<compile_context>
chip_gen: v6e
topology: v6e:2x2x1
jax: 0.10.0
libtpu: 0.0.40
codegen_flags: <defaults>
</compile_context>

<pallas_src>
import math

import numpy as np
import jax
import jax.numpy as jnp
from jax.experimental import pallas as pl
from jax.experimental.pallas import tpu as pltpu


def _round_up(x, m):
    return (x + m - 1) // m * m


# -----------------------------------------------------------------------------
# Fused conv1+conv2+conv3 kernel
# -----------------------------------------------------------------------------
def _conv_stack_kernel(x_ref, w1_ref, b1_ref, w2_ref, b2_ref, w3_ref, b3_ref,
                       o_ref):
    def conv_pool(blks, band_ref, bias_ref):
        """blks: 4 consecutive input-row blocks (M, K) bf16 = rows r0..r0+3.

        Returns relu(maxpool2x2(conv3x3)+bias) for the pooled row whose 2x2
        window covers conv rows r0+1, r0+2 (f32, (M, Wo*Cout)).
        Only 2 f32 accumulators (acc, out) are live at any time.
        """
        bias = bias_ref[...]
        out = None
        for ph in range(2):                       # conv-row parity in the pool window
            lcat = jnp.concatenate(blks[ph:ph + 3], axis=1)      # (M, 3*Kp) bf16
            for pw in range(2):                   # conv-col parity in the pool window
                acc = jnp.dot(lcat, band_ref[pw],
                              preferred_element_type=jnp.float32)
                out = acc if out is None else jnp.maximum(out, acc)
        return jnp.maximum(out + bias, 0.0)

    def shift_down(x):
        # out[(b, m)] = x[(b, m-1)], zero at m == 0 (per-image 4-row groups)
        z = jnp.zeros((1, x.shape[1]), x.dtype)
        sh = jnp.concatenate([z, x[:-1, :]], axis=0)
        r = jax.lax.broadcasted_iota(jnp.int32, x.shape, 0)
        return jnp.where(r % 4 == 0, jnp.zeros_like(sh), sh)

    def shift_up(x):
        # out[(b, m)] = x[(b, m+1)], zero at m == 3
        z = jnp.zeros((1, x.shape[1]), x.dtype)
        sh = jnp.concatenate([x[1:, :], z], axis=0)
        r = jax.lax.broadcasted_iota(jnp.int32, x.shape, 0)
        return jnp.where(r % 4 == 3, jnp.zeros_like(sh), sh)

    # ---- conv1: image row blocks Lo[s] = image row 8m+s-1, 128 lanes each ----
    Lo = [x_ref[:, s * 128:(s + 1) * 128] for s in range(10)]
    # p1[q][(b, m)] = conv1 pooled-output row 4m+q  (q = row index mod 4)
    p1 = [conv_pool(Lo[2 * q:2 * q + 4], w1_ref, b1_ref).astype(jnp.bfloat16)
          for q in range(4)]

    # ---- conv2: input row blocks blocks2[t] = conv1 row 4m+t-1 ----
    blocks2 = [shift_down(p1[3]), p1[0], p1[1], p1[2], p1[3], shift_up(p1[0])]
    p2e = conv_pool(blocks2[0:4], w2_ref, b2_ref).astype(jnp.bfloat16)  # row 2m
    p2o = conv_pool(blocks2[2:6], w2_ref, b2_ref).astype(jnp.bfloat16)  # row 2m+1

    # ---- conv3: input row blocks blocks3[t] = conv2 row 2m+t-1 ----
    blocks3 = [shift_down(p2o), p2e, p2o, shift_up(p2e)]
    p3 = conv_pool(blocks3, w3_ref, b3_ref)            # rows (b, i3), lanes (w, c)

    o_ref[...] = p3.astype(o_ref.dtype)


def conv_stack(x2d, prep, *, Bt):
    """x2d: (Npad*4, 1280) bf16 packed image slab -> (Npad*4, 256) bf16 features."""
    Mtot = x2d.shape[0]
    Mb = 4 * Bt
    grid = Mtot // Mb
    return pl.pallas_call(
        _conv_stack_kernel,
        out_shape=jax.ShapeDtypeStruct((Mtot, 256), jnp.bfloat16),
        grid_spec=pltpu.PrefetchScalarGridSpec(
            num_scalar_prefetch=0,
            grid=(grid,),
            in_specs=[
                pl.BlockSpec((Mb, 1280), lambda i: (i, 0)),
                pl.BlockSpec(prep["conv1_band"].shape, lambda i: (0, 0, 0)),
                pl.BlockSpec((1, 256), lambda i: (0, 0)),
                pl.BlockSpec(prep["conv2_band"].shape, lambda i: (0, 0, 0)),
                pl.BlockSpec((1, 256), lambda i: (0, 0)),
                pl.BlockSpec(prep["conv3_band"].shape, lambda i: (0, 0, 0)),
                pl.BlockSpec((1, 256), lambda i: (0, 0)),
            ],
            out_specs=pl.BlockSpec((Mb, 256), lambda i: (i, 0)),
        ),
        compiler_params=pltpu.CompilerParams(
            dimension_semantics=("parallel",)),
    )(x2d, prep["conv1_band"], prep["conv1_bias"],
      prep["conv2_band"], prep["conv2_bias"],
      prep["conv3_band"], prep["conv3_bias"])


# -----------------------------------------------------------------------------
# Fused fc1 + ReLU + fc2 kernel
# -----------------------------------------------------------------------------
def _fc_kernel(x_ref, w1_ref, b1_ref, w2_ref, b2_ref, o_ref):
    h = jnp.dot(x_ref[...], w1_ref[...], preferred_element_type=jnp.float32)
    h = jnp.maximum(h + b1_ref[...], 0.0)
    o_ref[...] = jnp.dot(h.astype(jnp.bfloat16), w2_ref[...],
                         preferred_element_type=jnp.float32) + b2_ref[...]


def fc_forward(x, w1, b1, w2, b2):
    Np, Din = x.shape
    Dh = w1.shape[1]
    Dop = w2.shape[1]
    if Np <= 512:
        TB = Np
    elif Np % 512 == 0:
        TB = 512
    elif Np % 256 == 0:
        TB = 256
    elif Np % 128 == 0:
        TB = 128
    else:
        TB = 64          # Np is always a multiple of 64 in this branch
    return pl.pallas_call(
        _fc_kernel,
        out_shape=jax.ShapeDtypeStruct((Np, Dop), jnp.float32),
        grid_spec=pltpu.PrefetchScalarGridSpec(
            num_scalar_prefetch=0,
            grid=(Np // TB,),
            in_specs=[
                pl.BlockSpec((TB, Din), lambda i: (i, 0)),
                pl.BlockSpec((Din, Dh), lambda i: (0, 0)),
                pl.BlockSpec((1, Dh), lambda i: (0, 0)),
                pl.BlockSpec((Dh, Dop), lambda i: (0, 0)),
                pl.BlockSpec((1, Dop), lambda i: (0, 0)),
            ],
            out_specs=pl.BlockSpec((TB, Dop), lambda i: (i, 0)),
        ),
        compiler_params=pltpu.CompilerParams(
            dimension_semantics=("parallel",)),
    )(x, w1, b1, w2, b2)


# -----------------------------------------------------------------------------
# Layout plumbing (tiny XLA ops, outside the kernels)
# -----------------------------------------------------------------------------
def _pack_input(x_nchw, Npad):
    """(N,3,32,32) -> (Npad*4, 1280) bf16 slab; row (b,m), block s = image row 8m+s-1."""
    N = x_nchw.shape[0]
    x = jnp.transpose(x_nchw, (0, 2, 3, 1)).reshape(N, 32, 96)     # NHWC rows (w,c)
    x = jnp.pad(x, ((0, Npad - N), (0, 0), (0, 32)))               # 128-lane rows
    x = jnp.pad(x, ((0, 0), (1, 7), (0, 0)))                       # padded rows p=actual+1
    a = x[:, 0:32, :].reshape(Npad, 4, 1024)                       # blocks 0..7
    b = (x[:, 8:40, :].reshape(Npad, 4, 8, 128)[:, :, 0:2, :]
         .reshape(Npad, 4, 256))                                   # blocks 8,9
    slab = jnp.concatenate([a, b], axis=2)                         # (Npad, 4, 1280)
    return slab.reshape(Npad * 4, 1280).astype(jnp.bfloat16)


# -----------------------------------------------------------------------------
# Parameters
# -----------------------------------------------------------------------------
def init_params(key):
    """PyTorch-layout params, uniform(-1/sqrt(fan_in), 1/sqrt(fan_in))."""
    ks = jax.random.split(key, 10)

    def u(k, shape, fan_in):
        bound = 1.0 / math.sqrt(fan_in)
        return jax.random.uniform(k, shape, jnp.float32, -bound, bound)

    return {
        "conv1_w": u(ks[0], (16, 3, 3, 3), 3 * 9),
        "conv1_b": u(ks[1], (16,), 3 * 9),
        "conv2_w": u(ks[2], (32, 16, 3, 3), 16 * 9),
        "conv2_b": u(ks[3], (32,), 16 * 9),
        "conv3_w": u(ks[4], (64, 32, 3, 3), 32 * 9),
        "conv3_b": u(ks[5], (64,), 32 * 9),
        "fc1_w":  u(ks[6], (1024, 256), 1024),   # (in, out), NCHW-flatten input order
        "fc1_b":  u(ks[7], (256,), 1024),
        "fc2_w":  u(ks[8], (256, 10), 256),
        "fc2_b":  u(ks[9], (10,), 256),
    }


def _build_conv_band(w, W):
    """Banded bf16 weights with kh folded into K.

    Returns (2, 3*Kp, Wo*Cout); band[pw, kh*Kp + w_in*Cin + ci, wo*Cout + co]
    = w[co, ci, kh, kw] with w_in = 2*wo + pw + kw - 1 (entries outside 0..W-1
    are zero -> horizontal padding is handled by the band itself, so input rows
    carry no left/right pad).
    """
    w = np.asarray(w, dtype=np.float32)               # (Cout, Cin, 3, 3)
    Cout, Cin = w.shape[0], w.shape[1]
    Wo = W // 2
    Kp = _round_up(W * Cin, 128)
    band = np.zeros((2, 3 * Kp, Wo * Cout), np.float32)
    for pw in range(2):
        for kh in range(3):
            for kw in range(3):
                for wo in range(Wo):
                    w_in = 2 * wo + pw + kw - 1
                    if 0 <= w_in < W:
                        band[pw,
                             kh * Kp + w_in * Cin: kh * Kp + (w_in + 1) * Cin,
                             wo * Cout: (wo + 1) * Cout] = w[:, :, kh, kw].T
    return jnp.asarray(band, dtype=jnp.bfloat16)


def prepare_params(params):
    """One-time conversion of PyTorch-layout params into kernel-ready tensors."""
    prep = {}
    for name, W in (("conv1", 32), ("conv2", 16), ("conv3", 8)):
        prep[f"{name}_band"] = _build_conv_band(params[f"{name}_w"], W)
        prep[f"{name}_bias"] = jnp.tile(params[f"{name}_b"], W // 2).reshape(1, -1)
    # fc1: permute rows from NCHW flatten order (c, h, w) to NHWC order (h, w, c)
    w1 = (params["fc1_w"].reshape(64, 4, 4, 256)
          .transpose(1, 2, 0, 3).reshape(1024, 256))
    prep["fc1_w"] = w1.astype(jnp.bfloat16)
    prep["fc1_b"] = params["fc1_b"].reshape(1, 256)
    # fc2: pad 10 -> 128 output lanes so the final store is lane-dense
    prep["fc2_w"] = jnp.pad(params["fc2_w"], ((0, 0), (0, 118))).astype(jnp.bfloat16)
    prep["fc2_b"] = jnp.pad(params["fc2_b"], (0, 118)).reshape(1, 128)
    return prep


# -----------------------------------------------------------------------------
# Forward pass (matches Network.forward in eval mode)
# -----------------------------------------------------------------------------
def forward(prep, x_nchw):
    # x_nchw: (N, 3, 32, 32) float32 (PyTorch layout); compute is NHWC internally.
    N = x_nchw.shape[0]
    Bt = 64 if N >= 64 else N            # images per grid step (M = 4*Bt rows)
    Npad = _round_up(N, Bt)

    x2d = _pack_input(x_nchw, Npad)                         # (Npad*4, 1280) bf16
    feat = conv_stack(x2d, prep, Bt=Bt)                     # (Npad*4, 256) bf16
    # Dropout(p=0.05/0.10/0.15): identity at inference.

    # Free row-major reshape: rows (b, i3) x lanes (w, c) -> (b, 1024) NHWC flatten.
    feat = feat.reshape(Npad, 1024)
    # Dropout(p=0.20) between fc1 and fc2: identity at inference (fused kernel).
    logits = fc_forward(feat, prep["fc1_w"], prep["fc1_b"],
                        prep["fc2_w"], prep["fc2_b"])
    return logits[:N, :10]


if __name__ == "__main__":
    key = jax.random.PRNGKey(0)
    pkey, xkey = jax.random.split(key)
    params = init_params(pkey)
    prep = prepare_params(params)
    # The 1024-wide classifier pins the input to (N, 3, 32, 32).
    x = jax.random.normal(xkey, (2, 3, 32, 32), dtype=jnp.float32)

    logits = jax.jit(forward)(prep, x)
    logits = jax.block_until_ready(logits)
    assert logits.shape == (2, 10), logits.shape
    print("KERNEL_OK")
</pallas_src>

<mosaic_0001>
module attributes {stable_mosaic.version = 11 : i64} {
  func.func @_conv_stack_kernel(%arg0: i32, %arg1: memref<8x1280xbf16, #tpu.memory_space<vmem>>, %arg2: memref<2x384x256xbf16, #tpu.memory_space<vmem>>, %arg3: memref<1x256xf32, #tpu.memory_space<vmem>>, %arg4: memref<2x768x256xbf16, #tpu.memory_space<vmem>>, %arg5: memref<1x256xf32, #tpu.memory_space<vmem>>, %arg6: memref<2x768x256xbf16, #tpu.memory_space<vmem>>, %arg7: memref<1x256xf32, #tpu.memory_space<vmem>>, %arg8: memref<8x256xbf16, #tpu.memory_space<vmem>>) attributes {dimension_semantics = [#tpu.dimension_semantics<parallel>], iteration_bounds = array<i64: 1>, scalar_prefetch = 0 : i64, scratch_operands = 0 : i64, tpu.core_type = #tpu.core_type<tc>, window_params = [{transform_indices = @transform_0, window_bounds = array<i64: 8, 1280>}, {pipeline_mode = #tpu.pipeline_mode<synchronous>, transform_indices = @transform_1, window_bounds = array<i64: 2, 384, 256>}, {pipeline_mode = #tpu.pipeline_mode<synchronous>, transform_indices = @transform_2, window_bounds = array<i64: 1, 256>}, {pipeline_mode = #tpu.pipeline_mode<synchronous>, transform_indices = @transform_3, window_bounds = array<i64: 2, 768, 256>}, {pipeline_mode = #tpu.pipeline_mode<synchronous>, transform_indices = @transform_4, window_bounds = array<i64: 1, 256>}, {pipeline_mode = #tpu.pipeline_mode<synchronous>, transform_indices = @transform_5, window_bounds = array<i64: 2, 768, 256>}, {pipeline_mode = #tpu.pipeline_mode<synchronous>, transform_indices = @transform_6, window_bounds = array<i64: 1, 256>}, {transform_indices = @transform_7, window_bounds = array<i64: 8, 256>}]} {
    %c0 = arith.constant 0 : index
    %c0_0 = arith.constant 0 : index
    %0 = vector.load %arg1[%c0, %c0_0] : memref<8x1280xbf16, #tpu.memory_space<vmem>>, vector<8x128xbf16>
    %c0_1 = arith.constant 0 : index
    %c128 = arith.constant 128 : index
    %1 = vector.load %arg1[%c0_1, %c128] : memref<8x1280xbf16, #tpu.memory_space<vmem>>, vector<8x128xbf16>
    %c0_2 = arith.constant 0 : index
    %c256 = arith.constant 256 : index
    %2 = vector.load %arg1[%c0_2, %c256] : memref<8x1280xbf16, #tpu.memory_space<vmem>>, vector<8x128xbf16>
    %c0_3 = arith.constant 0 : index
    %c384 = arith.constant 384 : index
    %3 = vector.load %arg1[%c0_3, %c384] : memref<8x1280xbf16, #tpu.memory_space<vmem>>, vector<8x128xbf16>
    %c0_4 = arith.constant 0 : index
    %c512 = arith.constant 512 : index
    %4 = vector.load %arg1[%c0_4, %c512] : memref<8x1280xbf16, #tpu.memory_space<vmem>>, vector<8x128xbf16>
    %c0_5 = arith.constant 0 : index
    %c640 = arith.constant 640 : index
    %5 = vector.load %arg1[%c0_5, %c640] : memref<8x1280xbf16, #tpu.memory_space<vmem>>, vector<8x128xbf16>
    %c0_6 = arith.constant 0 : index
    %c768 = arith.constant 768 : index
    %6 = vector.load %arg1[%c0_6, %c768] : memref<8x1280xbf16, #tpu.memory_space<vmem>>, vector<8x128xbf16>
    %c0_7 = arith.constant 0 : index
    %c896 = arith.constant 896 : index
    %7 = vector.load %arg1[%c0_7, %c896] : memref<8x1280xbf16, #tpu.memory_space<vmem>>, vector<8x128xbf16>
    %c0_8 = arith.constant 0 : index
    %c1024 = arith.constant 1024 : index
    %8 = vector.load %arg1[%c0_8, %c1024] : memref<8x1280xbf16, #tpu.memory_space<vmem>>, vector<8x128xbf16>
    %c0_9 = arith.constant 0 : index
    %c1152 = arith.constant 1152 : index
    %9 = vector.load %arg1[%c0_9, %c1152] : memref<8x1280xbf16, #tpu.memory_space<vmem>>, vector<8x128xbf16>
    %c0_10 = arith.constant 0 : index
    %c0_11 = arith.constant 0 : index
    %10 = vector.load %arg3[%c0_10, %c0_11] : memref<1x256xf32, #tpu.memory_space<vmem>>, vector<1x256xf32>
    %11 = tpu.concatenate %0, %1, %2 in 1 : vector<8x128xbf16>, vector<8x128xbf16>, vector<8x128xbf16> -> vector<8x384xbf16>
    %c0_12 = arith.constant 0 : index
    %c0_13 = arith.constant 0 : index
    %c0_14 = arith.constant 0 : index
    %12 = vector.load %arg2[%c0_12, %c0_13, %c0_14] : memref<2x384x256xbf16, #tpu.memory_space<vmem>>, vector<1x384x256xbf16>
    %13 = vector.shape_cast %12 : vector<1x384x256xbf16> to vector<384x256xbf16>
    %cst = arith.constant dense<0.000000e+00> : vector<8x256xf32>
    %14 = tpu.matmul %11, %13, %cst {dimension_numbers = #tpu.dot_dimension_numbers<[1], [0], [0], [1], [0, 0, 1, 1], [], []>} : vector<8x384xbf16>, vector<384x256xbf16>, vector<8x256xf32> -> vector<8x256xf32>
    %c1 = arith.constant 1 : index
    %c0_15 = arith.constant 0 : index
    %c0_16 = arith.constant 0 : index
    %15 = vector.load %arg2[%c1, %c0_15, %c0_16] : memref<2x384x256xbf16, #tpu.memory_space<vmem>>, vector<1x384x256xbf16>
    %16 = vector.shape_cast %15 : vector<1x384x256xbf16> to vector<384x256xbf16>
    %cst_17 = arith.constant dense<0.000000e+00> : vector<8x256xf32>
    %17 = tpu.matmul %11, %16, %cst_17 {dimension_numbers = #tpu.dot_dimension_numbers<[1], [0], [0], [1], [0, 0, 1, 1], [], []>} : vector<8x384xbf16>, vector<384x256xbf16>, vector<8x256xf32> -> vector<8x256xf32>
    %18 = arith.maximumf %14, %17 : vector<8x256xf32>
    %19 = tpu.concatenate %1, %2, %3 in 1 : vector<8x128xbf16>, vector<8x128xbf16>, vector<8x128xbf16> -> vector<8x384xbf16>
    %c0_18 = arith.constant 0 : index
    %c0_19 = arith.constant 0 : index
    %c0_20 = arith.constant 0 : index
    %20 = vector.load %arg2[%c0_18, %c0_19, %c0_20] : memref<2x384x256xbf16, #tpu.memory_space<vmem>>, vector<1x384x256xbf16>
    %21 = vector.shape_cast %20 : vector<1x384x256xbf16> to vector<384x256xbf16>
    %cst_21 = arith.constant dense<0.000000e+00> : vector<8x256xf32>
    %22 = tpu.matmul %19, %21, %cst_21 {dimension_numbers = #tpu.dot_dimension_numbers<[1], [0], [0], [1], [0, 0, 1, 1], [], []>} : vector<8x384xbf16>, vector<384x256xbf16>, vector<8x256xf32> -> vector<8x256xf32>
    %23 = arith.maximumf %18, %22 : vector<8x256xf32>
    %c1_22 = arith.constant 1 : index
    %c0_23 = arith.constant 0 : index
    %c0_24 = arith.constant 0 : index
    %24 = vector.load %arg2[%c1_22, %c0_23, %c0_24] : memref<2x384x256xbf16, #tpu.memory_space<vmem>>, vector<1x384x256xbf16>
    %25 = vector.shape_cast %24 : vector<1x384x256xbf16> to vector<384x256xbf16>
    %cst_25 = arith.constant dense<0.000000e+00> : vector<8x256xf32>
    %26 = tpu.matmul %19, %25, %cst_25 {dimension_numbers = #tpu.dot_dimension_numbers<[1], [0], [0], [1], [0, 0, 1, 1], [], []>} : vector<8x384xbf16>, vector<384x256xbf16>, vector<8x256xf32> -> vector<8x256xf32>
    %27 = arith.maximumf %23, %26 : vector<8x256xf32>
    %28 = vector.broadcast %10 : vector<1x256xf32> to vector<8x256xf32>
    %29 = arith.addf %27, %28 : vector<8x256xf32>
    %cst_26 = arith.constant 0.000000e+00 : f32
    %30 = vector.broadcast %cst_26 : f32 to vector<8x256xf32>
    %31 = arith.maximumf %29, %30 : vector<8x256xf32>
    %32 = arith.truncf %31 : vector<8x256xf32> to vector<8x256xbf16>
    %c0_27 = arith.constant 0 : index
    %c0_28 = arith.constant 0 : index
    %33 = vector.load %arg3[%c0_27, %c0_28] : memref<1x256xf32, #tpu.memory_space<vmem>>, vector<1x256xf32>
    %34 = tpu.concatenate %2, %3, %4 in 1 : vector<8x128xbf16>, vector<8x128xbf16>, vector<8x128xbf16> -> vector<8x384xbf16>
    %c0_29 = arith.constant 0 : index
    %c0_30 = arith.constant 0 : index
    %c0_31 = arith.constant 0 : index
    %35 = vector.load %arg2[%c0_29, %c0_30, %c0_31] : memref<2x384x256xbf16, #tpu.memory_space<vmem>>, vector<1x384x256xbf16>
    %36 = vector.shape_cast %35 : vector<1x384x256xbf16> to vector<384x256xbf16>
    %cst_32 = arith.constant dense<0.000000e+00> : vector<8x256xf32>
    %37 = tpu.matmul %34, %36, %cst_32 {dimension_numbers = #tpu.dot_dimension_numbers<[1], [0], [0], [1], [0, 0, 1, 1], [], []>} : vector<8x384xbf16>, vector<384x256xbf16>, vector<8x256xf32> -> vector<8x256xf32>
    %c1_33 = arith.constant 1 : index
    %c0_34 = arith.constant 0 : index
    %c0_35 = arith.constant 0 : index
    %38 = vector.load %arg2[%c1_33, %c0_34, %c0_35] : memref<2x384x256xbf16, #tpu.memory_space<vmem>>, vector<1x384x256xbf16>
    %39 = vector.shape_cast %38 : vector<1x384x256xbf16> to vector<384x256xbf16>
    %cst_36 = arith.constant dense<0.000000e+00> : vector<8x256xf32>
    %40 = tpu.matmul %34, %39, %cst_36 {dimension_numbers = #tpu.dot_dimension_numbers<[1], [0], [0], [1], [0, 0, 1, 1], [], []>} : vector<8x384xbf16>, vector<384x256xbf16>, vector<8x256xf32> -> vector<8x256xf32>
    %41 = arith.maximumf %37, %40 : vector<8x256xf32>
    %42 = tpu.concatenate %3, %4, %5 in 1 : vector<8x128xbf16>, vector<8x128xbf16>, vector<8x128xbf16> -> vector<8x384xbf16>
    %c0_37 = arith.constant 0 : index
    %c0_38 = arith.constant 0 : index
    %c0_39 = arith.constant 0 : index
    %43 = vector.load %arg2[%c0_37, %c0_38, %c0_39] : memref<2x384x256xbf16, #tpu.memory_space<vmem>>, vector<1x384x256xbf16>
    %44 = vector.shape_cast %43 : vector<1x384x256xbf16> to vector<384x256xbf16>
    %cst_40 = arith.constant dense<0.000000e+00> : vector<8x256xf32>
    %45 = tpu.matmul %42, %44, %cst_40 {dimension_numbers = #tpu.dot_dimension_numbers<[1], [0], [0], [1], [0, 0, 1, 1], [], []>} : vector<8x384xbf16>, vector<384x256xbf16>, vector<8x256xf32> -> vector<8x256xf32>
    %46 = arith.maximumf %41, %45 : vector<8x256xf32>
    %c1_41 = arith.constant 1 : index
    %c0_42 = arith.constant 0 : index
    %c0_43 = arith.constant 0 : index
    %47 = vector.load %arg2[%c1_41, %c0_42, %c0_43] : memref<2x384x256xbf16, #tpu.memory_space<vmem>>, vector<1x384x256xbf16>
    %48 = vector.shape_cast %47 : vector<1x384x256xbf16> to vector<384x256xbf16>
    %cst_44 = arith.constant dense<0.000000e+00> : vector<8x256xf32>
    %49 = tpu.matmul %42, %48, %cst_44 {dimension_numbers = #tpu.dot_dimension_numbers<[1], [0], [0], [1], [0, 0, 1, 1], [], []>} : vector<8x384xbf16>, vector<384x256xbf16>, vector<8x256xf32> -> vector<8x256xf32>
    %50 = arith.maximumf %46, %49 : vector<8x256xf32>
    %51 = vector.broadcast %33 : vector<1x256xf32> to vector<8x256xf32>
    %52 = arith.addf %50, %51 : vector<8x256xf32>
    %cst_45 = arith.constant 0.000000e+00 : f32
    %53 = vector.broadcast %cst_45 : f32 to vector<8x256xf32>
    %54 = arith.maximumf %52, %53 : vector<8x256xf32>
    %55 = arith.truncf %54 : vector<8x256xf32> to vector<8x256xbf16>
    %c0_46 = arith.constant 0 : index
    %c0_47 = arith.constant 0 : index
    %56 = vector.load %arg3[%c0_46, %c0_47] : memref<1x256xf32, #tpu.memory_space<vmem>>, vector<1x256xf32>
    %57 = tpu.concatenate %4, %5, %6 in 1 : vector<8x128xbf16>, vector<8x128xbf16>, vector<8x128xbf16> -> vector<8x384xbf16>
    %c0_48 = arith.constant 0 : index
    %c0_49 = arith.constant 0 : index
    %c0_50 = arith.constant 0 : index
    %58 = vector.load %arg2[%c0_48, %c0_49, %c0_50] : memref<2x384x256xbf16, #tpu.memory_space<vmem>>, vector<1x384x256xbf16>
    %59 = vector.shape_cast %58 : vector<1x384x256xbf16> to vector<384x256xbf16>
    %cst_51 = arith.constant dense<0.000000e+00> : vector<8x256xf32>
    %60 = tpu.matmul %57, %59, %cst_51 {dimension_numbers = #tpu.dot_dimension_numbers<[1], [0], [0], [1], [0, 0, 1, 1], [], []>} : vector<8x384xbf16>, vector<384x256xbf16>, vector<8x256xf32> -> vector<8x256xf32>
    %c1_52 = arith.constant 1 : index
    %c0_53 = arith.constant 0 : index
    %c0_54 = arith.constant 0 : index
    %61 = vector.load %arg2[%c1_52, %c0_53, %c0_54] : memref<2x384x256xbf16, #tpu.memory_space<vmem>>, vector<1x384x256xbf16>
    %62 = vector.shape_cast %61 : vector<1x384x256xbf16> to vector<384x256xbf16>
    %cst_55 = arith.constant dense<0.000000e+00> : vector<8x256xf32>
    %63 = tpu.matmul %57, %62, %cst_55 {dimension_numbers = #tpu.dot_dimension_numbers<[1], [0], [0], [1], [0, 0, 1, 1], [], []>} : vector<8x384xbf16>, vector<384x256xbf16>, vector<8x256xf32> -> vector<8x256xf32>
    %64 = arith.maximumf %60, %63 : vector<8x256xf32>
    %65 = tpu.concatenate %5, %6, %7 in 1 : vector<8x128xbf16>, vector<8x128xbf16>, vector<8x128xbf16> -> vector<8x384xbf16>
    %c0_56 = arith.constant 0 : index
    %c0_57 = arith.constant 0 : index
    %c0_58 = arith.constant 0 : index
    %66 = vector.load %arg2[%c0_56, %c0_57, %c0_58] : memref<2x384x256xbf16, #tpu.memory_space<vmem>>, vector<1x384x256xbf16>
    %67 = vector.shape_cast %66 : vector<1x384x256xbf16> to vector<384x256xbf16>
    %cst_59 = arith.constant dense<0.000000e+00> : vector<8x256xf32>
    %68 = tpu.matmul %65, %67, %cst_59 {dimension_numbers = #tpu.dot_dimension_numbers<[1], [0], [0], [1], [0, 0, 1, 1], [], []>} : vector<8x384xbf16>, vector<384x256xbf16>, vector<8x256xf32> -> vector<8x256xf32>
    %69 = arith.maximumf %64, %68 : vector<8x256xf32>
    %c1_60 = arith.constant 1 : index
    %c0_61 = arith.constant 0 : index
    %c0_62 = arith.constant 0 : index
    %70 = vector.load %arg2[%c1_60, %c0_61, %c0_62] : memref<2x384x256xbf16, #tpu.memory_space<vmem>>, vector<1x384x256xbf16>
    %71 = vector.shape_cast %70 : vector<1x384x256xbf16> to vector<384x256xbf16>
    %cst_63 = arith.constant dense<0.000000e+00> : vector<8x256xf32>
    %72 = tpu.matmul %65, %71, %cst_63 {dimension_numbers = #tpu.dot_dimension_numbers<[1], [0], [0], [1], [0, 0, 1, 1], [], []>} : vector<8x384xbf16>, vector<384x256xbf16>, vector<8x256xf32> -> vector<8x256xf32>
    %73 = arith.maximumf %69, %72 : vector<8x256xf32>
    %74 = vector.broadcast %56 : vector<1x256xf32> to vector<8x256xf32>
    %75 = arith.addf %73, %74 : vector<8x256xf32>
    %cst_64 = arith.constant 0.000000e+00 : f32
    %76 = vector.broadcast %cst_64 : f32 to vector<8x256xf32>
    %77 = arith.maximumf %75, %76 : vector<8x256xf32>
    %78 = arith.truncf %77 : vector<8x256xf32> to vector<8x256xbf16>
    %c0_65 = arith.constant 0 : index
    %c0_66 = arith.constant 0 : index
    %79 = vector.load %arg3[%c0_65, %c0_66] : memref<1x256xf32, #tpu.memory_space<vmem>>, vector<1x256xf32>
    %80 = tpu.concatenate %6, %7, %8 in 1 : vector<8x128xbf16>, vector<8x128xbf16>, vector<8x128xbf16> -> vector<8x384xbf16>
    %c0_67 = arith.constant 0 : index
    %c0_68 = arith.constant 0 : index
    %c0_69 = arith.constant 0 : index
    %81 = vector.load %arg2[%c0_67, %c0_68, %c0_69] : memref<2x384x256xbf16, #tpu.memory_space<vmem>>, vector<1x384x256xbf16>
    %82 = vector.shape_cast %81 : vector<1x384x256xbf16> to vector<384x256xbf16>
    %cst_70 = arith.constant dense<0.000000e+00> : vector<8x256xf32>
    %83 = tpu.matmul %80, %82, %cst_70 {dimension_numbers = #tpu.dot_dimension_numbers<[1], [0], [0], [1], [0, 0, 1, 1], [], []>} : vector<8x384xbf16>, vector<384x256xbf16>, vector<8x256xf32> -> vector<8x256xf32>
    %c1_71 = arith.constant 1 : index
    %c0_72 = arith.constant 0 : index
    %c0_73 = arith.constant 0 : index
    %84 = vector.load %arg2[%c1_71, %c0_72, %c0_73] : memref<2x384x256xbf16, #tpu.memory_space<vmem>>, vector<1x384x256xbf16>
    %85 = vector.shape_cast %84 : vector<1x384x256xbf16> to vector<384x256xbf16>
    %cst_74 = arith.constant dense<0.000000e+00> : vector<8x256xf32>
    %86 = tpu.matmul %80, %85, %cst_74 {dimension_numbers = #tpu.dot_dimension_numbers<[1], [0], [0], [1], [0, 0, 1, 1], [], []>} : vector<8x384xbf16>, vector<384x256xbf16>, vector<8x256xf32> -> vector<8x256xf32>
    %87 = arith.maximumf %83, %86 : vector<8x256xf32>
    %88 = tpu.concatenate %7, %8, %9 in 1 : vector<8x128xbf16>, vector<8x128xbf16>, vector<8x128xbf16> -> vector<8x384xbf16>
    %c0_75 = arith.constant 0 : index
    %c0_76 = arith.constant 0 : index
    %c0_77 = arith.constant 0 : index
    %89 = vector.load %arg2[%c0_75, %c0_76, %c0_77] : memref<2x384x256xbf16, #tpu.memory_space<vmem>>, vector<1x384x256xbf16>
    %90 = vector.shape_cast %89 : vector<1x384x256xbf16> to vector<384x256xbf16>
    %cst_78 = arith.constant dense<0.000000e+00> : vector<8x256xf32>
    %91 = tpu.matmul %88, %90, %cst_78 {dimension_numbers = #tpu.dot_dimension_numbers<[1], [0], [0], [1], [0, 0, 1, 1], [], []>} : vector<8x384xbf16>, vector<384x256xbf16>, vector<8x256xf32> -> vector<8x256xf32>
    %92 = arith.maximumf %87, %91 : vector<8x256xf32>
    %c1_79 = arith.constant 1 : index
    %c0_80 = arith.constant 0 : index
    %c0_81 = arith.constant 0 : index
    %93 = vector.load %arg2[%c1_79, %c0_80, %c0_81] : memref<2x384x256xbf16, #tpu.memory_space<vmem>>, vector<1x384x256xbf16>
    %94 = vector.shape_cast %93 : vector<1x384x256xbf16> to vector<384x256xbf16>
    %cst_82 = arith.constant dense<0.000000e+00> : vector<8x256xf32>
    %95 = tpu.matmul %88, %94, %cst_82 {dimension_numbers = #tpu.dot_dimension_numbers<[1], [0], [0], [1], [0, 0, 1, 1], [], []>} : vector<8x384xbf16>, vector<384x256xbf16>, vector<8x256xf32> -> vector<8x256xf32>
    %96 = arith.maximumf %92, %95 : vector<8x256xf32>
    %97 = vector.broadcast %79 : vector<1x256xf32> to vector<8x256xf32>
    %98 = arith.addf %96, %97 : vector<8x256xf32>
    %cst_83 = arith.constant 0.000000e+00 : f32
    %99 = vector.broadcast %cst_83 : f32 to vector<8x256xf32>
    %100 = arith.maximumf %98, %99 : vector<8x256xf32>
    %101 = arith.truncf %100 : vector<8x256xf32> to vector<8x256xbf16>
    %cst_84 = arith.constant 0.000000e+00 : bf16
    %102 = vector.broadcast %cst_84 : bf16 to vector<1x256xbf16>
    %103 = vector.extract_strided_slice %101 {offsets = [0, 0], sizes = [7, 256], strides = [1, 1]} : vector<8x256xbf16> to vector<7x256xbf16>
    %104 = tpu.concatenate %102, %103 in 0 : vector<1x256xbf16>, vector<7x256xbf16> -> vector<8x256xbf16>
    %105 = tpu.iota {dimensions = array<i32: 0>} : vector<8x256xi32>
    %c4_i32 = arith.constant 4 : i32
    %c0_i32 = arith.constant 0 : i32
    %106 = arith.cmpi eq, %c4_i32, %c0_i32 : i32
    %c1_i32 = arith.constant 1 : i32
    %107 = arith.select %106, %c1_i32, %c4_i32 : i32
    %108 = vector.broadcast %107 : i32 to vector<8x256xi32>
    %109 = arith.remsi %105, %108 : vector<8x256xi32>
    %c0_i32_85 = arith.constant 0 : i32
    %110 = vector.broadcast %c0_i32_85 : i32 to vector<8x256xi32>
    %111 = arith.cmpi ne, %109, %110 : vector<8x256xi32>
    %c0_i32_86 = arith.constant 0 : i32
    %112 = vector.broadcast %c0_i32_86 : i32 to vector<8x256xi32>
    %113 = arith.cmpi slt, %109, %112 : vector<8x256xi32>
    %c0_i32_87 = arith.constant 0 : i32
    %114 = arith.cmpi slt, %107, %c0_i32_87 : i32
    %115 = vector.broadcast %114 : i1 to vector<8x256xi1>
    %116 = vector.broadcast %115 : vector<8x256xi1> to vector<8x256xi1>
    %117 = arith.xori %113, %116 : vector<8x256xi1>
    %118 = arith.andi %117, %111 : vector<8x256xi1>
    %119 = vector.broadcast %107 : i32 to vector<8x256xi32>
    %120 = arith.addi %109, %119 : vector<8x256xi32>
    %121 = arith.select %118, %120, %109 : vector<8x256xi1>, vector<8x256xi32>
    %c0_i32_88 = arith.constant 0 : i32
    %122 = vector.broadcast %c0_i32_88 : i32 to vector<8x256xi32>
    %123 = arith.cmpi eq, %121, %122 : vector<8x256xi32>
    %cst_89 = arith.constant 0.000000e+00 : bf16
    %124 = vector.broadcast %cst_89 : bf16 to vector<8x256xbf16>
    %125 = arith.select %123, %124, %104 : vector<8x256xi1>, vector<8x256xbf16>
    %cst_90 = arith.constant 0.000000e+00 : bf16
    %126 = vector.broadcast %cst_90 : bf16 to vector<1x256xbf16>
    %127 = vector.extract_strided_slice %32 {offsets = [1, 0], sizes = [7, 256], strides = [1, 1]} : vector<8x256xbf16> to vector<7x256xbf16>
    %128 = tpu.concatenate %127, %126 in 0 : vector<7x256xbf16>, vector<1x256xbf16> -> vector<8x256xbf16>
    %129 = tpu.iota {dimensions = array<i32: 0>} : vector<8x256xi32>
    %c4_i32_91 = arith.constant 4 : i32
    %c0_i32_92 = arith.constant 0 : i32
    %130 = arith.cmpi eq, %c4_i32_91, %c0_i32_92 : i32
    %c1_i32_93 = arith.constant 1 : i32
    %131 = arith.select %130, %c1_i32_93, %c4_i32_91 : i32
    %132 = vector.broadcast %131 : i32 to vector<8x256xi32>
    %133 = arith.remsi %129, %132 : vector<8x256xi32>
    %c0_i32_94 = arith.constant 0 : i32
    %134 = vector.broadcast %c0_i32_94 : i32 to vector<8x256xi32>
    %135 = arith.cmpi ne, %133, %134 : vector<8x256xi32>
    %c0_i32_95 = arith.constant 0 : i32
    %136 = vector.broadcast %c0_i32_95 : i32 to vector<8x256xi32>
    %137 = arith.cmpi slt, %133, %136 : vector<8x256xi32>
    %c0_i32_96 = arith.constant 0 : i32
    %138 = arith.cmpi slt, %131, %c0_i32_96 : i32
    %139 = vector.broadcast %138 : i1 to vector<8x256xi1>
    %140 = vector.broadcast %139 : vector<8x256xi1> to vector<8x256xi1>
    %141 = arith.xori %137, %140 : vector<8x256xi1>
    %142 = arith.andi %141, %135 : vector<8x256xi1>
    %143 = vector.broadcast %131 : i32 to vector<8x256xi32>
    %144 = arith.addi %133, %143 : vector<8x256xi32>
    %145 = arith.select %142, %144, %133 : vector<8x256xi1>, vector<8x256xi32>
    %c3_i32 = arith.constant 3 : i32
    %146 = vector.broadcast %c3_i32 : i32 to vector<8x256xi32>
    %147 = arith.cmpi eq, %145, %146 : vector<8x256xi32>
    %cst_97 = arith.constant 0.000000e+00 : bf16
    %148 = vector.broadcast %cst_97 : bf16 to vector<8x256xbf16>
    %149 = arith.select %147, %148, %128 : vector<8x256xi1>, vector<8x256xbf16>
    %c0_98 = arith.constant 0 : index
    %c0_99 = arith.constant 0 : index
    %150 = vector.load %arg5[%c0_98, %c0_99] : memref<1x256xf32, #tpu.memory_space<vmem>>, vector<1x256xf32>
    %151 = tpu.concatenate %125, %32, %55 in 1 : vector<8x256xbf16>, vector<8x256xbf16>, vector<8x256xbf16> -> vector<8x768xbf16>
    %c0_100 = arith.constant 0 : index
    %c0_101 = arith.constant 0 : index
    %c0_102 = arith.constant 0 : index
    %152 = vector.load %arg4[%c0_100, %c0_101, %c0_102] : memref<2x768x256xbf16, #tpu.memory_space<vmem>>, vector<1x768x256xbf16>
    %153 = vector.shape_cast %152 : vector<1x768x256xbf16> to vector<768x256xbf16>
    %cst_103 = arith.constant dense<0.000000e+00> : vector<8x256xf32>
    %154 = tpu.matmul %151, %153, %cst_103 {dimension_numbers = #tpu.dot_dimension_numbers<[1], [0], [0], [1], [0, 0, 1, 1], [], []>} : vector<8x768xbf16>, vector<768x256xbf16>, vector<8x256xf32> -> vector<8x256xf32>
    %c1_104 = arith.constant 1 : index
    %c0_105 = arith.constant 0 : index
    %c0_106 = arith.constant 0 : index
    %155 = vector.load %arg4[%c1_104, %c0_105, %c0_106] : memref<2x768x256xbf16, #tpu.memory_space<vmem>>, vector<1x768x256xbf16>
    %156 = vector.shape_cast %155 : vector<1x768x256xbf16> to vector<768x256xbf16>
    %cst_107 = arith.constant dense<0.000000e+00> : vector<8x256xf32>
    %157 = tpu.matmul %151, %156, %cst_107 {dimension_numbers = #tpu.dot_dimension_numbers<[1], [0], [0], [1], [0, 0, 1, 1], [], []>} : vector<8x768xbf16>, vector<768x256xbf16>, vector<8x256xf32> -> vector<8x256xf32>
    %158 = arith.maximumf %154, %157 : vector<8x256xf32>
    %159 = tpu.concatenate %32, %55, %78 in 1 : vector<8x256xbf16>, vector<8x256xbf16>, vector<8x256xbf16> -> vector<8x768xbf16>
    %c0_108 = arith.constant 0 : index
    %c0_109 = arith.constant 0 : index
    %c0_110 = arith.constant 0 : index
    %160 = vector.load %arg4[%c0_108, %c0_109, %c0_110] : memref<2x768x256xbf16, #tpu.memory_space<vmem>>, vector<1x768x256xbf16>
    %161 = vector.shape_cast %160 : vector<1x768x256xbf16> to vector<768x256xbf16>
    %cst_111 = arith.constant dense<0.000000e+00> : vector<8x256xf32>
    %162 = tpu.matmul %159, %161, %cst_111 {dimension_numbers = #tpu.dot_dimension_numbers<[1], [0], [0], [1], [0, 0, 1, 1], [], []>} : vector<8x768xbf16>, vector<768x256xbf16>, vector<8x256xf32> -> vector<8x256xf32>
    %163 = arith.maximumf %158, %162 : vector<8x256xf32>
    %c1_112 = arith.constant 1 : index
    %c0_113 = arith.constant 0 : index
    %c0_114 = arith.constant 0 : index
    %164 = vector.load %arg4[%c1_112, %c0_113, %c0_114] : memref<2x768x256xbf16, #tpu.memory_space<vmem>>, vector<1x768x256xbf16>
    %165 = vector.shape_cast %164 : vector<1x768x256xbf16> to vector<768x256xbf16>
    %cst_115 = arith.constant dense<0.000000e+00> : vector<8x256xf32>
    %166 = tpu.matmul %159, %165, %cst_115 {dimension_numbers = #tpu.dot_dimension_numbers<[1], [0], [0], [1], [0, 0, 1, 1], [], []>} : vector<8x768xbf16>, vector<768x256xbf16>, vector<8x256xf32> -> vector<8x256xf32>
    %167 = arith.maximumf %163, %166 : vector<8x256xf32>
    %168 = vector.broadcast %150 : vector<1x256xf32> to vector<8x256xf32>
    %169 = arith.addf %167, %168 : vector<8x256xf32>
    %cst_116 = arith.constant 0.000000e+00 : f32
    %170 = vector.broadcast %cst_116 : f32 to vector<8x256xf32>
    %171 = arith.maximumf %169, %170 : vector<8x256xf32>
    %172 = arith.truncf %171 : vector<8x256xf32> to vector<8x256xbf16>
    %c0_117 = arith.constant 0 : index
    %c0_118 = arith.constant 0 : index
    %173 = vector.load %arg5[%c0_117, %c0_118] : memref<1x256xf32, #tpu.memory_space<vmem>>, vector<1x256xf32>
    %174 = tpu.concatenate %55, %78, %101 in 1 : vector<8x256xbf16>, vector<8x256xbf16>, vector<8x256xbf16> -> vector<8x768xbf16>
    %c0_119 = arith.constant 0 : index
    %c0_120 = arith.constant 0 : index
    %c0_121 = arith.constant 0 : index
    %175 = vector.load %arg4[%c0_119, %c0_120, %c0_121] : memref<2x768x256xbf16, #tpu.memory_space<vmem>>, vector<1x768x256xbf16>
    %176 = vector.shape_cast %175 : vector<1x768x256xbf16> to vector<768x256xbf16>
    %cst_122 = arith.constant dense<0.000000e+00> : vector<8x256xf32>
    %177 = tpu.matmul %174, %176, %cst_122 {dimension_numbers = #tpu.dot_dimension_numbers<[1], [0], [0], [1], [0, 0, 1, 1], [], []>} : vector<8x768xbf16>, vector<768x256xbf16>, vector<8x256xf32> -> vector<8x256xf32>
    %c1_123 = arith.constant 1 : index
    %c0_124 = arith.constant 0 : index
    %c0_125 = arith.constant 0 : index
    %178 = vector.load %arg4[%c1_123, %c0_124, %c0_125] : memref<2x768x256xbf16, #tpu.memory_space<vmem>>, vector<1x768x256xbf16>
    %179 = vector.shape_cast %178 : vector<1x768x256xbf16> to vector<768x256xbf16>
    %cst_126 = arith.constant dense<0.000000e+00> : vector<8x256xf32>
    %180 = tpu.matmul %174, %179, %cst_126 {dimension_numbers = #tpu.dot_dimension_numbers<[1], [0], [0], [1], [0, 0, 1, 1], [], []>} : vector<8x768xbf16>, vector<768x256xbf16>, vector<8x256xf32> -> vector<8x256xf32>
    %181 = arith.maximumf %177, %180 : vector<8x256xf32>
    %182 = tpu.concatenate %78, %101, %149 in 1 : vector<8x256xbf16>, vector<8x256xbf16>, vector<8x256xbf16> -> vector<8x768xbf16>
    %c0_127 = arith.constant 0 : index
    %c0_128 = arith.constant 0 : index
    %c0_129 = arith.constant 0 : index
    %183 = vector.load %arg4[%c0_127, %c0_128, %c0_129] : memref<2x768x256xbf16, #tpu.memory_space<vmem>>, vector<1x768x256xbf16>
    %184 = vector.shape_cast %183 : vector<1x768x256xbf16> to vector<768x256xbf16>
    %cst_130 = arith.constant dense<0.000000e+00> : vector<8x256xf32>
    %185 = tpu.matmul %182, %184, %cst_130 {dimension_numbers = #tpu.dot_dimension_numbers<[1], [0], [0], [1], [0, 0, 1, 1], [], []>} : vector<8x768xbf16>, vector<768x256xbf16>, vector<8x256xf32> -> vector<8x256xf32>
    %186 = arith.maximumf %181, %185 : vector<8x256xf32>
    %c1_131 = arith.constant 1 : index
    %c0_132 = arith.constant 0 : index
    %c0_133 = arith.constant 0 : index
    %187 = vector.load %arg4[%c1_131, %c0_132, %c0_133] : memref<2x768x256xbf16, #tpu.memory_space<vmem>>, vector<1x768x256xbf16>
    %188 = vector.shape_cast %187 : vector<1x768x256xbf16> to vector<768x256xbf16>
    %cst_134 = arith.constant dense<0.000000e+00> : vector<8x256xf32>
    %189 = tpu.matmul %182, %188, %cst_134 {dimension_numbers = #tpu.dot_dimension_numbers<[1], [0], [0], [1], [0, 0, 1, 1], [], []>} : vector<8x768xbf16>, vector<768x256xbf16>, vector<8x256xf32> -> vector<8x256xf32>
    %190 = arith.maximumf %186, %189 : vector<8x256xf32>
    %191 = vector.broadcast %173 : vector<1x256xf32> to vector<8x256xf32>
    %192 = arith.addf %190, %191 : vector<8x256xf32>
    %cst_135 = arith.constant 0.000000e+00 : f32
    %193 = vector.broadcast %cst_135 : f32 to vector<8x256xf32>
    %194 = arith.maximumf %192, %193 : vector<8x256xf32>
    %195 = arith.truncf %194 : vector<8x256xf32> to vector<8x256xbf16>
    %cst_136 = arith.constant 0.000000e+00 : bf16
    %196 = vector.broadcast %cst_136 : bf16 to vector<1x256xbf16>
    %197 = vector.extract_strided_slice %195 {offsets = [0, 0], sizes = [7, 256], strides = [1, 1]} : vector<8x256xbf16> to vector<7x256xbf16>
    %198 = tpu.concatenate %196, %197 in 0 : vector<1x256xbf16>, vector<7x256xbf16> -> vector<8x256xbf16>
    %199 = tpu.iota {dimensions = array<i32: 0>} : vector<8x256xi32>
    %c4_i32_137 = arith.constant 4 : i32
    %c0_i32_138 = arith.constant 0 : i32
    %200 = arith.cmpi eq, %c4_i32_137, %c0_i32_138 : i32
    %c1_i32_139 = arith.constant 1 : i32
    %201 = arith.select %200, %c1_i32_139, %c4_i32_137 : i32
    %202 = vector.broadcast %201 : i32 to vector<8x256xi32>
    %203 = arith.remsi %199, %202 : vector<8x256xi32>
    %c0_i32_140 = arith.constant 0 : i32
    %204 = vector.broadcast %c0_i32_140 : i32 to vector<8x256xi32>
    %205 = arith.cmpi ne, %203, %204 : vector<8x256xi32>
    %c0_i32_141 = arith.constant 0 : i32
    %206 = vector.broadcast %c0_i32_141 : i32 to vector<8x256xi32>
    %207 = arith.cmpi slt, %203, %206 : vector<8x256xi32>
    %c0_i32_142 = arith.constant 0 : i32
    %208 = arith.cmpi slt, %201, %c0_i32_142 : i32
    %209 = vector.broadcast %208 : i1 to vector<8x256xi1>
    %210 = vector.broadcast %209 : vector<8x256xi1> to vector<8x256xi1>
    %211 = arith.xori %207, %210 : vector<8x256xi1>
    %212 = arith.andi %211, %205 : vector<8x256xi1>
    %213 = vector.broadcast %201 : i32 to vector<8x256xi32>
    %214 = arith.addi %203, %213 : vector<8x256xi32>
    %215 = arith.select %212, %214, %203 : vector<8x256xi1>, vector<8x256xi32>
    %c0_i32_143 = arith.constant 0 : i32
    %216 = vector.broadcast %c0_i32_143 : i32 to vector<8x256xi32>
    %217 = arith.cmpi eq, %215, %216 : vector<8x256xi32>
    %cst_144 = arith.constant 0.000000e+00 : bf16
    %218 = vector.broadcast %cst_144 : bf16 to vector<8x256xbf16>
    %219 = arith.select %217, %218, %198 : vector<8x256xi1>, vector<8x256xbf16>
    %cst_145 = arith.constant 0.000000e+00 : bf16
    %220 = vector.broadcast %cst_145 : bf16 to vector<1x256xbf16>
    %221 = vector.extract_strided_slice %172 {offsets = [1, 0], sizes = [7, 256], strides = [1, 1]} : vector<8x256xbf16> to vector<7x256xbf16>
    %222 = tpu.concatenate %221, %220 in 0 : vector<7x256xbf16>, vector<1x256xbf16> -> vector<8x256xbf16>
    %223 = tpu.iota {dimensions = array<i32: 0>} : vector<8x256xi32>
    %c4_i32_146 = arith.constant 4 : i32
    %c0_i32_147 = arith.constant 0 : i32
    %224 = arith.cmpi eq, %c4_i32_146, %c0_i32_147 : i32
    %c1_i32_148 = arith.constant 1 : i32
    %225 = arith.select %224, %c1_i32_148, %c4_i32_146 : i32
    %226 = vector.broadcast %225 : i32 to vector<8x256xi32>
    %227 = arith.remsi %223, %226 : vector<8x256xi32>
    %c0_i32_149 = arith.constant 0 : i32
    %228 = vector.broadcast %c0_i32_149 : i32 to vector<8x256xi32>
    %229 = arith.cmpi ne, %227, %228 : vector<8x256xi32>
    %c0_i32_150 = arith.constant 0 : i32
    %230 = vector.broadcast %c0_i32_150 : i32 to vector<8x256xi32>
    %231 = arith.cmpi slt, %227, %230 : vector<8x256xi32>
    %c0_i32_151 = arith.constant 0 : i32
    %232 = arith.cmpi slt, %225, %c0_i32_151 : i32
    %233 = vector.broadcast %232 : i1 to vector<8x256xi1>
    %234 = vector.broadcast %233 : vector<8x256xi1> to vector<8x256xi1>
    %235 = arith.xori %231, %234 : vector<8x256xi1>
    %236 = arith.andi %235, %229 : vector<8x256xi1>
    %237 = vector.broadcast %225 : i32 to vector<8x256xi32>
    %238 = arith.addi %227, %237 : vector<8x256xi32>
    %239 = arith.select %236, %238, %227 : vector<8x256xi1>, vector<8x256xi32>
    %c3_i32_152 = arith.constant 3 : i32
    %240 = vector.broadcast %c3_i32_152 : i32 to vector<8x256xi32>
    %241 = arith.cmpi eq, %239, %240 : vector<8x256xi32>
    %cst_153 = arith.constant 0.000000e+00 : bf16
    %242 = vector.broadcast %cst_153 : bf16 to vector<8x256xbf16>
    %243 = arith.select %241, %242, %222 : vector<8x256xi1>, vector<8x256xbf16>
    %c0_154 = arith.constant 0 : index
    %c0_155 = arith.constant 0 : index
    %244 = vector.load %arg7[%c0_154, %c0_155] : memref<1x256xf32, #tpu.memory_space<vmem>>, vector<1x256xf32>
    %245 = tpu.concatenate %219, %172, %195 in 1 : vector<8x256xbf16>, vector<8x256xbf16>, vector<8x256xbf16> -> vector<8x768xbf16>
    %c0_156 = arith.constant 0 : index
    %c0_157 = arith.constant 0 : index
    %c0_158 = arith.constant 0 : index
    %246 = vector.load %arg6[%c0_156, %c0_157, %c0_158] : memref<2x768x256xbf16, #tpu.memory_space<vmem>>, vector<1x768x256xbf16>
    %247 = vector.shape_cast %246 : vector<1x768x256xbf16> to vector<768x256xbf16>
    %cst_159 = arith.constant dense<0.000000e+00> : vector<8x256xf32>
    %248 = tpu.matmul %245, %247, %cst_159 {dimension_numbers = #tpu.dot_dimension_numbers<[1], [0], [0], [1], [0, 0, 1, 1], [], []>} : vector<8x768xbf16>, vector<768x256xbf16>, vector<8x256xf32> -> vector<8x256xf32>
    %c1_160 = arith.constant 1 : index
    %c0_161 = arith.constant 0 : index
    %c0_162 = arith.constant 0 : index
    %249 = vector.load %arg6[%c1_160, %c0_161, %c0_162] : memref<2x768x256xbf16, #tpu.memory_space<vmem>>, vector<1x768x256xbf16>
    %250 = vector.shape_cast %249 : vector<1x768x256xbf16> to vector<768x256xbf16>
    %cst_163 = arith.constant dense<0.000000e+00> : vector<8x256xf32>
    %251 = tpu.matmul %245, %250, %cst_163 {dimension_numbers = #tpu.dot_dimension_numbers<[1], [0], [0], [1], [0, 0, 1, 1], [], []>} : vector<8x768xbf16>, vector<768x256xbf16>, vector<8x256xf32> -> vector<8x256xf32>
    %252 = arith.maximumf %248, %251 : vector<8x256xf32>
    %253 = tpu.concatenate %172, %195, %243 in 1 : vector<8x256xbf16>, vector<8x256xbf16>, vector<8x256xbf16> -> vector<8x768xbf16>
    %c0_164 = arith.constant 0 : index
    %c0_165 = arith.constant 0 : index
    %c0_166 = arith.constant 0 : index
    %254 = vector.load %arg6[%c0_164, %c0_165, %c0_166] : memref<2x768x256xbf16, #tpu.memory_space<vmem>>, vector<1x768x256xbf16>
    %255 = vector.shape_cast %254 : vector<1x768x256xbf16> to vector<768x256xbf16>
    %cst_167 = arith.constant dense<0.000000e+00> : vector<8x256xf32>
    %256 = tpu.matmul %253, %255, %cst_167 {dimension_numbers = #tpu.dot_dimension_numbers<[1], [0], [0], [1], [0, 0, 1, 1], [], []>} : vector<8x768xbf16>, vector<768x256xbf16>, vector<8x256xf32> -> vector<8x256xf32>
    %257 = arith.maximumf %252, %256 : vector<8x256xf32>
    %c1_168 = arith.constant 1 : index
    %c0_169 = arith.constant 0 : index
    %c0_170 = arith.constant 0 : index
    %258 = vector.load %arg6[%c1_168, %c0_169, %c0_170] : memref<2x768x256xbf16, #tpu.memory_space<vmem>>, vector<1x768x256xbf16>
    %259 = vector.shape_cast %258 : vector<1x768x256xbf16> to vector<768x256xbf16>
    %cst_171 = arith.constant dense<0.000000e+00> : vector<8x256xf32>
    %260 = tpu.matmul %253, %259, %cst_171 {dimension_numbers = #tpu.dot_dimension_numbers<[1], [0], [0], [1], [0, 0, 1, 1], [], []>} : vector<8x768xbf16>, vector<768x256xbf16>, vector<8x256xf32> -> vector<8x256xf32>
    %261 = arith.maximumf %257, %260 : vector<8x256xf32>
    %262 = vector.broadcast %244 : vector<1x256xf32> to vector<8x256xf32>
    %263 = arith.addf %261, %262 : vector<8x256xf32>
    %cst_172 = arith.constant 0.000000e+00 : f32
    %264 = vector.broadcast %cst_172 : f32 to vector<8x256xf32>
    %265 = arith.maximumf %263, %264 : vector<8x256xf32>
    %266 = arith.truncf %265 : vector<8x256xf32> to vector<8x256xbf16>
    %c0_173 = arith.constant 0 : index
    %c0_174 = arith.constant 0 : index
    %267 = vector.load %arg8[%c0_173, %c0_174] : memref<8x256xbf16, #tpu.memory_space<vmem>>, vector<8x256xbf16>
    tpu.vector_store %arg8[%c0_173, %c0_174], %266 {strides = array<i32>} : memref<8x256xbf16, #tpu.memory_space<vmem>>, vector<8x256xbf16>,
    return
  }
  func.func @transform_0(%arg0: i32) -> (i32, i32) {
    %c0_i32 = arith.constant 0 : i32
    %c0_i32_0 = arith.constant 0 : i32
    return %arg0, %c0_i32 : i32, i32
  }
  func.func @transform_1(%arg0: i32) -> (i32, i32, i32) {
    %c0_i32 = arith.constant 0 : i32
    %c0_i32_0 = arith.constant 0 : i32
    %c0_i32_1 = arith.constant 0 : i32
    %c0_i32_2 = arith.constant 0 : i32
    return %c0_i32, %c0_i32_0, %c0_i32_1 : i32, i32, i32
  }
  func.func @transform_2(%arg0: i32) -> (i32, i32) {
    %c0_i32 = arith.constant 0 : i32
    %c0_i32_0 = arith.constant 0 : i32
    %c0_i32_1 = arith.constant 0 : i32
    return %c0_i32, %c0_i32_0 : i32, i32
  }
  func.func @transform_3(%arg0: i32) -> (i32, i32, i32) {
    %c0_i32 = arith.constant 0 : i32
    %c0_i32_0 = arith.constant 0 : i32
    %c0_i32_1 = arith.constant 0 : i32
    %c0_i32_2 = arith.constant 0 : i32
    return %c0_i32, %c0_i32_0, %c0_i32_1 : i32, i32, i32
  }
  func.func @transform_4(%arg0: i32) -> (i32, i32) {
    %c0_i32 = arith.constant 0 : i32
    %c0_i32_0 = arith.constant 0 : i32
    %c0_i32_1 = arith.constant 0 : i32
    return %c0_i32, %c0_i32_0 : i32, i32
  }
  func.func @transform_5(%arg0: i32) -> (i32, i32, i32) {
    %c0_i32 = arith.constant 0 : i32
    %c0_i32_0 = arith.constant 0 : i32
    %c0_i32_1 = arith.constant 0 : i32
    %c0_i32_2 = arith.constant 0 : i32
    return %c0_i32, %c0_i32_0, %c0_i32_1 : i32, i32, i32
  }
  func.func @transform_6(%arg0: i32) -> (i32, i32) {
    %c0_i32 = arith.constant 0 : i32
    %c0_i32_0 = arith.constant 0 : i32
    %c0_i32_1 = arith.constant 0 : i32
    return %c0_i32, %c0_i32_0 : i32, i32
  }
  func.func @transform_7(%arg0: i32) -> (i32, i32) {
    %c0_i32 = arith.constant 0 : i32
    %c0_i32_0 = arith.constant 0 : i32
    return %arg0, %c0_i32 : i32, i32
  }
}

module attributes {stable_mosaic.version = 11 : i64} {
  func.func @_fc_kernel(%arg0: i32, %arg1: memref<2x1024xbf16, #tpu.memory_space<vmem>>, %arg2: memref<1024x256xbf16, #tpu.memory_space<vmem>>, %arg3: memref<1x256xf32, #tpu.memory_space<vmem>>, %arg4: memref<256x128xbf16, #tpu.memory_space<vmem>>, %arg5: memref<1x128xf32, #tpu.memory_space<vmem>>, %arg6: memref<2x128xf32, #tpu.memory_space<vmem>>) attributes {dimension_semantics = [#tpu.dimension_semantics<parallel>], iteration_bounds = array<i64: 1>, scalar_prefetch = 0 : i64, scratch_operands = 0 : i64, tpu.core_type = #tpu.core_type<tc>, window_params = [{transform_indices = @transform_0, window_bounds = array<i64: 2, 1024>}, {pipeline_mode = #tpu.pipeline_mode<synchronous>, transform_indices = @transform_1, window_bounds = array<i64: 1024, 256>}, {pipeline_mode = #tpu.pipeline_mode<synchronous>, transform_indices = @transform_2, window_bounds = array<i64: 1, 256>}, {pipeline_mode = #tpu.pipeline_mode<synchronous>, transform_indices = @transform_3, window_bounds = array<i64: 256, 128>}, {pipeline_mode = #tpu.pipeline_mode<synchronous>, transform_indices = @transform_4, window_bounds = array<i64: 1, 128>}, {transform_indices = @transform_5, window_bounds = array<i64: 2, 128>}]} {
    %c0 = arith.constant 0 : index
    %c0_0 = arith.constant 0 : index
    %0 = vector.load %arg1[%c0, %c0_0] : memref<2x1024xbf16, #tpu.memory_space<vmem>>, vector<2x1024xbf16>
    %c0_1 = arith.constant 0 : index
    %c0_2 = arith.constant 0 : index
    %1 = vector.load %arg2[%c0_1, %c0_2] : memref<1024x256xbf16, #tpu.memory_space<vmem>>, vector<1024x256xbf16>
    %cst = arith.constant dense<0.000000e+00> : vector<2x256xf32>
    %2 = tpu.matmul %0, %1, %cst {dimension_numbers = #tpu.dot_dimension_numbers<[1], [0], [0], [1], [0, 0, 1, 1], [], []>} : vector<2x1024xbf16>, vector<1024x256xbf16>, vector<2x256xf32> -> vector<2x256xf32>
    %c0_3 = arith.constant 0 : index
    %c0_4 = arith.constant 0 : index
    %3 = vector.load %arg3[%c0_3, %c0_4] : memref<1x256xf32, #tpu.memory_space<vmem>>, vector<1x256xf32>
    %4 = vector.broadcast %3 : vector<1x256xf32> to vector<2x256xf32>
    %5 = arith.addf %2, %4 : vector<2x256xf32>
    %cst_5 = arith.constant 0.000000e+00 : f32
    %6 = vector.broadcast %cst_5 : f32 to vector<2x256xf32>
    %7 = arith.maximumf %5, %6 : vector<2x256xf32>
    %8 = arith.truncf %7 : vector<2x256xf32> to vector<2x256xbf16>
    %c0_6 = arith.constant 0 : index
    %c0_7 = arith.constant 0 : index
    %9 = vector.load %arg4[%c0_6, %c0_7] : memref<256x128xbf16, #tpu.memory_space<vmem>>, vector<256x128xbf16>
    %cst_8 = arith.constant dense<0.000000e+00> : vector<2x128xf32>
    %10 = tpu.matmul %8, %9, %cst_8 {dimension_numbers = #tpu.dot_dimension_numbers<[1], [0], [0], [1], [0, 0, 1, 1], [], []>} : vector<2x256xbf16>, vector<256x128xbf16>, vector<2x128xf32> -> vector<2x128xf32>
    %c0_9 = arith.constant 0 : index
    %c0_10 = arith.constant 0 : index
    %11 = vector.load %arg5[%c0_9, %c0_10] : memref<1x128xf32, #tpu.memory_space<vmem>>, vector<1x128xf32>
    %12 = vector.broadcast %11 : vector<1x128xf32> to vector<2x128xf32>
    %13 = arith.addf %10, %12 : vector<2x128xf32>
    %c0_11 = arith.constant 0 : index
    %c0_12 = arith.constant 0 : index
    %14 = vector.load %arg6[%c0_11, %c0_12] : memref<2x128xf32, #tpu.memory_space<vmem>>, vector<2x128xf32>
    tpu.vector_store %arg6[%c0_11, %c0_12], %13 {strides = array<i32>} : memref<2x128xf32, #tpu.memory_space<vmem>>, vector<2x128xf32>,
    return
  }
  func.func @transform_0(%arg0: i32) -> (i32, i32) {
    %c0_i32 = arith.constant 0 : i32
    %c0_i32_0 = arith.constant 0 : i32
    return %arg0, %c0_i32 : i32, i32
  }
  func.func @transform_1(%arg0: i32) -> (i32, i32) {
    %c0_i32 = arith.constant 0 : i32
    %c0_i32_0 = arith.constant 0 : i32
    %c0_i32_1 = arith.constant 0 : i32
    return %c0_i32, %c0_i32_0 : i32, i32
  }
  func.func @transform_2(%arg0: i32) -> (i32, i32) {
    %c0_i32 = arith.constant 0 : i32
    %c0_i32_0 = arith.constant 0 : i32
    %c0_i32_1 = arith.constant 0 : i32
    return %c0_i32, %c0_i32_0 : i32, i32
  }
  func.func @transform_3(%arg0: i32) -> (i32, i32) {
    %c0_i32 = arith.constant 0 : i32
    %c0_i32_0 = arith.constant 0 : i32
    %c0_i32_1 = arith.constant 0 : i32
    return %c0_i32, %c0_i32_0 : i32, i32
  }
  func.func @transform_4(%arg0: i32) -> (i32, i32) {
    %c0_i32 = arith.constant 0 : i32
    %c0_i32_0 = arith.constant 0 : i32
    %c0_i32_1 = arith.constant 0 : i32
    return %c0_i32, %c0_i32_0 : i32, i32
  }
  func.func @transform_5(%arg0: i32) -> (i32, i32) {
    %c0_i32 = arith.constant 0 : i32
    %c0_i32_0 = arith.constant 0 : i32
    return %arg0, %c0_i32 : i32, i32
  }
}

</mosaic_0001>

<llo_original>
// kernel: forward.3
$region0: #{forward.3}
  #allocation0 [shape = 'u32[]', space=smem, size = 0x4, offset = 0x4, fixed_abs, tag = 'smem constant byte address 0x4 - core index']
  #allocation1 [shape = 'u32[144,128]{1,0:T(1,128)}', space=vmem, size = 0x12000, scoped, tag = 'internal scratch']
  %s0 = inlined_call_operand.vmem [shape: bf16[2,1024], index: 0, kind: input, shape index: {}]
  %s1 = inlined_call_operand.vmem [shape: bf16[1024,256], index: 1, kind: input, shape index: {}]
  %s2 = inlined_call_operand.vmem [shape: f32[1,256], index: 2, kind: input, shape index: {}]
  %s3 = inlined_call_operand.vmem [shape: bf16[256,128], index: 3, kind: input, shape index: {}]
  %s4 = inlined_call_operand.vmem [shape: f32[1,128], index: 4, kind: input, shape index: {}]
  %s5 = inlined_call_operand.hbm [shape: f32[2,128], index: 5, kind: output, shape index: {}]
  %s6 = sld [smem:[#allocation0]]
  $region30: #{forward.3} parent=0
    _
  %s8 = ssub.s32 1, %s6
  %s9 = scalar_select 0, %s8, %s6
  $region1: #{forward.3} parent=0
    #allocation2 [shape = 'u8[1024]{0}', space=vmem, size = 0x400, scoped, tag = 'output window, operand 0, single buffered']
    #allocation3 [shape = 's32[1]{0}', space=sflag, size = 0x4, scoped, tag = 'scoped memory for forward.3']
    %10 = vsyncpa [#allocation3], 0
    // Predicated region
    $region2: #{forward.3} parent=1 // pred_check
      _
    $region3: #{forward.3} parent=1 // pred_check_branch
      %12 = sbr.rel (0) target = $region5
    $region4: #{forward.3} parent=1 // pred_region
      _
    $region5: #{forward.3} parent=1 // pred_fallthru
      _
    // Predicated region
    $region6: #{forward.3} parent=1 // pred_check
      _
    $region7: #{forward.3} parent=1 // pred_check_branch
      %14 = sbr.rel (0) target = $region9
    $region8: #{forward.3} parent=1 // pred_region
      _
    $region9: #{forward.3} parent=1 // pred_fallthru
      _
    // Predicated region
    $region10: #{forward.3} parent=1 // pred_check
      _
    $region11: #{forward.3} parent=1 // pred_check_branch
      %16 = sbr.rel (0) target = $region13
    $region12: #{forward.3} parent=1 // pred_region
      _
    $region13: #{forward.3} parent=1 // pred_fallthru
      _
    // Predicated region
    $region14: #{forward.3} parent=1 // pred_check
      _
    $region15: #{forward.3} parent=1 // pred_check_branch
      %18 = sbr.rel (0) target = $region17
    $region16: #{forward.3} parent=1 // pred_region
      _
    $region17: #{forward.3} parent=1 // pred_fallthru
      _
    // Predicated region
    $region18: #{forward.3} parent=1 // pred_check
      _
    $region19: #{forward.3} parent=1 // pred_check_branch
      %20 = sbr.rel (0) target = $region21
    $region20: #{forward.3} parent=1 // pred_region
      _
    $region21: #{forward.3} parent=1 // pred_fallthru
      _
    %v22 = vld [vmem:[%s0] sm:$0xff]
    %v23 = vld [vmem:[%s1] sm:$0xff]
    %v24 = vld [vmem:[%s1 + $0x8] sm:$0xff]
    %v25 = vld [vmem:[%s1 + $0x10] sm:$0xff]
    %v26 = vld [vmem:[%s1 + $0x18] sm:$0xff]
    %v27 = vld [vmem:[%s1 + $0x20] sm:$0xff]
    %v28 = vld [vmem:[%s1 + $0x28] sm:$0xff]
    %v29 = vld [vmem:[%s1 + $0x30] sm:$0xff]
    %v30 = vld [vmem:[%s1 + $0x38] sm:$0xff]
    %v31 = vld [vmem:[%s1 + $0x40] sm:$0xff]
    %v32 = vld [vmem:[%s1 + $0x48] sm:$0xff]
    %v33 = vld [vmem:[%s1 + $0x50] sm:$0xff]
    %v34 = vld [vmem:[%s1 + $0x58] sm:$0xff]
    %v35 = vld [vmem:[%s1 + $0x60] sm:$0xff]
    %v36 = vld [vmem:[%s1 + $0x68] sm:$0xff]
    %v37 = vld [vmem:[%s1 + $0x70] sm:$0xff]
    %v38 = vld [vmem:[%s1 + $0x78] sm:$0xff]
    %v39 = vld [vmem:[%s1 + $0x80] sm:$0xff]
    %v40 = vld [vmem:[%s1 + $0x88] sm:$0xff]
    %v41 = vld [vmem:[%s1 + $0x90] sm:$0xff]
    %v42 = vld [vmem:[%s1 + $0x98] sm:$0xff]
    %v43 = vld [vmem:[%s1 + $0xa0] sm:$0xff]
    %v44 = vld [vmem:[%s1 + $0xa8] sm:$0xff]
    %v45 = vld [vmem:[%s1 + $0xb0] sm:$0xff]
    %v46 = vld [vmem:[%s1 + $0xb8] sm:$0xff]
    %v47 = vld [vmem:[%s1 + $0xc0] sm:$0xff]
    %v48 = vld [vmem:[%s1 + $0xc8] sm:$0xff]
    %v49 = vld [vmem:[%s1 + $0xd0] sm:$0xff]
    %v50 = vld [vmem:[%s1 + $0xd8] sm:$0xff]
    %v51 = vld [vmem:[%s1 + $0xe0] sm:$0xff]
    %v52 = vld [vmem:[%s1 + $0xe8] sm:$0xff]
    %v53 = vld [vmem:[%s1 + $0xf0] sm:$0xff]
    %v54 = vld [vmem:[%s1 + $0xf8] sm:$0xff]
    %v55 = vld [vmem:[%s1 + $0x100] sm:$0xff]
    %v56 = vld [vmem:[%s1 + $0x108] sm:$0xff]
    %v57 = vld [vmem:[%s1 + $0x110] sm:$0xff]
    %v58 = vld [vmem:[%s1 + $0x118] sm:$0xff]
    %v59 = vld [vmem:[%s1 + $0x120] sm:$0xff]
    %v60 = vld [vmem:[%s1 + $0x128] sm:$0xff]
    %v61 = vld [vmem:[%s1 + $0x130] sm:$0xff]
    %v62 = vld [vmem:[%s1 + $0x138] sm:$0xff]
    %v63 = vld [vmem:[%s1 + $0x140] sm:$0xff]
    %v64 = vld [vmem:[%s1 + $0x148] sm:$0xff]
    %v65 = vld [vmem:[%s1 + $0x150] sm:$0xff]
    %v66 = vld [vmem:[%s1 + $0x158] sm:$0xff]
    %v67 = vld [vmem:[%s1 + $0x160] sm:$0xff]
    %v68 = vld [vmem:[%s1 + $0x168] sm:$0xff]
    %v69 = vld [vmem:[%s1 + $0x170] sm:$0xff]
    %v70 = vld [vmem:[%s1 + $0x178] sm:$0xff]
    %v71 = vld [vmem:[%s1 + $0x180] sm:$0xff]
    %v72 = vld [vmem:[%s1 + $0x188] sm:$0xff]
    %v73 = vld [vmem:[%s1 + $0x190] sm:$0xff]
    %v74 = vld [vmem:[%s1 + $0x198] sm:$0xff]
    %v75 = vld [vmem:[%s1 + $0x1a0] sm:$0xff]
    %v76 = vld [vmem:[%s1 + $0x1a8] sm:$0xff]
    %v77 = vld [vmem:[%s1 + $0x1b0] sm:$0xff]
    %v78 = vld [vmem:[%s1 + $0x1b8] sm:$0xff]
    %v79 = vld [vmem:[%s1 + $0x1c0] sm:$0xff]
    %v80 = vld [vmem:[%s1 + $0x1c8] sm:$0xff]
    %v81 = vld [vmem:[%s1 + $0x1d0] sm:$0xff]
    %v82 = vld [vmem:[%s1 + $0x1d8] sm:$0xff]
    %v83 = vld [vmem:[%s1 + $0x1e0] sm:$0xff]
    %v84 = vld [vmem:[%s1 + $0x1e8] sm:$0xff]
    %v85 = vld [vmem:[%s1 + $0x1f0] sm:$0xff]
    %v86 = vld [vmem:[%s1 + $0x1f8] sm:$0xff]
    %v87 = vld [vmem:[%s1 + $0x200] sm:$0xff]
    %v88 = vld [vmem:[%s1 + $0x208] sm:$0xff]
    %v89 = vld [vmem:[%s1 + $0x210] sm:$0xff]
    %v90 = vld [vmem:[%s1 + $0x218] sm:$0xff]
    %v91 = vld [vmem:[%s1 + $0x220] sm:$0xff]
    %v92 = vld [vmem:[%s1 + $0x228] sm:$0xff]
    %v93 = vld [vmem:[%s1 + $0x230] sm:$0xff]
    %v94 = vld [vmem:[%s1 + $0x238] sm:$0xff]
    %v95 = vld [vmem:[%s1 + $0x240] sm:$0xff]
    %v96 = vld [vmem:[%s1 + $0x248] sm:$0xff]
    %v97 = vld [vmem:[%s1 + $0x250] sm:$0xff]
    %v98 = vld [vmem:[%s1 + $0x258] sm:$0xff]
    %v99 = vld [vmem:[%s1 + $0x260] sm:$0xff]
    %v100 = vld [vmem:[%s1 + $0x268] sm:$0xff]
    %v101 = vld [vmem:[%s1 + $0x270] sm:$0xff]
    %v102 = vld [vmem:[%s1 + $0x278] sm:$0xff]
    %v103 = vld [vmem:[%s1 + $0x280] sm:$0xff]
    %v104 = vld [vmem:[%s1 + $0x288] sm:$0xff]
    %v105 = vld [vmem:[%s1 + $0x290] sm:$0xff]
    %v106 = vld [vmem:[%s1 + $0x298] sm:$0xff]
    %v107 = vld [vmem:[%s1 + $0x2a0] sm:$0xff]
    %v108 = vld [vmem:[%s1 + $0x2a8] sm:$0xff]
    %v109 = vld [vmem:[%s1 + $0x2b0] sm:$0xff]
    %v110 = vld [vmem:[%s1 + $0x2b8] sm:$0xff]
    %v111 = vld [vmem:[%s1 + $0x2c0] sm:$0xff]
    %v112 = vld [vmem:[%s1 + $0x2c8] sm:$0xff]
    %v113 = vld [vmem:[%s1 + $0x2d0] sm:$0xff]
    %v114 = vld [vmem:[%s1 + $0x2d8] sm:$0xff]
    %v115 = vld [vmem:[%s1 + $0x2e0] sm:$0xff]
    %v116 = vld [vmem:[%s1 + $0x2e8] sm:$0xff]
    %v117 = vld [vmem:[%s1 + $0x2f0] sm:$0xff]
    %v118 = vld [vmem:[%s1 + $0x2f8] sm:$0xff]
    %v119 = vld [vmem:[%s1 + $0x300] sm:$0xff]
    %v120 = vld [vmem:[%s1 + $0x308] sm:$0xff]
    %v121 = vld [vmem:[%s1 + $0x310] sm:$0xff]
    %v122 = vld [vmem:[%s1 + $0x318] sm:$0xff]
    %v123 = vld [vmem:[%s1 + $0x320] sm:$0xff]
    %v124 = vld [vmem:[%s1 + $0x328] sm:$0xff]
    %v125 = vld [vmem:[%s1 + $0x330] sm:$0xff]
    %v126 = vld [vmem:[%s1 + $0x338] sm:$0xff]
    %v127 = vld [vmem:[%s1 + $0x340] sm:$0xff]
    %v128 = vld [vmem:[%s1 + $0x348] sm:$0xff]
    %v129 = vld [vmem:[%s1 + $0x350] sm:$0xff]
    %v130 = vld [vmem:[%s1 + $0x358] sm:$0xff]
    %v131 = vld [vmem:[%s1 + $0x360] sm:$0xff]
    %v132 = vld [vmem:[%s1 + $0x368] sm:$0xff]
    %v133 = vld [vmem:[%s1 + $0x370] sm:$0xff]
    %v134 = vld [vmem:[%s1 + $0x378] sm:$0xff]
    %v135 = vld [vmem:[%s1 + $0x380] sm:$0xff]
    %v136 = vld [vmem:[%s1 + $0x388] sm:$0xff]
    %v137 = vld [vmem:[%s1 + $0x390] sm:$0xff]
    %v138 = vld [vmem:[%s1 + $0x398] sm:$0xff]
    %v139 = vld [vmem:[%s1 + $0x3a0] sm:$0xff]
    %v140 = vld [vmem:[%s1 + $0x3a8] sm:$0xff]
    %v141 = vld [vmem:[%s1 + $0x3b0] sm:$0xff]
    %v142 = vld [vmem:[%s1 + $0x3b8] sm:$0xff]
    %v143 = vld [vmem:[%s1 + $0x3c0] sm:$0xff]
    %v144 = vld [vmem:[%s1 + $0x3c8] sm:$0xff]
    %v145 = vld [vmem:[%s1 + $0x3d0] sm:$0xff]
    %v146 = vld [vmem:[%s1 + $0x3d8] sm:$0xff]
    %v147 = vld [vmem:[%s1 + $0x3e0] sm:$0xff]
    %v148 = vld [vmem:[%s1 + $0x3e8] sm:$0xff]
    %v149 = vld [vmem:[%s1 + $0x3f0] sm:$0xff]
    %v150 = vld [vmem:[%s1 + $0x3f8] sm:$0xff]
    %v151 = vld [vmem:[%s2] sm:$0x3]
    %v153 = vlaneseq
    %v154 = vshrl.u32 %v153, 7
    %v155 = vsub.s32 0, %v154
    %v156 = vrot.slane %v151, %v155
    %v157 = vlaneseq
    %v158 = vshrl.u32 %v157, 7
    %v159 = vsub.s32 1, %v158
    %v160 = vrot.slane %v151, %v159
    %v164 = vcombine.high %v22, %v22
    %v166 = vunpack.c.l.s4 1966171168
    %v167 = vunpack.c.0.s8 %v166
    %v168 = vlaneseq
    %v169 = vshrl.u32 %v168, 7
    %v170 = vsub.s32 %v167, %v169
    %v171 = vrot.slane %v22, %v170
    %v173 = vunpack.c.l.s4 1966171168
    %v174 = vunpack.c.0.s8 %v173
    %v175 = vlaneseq
    %v176 = vshrl.u32 %v175, 7
    %v177 = vsub.s32 %v174, %v176
    %v178 = vrot.slane %v164, %v177
    %v179 = vcombine.high %v171, %v171
    %v180 = vcombine.high %v178, %v178
    %v182 = vunpack.c.l.s4 1966171168
    %v183 = vunpack.c.0.s8 %v182
    %v184 = vlaneseq
    %v185 = vshrl.u32 %v184, 7
    %v186 = vsub.s32 %v183, %v185
    %v187 = vrot.slane %v171, %v186
    %v189 = vunpack.c.l.s4 1966171168
    %v190 = vunpack.c.0.s8 %v189
    %v191 = vlaneseq
    %v192 = vshrl.u32 %v191, 7
    %v193 = vsub.s32 %v190, %v192
    %v194 = vrot.slane %v178, %v193
    %v196 = vunpack.c.l.s4 1966171168
    %v197 = vunpack.c.0.s8 %v196
    %v198 = vlaneseq
    %v199 = vshrl.u32 %v198, 7
    %v200 = vsub.s32 %v197, %v199
    %v201 = vrot.slane %v179, %v200
    %v203 = vunpack.c.l.s4 1966171168
    %v204 = vunpack.c.0.s8 %v203
    %v205 = vlaneseq
    %v206 = vshrl.u32 %v205, 7
    %v207 = vsub.s32 %v204, %v206
    %v208 = vrot.slane %v180, %v207
    %v209 = vcombine.high %v187, %v187
    %v210 = vcombine.high %v194, %v194
    %v211 = vcombine.high %v201, %v201
    %v212 = vcombine.high %v208, %v208
    %v349 = vunpack.c.l.b16 %v23
    %v350 = vunpack.c.h.b16 %v23
    %v351 = vunpack.c.l.b16 %v24
    %v352 = vunpack.c.h.b16 %v24
    %v353 = vunpack.c.l.b16 %v25
    %v354 = vunpack.c.h.b16 %v25
    %v355 = vunpack.c.l.b16 %v26
    %v356 = vunpack.c.h.b16 %v26
    %v357 = vunpack.c.l.b16 %v27
    %v358 = vunpack.c.h.b16 %v27
    %v359 = vunpack.c.l.b16 %v28
    %v360 = vunpack.c.h.b16 %v28
    %v361 = vunpack.c.l.b16 %v29
    %v362 = vunpack.c.h.b16 %v29
    %v363 = vunpack.c.l.b16 %v30
    %v364 = vunpack.c.h.b16 %v30
    %v365 = vunpack.c.l.b16 %v31
    %v366 = vunpack.c.h.b16 %v31
    %v367 = vunpack.c.l.b16 %v32
    %v368 = vunpack.c.h.b16 %v32
    %v369 = vunpack.c.l.b16 %v33
    %v370 = vunpack.c.h.b16 %v33
    %v371 = vunpack.c.l.b16 %v34
    %v372 = vunpack.c.h.b16 %v34
    %v373 = vunpack.c.l.b16 %v35
    %v374 = vunpack.c.h.b16 %v35
    %v375 = vunpack.c.l.b16 %v36
    %v376 = vunpack.c.h.b16 %v36
    %v377 = vunpack.c.l.b16 %v37
    %v378 = vunpack.c.h.b16 %v37
    %v379 = vunpack.c.l.b16 %v38
    %v380 = vunpack.c.h.b16 %v38
    %v381 = vunpack.c.l.b16 %v39
    %v382 = vunpack.c.h.b16 %v39
    %v383 = vunpack.c.l.b16 %v40
    %v384 = vunpack.c.h.b16 %v40
    %v385 = vunpack.c.l.b16 %v41
    %v386 = vunpack.c.h.b16 %v41
    %v387 = vunpack.c.l.b16 %v42
    %v388 = vunpack.c.h.b16 %v42
    %v389 = vunpack.c.l.b16 %v43
    %v390 = vunpack.c.h.b16 %v43
    %v391 = vunpack.c.l.b16 %v44
    %v392 = vunpack.c.h.b16 %v44
    %v393 = vunpack.c.l.b16 %v45
    %v394 = vunpack.c.h.b16 %v45
    %v395 = vunpack.c.l.b16 %v46
    %v396 = vunpack.c.h.b16 %v46
    %v397 = vunpack.c.l.b16 %v47
    %v398 = vunpack.c.h.b16 %v47
    %v399 = vunpack.c.l.b16 %v48
    %v400 = vunpack.c.h.b16 %v48
    %v401 = vunpack.c.l.b16 %v49
    %v402 = vunpack.c.h.b16 %v49
    %v403 = vunpack.c.l.b16 %v50
    %v404 = vunpack.c.h.b16 %v50
    %v405 = vunpack.c.l.b16 %v51
    %v406 = vunpack.c.h.b16 %v51
    %v407 = vunpack.c.l.b16 %v52
    %v408 = vunpack.c.h.b16 %v52
    %v409 = vunpack.c.l.b16 %v53
    %v410 = vunpack.c.h.b16 %v53
    %v411 = vunpack.c.l.b16 %v54
    %v412 = vunpack.c.h.b16 %v54
    %v413 = vunpack.c.l.b16 %v55
    %v414 = vunpack.c.h.b16 %v55
    %v415 = vunpack.c.l.b16 %v56
    %v416 = vunpack.c.h.b16 %v56
    %v417 = vunpack.c.l.b16 %v57
    %v418 = vunpack.c.h.b16 %v57
    %v419 = vunpack.c.l.b16 %v58
    %v420 = vunpack.c.h.b16 %v58
    %v421 = vunpack.c.l.b16 %v59
    %v422 = vunpack.c.h.b16 %v59
    %v423 = vunpack.c.l.b16 %v60
    %v424 = vunpack.c.h.b16 %v60
    %v425 = vunpack.c.l.b16 %v61
    %v426 = vunpack.c.h.b16 %v61
    %v427 = vunpack.c.l.b16 %v62
    %v428 = vunpack.c.h.b16 %v62
    %v429 = vunpack.c.l.b16 %v63
    %v430 = vunpack.c.h.b16 %v63
    %v431 = vunpack.c.l.b16 %v64
    %v432 = vunpack.c.h.b16 %v64
    %v433 = vunpack.c.l.b16 %v65
    %v434 = vunpack.c.h.b16 %v65
    %v435 = vunpack.c.l.b16 %v66
    %v436 = vunpack.c.h.b16 %v66
    %v437 = vunpack.c.l.b16 %v67
    %v438 = vunpack.c.h.b16 %v67
    %v439 = vunpack.c.l.b16 %v68
    %v440 = vunpack.c.h.b16 %v68
    %v441 = vunpack.c.l.b16 %v69
    %v442 = vunpack.c.h.b16 %v69
    %v443 = vunpack.c.l.b16 %v70
    %v444 = vunpack.c.h.b16 %v70
    %v445 = vunpack.c.l.b16 %v71
    %v446 = vunpack.c.h.b16 %v71
    %v447 = vunpack.c.l.b16 %v72
    %v448 = vunpack.c.h.b16 %v72
    %v449 = vunpack.c.l.b16 %v73
    %v450 = vunpack.c.h.b16 %v73
    %v451 = vunpack.c.l.b16 %v74
    %v452 = vunpack.c.h.b16 %v74
    %v453 = vunpack.c.l.b16 %v75
    %v454 = vunpack.c.h.b16 %v75
    %v455 = vunpack.c.l.b16 %v76
    %v456 = vunpack.c.h.b16 %v76
    %v457 = vunpack.c.l.b16 %v77
    %v458 = vunpack.c.h.b16 %v77
    %v459 = vunpack.c.l.b16 %v78
    %v460 = vunpack.c.h.b16 %v78
    %v461 = vunpack.c.l.b16 %v79
    %v462 = vunpack.c.h.b16 %v79
    %v463 = vunpack.c.l.b16 %v80
    %v464 = vunpack.c.h.b16 %v80
    %v465 = vunpack.c.l.b16 %v81
    %v466 = vunpack.c.h.b16 %v81
    %v467 = vunpack.c.l.b16 %v82
    %v468 = vunpack.c.h.b16 %v82
    %v469 = vunpack.c.l.b16 %v83
    %v470 = vunpack.c.h.b16 %v83
    %v471 = vunpack.c.l.b16 %v84
    %v472 = vunpack.c.h.b16 %v84
    %v473 = vunpack.c.l.b16 %v85
    %v474 = vunpack.c.h.b16 %v85
    %v475 = vunpack.c.l.b16 %v86
    %v476 = vunpack.c.h.b16 %v86
    %v477 = vunpack.c.l.b16 %v87
    %v478 = vunpack.c.h.b16 %v87
    %v479 = vunpack.c.l.b16 %v88
    %v480 = vunpack.c.h.b16 %v88
    %v481 = vunpack.c.l.b16 %v89
    %v482 = vunpack.c.h.b16 %v89
    %v483 = vunpack.c.l.b16 %v90
    %v484 = vunpack.c.h.b16 %v90
    %v485 = vunpack.c.l.b16 %v91
    %v486 = vunpack.c.h.b16 %v91
    %v487 = vunpack.c.l.b16 %v92
    %v488 = vunpack.c.h.b16 %v92
    %v489 = vunpack.c.l.b16 %v93
    %v490 = vunpack.c.h.b16 %v93
    %v491 = vunpack.c.l.b16 %v94
    %v492 = vunpack.c.h.b16 %v94
    %v493 = vunpack.c.l.b16 %v95
    %v494 = vunpack.c.h.b16 %v95
    %v495 = vunpack.c.l.b16 %v96
    %v496 = vunpack.c.h.b16 %v96
    %v497 = vunpack.c.l.b16 %v97
    %v498 = vunpack.c.h.b16 %v97
    %v499 = vunpack.c.l.b16 %v98
    %v500 = vunpack.c.h.b16 %v98
    %v501 = vunpack.c.l.b16 %v99
    %v502 = vunpack.c.h.b16 %v99
    %v503 = vunpack.c.l.b16 %v100
    %v504 = vunpack.c.h.b16 %v100
    %v505 = vunpack.c.l.b16 %v101
    %v506 = vunpack.c.h.b16 %v101
    %v507 = vunpack.c.l.b16 %v102
    %v508 = vunpack.c.h.b16 %v102
    %v509 = vunpack.c.l.b16 %v103
    %v510 = vunpack.c.h.b16 %v103
    %v511 = vunpack.c.l.b16 %v104
    %v512 = vunpack.c.h.b16 %v104
    %v513 = vunpack.c.l.b16 %v105
    %v514 = vunpack.c.h.b16 %v105
    %v515 = vunpack.c.l.b16 %v106
    %v516 = vunpack.c.h.b16 %v106
    %v517 = vunpack.c.l.b16 %v107
    %v518 = vunpack.c.h.b16 %v107
    %v519 = vunpack.c.l.b16 %v108
    %v520 = vunpack.c.h.b16 %v108
    %v521 = vunpack.c.l.b16 %v109
    %v522 = vunpack.c.h.b16 %v109
    %v523 = vunpack.c.l.b16 %v110
    %v524 = vunpack.c.h.b16 %v110
    %v525 = vunpack.c.l.b16 %v111
    %v526 = vunpack.c.h.b16 %v111
    %v527 = vunpack.c.l.b16 %v112
    %v528 = vunpack.c.h.b16 %v112
    %v529 = vunpack.c.l.b16 %v113
    %v530 = vunpack.c.h.b16 %v113
    %v531 = vunpack.c.l.b16 %v114
    %v532 = vunpack.c.h.b16 %v114
    %v533 = vunpack.c.l.b16 %v115
    %v534 = vunpack.c.h.b16 %v115
    %v535 = vunpack.c.l.b16 %v116
    %v536 = vunpack.c.h.b16 %v116
    %v537 = vunpack.c.l.b16 %v117
    %v538 = vunpack.c.h.b16 %v117
    %v539 = vunpack.c.l.b16 %v118
    %v540 = vunpack.c.h.b16 %v118
    %v541 = vunpack.c.l.b16 %v119
    %v542 = vunpack.c.h.b16 %v119
    %v543 = vunpack.c.l.b16 %v120
    %v544 = vunpack.c.h.b16 %v120
    %v545 = vunpack.c.l.b16 %v121
    %v546 = vunpack.c.h.b16 %v121
    %v547 = vunpack.c.l.b16 %v122
    %v548 = vunpack.c.h.b16 %v122
    %v549 = vunpack.c.l.b16 %v123
    %v550 = vunpack.c.h.b16 %v123
    %v551 = vunpack.c.l.b16 %v124
    %v552 = vunpack.c.h.b16 %v124
    %v553 = vunpack.c.l.b16 %v125
    %v554 = vunpack.c.h.b16 %v125
    %v555 = vunpack.c.l.b16 %v126
    %v556 = vunpack.c.h.b16 %v126
    %v557 = vunpack.c.l.b16 %v127
    %v558 = vunpack.c.h.b16 %v127
    %v559 = vunpack.c.l.b16 %v128
    %v560 = vunpack.c.h.b16 %v128
    %v561 = vunpack.c.l.b16 %v129
    %v562 = vunpack.c.h.b16 %v129
    %v563 = vunpack.c.l.b16 %v130
    %v564 = vunpack.c.h.b16 %v130
    %v565 = vunpack.c.l.b16 %v131
    %v566 = vunpack.c.h.b16 %v131
    %v567 = vunpack.c.l.b16 %v132
    %v568 = vunpack.c.h.b16 %v132
    %v569 = vunpack.c.l.b16 %v133
    %v570 = vunpack.c.h.b16 %v133
    %v571 = vunpack.c.l.b16 %v134
    %v572 = vunpack.c.h.b16 %v134
    %v573 = vunpack.c.l.b16 %v135
    %v574 = vunpack.c.h.b16 %v135
    %v575 = vunpack.c.l.b16 %v136
    %v576 = vunpack.c.h.b16 %v136
    %v577 = vunpack.c.l.b16 %v137
    %v578 = vunpack.c.h.b16 %v137
    %v579 = vunpack.c.l.b16 %v138
    %v580 = vunpack.c.h.b16 %v138
    %v581 = vunpack.c.l.b16 %v139
    %v582 = vunpack.c.h.b16 %v139
    %v583 = vunpack.c.l.b16 %v140
    %v584 = vunpack.c.h.b16 %v140
    %v585 = vunpack.c.l.b16 %v141
    %v586 = vunpack.c.h.b16 %v141
    %v587 = vunpack.c.l.b16 %v142
    %v588 = vunpack.c.h.b16 %v142
    %v589 = vunpack.c.l.b16 %v143
    %v590 = vunpack.c.h.b16 %v143
    %v591 = vunpack.c.l.b16 %v144
    %v592 = vunpack.c.h.b16 %v144
    %v593 = vunpack.c.l.b16 %v145
    %v594 = vunpack.c.h.b16 %v145
    %v595 = vunpack.c.l.b16 %v146
    %v596 = vunpack.c.h.b16 %v146
    %v597 = vunpack.c.l.b16 %v147
    %v598 = vunpack.c.h.b16 %v147
    %v599 = vunpack.c.l.b16 %v148
    %v600 = vunpack.c.h.b16 %v148
    %v601 = vunpack.c.l.b16 %v149
    %v602 = vunpack.c.h.b16 %v149
    %v603 = vunpack.c.l.b16 %v150
    %v604 = vunpack.c.h.b16 %v150
    %v605 = vpack.c.b16 %v351, %v349
    %v606 = vpack.c.b16 %v352, %v350
    %v607 = vpack.c.b16 %v355, %v353
    %v608 = vpack.c.b16 %v356, %v354
    %v609 = vpack.c.b16 %v359, %v357
    %v610 = vpack.c.b16 %v360, %v358
    %v611 = vpack.c.b16 %v363, %v361
    %v612 = vpack.c.b16 %v364, %v362
    %v613 = vpack.c.b16 %v367, %v365
    %v614 = vpack.c.b16 %v368, %v366
    %v615 = vpack.c.b16 %v371, %v369
    %v616 = vpack.c.b16 %v372, %v370
    %v617 = vpack.c.b16 %v375, %v373
    %v618 = vpack.c.b16 %v376, %v374
    %v619 = vpack.c.b16 %v379, %v377
    %v620 = vpack.c.b16 %v380, %v378
    %v621 = vpack.c.b16 %v383, %v381
    %v622 = vpack.c.b16 %v384, %v382
    %v623 = vpack.c.b16 %v387, %v385
    %v624 = vpack.c.b16 %v388, %v386
    %v625 = vpack.c.b16 %v391, %v389
    %v626 = vpack.c.b16 %v392, %v390
    %v627 = vpack.c.b16 %v395, %v393
    %v628 = vpack.c.b16 %v396, %v394
    %v629 = vpack.c.b16 %v399, %v397
    %v630 = vpack.c.b16 %v400, %v398
    %v631 = vpack.c.b16 %v403, %v401
    %v632 = vpack.c.b16 %v404, %v402
    %v633 = vpack.c.b16 %v407, %v405
    %v634 = vpack.c.b16 %v408, %v406
    %v635 = vpack.c.b16 %v411, %v409
    %v636 = vpack.c.b16 %v412, %v410
    %v637 = vpack.c.b16 %v415, %v413
    %v638 = vpack.c.b16 %v416, %v414
    %v639 = vpack.c.b16 %v419, %v417
    %v640 = vpack.c.b16 %v420, %v418
    %v641 = vpack.c.b16 %v423, %v421
    %v642 = vpack.c.b16 %v424, %v422
    %v643 = vpack.c.b16 %v427, %v425
    %v644 = vpack.c.b16 %v428, %v426
    %v645 = vpack.c.b16 %v431, %v429
    %v646 = vpack.c.b16 %v432, %v430
    %v647 = vpack.c.b16 %v435, %v433
    %v648 = vpack.c.b16 %v436, %v434
    %v649 = vpack.c.b16 %v439, %v437
    %v650 = vpack.c.b16 %v440, %v438
    %v651 = vpack.c.b16 %v443, %v441
    %v652 = vpack.c.b16 %v444, %v442
    %v653 = vpack.c.b16 %v447, %v445
    %v654 = vpack.c.b16 %v448, %v446
    %v655 = vpack.c.b16 %v451, %v449
    %v656 = vpack.c.b16 %v452, %v450
    %v657 = vpack.c.b16 %v455, %v453
    %v658 = vpack.c.b16 %v456, %v454
    %v659 = vpack.c.b16 %v459, %v457
    %v660 = vpack.c.b16 %v460, %v458
    %v661 = vpack.c.b16 %v463, %v461
    %v662 = vpack.c.b16 %v464, %v462
    %v663 = vpack.c.b16 %v467, %v465
    %v664 = vpack.c.b16 %v468, %v466
    %v665 = vpack.c.b16 %v471, %v469
    %v666 = vpack.c.b16 %v472, %v470
    %v667 = vpack.c.b16 %v475, %v473
    %v668 = vpack.c.b16 %v476, %v474
    %v669 = vpack.c.b16 %v479, %v477
    %v670 = vpack.c.b16 %v480, %v478
    %v671 = vpack.c.b16 %v483, %v481
    %v672 = vpack.c.b16 %v484, %v482
    %v673 = vpack.c.b16 %v487, %v485
    %v674 = vpack.c.b16 %v488, %v486
    %v675 = vpack.c.b16 %v491, %v489
    %v676 = vpack.c.b16 %v492, %v490
    %v677 = vpack.c.b16 %v495, %v493
    %v678 = vpack.c.b16 %v496, %v494
    %v679 = vpack.c.b16 %v499, %v497
    %v680 = vpack.c.b16 %v500, %v498
    %v681 = vpack.c.b16 %v503, %v501
    %v682 = vpack.c.b16 %v504, %v502
    %v683 = vpack.c.b16 %v507, %v505
    %v684 = vpack.c.b16 %v508, %v506
    %v685 = vpack.c.b16 %v511, %v509
    %v686 = vpack.c.b16 %v512, %v510
    %v687 = vpack.c.b16 %v515, %v513
    %v688 = vpack.c.b16 %v516, %v514
    %v689 = vpack.c.b16 %v519, %v517
    %v690 = vpack.c.b16 %v520, %v518
    %v691 = vpack.c.b16 %v523, %v521
    %v692 = vpack.c.b16 %v524, %v522
    %v693 = vpack.c.b16 %v527, %v525
    %v694 = vpack.c.b16 %v528, %v526
    %v695 = vpack.c.b16 %v531, %v529
    %v696 = vpack.c.b16 %v532, %v530
    %v697 = vpack.c.b16 %v535, %v533
    %v698 = vpack.c.b16 %v536, %v534
    %v699 = vpack.c.b16 %v539, %v537
    %v700 = vpack.c.b16 %v540, %v538
    %v701 = vpack.c.b16 %v543, %v541
    %v702 = vpack.c.b16 %v544, %v542
    %v703 = vpack.c.b16 %v547, %v545
    %v704 = vpack.c.b16 %v548, %v546
    %v705 = vpack.c.b16 %v551, %v549
    %v706 = vpack.c.b16 %v552, %v550
    %v707 = vpack.c.b16 %v555, %v553
    %v708 = vpack.c.b16 %v556, %v554
    %v709 = vpack.c.b16 %v559, %v557
    %v710 = vpack.c.b16 %v560, %v558
    %v711 = vpack.c.b16 %v563, %v561
    %v712 = vpack.c.b16 %v564, %v562
    %v713 = vpack.c.b16 %v567, %v565
    %v714 = vpack.c.b16 %v568, %v566
    %v715 = vpack.c.b16 %v571, %v569
    %v716 = vpack.c.b16 %v572, %v570
    %v717 = vpack.c.b16 %v575, %v573
    %v718 = vpack.c.b16 %v576, %v574
    %v719 = vpack.c.b16 %v579, %v577
    %v720 = vpack.c.b16 %v580, %v578
    %v721 = vpack.c.b16 %v583, %v581
    %v722 = vpack.c.b16 %v584, %v582
    %v723 = vpack.c.b16 %v587, %v585
    %v724 = vpack.c.b16 %v588, %v586
    %v725 = vpack.c.b16 %v591, %v589
    %v726 = vpack.c.b16 %v592, %v590
    %v727 = vpack.c.b16 %v595, %v593
    %v728 = vpack.c.b16 %v596, %v594
    %v729 = vpack.c.b16 %v599, %v597
    %v730 = vpack.c.b16 %v600, %v598
    %v731 = vpack.c.b16 %v603, %v601
    %v732 = vpack.c.b16 %v604, %v602
    %861 = vmatprep.subr.bf16.mxu0 %v620
    %862 = vmatpush1.bf16.msra.mxu0 %v619
    %863 = vmatprep.subr.bf16.mxu0 %v618
    %864 = vmatpush1.bf16.msra.mxu0 %v617
    %865 = vmatprep.subr.bf16.mxu0 %v616
    %866 = vmatpush1.bf16.msra.mxu0 %v615
    %867 = vmatprep.subr.bf16.mxu0 %v614
    %868 = vmatpush1.bf16.msra.mxu0 %v613
    %869 = vmatprep.subr.bf16.mxu0 %v612
    %870 = vmatpush1.bf16.msra.mxu0 %v611
    %871 = vmatprep.subr.bf16.mxu0 %v610
    %872 = vmatpush1.bf16.msra.mxu0 %v609
    %873 = vmatprep.subr.bf16.mxu0 %v608
    %874 = vmatpush1.bf16.msra.mxu0 %v607
    %875 = vmatprep.subr.bf16.mxu0 %v606
    %876 = vmatpush1.bf16.msra.mxu0 %v605
    %877 = vmatprep.subr.bf16.mxu0 %v636
    %878 = vmatpush2.bf16.msra.mxu0 %v635
    %879 = vmatprep.subr.bf16.mxu0 %v634
    %880 = vmatpush2.bf16.msra.mxu0 %v633
    %881 = vmatprep.subr.bf16.mxu0 %v632
    %882 = vmatpush2.bf16.msra.mxu0 %v631
    %883 = vmatprep.subr.bf16.mxu0 %v630
    %884 = vmatpush2.bf16.msra.mxu0 %v629
    %885 = vmatprep.subr.bf16.mxu0 %v628
    %886 = vmatpush2.bf16.msra.mxu0 %v627
    %887 = vmatprep.subr.bf16.mxu0 %v626
    %888 = vmatpush2.bf16.msra.mxu0 %v625
    %889 = vmatprep.subr.bf16.mxu0 %v624
    %890 = vmatpush2.bf16.msra.mxu0 %v623
    %891 = vmatprep.subr.bf16.mxu0 %v622
    %892 = vmatpush2.bf16.msra.mxu0 %v621
    %893 = vmatprep.mubr.bf16.mxu0 %v201
    %894 = vmatmul.mubr.bf16.gmra.mxu0 %v187
    %v895 = vpop.f32.mrf.mxu0
    %v896 = vadd.f32 %v156, %v895
    %v897 = vpop.f32.mrf.mxu0
    %v898 = vadd.f32 %v160, %v897
    %v899 = vpop.f32.mrf.mxu0
    %v900 = vpop.f32.mrf.mxu0
    %901 = vdwg.mxu0
    %902 = vmatprep.subr.bf16.mxu0 %v652
    %903 = vmatpush1.bf16.msra.mxu0 %v651
    %904 = vmatprep.subr.bf16.mxu0 %v650
    %905 = vmatpush1.bf16.msra.mxu0 %v649
    %906 = vmatprep.subr.bf16.mxu0 %v648
    %907 = vmatpush1.bf16.msra.mxu0 %v647
    %908 = vmatprep.subr.bf16.mxu0 %v646
    %909 = vmatpush1.bf16.msra.mxu0 %v645
    %910 = vmatprep.subr.bf16.mxu0 %v644
    %911 = vmatpush1.bf16.msra.mxu0 %v643
    %912 = vmatprep.subr.bf16.mxu0 %v642
    %913 = vmatpush1.bf16.msra.mxu0 %v641
    %914 = vmatprep.subr.bf16.mxu0 %v640
    %915 = vmatpush1.bf16.msra.mxu0 %v639
    %916 = vmatprep.subr.bf16.mxu0 %v638
    %917 = vmatpush1.bf16.msra.mxu0 %v637
    %918 = vmatprep.subr.bf16.mxu0 %v668
    %919 = vmatpush2.bf16.msra.mxu0 %v667
    %920 = vmatprep.subr.bf16.mxu0 %v666
    %921 = vmatpush2.bf16.msra.mxu0 %v665
    %922 = vmatprep.subr.bf16.mxu0 %v664
    %923 = vmatpush2.bf16.msra.mxu0 %v663
    %924 = vmatprep.subr.bf16.mxu0 %v662
    %925 = vmatpush2.bf16.msra.mxu0 %v661
    %926 = vmatprep.subr.bf16.mxu0 %v660
    %927 = vmatpush2.bf16.msra.mxu0 %v659
    %928 = vmatprep.subr.bf16.mxu0 %v658
    %929 = vmatpush2.bf16.msra.mxu0 %v657
    %930 = vmatprep.subr.bf16.mxu0 %v656
    %931 = vmatpush2.bf16.msra.mxu0 %v655
    %932 = vmatprep.subr.bf16.mxu0 %v654
    %933 = vmatpush2.bf16.msra.mxu0 %v653
    %934 = vmatprep.mubr.bf16.mxu0 %v211
    %935 = vmatmul.mubr.bf16.gmra.mxu0 %v209
    %v936 = vpop.f32.mrf.mxu0
    %v937 = vadd.f32 %v896, %v936
    %v938 = vpop.f32.mrf.mxu0
    %v939 = vadd.f32 %v898, %v938
    %v940 = vpop.f32.mrf.mxu0
    %v941 = vpop.f32.mrf.mxu0
    %942 = vdwg.mxu0
    %943 = vmatprep.subr.bf16.mxu0 %v684
    %944 = vmatpush1.bf16.msra.mxu0 %v683
    %945 = vmatprep.subr.bf16.mxu0 %v682
    %946 = vmatpush1.bf16.msra.mxu0 %v681
    %947 = vmatprep.subr.bf16.mxu0 %v680
    %948 = vmatpush1.bf16.msra.mxu0 %v679
    %949 = vmatprep.subr.bf16.mxu0 %v678
    %950 = vmatpush1.bf16.msra.mxu0 %v677
    %951 = vmatprep.subr.bf16.mxu0 %v676
    %952 = vmatpush1.bf16.msra.mxu0 %v675
    %953 = vmatprep.subr.bf16.mxu0 %v674
    %954 = vmatpush1.bf16.msra.mxu0 %v673
    %955 = vmatprep.subr.bf16.mxu0 %v672
    %956 = vmatpush1.bf16.msra.mxu0 %v671
    %957 = vmatprep.subr.bf16.mxu0 %v670
    %958 = vmatpush1.bf16.msra.mxu0 %v669
    %959 = vmatprep.subr.bf16.mxu0 %v700
    %960 = vmatpush2.bf16.msra.mxu0 %v699
    %961 = vmatprep.subr.bf16.mxu0 %v698
    %962 = vmatpush2.bf16.msra.mxu0 %v697
    %963 = vmatprep.subr.bf16.mxu0 %v696
    %964 = vmatpush2.bf16.msra.mxu0 %v695
    %965 = vmatprep.subr.bf16.mxu0 %v694
    %966 = vmatpush2.bf16.msra.mxu0 %v693
    %967 = vmatprep.subr.bf16.mxu0 %v692
    %968 = vmatpush2.bf16.msra.mxu0 %v691
    %969 = vmatprep.subr.bf16.mxu0 %v690
    %970 = vmatpush2.bf16.msra.mxu0 %v689
    %971 = vmatprep.subr.bf16.mxu0 %v688
    %972 = vmatpush2.bf16.msra.mxu0 %v687
    %973 = vmatprep.subr.bf16.mxu0 %v686
    %974 = vmatpush2.bf16.msra.mxu0 %v685
    %975 = vmatprep.mubr.bf16.mxu0 %v208
    %976 = vmatmul.mubr.bf16.gmra.mxu0 %v194
    %v977 = vpop.f32.mrf.mxu0
    %v978 = vadd.f32 %v937, %v977
    %v979 = vpop.f32.mrf.mxu0
    %v980 = vadd.f32 %v939, %v979
    %v981 = vpop.f32.mrf.mxu0
    %v982 = vpop.f32.mrf.mxu0
    %983 = vdwg.mxu0
    %984 = vmatprep.subr.bf16.mxu0 %v716
    %985 = vmatpush1.bf16.msra.mxu0 %v715
    %986 = vmatprep.subr.bf16.mxu0 %v714
    %987 = vmatpush1.bf16.msra.mxu0 %v713
    %988 = vmatprep.subr.bf16.mxu0 %v712
    %989 = vmatpush1.bf16.msra.mxu0 %v711
    %990 = vmatprep.subr.bf16.mxu0 %v710
    %991 = vmatpush1.bf16.msra.mxu0 %v709
    %992 = vmatprep.subr.bf16.mxu0 %v708
    %993 = vmatpush1.bf16.msra.mxu0 %v707
    %994 = vmatprep.subr.bf16.mxu0 %v706
    %995 = vmatpush1.bf16.msra.mxu0 %v705
    %996 = vmatprep.subr.bf16.mxu0 %v704
    %997 = vmatpush1.bf16.msra.mxu0 %v703
    %998 = vmatprep.subr.bf16.mxu0 %v702
    %999 = vmatpush1.bf16.msra.mxu0 %v701
    %1000 = vmatprep.subr.bf16.mxu0 %v732
    %1001 = vmatpush2.bf16.msra.mxu0 %v731
    %1002 = vmatprep.subr.bf16.mxu0 %v730
    %1003 = vmatpush2.bf16.msra.mxu0 %v729
    %1004 = vmatprep.subr.bf16.mxu0 %v728
    %1005 = vmatpush2.bf16.msra.mxu0 %v727
    %1006 = vmatprep.subr.bf16.mxu0 %v726
    %1007 = vmatpush2.bf16.msra.mxu0 %v725
    %1008 = vmatprep.subr.bf16.mxu0 %v724
    %1009 = vmatpush2.bf16.msra.mxu0 %v723
    %1010 = vmatprep.subr.bf16.mxu0 %v722
    %1011 = vmatpush2.bf16.msra.mxu0 %v721
    %1012 = vmatprep.subr.bf16.mxu0 %v720
    %1013 = vmatpush2.bf16.msra.mxu0 %v719
    %1014 = vmatprep.subr.bf16.mxu0 %v718
    %1015 = vmatpush2.bf16.msra.mxu0 %v717
    %1016 = vmatprep.mubr.bf16.mxu0 %v212
    %1017 = vmatmul.mubr.bf16.gmra.mxu0 %v210
    %v1018 = vpop.f32.mrf.mxu0
    %v1019 = vadd.f32 %v978, %v1018
    %v1020 = vpop.f32.mrf.mxu0
    %v1021 = vadd.f32 %v980, %v1020
    %v1022 = vpop.f32.mrf.mxu0
    %v1023 = vpop.f32.mrf.mxu0
    %1024 = vdwg.mxu0
    %v1025 = vmax.f32 %v1019, 0.0
    %v1026 = vmax.f32 %v1021, 0.0
    %v1027 = vpack.c.bf16 %v1025, %v1025
    %v1028 = vpack.c.bf16 %v1026, %v1026
    %v1029 = vld [vmem:[%s3] sm:$0xf]
    %v1030 = vld [vmem:[%s3 + $0x4] sm:$0xf]
    %v1031 = vld [vmem:[%s3 + $0x8] sm:$0xf]
    %v1032 = vld [vmem:[%s3 + $0xc] sm:$0xf]
    %v1033 = vld [vmem:[%s3 + $0x10] sm:$0xf]
    %v1034 = vld [vmem:[%s3 + $0x14] sm:$0xf]
    %v1035 = vld [vmem:[%s3 + $0x18] sm:$0xf]
    %v1036 = vld [vmem:[%s3 + $0x1c] sm:$0xf]
    %v1037 = vld [vmem:[%s3 + $0x20] sm:$0xf]
    %v1038 = vld [vmem:[%s3 + $0x24] sm:$0xf]
    %v1039 = vld [vmem:[%s3 + $0x28] sm:$0xf]
    %v1040 = vld [vmem:[%s3 + $0x2c] sm:$0xf]
    %v1041 = vld [vmem:[%s3 + $0x30] sm:$0xf]
    %v1042 = vld [vmem:[%s3 + $0x34] sm:$0xf]
    %v1043 = vld [vmem:[%s3 + $0x38] sm:$0xf]
    %v1044 = vld [vmem:[%s3 + $0x3c] sm:$0xf]
    %v1045 = vld [vmem:[%s3 + $0x40] sm:$0xf]
    %v1046 = vld [vmem:[%s3 + $0x44] sm:$0xf]
    %v1047 = vld [vmem:[%s3 + $0x48] sm:$0xf]
    %v1048 = vld [vmem:[%s3 + $0x4c] sm:$0xf]
    %v1049 = vld [vmem:[%s3 + $0x50] sm:$0xf]
    %v1050 = vld [vmem:[%s3 + $0x54] sm:$0xf]
    %v1051 = vld [vmem:[%s3 + $0x58] sm:$0xf]
    %v1052 = vld [vmem:[%s3 + $0x5c] sm:$0xf]
    %v1053 = vld [vmem:[%s3 + $0x60] sm:$0xf]
    %v1054 = vld [vmem:[%s3 + $0x64] sm:$0xf]
    %v1055 = vld [vmem:[%s3 + $0x68] sm:$0xf]
    %v1056 = vld [vmem:[%s3 + $0x6c] sm:$0xf]
    %v1057 = vld [vmem:[%s3 + $0x70] sm:$0xf]
    %v1058 = vld [vmem:[%s3 + $0x74] sm:$0xf]
    %v1059 = vld [vmem:[%s3 + $0x78] sm:$0xf]
    %v1060 = vld [vmem:[%s3 + $0x7c] sm:$0xf]
    %v1061 = vld [vmem:[%s4] sm:$0x1]
    %v1063 = vlaneseq
    %v1064 = vshrl.u32 %v1063, 7
    %v1065 = vsub.s32 0, %v1064
    %v1066 = vrot.slane %v1061, %v1065
    %v1100 = vunpack.c.l.b16 %v1029
    %v1101 = vunpack.c.l.b16 %v1030
    %v1102 = vunpack.c.l.b16 %v1031
    %v1103 = vunpack.c.l.b16 %v1032
    %v1104 = vunpack.c.l.b16 %v1033
    %v1105 = vunpack.c.l.b16 %v1034
    %v1106 = vunpack.c.l.b16 %v1035
    %v1107 = vunpack.c.l.b16 %v1036
    %v1108 = vunpack.c.l.b16 %v1037
    %v1109 = vunpack.c.l.b16 %v1038
    %v1110 = vunpack.c.l.b16 %v1039
    %v1111 = vunpack.c.l.b16 %v1040
    %v1112 = vunpack.c.l.b16 %v1041
    %v1113 = vunpack.c.l.b16 %v1042
    %v1114 = vunpack.c.l.b16 %v1043
    %v1115 = vunpack.c.l.b16 %v1044
    %v1116 = vunpack.c.l.b16 %v1045
    %v1117 = vunpack.c.l.b16 %v1046
    %v1118 = vunpack.c.l.b16 %v1047
    %v1119 = vunpack.c.l.b16 %v1048
    %v1120 = vunpack.c.l.b16 %v1049
    %v1121 = vunpack.c.l.b16 %v1050
    %v1122 = vunpack.c.l.b16 %v1051
    %v1123 = vunpack.c.l.b16 %v1052
    %v1124 = vunpack.c.l.b16 %v1053
    %v1125 = vunpack.c.l.b16 %v1054
    %v1126 = vunpack.c.l.b16 %v1055
    %v1127 = vunpack.c.l.b16 %v1056
    %v1128 = vunpack.c.l.b16 %v1057
    %v1129 = vunpack.c.l.b16 %v1058
    %v1130 = vunpack.c.l.b16 %v1059
    %v1131 = vunpack.c.l.b16 %v1060
    %v1132 = vpack.c.b16 %v1101, %v1100
    %v1133 = vpack.c.b16 %v1103, %v1102
    %v1134 = vpack.c.b16 %v1105, %v1104
    %v1135 = vpack.c.b16 %v1107, %v1106
    %v1136 = vpack.c.b16 %v1109, %v1108
    %v1137 = vpack.c.b16 %v1111, %v1110
    %v1138 = vpack.c.b16 %v1113, %v1112
    %v1139 = vpack.c.b16 %v1115, %v1114
    %v1140 = vpack.c.b16 %v1117, %v1116
    %v1141 = vpack.c.b16 %v1119, %v1118
    %v1142 = vpack.c.b16 %v1121, %v1120
    %v1143 = vpack.c.b16 %v1123, %v1122
    %v1144 = vpack.c.b16 %v1125, %v1124
    %v1145 = vpack.c.b16 %v1127, %v1126
    %v1146 = vpack.c.b16 %v1129, %v1128
    %v1147 = vpack.c.b16 %v1131, %v1130
    %1164 = vmatprep.subr.bf16.mxu0 0
    %1165 = vmatpush1.bf16.msra.mxu0 %v1139
    %1166 = vmatprep.subr.bf16.mxu0 0
    %1167 = vmatpush1.bf16.msra.mxu0 %v1138
    %1168 = vmatprep.subr.bf16.mxu0 0
    %1169 = vmatpush1.bf16.msra.mxu0 %v1137
    %1170 = vmatprep.subr.bf16.mxu0 0
    %1171 = vmatpush1.bf16.msra.mxu0 %v1136
    %1172 = vmatprep.subr.bf16.mxu0 0
    %1173 = vmatpush1.bf16.msra.mxu0 %v1135
    %1174 = vmatprep.subr.bf16.mxu0 0
    %1175 = vmatpush1.bf16.msra.mxu0 %v1134
    %1176 = vmatprep.subr.bf16.mxu0 0
    %1177 = vmatpush1.bf16.msra.mxu0 %v1133
    %1178 = vmatprep.subr.bf16.mxu0 0
    %1179 = vmatpush1.bf16.msra.mxu0 %v1132
    %1180 = vmatprep.subr.bf16.mxu0 0
    %1181 = vmatpush2.bf16.msra.mxu0 %v1147
    %1182 = vmatprep.subr.bf16.mxu0 0
    %1183 = vmatpush2.bf16.msra.mxu0 %v1146
    %1184 = vmatprep.subr.bf16.mxu0 0
    %1185 = vmatpush2.bf16.msra.mxu0 %v1145
    %1186 = vmatprep.subr.bf16.mxu0 0
    %1187 = vmatpush2.bf16.msra.mxu0 %v1144
    %1188 = vmatprep.subr.bf16.mxu0 0
    %1189 = vmatpush2.bf16.msra.mxu0 %v1143
    %1190 = vmatprep.subr.bf16.mxu0 0
    %1191 = vmatpush2.bf16.msra.mxu0 %v1142
    %1192 = vmatprep.subr.bf16.mxu0 0
    %1193 = vmatpush2.bf16.msra.mxu0 %v1141
    %1194 = vmatprep.subr.bf16.mxu0 0
    %1195 = vmatpush2.bf16.msra.mxu0 %v1140
    %1196 = vmatprep.mubr.bf16.mxu0 %v1028
    %1197 = vmatmul.mubr.bf16.gmra.mxu0 %v1027
    %v1198 = vpop.f32.mrf.mxu0
    %v1199 = vadd.f32 %v1066, %v1198
    %v1200 = vpop.f32.mrf.mxu0
    %v1201 = vpop.f32.mrf.mxu0
    %v1202 = vpop.f32.mrf.mxu0
    %1203 = vdwg.mxu0
    %1204 = vst [vmem:[#allocation2] sm:$0x3] %v1199
    // Predicated region
    $region22: #{forward.3} parent=1 // pred_check
      _
    $region23: #{forward.3} parent=1 // pred_check_branch
      %1206 = sbr.rel (0) target = $region25
    $region24: #{forward.3} parent=1 // pred_region
      %s1208 = ssub.s32 32, 32
      %1209 = vsyncadd [#allocation3], %s1208
      %s1211 = sshll.u32 [#allocation2], 4
      %s1212 = int_to_ptr.vmem [resolvable:$true] %s1211
      %1214 = dma.vmem_to_hbm [thread:$0]  %s1212, 32, %s5, [#allocation3]
    $region25: #{forward.3} parent=1 // pred_fallthru
      _
    // Predicated region
    $region26: #{forward.3} parent=1 // pred_check
      _
    $region27: #{forward.3} parent=1 // pred_check_branch
      %1216 = sbr.rel (0) target = $region29
    $region28: #{forward.3} parent=1 // pred_region
      %1217 = dma.done [#allocation3], 32
    $region29: #{forward.3} parent=1 // pred_fallthru
      _
    %1218 = vsyncpa [#allocation3], 1

// kernel: forward.2
$region0: #{forward.2}
  #allocation0 [shape = 'u32[]', space=smem, size = 0x4, offset = 0x4, fixed_abs, tag = 'smem constant byte address 0x4 - core index']
  #allocation1 [shape = 'u32[144,128]{1,0:T(1,128)}', space=vmem, size = 0x12000, scoped, tag = 'internal scratch']
  %s0 = inlined_call_operand.vmem [shape: bf16[8,1280], index: 0, kind: input, shape index: {}]
  %s1 = inlined_call_operand.hbm [shape: bf16[2,384,256], index: 1, kind: input, shape index: {}]
  %s2 = inlined_call_operand.vmem [shape: f32[1,256], index: 2, kind: input, shape index: {}]
  %s3 = inlined_call_operand.hbm [shape: bf16[2,768,256], index: 3, kind: input, shape index: {}]
  %s4 = inlined_call_operand.hbm [shape: f32[1,256], index: 4, kind: input, shape index: {}]
  %s5 = inlined_call_operand.vmem [shape: bf16[2,768,256], index: 5, kind: input, shape index: {}]
  %s6 = inlined_call_operand.hbm [shape: f32[1,256], index: 6, kind: input, shape index: {}]
  %s7 = inlined_call_operand.vmem [shape: bf16[8,256], index: 7, kind: output, shape index: {}]
  %s8 = sld [smem:[#allocation0]]
  $region54: #{forward.2} parent=0
    _
  %s10 = ssub.s32 1, %s8
  %s11 = scalar_select 0, %s10, %s8
  $region1: #{forward.2} parent=0
    #allocation2 [shape = 'u8[393216]{0}', space=vmem, size = 0x60000, scoped, tag = 'input window, operand 1, single buffered']
    #allocation3 [shape = 's32[1]{0}', space=sflag, size = 0x4, scoped, tag = 'scoped memory for forward.2']
    #allocation4 [shape = 'u8[786432]{0}', space=vmem, size = 0xc0000, scoped, tag = 'input window, operand 3, single buffered']
    #allocation5 [shape = 's32[1]{0}', space=sflag, size = 0x4, scoped, tag = 'scoped memory for forward.2']
    #allocation6 [shape = 'u8[1024]{0}', space=vmem, size = 0x400, scoped, tag = 'input window, operand 4, single buffered']
    #allocation7 [shape = 'u8[1024]{0}', space=vmem, size = 0x400, scoped, tag = 'input window, operand 6, single buffered']
    #allocation8 [shape = 's32[1]{0}', space=sflag, size = 0x4, scoped, tag = 'scoped memory for forward.2']
    %12 = vsyncpa [#allocation3], 0
    %13 = vsyncpa [#allocation5], 0
    %14 = vsyncpa [#allocation8], 0
    // Predicated region
    $region2: #{forward.2} parent=1 // pred_check
      _
    $region3: #{forward.2} parent=1 // pred_check_branch
      %16 = sbr.rel (0) target = $region5
    $region4: #{forward.2} parent=1 // pred_region
      _
    $region5: #{forward.2} parent=1 // pred_fallthru
      _
    // Predicated region
    $region6: #{forward.2} parent=1 // pred_check
      _
    $region7: #{forward.2} parent=1 // pred_check_branch
      %18 = sbr.rel (0) target = $region9
    $region8: #{forward.2} parent=1 // pred_region
      %s20 = ssub.s32 12288, 12288
      %21 = vsyncadd [#allocation3], %s20
      %s22 = sshll.u32 [#allocation2], 4
      %s23 = int_to_ptr.vmem [resolvable:$true] %s22
      %28 = dma.hbm_to_vmem [thread:$0]  %s1, 12288, %s23, [#allocation3], 128, 128, 8
    $region9: #{forward.2} parent=1 // pred_fallthru
      _
    // Predicated region
    $region10: #{forward.2} parent=1 // pred_check
      _
    $region11: #{forward.2} parent=1 // pred_check_branch
      %30 = sbr.rel (0) target = $region13
    $region12: #{forward.2} parent=1 // pred_region
      _
    $region13: #{forward.2} parent=1 // pred_fallthru
      _
    // Predicated region
    $region14: #{forward.2} parent=1 // pred_check
      _
    $region15: #{forward.2} parent=1 // pred_check_branch
      %32 = sbr.rel (0) target = $region17
    $region16: #{forward.2} parent=1 // pred_region
      %s34 = ssub.s32 24576, 24576
      %35 = vsyncadd [#allocation5], %s34
      %s36 = sshll.u32 [#allocation4], 4
      %s37 = int_to_ptr.vmem [resolvable:$true] %s36
      %42 = dma.hbm_to_vmem [thread:$0]  %s3, 24576, %s37, [#allocation5], 128, 128, 8
    $region17: #{forward.2} parent=1 // pred_fallthru
      _
    // Predicated region
    $region18: #{forward.2} parent=1 // pred_check
      _
    $region19: #{forward.2} parent=1 // pred_check_branch
      %44 = sbr.rel (0) target = $region21
    $region20: #{forward.2} parent=1 // pred_region
      %s46 = ssub.s32 32, 32
      %47 = vsyncadd [#allocation5], %s46
      %s49 = sshll.u32 [#allocation6], 4
      %s50 = int_to_ptr.vmem [resolvable:$true] %s49
      %52 = dma.hbm_to_vmem [thread:$0]  %s4, 32, %s50, [#allocation5]
    $region21: #{forward.2} parent=1 // pred_fallthru
      _
    // Predicated region
    $region22: #{forward.2} parent=1 // pred_check
      _
    $region23: #{forward.2} parent=1 // pred_check_branch
      %54 = sbr.rel (0) target = $region25
    $region24: #{forward.2} parent=1 // pred_region
      _
    $region25: #{forward.2} parent=1 // pred_fallthru
      _
    // Predicated region
    $region26: #{forward.2} parent=1 // pred_check
      _
    $region27: #{forward.2} parent=1 // pred_check_branch
      %56 = sbr.rel (0) target = $region29
    $region28: #{forward.2} parent=1 // pred_region
      %s58 = ssub.s32 32, 32
      %59 = vsyncadd [#allocation8], %s58
      %s61 = sshll.u32 [#allocation7], 4
      %s62 = int_to_ptr.vmem [resolvable:$true] %s61
      %64 = dma.hbm_to_vmem [thread:$0]  %s6, 32, %s62, [#allocation8]
    $region29: #{forward.2} parent=1 // pred_fallthru
      _
    // Predicated region
    $region30: #{forward.2} parent=1 // pred_check
      _
    $region31: #{forward.2} parent=1 // pred_check_branch
      %66 = sbr.rel (0) target = $region33
    $region32: #{forward.2} parent=1 // pred_region
      %67 = dma.done [#allocation3], 12288
    $region33: #{forward.2} parent=1 // pred_fallthru
      _
    // Predicated region
    $region34: #{forward.2} parent=1 // pred_check
      _
    $region35: #{forward.2} parent=1 // pred_check_branch
      %69 = sbr.rel (0) target = $region37
    $region36: #{forward.2} parent=1 // pred_region
      %70 = dma.done [#allocation5], 24576
    $region37: #{forward.2} parent=1 // pred_fallthru
      _
    // Predicated region
    $region38: #{forward.2} parent=1 // pred_check
      _
    $region39: #{forward.2} parent=1 // pred_check_branch
      %72 = sbr.rel (0) target = $region41
    $region40: #{forward.2} parent=1 // pred_region
      %73 = dma.done [#allocation5], 32
    $region41: #{forward.2} parent=1 // pred_fallthru
      _
    // Predicated region
    $region42: #{forward.2} parent=1 // pred_check
      _
    $region43: #{forward.2} parent=1 // pred_check_branch
      %75 = sbr.rel (0) target = $region45
    $region44: #{forward.2} parent=1 // pred_region
      %76 = dma.done [#allocation8], 32
    $region45: #{forward.2} parent=1 // pred_fallthru
      _
    %v80 = vld [vmem:[%s0] sm:$0xf]
    %v81 = vld [vmem:[%s0 + $0x4] sm:$0xf]
    %v82 = vld [vmem:[%s0 + $0x8] sm:$0xf]
    %v83 = vld [vmem:[%s0 + $0xc] sm:$0xf]
    %v84 = vld [vmem:[%s0 + $0x10] sm:$0xf]
    %v85 = vld [vmem:[%s0 + $0x14] sm:$0xf]
    %v86 = vld [vmem:[%s0 + $0x18] sm:$0xf]
    %v87 = vld [vmem:[%s0 + $0x1c] sm:$0xf]
    %v88 = vld [vmem:[%s0 + $0x20] sm:$0xf]
    %v89 = vld [vmem:[%s0 + $0x24] sm:$0xf]
    %v90 = vld [vmem:[%s2] sm:$0x3]
    %v91 = vld [vmem:[#allocation2] sm:$0xff]
    %v92 = vld [vmem:[#allocation2 + $0x8] sm:$0xff]
    %v93 = vld [vmem:[#allocation2 + $0x10] sm:$0xff]
    %v94 = vld [vmem:[#allocation2 + $0x18] sm:$0xff]
    %v95 = vld [vmem:[#allocation2 + $0x20] sm:$0xff]
    %v96 = vld [vmem:[#allocation2 + $0x28] sm:$0xff]
    %v97 = vld [vmem:[#allocation2 + $0x30] sm:$0xff]
    %v98 = vld [vmem:[#allocation2 + $0x38] sm:$0xff]
    %v99 = vld [vmem:[#allocation2 + $0x40] sm:$0xff]
    %v100 = vld [vmem:[#allocation2 + $0x48] sm:$0xff]
    %v101 = vld [vmem:[#allocation2 + $0x50] sm:$0xff]
    %v102 = vld [vmem:[#allocation2 + $0x58] sm:$0xff]
    %v103 = vld [vmem:[#allocation2 + $0x60] sm:$0xff]
    %v104 = vld [vmem:[#allocation2 + $0x68] sm:$0xff]
    %v105 = vld [vmem:[#allocation2 + $0x70] sm:$0xff]
    %v106 = vld [vmem:[#allocation2 + $0x78] sm:$0xff]
    %v107 = vld [vmem:[#allocation2 + $0x80] sm:$0xff]
    %v108 = vld [vmem:[#allocation2 + $0x88] sm:$0xff]
    %v109 = vld [vmem:[#allocation2 + $0x90] sm:$0xff]
    %v110 = vld [vmem:[#allocation2 + $0x98] sm:$0xff]
    %v111 = vld [vmem:[#allocation2 + $0xa0] sm:$0xff]
    %v112 = vld [vmem:[#allocation2 + $0xa8] sm:$0xff]
    %v113 = vld [vmem:[#allocation2 + $0xb0] sm:$0xff]
    %v114 = vld [vmem:[#allocation2 + $0xb8] sm:$0xff]
    %v115 = vld [vmem:[#allocation2 + $0xc0] sm:$0xff]
    %v116 = vld [vmem:[#allocation2 + $0xc8] sm:$0xff]
    %v117 = vld [vmem:[#allocation2 + $0xd0] sm:$0xff]
    %v118 = vld [vmem:[#allocation2 + $0xd8] sm:$0xff]
    %v119 = vld [vmem:[#allocation2 + $0xe0] sm:$0xff]
    %v120 = vld [vmem:[#allocation2 + $0xe8] sm:$0xff]
    %v121 = vld [vmem:[#allocation2 + $0xf0] sm:$0xff]
    %v122 = vld [vmem:[#allocation2 + $0xf8] sm:$0xff]
    %v123 = vld [vmem:[#allocation2 + $0x100] sm:$0xff]
    %v124 = vld [vmem:[#allocation2 + $0x108] sm:$0xff]
    %v125 = vld [vmem:[#allocation2 + $0x110] sm:$0xff]
    %v126 = vld [vmem:[#allocation2 + $0x118] sm:$0xff]
    %v127 = vld [vmem:[#allocation2 + $0x120] sm:$0xff]
    %v128 = vld [vmem:[#allocation2 + $0x128] sm:$0xff]
    %v129 = vld [vmem:[#allocation2 + $0x130] sm:$0xff]
    %v130 = vld [vmem:[#allocation2 + $0x138] sm:$0xff]
    %v131 = vld [vmem:[#allocation2 + $0x140] sm:$0xff]
    %v132 = vld [vmem:[#allocation2 + $0x148] sm:$0xff]
    %v133 = vld [vmem:[#allocation2 + $0x150] sm:$0xff]
    %v134 = vld [vmem:[#allocation2 + $0x158] sm:$0xff]
    %v135 = vld [vmem:[#allocation2 + $0x160] sm:$0xff]
    %v136 = vld [vmem:[#allocation2 + $0x168] sm:$0xff]
    %v137 = vld [vmem:[#allocation2 + $0x170] sm:$0xff]
    %v138 = vld [vmem:[#allocation2 + $0x178] sm:$0xff]
    %v187 = vunpack.c.l.b16 %v91
    %v188 = vunpack.c.h.b16 %v91
    %v189 = vunpack.c.l.b16 %v92
    %v190 = vunpack.c.h.b16 %v92
    %v191 = vunpack.c.l.b16 %v93
    %v192 = vunpack.c.h.b16 %v93
    %v193 = vunpack.c.l.b16 %v94
    %v194 = vunpack.c.h.b16 %v94
    %v195 = vunpack.c.l.b16 %v95
    %v196 = vunpack.c.h.b16 %v95
    %v197 = vunpack.c.l.b16 %v96
    %v198 = vunpack.c.h.b16 %v96
    %v199 = vunpack.c.l.b16 %v97
    %v200 = vunpack.c.h.b16 %v97
    %v201 = vunpack.c.l.b16 %v98
    %v202 = vunpack.c.h.b16 %v98
    %v203 = vunpack.c.l.b16 %v99
    %v204 = vunpack.c.h.b16 %v99
    %v205 = vunpack.c.l.b16 %v100
    %v206 = vunpack.c.h.b16 %v100
    %v207 = vunpack.c.l.b16 %v101
    %v208 = vunpack.c.h.b16 %v101
    %v209 = vunpack.c.l.b16 %v102
    %v210 = vunpack.c.h.b16 %v102
    %v211 = vunpack.c.l.b16 %v103
    %v212 = vunpack.c.h.b16 %v103
    %v213 = vunpack.c.l.b16 %v104
    %v214 = vunpack.c.h.b16 %v104
    %v215 = vunpack.c.l.b16 %v105
    %v216 = vunpack.c.h.b16 %v105
    %v217 = vunpack.c.l.b16 %v106
    %v218 = vunpack.c.h.b16 %v106
    %v219 = vunpack.c.l.b16 %v107
    %v220 = vunpack.c.h.b16 %v107
    %v221 = vunpack.c.l.b16 %v108
    %v222 = vunpack.c.h.b16 %v108
    %v223 = vunpack.c.l.b16 %v109
    %v224 = vunpack.c.h.b16 %v109
    %v225 = vunpack.c.l.b16 %v110
    %v226 = vunpack.c.h.b16 %v110
    %v227 = vunpack.c.l.b16 %v111
    %v228 = vunpack.c.h.b16 %v111
    %v229 = vunpack.c.l.b16 %v112
    %v230 = vunpack.c.h.b16 %v112
    %v231 = vunpack.c.l.b16 %v113
    %v232 = vunpack.c.h.b16 %v113
    %v233 = vunpack.c.l.b16 %v114
    %v234 = vunpack.c.h.b16 %v114
    %v235 = vunpack.c.l.b16 %v115
    %v236 = vunpack.c.h.b16 %v115
    %v237 = vunpack.c.l.b16 %v116
    %v238 = vunpack.c.h.b16 %v116
    %v239 = vunpack.c.l.b16 %v117
    %v240 = vunpack.c.h.b16 %v117
    %v241 = vunpack.c.l.b16 %v118
    %v242 = vunpack.c.h.b16 %v118
    %v243 = vunpack.c.l.b16 %v119
    %v244 = vunpack.c.h.b16 %v119
    %v245 = vunpack.c.l.b16 %v120
    %v246 = vunpack.c.h.b16 %v120
    %v247 = vunpack.c.l.b16 %v121
    %v248 = vunpack.c.h.b16 %v121
    %v249 = vunpack.c.l.b16 %v122
    %v250 = vunpack.c.h.b16 %v122
    %v251 = vunpack.c.l.b16 %v123
    %v252 = vunpack.c.h.b16 %v123
    %v253 = vunpack.c.l.b16 %v124
    %v254 = vunpack.c.h.b16 %v124
    %v255 = vunpack.c.l.b16 %v125
    %v256 = vunpack.c.h.b16 %v125
    %v257 = vunpack.c.l.b16 %v126
    %v258 = vunpack.c.h.b16 %v126
    %v259 = vunpack.c.l.b16 %v127
    %v260 = vunpack.c.h.b16 %v127
    %v261 = vunpack.c.l.b16 %v128
    %v262 = vunpack.c.h.b16 %v128
    %v263 = vunpack.c.l.b16 %v129
    %v264 = vunpack.c.h.b16 %v129
    %v265 = vunpack.c.l.b16 %v130
    %v266 = vunpack.c.h.b16 %v130
    %v267 = vunpack.c.l.b16 %v131
    %v268 = vunpack.c.h.b16 %v131
    %v269 = vunpack.c.l.b16 %v132
    %v270 = vunpack.c.h.b16 %v132
    %v271 = vunpack.c.l.b16 %v133
    %v272 = vunpack.c.h.b16 %v133
    %v273 = vunpack.c.l.b16 %v134
    %v274 = vunpack.c.h.b16 %v134
    %v275 = vunpack.c.l.b16 %v135
    %v276 = vunpack.c.h.b16 %v135
    %v277 = vunpack.c.l.b16 %v136
    %v278 = vunpack.c.h.b16 %v136
    %v279 = vunpack.c.l.b16 %v137
    %v280 = vunpack.c.h.b16 %v137
    %v281 = vunpack.c.l.b16 %v138
    %v282 = vunpack.c.h.b16 %v138
    %v283 = vpack.c.b16 %v189, %v187
    %v284 = vpack.c.b16 %v190, %v188
    %v285 = vpack.c.b16 %v193, %v191
    %v286 = vpack.c.b16 %v194, %v192
    %v287 = vpack.c.b16 %v197, %v195
    %v288 = vpack.c.b16 %v198, %v196
    %v289 = vpack.c.b16 %v201, %v199
    %v290 = vpack.c.b16 %v202, %v200
    %v291 = vpack.c.b16 %v205, %v203
    %v292 = vpack.c.b16 %v206, %v204
    %v293 = vpack.c.b16 %v209, %v207
    %v294 = vpack.c.b16 %v210, %v208
    %v295 = vpack.c.b16 %v213, %v211
    %v296 = vpack.c.b16 %v214, %v212
    %v297 = vpack.c.b16 %v217, %v215
    %v298 = vpack.c.b16 %v218, %v216
    %v299 = vpack.c.b16 %v221, %v219
    %v300 = vpack.c.b16 %v222, %v220
    %v301 = vpack.c.b16 %v225, %v223
    %v302 = vpack.c.b16 %v226, %v224
    %v303 = vpack.c.b16 %v229, %v227
    %v304 = vpack.c.b16 %v230, %v228
    %v305 = vpack.c.b16 %v233, %v231
    %v306 = vpack.c.b16 %v234, %v232
    %v307 = vpack.c.b16 %v237, %v235
    %v308 = vpack.c.b16 %v238, %v236
    %v309 = vpack.c.b16 %v241, %v239
    %v310 = vpack.c.b16 %v242, %v240
    %v311 = vpack.c.b16 %v245, %v243
    %v312 = vpack.c.b16 %v246, %v244
    %v313 = vpack.c.b16 %v249, %v247
    %v314 = vpack.c.b16 %v250, %v248
    %v315 = vpack.c.b16 %v253, %v251
    %v316 = vpack.c.b16 %v254, %v252
    %v317 = vpack.c.b16 %v257, %v255
    %v318 = vpack.c.b16 %v258, %v256
    %v319 = vpack.c.b16 %v261, %v259
    %v320 = vpack.c.b16 %v262, %v260
    %v321 = vpack.c.b16 %v265, %v263
    %v322 = vpack.c.b16 %v266, %v264
    %v323 = vpack.c.b16 %v269, %v267
    %v324 = vpack.c.b16 %v270, %v268
    %v325 = vpack.c.b16 %v273, %v271
    %v326 = vpack.c.b16 %v274, %v272
    %v327 = vpack.c.b16 %v277, %v275
    %v328 = vpack.c.b16 %v278, %v276
    %v329 = vpack.c.b16 %v281, %v279
    %v330 = vpack.c.b16 %v282, %v280
    %379 = vmatprep.subr.bf16.mxu0 %v298
    %380 = vmatpush1.bf16.msra.mxu0 %v297
    %381 = vmatprep.subr.bf16.mxu0 %v296
    %382 = vmatpush1.bf16.msra.mxu0 %v295
    %383 = vmatprep.subr.bf16.mxu0 %v294
    %384 = vmatpush1.bf16.msra.mxu0 %v293
    %385 = vmatprep.subr.bf16.mxu0 %v292
    %386 = vmatpush1.bf16.msra.mxu0 %v291
    %387 = vmatprep.subr.bf16.mxu0 %v290
    %388 = vmatpush1.bf16.msra.mxu0 %v289
    %389 = vmatprep.subr.bf16.mxu0 %v288
    %390 = vmatpush1.bf16.msra.mxu0 %v287
    %391 = vmatprep.subr.bf16.mxu0 %v286
    %392 = vmatpush1.bf16.msra.mxu0 %v285
    %393 = vmatprep.subr.bf16.mxu0 %v284
    %394 = vmatpush1.bf16.msra.mxu0 %v283
    %395 = vmatprep.subr.bf16.mxu0 %v314
    %396 = vmatpush2.bf16.msra.mxu0 %v313
    %397 = vmatprep.subr.bf16.mxu0 %v312
    %398 = vmatpush2.bf16.msra.mxu0 %v311
    %399 = vmatprep.subr.bf16.mxu0 %v310
    %400 = vmatpush2.bf16.msra.mxu0 %v309
    %401 = vmatprep.subr.bf16.mxu0 %v308
    %402 = vmatpush2.bf16.msra.mxu0 %v307
    %403 = vmatprep.subr.bf16.mxu0 %v306
    %404 = vmatpush2.bf16.msra.mxu0 %v305
    %405 = vmatprep.subr.bf16.mxu0 %v304
    %406 = vmatpush2.bf16.msra.mxu0 %v303
    %407 = vmatprep.subr.bf16.mxu0 %v302
    %408 = vmatpush2.bf16.msra.mxu0 %v301
    %409 = vmatprep.subr.bf16.mxu0 %v300
    %410 = vmatpush2.bf16.msra.mxu0 %v299
    %411 = vmatprep.mubr.bf16.mxu0 %v81
    %412 = vmatmul.mubr.bf16.gmra.mxu0 %v80
    %v413 = vpop.f32.mrf.mxu0
    %v414 = vadd.f32 0.0, %v413
    %v415 = vpop.f32.mrf.mxu0
    %v416 = vadd.f32 0.0, %v415
    %v417 = vpop.f32.mrf.mxu0
    %v418 = vpop.f32.mrf.mxu0
    %419 = vdwg.mxu0
    %420 = vmatprep.subr.bf16.mxu0 %v330
    %421 = vmatpush1.bf16.msra.mxu0 %v329
    %422 = vmatprep.subr.bf16.mxu0 %v328
    %423 = vmatpush1.bf16.msra.mxu0 %v327
    %424 = vmatprep.subr.bf16.mxu0 %v326
    %425 = vmatpush1.bf16.msra.mxu0 %v325
    %426 = vmatprep.subr.bf16.mxu0 %v324
    %427 = vmatpush1.bf16.msra.mxu0 %v323
    %428 = vmatprep.subr.bf16.mxu0 %v322
    %429 = vmatpush1.bf16.msra.mxu0 %v321
    %430 = vmatprep.subr.bf16.mxu0 %v320
    %431 = vmatpush1.bf16.msra.mxu0 %v319
    %432 = vmatprep.subr.bf16.mxu0 %v318
    %433 = vmatpush1.bf16.msra.mxu0 %v317
    %434 = vmatprep.subr.bf16.mxu0 %v316
    %435 = vmatpush1.bf16.msra.mxu0 %v315
    %436 = vmatprep.subr.bf16.mxu0 0
    %437 = vmatpush2.bf16.msra.mxu0 0
    %438 = vmatprep.subr.bf16.mxu0 0
    %439 = vmatpush2.bf16.msra.mxu0 0
    %440 = vmatprep.subr.bf16.mxu0 0
    %441 = vmatpush2.bf16.msra.mxu0 0
    %442 = vmatprep.subr.bf16.mxu0 0
    %443 = vmatpush2.bf16.msra.mxu0 0
    %444 = vmatprep.subr.bf16.mxu0 0
    %445 = vmatpush2.bf16.msra.mxu0 0
    %446 = vmatprep.subr.bf16.mxu0 0
    %447 = vmatpush2.bf16.msra.mxu0 0
    %448 = vmatprep.subr.bf16.mxu0 0
    %449 = vmatpush2.bf16.msra.mxu0 0
    %450 = vmatprep.subr.bf16.mxu0 0
    %451 = vmatpush2.bf16.msra.mxu0 0
    %452 = vmatprep.mubr.bf16.mxu0 0
    %453 = vmatmul.mubr.bf16.gmra.mxu0 %v82
    %v454 = vpop.f32.mrf.mxu0
    %v455 = vadd.f32 %v414, %v454
    %v456 = vpop.f32.mrf.mxu0
    %v457 = vadd.f32 %v416, %v456
    %v458 = vpop.f32.mrf.mxu0
    %v459 = vpop.f32.mrf.mxu0
    %460 = vdwg.mxu0
    %s461 = scalar_lea.vmem [#allocation2], 384
    %v462 = vld [vmem:[%s461] sm:$0xff]
    %v463 = vld [vmem:[%s461 + $0x8] sm:$0xff]
    %v464 = vld [vmem:[%s461 + $0x10] sm:$0xff]
    %v465 = vld [vmem:[%s461 + $0x18] sm:$0xff]
    %v466 = vld [vmem:[%s461 + $0x20] sm:$0xff]
    %v467 = vld [vmem:[%s461 + $0x28] sm:$0xff]
    %v468 = vld [vmem:[%s461 + $0x30] sm:$0xff]
    %v469 = vld [vmem:[%s461 + $0x38] sm:$0xff]
    %v470 = vld [vmem:[%s461 + $0x40] sm:$0xff]
    %v471 = vld [vmem:[%s461 + $0x48] sm:$0xff]
    %v472 = vld [vmem:[%s461 + $0x50] sm:$0xff]
    %v473 = vld [vmem:[%s461 + $0x58] sm:$0xff]
    %v474 = vld [vmem:[%s461 + $0x60] sm:$0xff]
    %v475 = vld [vmem:[%s461 + $0x68] sm:$0xff]
    %v476 = vld [vmem:[%s461 + $0x70] sm:$0xff]
    %v477 = vld [vmem:[%s461 + $0x78] sm:$0xff]
    %v478 = vld [vmem:[%s461 + $0x80] sm:$0xff]
    %v479 = vld [vmem:[%s461 + $0x88] sm:$0xff]
    %v480 = vld [vmem:[%s461 + $0x90] sm:$0xff]
    %v481 = vld [vmem:[%s461 + $0x98] sm:$0xff]
    %v482 = vld [vmem:[%s461 + $0xa0] sm:$0xff]
    %v483 = vld [vmem:[%s461 + $0xa8] sm:$0xff]
    %v484 = vld [vmem:[%s461 + $0xb0] sm:$0xff]
    %v485 = vld [vmem:[%s461 + $0xb8] sm:$0xff]
    %v486 = vld [vmem:[%s461 + $0xc0] sm:$0xff]
    %v487 = vld [vmem:[%s461 + $0xc8] sm:$0xff]
    %v488 = vld [vmem:[%s461 + $0xd0] sm:$0xff]
    %v489 = vld [vmem:[%s461 + $0xd8] sm:$0xff]
    %v490 = vld [vmem:[%s461 + $0xe0] sm:$0xff]
    %v491 = vld [vmem:[%s461 + $0xe8] sm:$0xff]
    %v492 = vld [vmem:[%s461 + $0xf0] sm:$0xff]
    %v493 = vld [vmem:[%s461 + $0xf8] sm:$0xff]
    %v494 = vld [vmem:[%s461 + $0x100] sm:$0xff]
    %v495 = vld [vmem:[%s461 + $0x108] sm:$0xff]
    %v496 = vld [vmem:[%s461 + $0x110] sm:$0xff]
    %v497 = vld [vmem:[%s461 + $0x118] sm:$0xff]
    %v498 = vld [vmem:[%s461 + $0x120] sm:$0xff]
    %v499 = vld [vmem:[%s461 + $0x128] sm:$0xff]
    %v500 = vld [vmem:[%s461 + $0x130] sm:$0xff]
    %v501 = vld [vmem:[%s461 + $0x138] sm:$0xff]
    %v502 = vld [vmem:[%s461 + $0x140] sm:$0xff]
    %v503 = vld [vmem:[%s461 + $0x148] sm:$0xff]
    %v504 = vld [vmem:[%s461 + $0x150] sm:$0xff]
    %v505 = vld [vmem:[%s461 + $0x158] sm:$0xff]
    %v506 = vld [vmem:[%s461 + $0x160] sm:$0xff]
    %v507 = vld [vmem:[%s461 + $0x168] sm:$0xff]
    %v508 = vld [vmem:[%s461 + $0x170] sm:$0xff]
    %v509 = vld [vmem:[%s461 + $0x178] sm:$0xff]
    %v558 = vunpack.c.l.b16 %v462
    %v559 = vunpack.c.h.b16 %v462
    %v560 = vunpack.c.l.b16 %v463
    %v561 = vunpack.c.h.b16 %v463
    %v562 = vunpack.c.l.b16 %v464
    %v563 = vunpack.c.h.b16 %v464
    %v564 = vunpack.c.l.b16 %v465
    %v565 = vunpack.c.h.b16 %v465
    %v566 = vunpack.c.l.b16 %v466
    %v567 = vunpack.c.h.b16 %v466
    %v568 = vunpack.c.l.b16 %v467
    %v569 = vunpack.c.h.b16 %v467
    %v570 = vunpack.c.l.b16 %v468
    %v571 = vunpack.c.h.b16 %v468
    %v572 = vunpack.c.l.b16 %v469
    %v573 = vunpack.c.h.b16 %v469
    %v574 = vunpack.c.l.b16 %v470
    %v575 = vunpack.c.h.b16 %v470
    %v576 = vunpack.c.l.b16 %v471
    %v577 = vunpack.c.h.b16 %v471
    %v578 = vunpack.c.l.b16 %v472
    %v579 = vunpack.c.h.b16 %v472
    %v580 = vunpack.c.l.b16 %v473
    %v581 = vunpack.c.h.b16 %v473
    %v582 = vunpack.c.l.b16 %v474
    %v583 = vunpack.c.h.b16 %v474
    %v584 = vunpack.c.l.b16 %v475
    %v585 = vunpack.c.h.b16 %v475
    %v586 = vunpack.c.l.b16 %v476
    %v587 = vunpack.c.h.b16 %v476
    %v588 = vunpack.c.l.b16 %v477
    %v589 = vunpack.c.h.b16 %v477
    %v590 = vunpack.c.l.b16 %v478
    %v591 = vunpack.c.h.b16 %v478
    %v592 = vunpack.c.l.b16 %v479
    %v593 = vunpack.c.h.b16 %v479
    %v594 = vunpack.c.l.b16 %v480
    %v595 = vunpack.c.h.b16 %v480
    %v596 = vunpack.c.l.b16 %v481
    %v597 = vunpack.c.h.b16 %v481
    %v598 = vunpack.c.l.b16 %v482
    %v599 = vunpack.c.h.b16 %v482
    %v600 = vunpack.c.l.b16 %v483
    %v601 = vunpack.c.h.b16 %v483
    %v602 = vunpack.c.l.b16 %v484
    %v603 = vunpack.c.h.b16 %v484
    %v604 = vunpack.c.l.b16 %v485
    %v605 = vunpack.c.h.b16 %v485
    %v606 = vunpack.c.l.b16 %v486
    %v607 = vunpack.c.h.b16 %v486
    %v608 = vunpack.c.l.b16 %v487
    %v609 = vunpack.c.h.b16 %v487
    %v610 = vunpack.c.l.b16 %v488
    %v611 = vunpack.c.h.b16 %v488
    %v612 = vunpack.c.l.b16 %v489
    %v613 = vunpack.c.h.b16 %v489
    %v614 = vunpack.c.l.b16 %v490
    %v615 = vunpack.c.h.b16 %v490
    %v616 = vunpack.c.l.b16 %v491
    %v617 = vunpack.c.h.b16 %v491
    %v618 = vunpack.c.l.b16 %v492
    %v619 = vunpack.c.h.b16 %v492
    %v620 = vunpack.c.l.b16 %v493
    %v621 = vunpack.c.h.b16 %v493
    %v622 = vunpack.c.l.b16 %v494
    %v623 = vunpack.c.h.b16 %v494
    %v624 = vunpack.c.l.b16 %v495
    %v625 = vunpack.c.h.b16 %v495
    %v626 = vunpack.c.l.b16 %v496
    %v627 = vunpack.c.h.b16 %v496
    %v628 = vunpack.c.l.b16 %v497
    %v629 = vunpack.c.h.b16 %v497
    %v630 = vunpack.c.l.b16 %v498
    %v631 = vunpack.c.h.b16 %v498
    %v632 = vunpack.c.l.b16 %v499
    %v633 = vunpack.c.h.b16 %v499
    %v634 = vunpack.c.l.b16 %v500
    %v635 = vunpack.c.h.b16 %v500
    %v636 = vunpack.c.l.b16 %v501
    %v637 = vunpack.c.h.b16 %v501
    %v638 = vunpack.c.l.b16 %v502
    %v639 = vunpack.c.h.b16 %v502
    %v640 = vunpack.c.l.b16 %v503
    %v641 = vunpack.c.h.b16 %v503
    %v642 = vunpack.c.l.b16 %v504
    %v643 = vunpack.c.h.b16 %v504
    %v644 = vunpack.c.l.b16 %v505
    %v645 = vunpack.c.h.b16 %v505
    %v646 = vunpack.c.l.b16 %v506
    %v647 = vunpack.c.h.b16 %v506
    %v648 = vunpack.c.l.b16 %v507
    %v649 = vunpack.c.h.b16 %v507
    %v650 = vunpack.c.l.b16 %v508
    %v651 = vunpack.c.h.b16 %v508
    %v652 = vunpack.c.l.b16 %v509
    %v653 = vunpack.c.h.b16 %v509
    %v654 = vpack.c.b16 %v560, %v558
    %v655 = vpack.c.b16 %v561, %v559
    %v656 = vpack.c.b16 %v564, %v562
    %v657 = vpack.c.b16 %v565, %v563
    %v658 = vpack.c.b16 %v568, %v566
    %v659 = vpack.c.b16 %v569, %v567
    %v660 = vpack.c.b16 %v572, %v570
    %v661 = vpack.c.b16 %v573, %v571
    %v662 = vpack.c.b16 %v576, %v574
    %v663 = vpack.c.b16 %v577, %v575
    %v664 = vpack.c.b16 %v580, %v578
    %v665 = vpack.c.b16 %v581, %v579
    %v666 = vpack.c.b16 %v584, %v582
    %v667 = vpack.c.b16 %v585, %v583
    %v668 = vpack.c.b16 %v588, %v586
    %v669 = vpack.c.b16 %v589, %v587
    %v670 = vpack.c.b16 %v592, %v590
    %v671 = vpack.c.b16 %v593, %v591
    %v672 = vpack.c.b16 %v596, %v594
    %v673 = vpack.c.b16 %v597, %v595
    %v674 = vpack.c.b16 %v600, %v598
    %v675 = vpack.c.b16 %v601, %v599
    %v676 = vpack.c.b16 %v604, %v602
    %v677 = vpack.c.b16 %v605, %v603
    %v678 = vpack.c.b16 %v608, %v606
    %v679 = vpack.c.b16 %v609, %v607
    %v680 = vpack.c.b16 %v612, %v610
    %v681 = vpack.c.b16 %v613, %v611
    %v682 = vpack.c.b16 %v616, %v614
    %v683 = vpack.c.b16 %v617, %v615
    %v684 = vpack.c.b16 %v620, %v618
    %v685 = vpack.c.b16 %v621, %v619
    %v686 = vpack.c.b16 %v624, %v622
    %v687 = vpack.c.b16 %v625, %v623
    %v688 = vpack.c.b16 %v628, %v626
    %v689 = vpack.c.b16 %v629, %v627
    %v690 = vpack.c.b16 %v632, %v630
    %v691 = vpack.c.b16 %v633, %v631
    %v692 = vpack.c.b16 %v636, %v634
    %v693 = vpack.c.b16 %v637, %v635
    %v694 = vpack.c.b16 %v640, %v638
    %v695 = vpack.c.b16 %v641, %v639
    %v696 = vpack.c.b16 %v644, %v642
    %v697 = vpack.c.b16 %v645, %v643
    %v698 = vpack.c.b16 %v648, %v646
    %v699 = vpack.c.b16 %v649, %v647
    %v700 = vpack.c.b16 %v652, %v650
    %v701 = vpack.c.b16 %v653, %v651
    %750 = vmatprep.subr.bf16.mxu0 %v669
    %751 = vmatpush1.bf16.msra.mxu0 %v668
    %752 = vmatprep.subr.bf16.mxu0 %v667
    %753 = vmatpush1.bf16.msra.mxu0 %v666
    %754 = vmatprep.subr.bf16.mxu0 %v665
    %755 = vmatpush1.bf16.msra.mxu0 %v664
    %756 = vmatprep.subr.bf16.mxu0 %v663
    %757 = vmatpush1.bf16.msra.mxu0 %v662
    %758 = vmatprep.subr.bf16.mxu0 %v661
    %759 = vmatpush1.bf16.msra.mxu0 %v660
    %760 = vmatprep.subr.bf16.mxu0 %v659
    %761 = vmatpush1.bf16.msra.mxu0 %v658
    %762 = vmatprep.subr.bf16.mxu0 %v657
    %763 = vmatpush1.bf16.msra.mxu0 %v656
    %764 = vmatprep.subr.bf16.mxu0 %v655
    %765 = vmatpush1.bf16.msra.mxu0 %v654
    %766 = vmatprep.subr.bf16.mxu0 %v685
    %767 = vmatpush2.bf16.msra.mxu0 %v684
    %768 = vmatprep.subr.bf16.mxu0 %v683
    %769 = vmatpush2.bf16.msra.mxu0 %v682
    %770 = vmatprep.subr.bf16.mxu0 %v681
    %771 = vmatpush2.bf16.msra.mxu0 %v680
    %772 = vmatprep.subr.bf16.mxu0 %v679
    %773 = vmatpush2.bf16.msra.mxu0 %v678
    %774 = vmatprep.subr.bf16.mxu0 %v677
    %775 = vmatpush2.bf16.msra.mxu0 %v676
    %776 = vmatprep.subr.bf16.mxu0 %v675
    %777 = vmatpush2.bf16.msra.mxu0 %v674
    %778 = vmatprep.subr.bf16.mxu0 %v673
    %779 = vmatpush2.bf16.msra.mxu0 %v672
    %780 = vmatprep.subr.bf16.mxu0 %v671
    %781 = vmatpush2.bf16.msra.mxu0 %v670
    %782 = vmatprep.mubr.bf16.mxu0 %v81
    %783 = vmatmul.mubr.bf16.gmra.mxu0 %v80
    %v784 = vpop.f32.mrf.mxu0
    %v785 = vadd.f32 0.0, %v784
    %v786 = vpop.f32.mrf.mxu0
    %v787 = vadd.f32 0.0, %v786
    %v788 = vpop.f32.mrf.mxu0
    %v789 = vpop.f32.mrf.mxu0
    %790 = vdwg.mxu0
    %791 = vmatprep.subr.bf16.mxu0 %v701
    %792 = vmatpush1.bf16.msra.mxu0 %v700
    %793 = vmatprep.subr.bf16.mxu0 %v699
    %794 = vmatpush1.bf16.msra.mxu0 %v698
    %795 = vmatprep.subr.bf16.mxu0 %v697
    %796 = vmatpush1.bf16.msra.mxu0 %v696
    %797 = vmatprep.subr.bf16.mxu0 %v695
    %798 = vmatpush1.bf16.msra.mxu0 %v694
    %799 = vmatprep.subr.bf16.mxu0 %v693
    %800 = vmatpush1.bf16.msra.mxu0 %v692
    %801 = vmatprep.subr.bf16.mxu0 %v691
    %802 = vmatpush1.bf16.msra.mxu0 %v690
    %803 = vmatprep.subr.bf16.mxu0 %v689
    %804 = vmatpush1.bf16.msra.mxu0 %v688
    %805 = vmatprep.subr.bf16.mxu0 %v687
    %806 = vmatpush1.bf16.msra.mxu0 %v686
    %807 = vmatprep.subr.bf16.mxu0 0
    %808 = vmatpush2.bf16.msra.mxu0 0
    %809 = vmatprep.subr.bf16.mxu0 0
    %810 = vmatpush2.bf16.msra.mxu0 0
    %811 = vmatprep.subr.bf16.mxu0 0
    %812 = vmatpush2.bf16.msra.mxu0 0
    %813 = vmatprep.subr.bf16.mxu0 0
    %814 = vmatpush2.bf16.msra.mxu0 0
    %815 = vmatprep.subr.bf16.mxu0 0
    %816 = vmatpush2.bf16.msra.mxu0 0
    %817 = vmatprep.subr.bf16.mxu0 0
    %818 = vmatpush2.bf16.msra.mxu0 0
    %819 = vmatprep.subr.bf16.mxu0 0
    %820 = vmatpush2.bf16.msra.mxu0 0
    %821 = vmatprep.subr.bf16.mxu0 0
    %822 = vmatpush2.bf16.msra.mxu0 0
    %823 = vmatprep.mubr.bf16.mxu0 0
    %824 = vmatmul.mubr.bf16.gmra.mxu0 %v82
    %v825 = vpop.f32.mrf.mxu0
    %v826 = vadd.f32 %v785, %v825
    %v827 = vpop.f32.mrf.mxu0
    %v828 = vadd.f32 %v787, %v827
    %v829 = vpop.f32.mrf.mxu0
    %v830 = vpop.f32.mrf.mxu0
    %831 = vdwg.mxu0
    %v832 = vmax.f32 %v455, %v826
    %v833 = vmax.f32 %v457, %v828
    %834 = vmatprep.subr.bf16.mxu0 %v298
    %835 = vmatpush1.bf16.msra.mxu0 %v297
    %836 = vmatprep.subr.bf16.mxu0 %v296
    %837 = vmatpush1.bf16.msra.mxu0 %v295
    %838 = vmatprep.subr.bf16.mxu0 %v294
    %839 = vmatpush1.bf16.msra.mxu0 %v293
    %840 = vmatprep.subr.bf16.mxu0 %v292
    %841 = vmatpush1.bf16.msra.mxu0 %v291
    %842 = vmatprep.subr.bf16.mxu0 %v290
    %843 = vmatpush1.bf16.msra.mxu0 %v289
    %844 = vmatprep.subr.bf16.mxu0 %v288
    %845 = vmatpush1.bf16.msra.mxu0 %v287
    %846 = vmatprep.subr.bf16.mxu0 %v286
    %847 = vmatpush1.bf16.msra.mxu0 %v285
    %848 = vmatprep.subr.bf16.mxu0 %v284
    %849 = vmatpush1.bf16.msra.mxu0 %v283
    %850 = vmatprep.subr.bf16.mxu0 %v314
    %851 = vmatpush2.bf16.msra.mxu0 %v313
    %852 = vmatprep.subr.bf16.mxu0 %v312
    %853 = vmatpush2.bf16.msra.mxu0 %v311
    %854 = vmatprep.subr.bf16.mxu0 %v310
    %855 = vmatpush2.bf16.msra.mxu0 %v309
    %856 = vmatprep.subr.bf16.mxu0 %v308
    %857 = vmatpush2.bf16.msra.mxu0 %v307
    %858 = vmatprep.subr.bf16.mxu0 %v306
    %859 = vmatpush2.bf16.msra.mxu0 %v305
    %860 = vmatprep.subr.bf16.mxu0 %v304
    %861 = vmatpush2.bf16.msra.mxu0 %v303
    %862 = vmatprep.subr.bf16.mxu0 %v302
    %863 = vmatpush2.bf16.msra.mxu0 %v301
    %864 = vmatprep.subr.bf16.mxu0 %v300
    %865 = vmatpush2.bf16.msra.mxu0 %v299
    %866 = vmatprep.mubr.bf16.mxu0 %v82
    %867 = vmatmul.mubr.bf16.gmra.mxu0 %v81
    %v868 = vpop.f32.mrf.mxu0
    %v869 = vadd.f32 0.0, %v868
    %v870 = vpop.f32.mrf.mxu0
    %v871 = vadd.f32 0.0, %v870
    %v872 = vpop.f32.mrf.mxu0
    %v873 = vpop.f32.mrf.mxu0
    %874 = vdwg.mxu0
    %875 = vmatprep.subr.bf16.mxu0 %v330
    %876 = vmatpush1.bf16.msra.mxu0 %v329
    %877 = vmatprep.subr.bf16.mxu0 %v328
    %878 = vmatpush1.bf16.msra.mxu0 %v327
    %879 = vmatprep.subr.bf16.mxu0 %v326
    %880 = vmatpush1.bf16.msra.mxu0 %v325
    %881 = vmatprep.subr.bf16.mxu0 %v324
    %882 = vmatpush1.bf16.msra.mxu0 %v323
    %883 = vmatprep.subr.bf16.mxu0 %v322
    %884 = vmatpush1.bf16.msra.mxu0 %v321
    %885 = vmatprep.subr.bf16.mxu0 %v320
    %886 = vmatpush1.bf16.msra.mxu0 %v319
    %887 = vmatprep.subr.bf16.mxu0 %v318
    %888 = vmatpush1.bf16.msra.mxu0 %v317
    %889 = vmatprep.subr.bf16.mxu0 %v316
    %890 = vmatpush1.bf16.msra.mxu0 %v315
    %891 = vmatprep.subr.bf16.mxu0 0
    %892 = vmatpush2.bf16.msra.mxu0 0
    %893 = vmatprep.subr.bf16.mxu0 0
    %894 = vmatpush2.bf16.msra.mxu0 0
    %895 = vmatprep.subr.bf16.mxu0 0
    %896 = vmatpush2.bf16.msra.mxu0 0
    %897 = vmatprep.subr.bf16.mxu0 0
    %898 = vmatpush2.bf16.msra.mxu0 0
    %899 = vmatprep.subr.bf16.mxu0 0
    %900 = vmatpush2.bf16.msra.mxu0 0
    %901 = vmatprep.subr.bf16.mxu0 0
    %902 = vmatpush2.bf16.msra.mxu0 0
    %903 = vmatprep.subr.bf16.mxu0 0
    %904 = vmatpush2.bf16.msra.mxu0 0
    %905 = vmatprep.subr.bf16.mxu0 0
    %906 = vmatpush2.bf16.msra.mxu0 0
    %907 = vmatprep.mubr.bf16.mxu0 0
    %908 = vmatmul.mubr.bf16.gmra.mxu0 %v83
    %v909 = vpop.f32.mrf.mxu0
    %v910 = vadd.f32 %v869, %v909
    %v911 = vpop.f32.mrf.mxu0
    %v912 = vadd.f32 %v871, %v911
    %v913 = vpop.f32.mrf.mxu0
    %v914 = vpop.f32.mrf.mxu0
    %915 = vdwg.mxu0
    %v916 = vmax.f32 %v832, %v910
    %v917 = vmax.f32 %v833, %v912
    %918 = vmatprep.subr.bf16.mxu0 %v669
    %919 = vmatpush1.bf16.msra.mxu0 %v668
    %920 = vmatprep.subr.bf16.mxu0 %v667
    %921 = vmatpush1.bf16.msra.mxu0 %v666
    %922 = vmatprep.subr.bf16.mxu0 %v665
    %923 = vmatpush1.bf16.msra.mxu0 %v664
    %924 = vmatprep.subr.bf16.mxu0 %v663
    %925 = vmatpush1.bf16.msra.mxu0 %v662
    %926 = vmatprep.subr.bf16.mxu0 %v661
    %927 = vmatpush1.bf16.msra.mxu0 %v660
    %928 = vmatprep.subr.bf16.mxu0 %v659
    %929 = vmatpush1.bf16.msra.mxu0 %v658
    %930 = vmatprep.subr.bf16.mxu0 %v657
    %931 = vmatpush1.bf16.msra.mxu0 %v656
    %932 = vmatprep.subr.bf16.mxu0 %v655
    %933 = vmatpush1.bf16.msra.mxu0 %v654
    %934 = vmatprep.subr.bf16.mxu0 %v685
    %935 = vmatpush2.bf16.msra.mxu0 %v684
    %936 = vmatprep.subr.bf16.mxu0 %v683
    %937 = vmatpush2.bf16.msra.mxu0 %v682
    %938 = vmatprep.subr.bf16.mxu0 %v681
    %939 = vmatpush2.bf16.msra.mxu0 %v680
    %940 = vmatprep.subr.bf16.mxu0 %v679
    %941 = vmatpush2.bf16.msra.mxu0 %v678
    %942 = vmatprep.subr.bf16.mxu0 %v677
    %943 = vmatpush2.bf16.msra.mxu0 %v676
    %944 = vmatprep.subr.bf16.mxu0 %v675
    %945 = vmatpush2.bf16.msra.mxu0 %v674
    %946 = vmatprep.subr.bf16.mxu0 %v673
    %947 = vmatpush2.bf16.msra.mxu0 %v672
    %948 = vmatprep.subr.bf16.mxu0 %v671
    %949 = vmatpush2.bf16.msra.mxu0 %v670
    %950 = vmatprep.mubr.bf16.mxu0 %v82
    %951 = vmatmul.mubr.bf16.gmra.mxu0 %v81
    %v952 = vpop.f32.mrf.mxu0
    %v953 = vadd.f32 0.0, %v952
    %v954 = vpop.f32.mrf.mxu0
    %v955 = vadd.f32 0.0, %v954
    %v956 = vpop.f32.mrf.mxu0
    %v957 = vpop.f32.mrf.mxu0
    %958 = vdwg.mxu0
    %959 = vmatprep.subr.bf16.mxu0 %v701
    %960 = vmatpush1.bf16.msra.mxu0 %v700
    %961 = vmatprep.subr.bf16.mxu0 %v699
    %962 = vmatpush1.bf16.msra.mxu0 %v698
    %963 = vmatprep.subr.bf16.mxu0 %v697
    %964 = vmatpush1.bf16.msra.mxu0 %v696
    %965 = vmatprep.subr.bf16.mxu0 %v695
    %966 = vmatpush1.bf16.msra.mxu0 %v694
    %967 = vmatprep.subr.bf16.mxu0 %v693
    %968 = vmatpush1.bf16.msra.mxu0 %v692
    %969 = vmatprep.subr.bf16.mxu0 %v691
    %970 = vmatpush1.bf16.msra.mxu0 %v690
    %971 = vmatprep.subr.bf16.mxu0 %v689
    %972 = vmatpush1.bf16.msra.mxu0 %v688
    %973 = vmatprep.subr.bf16.mxu0 %v687
    %974 = vmatpush1.bf16.msra.mxu0 %v686
    %975 = vmatprep.subr.bf16.mxu0 0
    %976 = vmatpush2.bf16.msra.mxu0 0
    %977 = vmatprep.subr.bf16.mxu0 0
    %978 = vmatpush2.bf16.msra.mxu0 0
    %979 = vmatprep.subr.bf16.mxu0 0
    %980 = vmatpush2.bf16.msra.mxu0 0
    %981 = vmatprep.subr.bf16.mxu0 0
    %982 = vmatpush2.bf16.msra.mxu0 0
    %983 = vmatprep.subr.bf16.mxu0 0
    %984 = vmatpush2.bf16.msra.mxu0 0
    %985 = vmatprep.subr.bf16.mxu0 0
    %986 = vmatpush2.bf16.msra.mxu0 0
    %987 = vmatprep.subr.bf16.mxu0 0
    %988 = vmatpush2.bf16.msra.mxu0 0
    %989 = vmatprep.subr.bf16.mxu0 0
    %990 = vmatpush2.bf16.msra.mxu0 0
    %991 = vmatprep.mubr.bf16.mxu0 0
    %992 = vmatmul.mubr.bf16.gmra.mxu0 %v83
    %v993 = vpop.f32.mrf.mxu0
    %v994 = vadd.f32 %v953, %v993
    %v995 = vpop.f32.mrf.mxu0
    %v996 = vadd.f32 %v955, %v995
    %v997 = vpop.f32.mrf.mxu0
    %v998 = vpop.f32.mrf.mxu0
    %999 = vdwg.mxu0
    %v1000 = vmax.f32 %v916, %v994
    %v1001 = vmax.f32 %v917, %v996
    %v1003 = vlaneseq
    %v1004 = vshrl.u32 %v1003, 7
    %v1005 = vsub.s32 0, %v1004
    %v1006 = vrot.slane %v90, %v1005
    %v1007 = vlaneseq
    %v1008 = vshrl.u32 %v1007, 7
    %v1009 = vsub.s32 1, %v1008
    %v1010 = vrot.slane %v90, %v1009
    %v1013 = vadd.f32 %v1000, %v1006
    %v1014 = vadd.f32 %v1001, %v1010
    %v1015 = vmax.f32 %v1013, 0.0
    %v1016 = vmax.f32 %v1014, 0.0
    %v1017 = vpack.c.bf16 %v1015, %v1015
    %v1018 = vpack.c.bf16 %v1016, %v1016
    %1019 = vmatprep.subr.bf16.mxu0 %v298
    %1020 = vmatpush1.bf16.msra.mxu0 %v297
    %1021 = vmatprep.subr.bf16.mxu0 %v296
    %1022 = vmatpush1.bf16.msra.mxu0 %v295
    %1023 = vmatprep.subr.bf16.mxu0 %v294
    %1024 = vmatpush1.bf16.msra.mxu0 %v293
    %1025 = vmatprep.subr.bf16.mxu0 %v292
    %1026 = vmatpush1.bf16.msra.mxu0 %v291
    %1027 = vmatprep.subr.bf16.mxu0 %v290
    %1028 = vmatpush1.bf16.msra.mxu0 %v289
    %1029 = vmatprep.subr.bf16.mxu0 %v288
    %1030 = vmatpush1.bf16.msra.mxu0 %v287
    %1031 = vmatprep.subr.bf16.mxu0 %v286
    %1032 = vmatpush1.bf16.msra.mxu0 %v285
    %1033 = vmatprep.subr.bf16.mxu0 %v284
    %1034 = vmatpush1.bf16.msra.mxu0 %v283
    %1035 = vmatprep.subr.bf16.mxu0 %v314
    %1036 = vmatpush2.bf16.msra.mxu0 %v313
    %1037 = vmatprep.subr.bf16.mxu0 %v312
    %1038 = vmatpush2.bf16.msra.mxu0 %v311
    %1039 = vmatprep.subr.bf16.mxu0 %v310
    %1040 = vmatpush2.bf16.msra.mxu0 %v309
    %1041 = vmatprep.subr.bf16.mxu0 %v308
    %1042 = vmatpush2.bf16.msra.mxu0 %v307
    %1043 = vmatprep.subr.bf16.mxu0 %v306
    %1044 = vmatpush2.bf16.msra.mxu0 %v305
    %1045 = vmatprep.subr.bf16.mxu0 %v304
    %1046 = vmatpush2.bf16.msra.mxu0 %v303
    %1047 = vmatprep.subr.bf16.mxu0 %v302
    %1048 = vmatpush2.bf16.msra.mxu0 %v301
    %1049 = vmatprep.subr.bf16.mxu0 %v300
    %1050 = vmatpush2.bf16.msra.mxu0 %v299
    %1051 = vmatprep.mubr.bf16.mxu0 %v83
    %1052 = vmatmul.mubr.bf16.gmra.mxu0 %v82
    %v1053 = vpop.f32.mrf.mxu0
    %v1054 = vadd.f32 0.0, %v1053
    %v1055 = vpop.f32.mrf.mxu0
    %v1056 = vadd.f32 0.0, %v1055
    %v1057 = vpop.f32.mrf.mxu0
    %v1058 = vpop.f32.mrf.mxu0
    %1059 = vdwg.mxu0
    %1060 = vmatprep.subr.bf16.mxu0 %v330
    %1061 = vmatpush1.bf16.msra.mxu0 %v329
    %1062 = vmatprep.subr.bf16.mxu0 %v328
    %1063 = vmatpush1.bf16.msra.mxu0 %v327
    %1064 = vmatprep.subr.bf16.mxu0 %v326
    %1065 = vmatpush1.bf16.msra.mxu0 %v325
    %1066 = vmatprep.subr.bf16.mxu0 %v324
    %1067 = vmatpush1.bf16.msra.mxu0 %v323
    %1068 = vmatprep.subr.bf16.mxu0 %v322
    %1069 = vmatpush1.bf16.msra.mxu0 %v321
    %1070 = vmatprep.subr.bf16.mxu0 %v320
    %1071 = vmatpush1.bf16.msra.mxu0 %v319
    %1072 = vmatprep.subr.bf16.mxu0 %v318
    %1073 = vmatpush1.bf16.msra.mxu0 %v317
    %1074 = vmatprep.subr.bf16.mxu0 %v316
    %1075 = vmatpush1.bf16.msra.mxu0 %v315
    %1076 = vmatprep.subr.bf16.mxu0 0
    %1077 = vmatpush2.bf16.msra.mxu0 0
    %1078 = vmatprep.subr.bf16.mxu0 0
    %1079 = vmatpush2.bf16.msra.mxu0 0
    %1080 = vmatprep.subr.bf16.mxu0 0
    %1081 = vmatpush2.bf16.msra.mxu0 0
    %1082 = vmatprep.subr.bf16.mxu0 0
    %1083 = vmatpush2.bf16.msra.mxu0 0
    %1084 = vmatprep.subr.bf16.mxu0 0
    %1085 = vmatpush2.bf16.msra.mxu0 0
    %1086 = vmatprep.subr.bf16.mxu0 0
    %1087 = vmatpush2.bf16.msra.mxu0 0
    %1088 = vmatprep.subr.bf16.mxu0 0
    %1089 = vmatpush2.bf16.msra.mxu0 0
    %1090 = vmatprep.subr.bf16.mxu0 0
    %1091 = vmatpush2.bf16.msra.mxu0 0
    %1092 = vmatprep.mubr.bf16.mxu0 0
    %1093 = vmatmul.mubr.bf16.gmra.mxu0 %v84
    %v1094 = vpop.f32.mrf.mxu0
    %v1095 = vadd.f32 %v1054, %v1094
    %v1096 = vpop.f32.mrf.mxu0
    %v1097 = vadd.f32 %v1056, %v1096
    %v1098 = vpop.f32.mrf.mxu0
    %v1099 = vpop.f32.mrf.mxu0
    %1100 = vdwg.mxu0
    %1101 = vmatprep.subr.bf16.mxu0 %v669
    %1102 = vmatpush1.bf16.msra.mxu0 %v668
    %1103 = vmatprep.subr.bf16.mxu0 %v667
    %1104 = vmatpush1.bf16.msra.mxu0 %v666
    %1105 = vmatprep.subr.bf16.mxu0 %v665
    %1106 = vmatpush1.bf16.msra.mxu0 %v664
    %1107 = vmatprep.subr.bf16.mxu0 %v663
    %1108 = vmatpush1.bf16.msra.mxu0 %v662
    %1109 = vmatprep.subr.bf16.mxu0 %v661
    %1110 = vmatpush1.bf16.msra.mxu0 %v660
    %1111 = vmatprep.subr.bf16.mxu0 %v659
    %1112 = vmatpush1.bf16.msra.mxu0 %v658
    %1113 = vmatprep.subr.bf16.mxu0 %v657
    %1114 = vmatpush1.bf16.msra.mxu0 %v656
    %1115 = vmatprep.subr.bf16.mxu0 %v655
    %1116 = vmatpush1.bf16.msra.mxu0 %v654
    %1117 = vmatprep.subr.bf16.mxu0 %v685
    %1118 = vmatpush2.bf16.msra.mxu0 %v684
    %1119 = vmatprep.subr.bf16.mxu0 %v683
    %1120 = vmatpush2.bf16.msra.mxu0 %v682
    %1121 = vmatprep.subr.bf16.mxu0 %v681
    %1122 = vmatpush2.bf16.msra.mxu0 %v680
    %1123 = vmatprep.subr.bf16.mxu0 %v679
    %1124 = vmatpush2.bf16.msra.mxu0 %v678
    %1125 = vmatprep.subr.bf16.mxu0 %v677
    %1126 = vmatpush2.bf16.msra.mxu0 %v676
    %1127 = vmatprep.subr.bf16.mxu0 %v675
    %1128 = vmatpush2.bf16.msra.mxu0 %v674
    %1129 = vmatprep.subr.bf16.mxu0 %v673
    %1130 = vmatpush2.bf16.msra.mxu0 %v672
    %1131 = vmatprep.subr.bf16.mxu0 %v671
    %1132 = vmatpush2.bf16.msra.mxu0 %v670
    %1133 = vmatprep.mubr.bf16.mxu0 %v83
    %1134 = vmatmul.mubr.bf16.gmra.mxu0 %v82
    %v1135 = vpop.f32.mrf.mxu0
    %v1136 = vadd.f32 0.0, %v1135
    %v1137 = vpop.f32.mrf.mxu0
    %v1138 = vadd.f32 0.0, %v1137
    %v1139 = vpop.f32.mrf.mxu0
    %v1140 = vpop.f32.mrf.mxu0
    %1141 = vdwg.mxu0
    %1142 = vmatprep.subr.bf16.mxu0 %v701
    %1143 = vmatpush1.bf16.msra.mxu0 %v700
    %1144 = vmatprep.subr.bf16.mxu0 %v699
    %1145 = vmatpush1.bf16.msra.mxu0 %v698
    %1146 = vmatprep.subr.bf16.mxu0 %v697
    %1147 = vmatpush1.bf16.msra.mxu0 %v696
    %1148 = vmatprep.subr.bf16.mxu0 %v695
    %1149 = vmatpush1.bf16.msra.mxu0 %v694
    %1150 = vmatprep.subr.bf16.mxu0 %v693
    %1151 = vmatpush1.bf16.msra.mxu0 %v692
    %1152 = vmatprep.subr.bf16.mxu0 %v691
    %1153 = vmatpush1.bf16.msra.mxu0 %v690
    %1154 = vmatprep.subr.bf16.mxu0 %v689
    %1155 = vmatpush1.bf16.msra.mxu0 %v688
    %1156 = vmatprep.subr.bf16.mxu0 %v687
    %1157 = vmatpush1.bf16.msra.mxu0 %v686
    %1158 = vmatprep.subr.bf16.mxu0 0
    %1159 = vmatpush2.bf16.msra.mxu0 0
    %1160 = vmatprep.subr.bf16.mxu0 0
    %1161 = vmatpush2.bf16.msra.mxu0 0
    %1162 = vmatprep.subr.bf16.mxu0 0
    %1163 = vmatpush2.bf16.msra.mxu0 0
    %1164 = vmatprep.subr.bf16.mxu0 0
    %1165 = vmatpush2.bf16.msra.mxu0 0
    %1166 = vmatprep.subr.bf16.mxu0 0
    %1167 = vmatpush2.bf16.msra.mxu0 0
    %1168 = vmatprep.subr.bf16.mxu0 0
    %1169 = vmatpush2.bf16.msra.mxu0 0
    %1170 = vmatprep.subr.bf16.mxu0 0
    %1171 = vmatpush2.bf16.msra.mxu0 0
    %1172 = vmatprep.subr.bf16.mxu0 0
    %1173 = vmatpush2.bf16.msra.mxu0 0
    %1174 = vmatprep.mubr.bf16.mxu0 0
    %1175 = vmatmul.mubr.bf16.gmra.mxu0 %v84
    %v1176 = vpop.f32.mrf.mxu0
    %v1177 = vadd.f32 %v1136, %v1176
    %v1178 = vpop.f32.mrf.mxu0
    %v1179 = vadd.f32 %v1138, %v1178
    %v1180 = vpop.f32.mrf.mxu0
    %v1181 = vpop.f32.mrf.mxu0
    %1182 = vdwg.mxu0
    %v1183 = vmax.f32 %v1095, %v1177
    %v1184 = vmax.f32 %v1097, %v1179
    %1185 = vmatprep.subr.bf16.mxu0 %v298
    %1186 = vmatpush1.bf16.msra.mxu0 %v297
    %1187 = vmatprep.subr.bf16.mxu0 %v296
    %1188 = vmatpush1.bf16.msra.mxu0 %v295
    %1189 = vmatprep.subr.bf16.mxu0 %v294
    %1190 = vmatpush1.bf16.msra.mxu0 %v293
    %1191 = vmatprep.subr.bf16.mxu0 %v292
    %1192 = vmatpush1.bf16.msra.mxu0 %v291
    %1193 = vmatprep.subr.bf16.mxu0 %v290
    %1194 = vmatpush1.bf16.msra.mxu0 %v289
    %1195 = vmatprep.subr.bf16.mxu0 %v288
    %1196 = vmatpush1.bf16.msra.mxu0 %v287
    %1197 = vmatprep.subr.bf16.mxu0 %v286
    %1198 = vmatpush1.bf16.msra.mxu0 %v285
    %1199 = vmatprep.subr.bf16.mxu0 %v284
    %1200 = vmatpush1.bf16.msra.mxu0 %v283
    %1201 = vmatprep.subr.bf16.mxu0 %v314
    %1202 = vmatpush2.bf16.msra.mxu0 %v313
    %1203 = vmatprep.subr.bf16.mxu0 %v312
    %1204 = vmatpush2.bf16.msra.mxu0 %v311
    %1205 = vmatprep.subr.bf16.mxu0 %v310
    %1206 = vmatpush2.bf16.msra.mxu0 %v309
    %1207 = vmatprep.subr.bf16.mxu0 %v308
    %1208 = vmatpush2.bf16.msra.mxu0 %v307
    %1209 = vmatprep.subr.bf16.mxu0 %v306
    %1210 = vmatpush2.bf16.msra.mxu0 %v305
    %1211 = vmatprep.subr.bf16.mxu0 %v304
    %1212 = vmatpush2.bf16.msra.mxu0 %v303
    %1213 = vmatprep.subr.bf16.mxu0 %v302
    %1214 = vmatpush2.bf16.msra.mxu0 %v301
    %1215 = vmatprep.subr.bf16.mxu0 %v300
    %1216 = vmatpush2.bf16.msra.mxu0 %v299
    %1217 = vmatprep.mubr.bf16.mxu0 %v84
    %1218 = vmatmul.mubr.bf16.gmra.mxu0 %v83
    %v1219 = vpop.f32.mrf.mxu0
    %v1220 = vadd.f32 0.0, %v1219
    %v1221 = vpop.f32.mrf.mxu0
    %v1222 = vadd.f32 0.0, %v1221
    %v1223 = vpop.f32.mrf.mxu0
    %v1224 = vpop.f32.mrf.mxu0
    %1225 = vdwg.mxu0
    %1226 = vmatprep.subr.bf16.mxu0 %v330
    %1227 = vmatpush1.bf16.msra.mxu0 %v329
    %1228 = vmatprep.subr.bf16.mxu0 %v328
    %1229 = vmatpush1.bf16.msra.mxu0 %v327
    %1230 = vmatprep.subr.bf16.mxu0 %v326
    %1231 = vmatpush1.bf16.msra.mxu0 %v325
    %1232 = vmatprep.subr.bf16.mxu0 %v324
    %1233 = vmatpush1.bf16.msra.mxu0 %v323
    %1234 = vmatprep.subr.bf16.mxu0 %v322
    %1235 = vmatpush1.bf16.msra.mxu0 %v321
    %1236 = vmatprep.subr.bf16.mxu0 %v320
    %1237 = vmatpush1.bf16.msra.mxu0 %v319
    %1238 = vmatprep.subr.bf16.mxu0 %v318
    %1239 = vmatpush1.bf16.msra.mxu0 %v317
    %1240 = vmatprep.subr.bf16.mxu0 %v316
    %1241 = vmatpush1.bf16.msra.mxu0 %v315
    %1242 = vmatprep.subr.bf16.mxu0 0
    %1243 = vmatpush2.bf16.msra.mxu0 0
    %1244 = vmatprep.subr.bf16.mxu0 0
    %1245 = vmatpush2.bf16.msra.mxu0 0
    %1246 = vmatprep.subr.bf16.mxu0 0
    %1247 = vmatpush2.bf16.msra.mxu0 0
    %1248 = vmatprep.subr.bf16.mxu0 0
    %1249 = vmatpush2.bf16.msra.mxu0 0
    %1250 = vmatprep.subr.bf16.mxu0 0
    %1251 = vmatpush2.bf16.msra.mxu0 0
    %1252 = vmatprep.subr.bf16.mxu0 0
    %1253 = vmatpush2.bf16.msra.mxu0 0
    %1254 = vmatprep.subr.bf16.mxu0 0
    %1255 = vmatpush2.bf16.msra.mxu0 0
    %1256 = vmatprep.subr.bf16.mxu0 0
    %1257 = vmatpush2.bf16.msra.mxu0 0
    %1258 = vmatprep.mubr.bf16.mxu0 0
    %1259 = vmatmul.mubr.bf16.gmra.mxu0 %v85
    %v1260 = vpop.f32.mrf.mxu0
    %v1261 = vadd.f32 %v1220, %v1260
    %v1262 = vpop.f32.mrf.mxu0
    %v1263 = vadd.f32 %v1222, %v1262
    %v1264 = vpop.f32.mrf.mxu0
    %v1265 = vpop.f32.mrf.mxu0
    %1266 = vdwg.mxu0
    %v1267 = vmax.f32 %v1183, %v1261
    %v1268 = vmax.f32 %v1184, %v1263
    %1269 = vmatprep.subr.bf16.mxu0 %v669
    %1270 = vmatpush1.bf16.msra.mxu0 %v668
    %1271 = vmatprep.subr.bf16.mxu0 %v667
    %1272 = vmatpush1.bf16.msra.mxu0 %v666
    %1273 = vmatprep.subr.bf16.mxu0 %v665
    %1274 = vmatpush1.bf16.msra.mxu0 %v664
    %1275 = vmatprep.subr.bf16.mxu0 %v663
    %1276 = vmatpush1.bf16.msra.mxu0 %v662
    %1277 = vmatprep.subr.bf16.mxu0 %v661
    %1278 = vmatpush1.bf16.msra.mxu0 %v660
    %1279 = vmatprep.subr.bf16.mxu0 %v659
    %1280 = vmatpush1.bf16.msra.mxu0 %v658
    %1281 = vmatprep.subr.bf16.mxu0 %v657
    %1282 = vmatpush1.bf16.msra.mxu0 %v656
    %1283 = vmatprep.subr.bf16.mxu0 %v655
    %1284 = vmatpush1.bf16.msra.mxu0 %v654
    %1285 = vmatprep.subr.bf16.mxu0 %v685
    %1286 = vmatpush2.bf16.msra.mxu0 %v684
    %1287 = vmatprep.subr.bf16.mxu0 %v683
    %1288 = vmatpush2.bf16.msra.mxu0 %v682
    %1289 = vmatprep.subr.bf16.mxu0 %v681
    %1290 = vmatpush2.bf16.msra.mxu0 %v680
    %1291 = vmatprep.subr.bf16.mxu0 %v679
    %1292 = vmatpush2.bf16.msra.mxu0 %v678
    %1293 = vmatprep.subr.bf16.mxu0 %v677
    %1294 = vmatpush2.bf16.msra.mxu0 %v676
    %1295 = vmatprep.subr.bf16.mxu0 %v675
    %1296 = vmatpush2.bf16.msra.mxu0 %v674
    %1297 = vmatprep.subr.bf16.mxu0 %v673
    %1298 = vmatpush2.bf16.msra.mxu0 %v672
    %1299 = vmatprep.subr.bf16.mxu0 %v671
    %1300 = vmatpush2.bf16.msra.mxu0 %v670
    %1301 = vmatprep.mubr.bf16.mxu0 %v84
    %1302 = vmatmul.mubr.bf16.gmra.mxu0 %v83
    %v1303 = vpop.f32.mrf.mxu0
    %v1304 = vadd.f32 0.0, %v1303
    %v1305 = vpop.f32.mrf.mxu0
    %v1306 = vadd.f32 0.0, %v1305
    %v1307 = vpop.f32.mrf.mxu0
    %v1308 = vpop.f32.mrf.mxu0
    %1309 = vdwg.mxu0
    %1310 = vmatprep.subr.bf16.mxu0 %v701
    %1311 = vmatpush1.bf16.msra.mxu0 %v700
    %1312 = vmatprep.subr.bf16.mxu0 %v699
    %1313 = vmatpush1.bf16.msra.mxu0 %v698
    %1314 = vmatprep.subr.bf16.mxu0 %v697
    %1315 = vmatpush1.bf16.msra.mxu0 %v696
    %1316 = vmatprep.subr.bf16.mxu0 %v695
    %1317 = vmatpush1.bf16.msra.mxu0 %v694
    %1318 = vmatprep.subr.bf16.mxu0 %v693
    %1319 = vmatpush1.bf16.msra.mxu0 %v692
    %1320 = vmatprep.subr.bf16.mxu0 %v691
    %1321 = vmatpush1.bf16.msra.mxu0 %v690
    %1322 = vmatprep.subr.bf16.mxu0 %v689
    %1323 = vmatpush1.bf16.msra.mxu0 %v688
    %1324 = vmatprep.subr.bf16.mxu0 %v687
    %1325 = vmatpush1.bf16.msra.mxu0 %v686
    %1326 = vmatprep.subr.bf16.mxu0 0
    %1327 = vmatpush2.bf16.msra.mxu0 0
    %1328 = vmatprep.subr.bf16.mxu0 0
    %1329 = vmatpush2.bf16.msra.mxu0 0
    %1330 = vmatprep.subr.bf16.mxu0 0
    %1331 = vmatpush2.bf16.msra.mxu0 0
    %1332 = vmatprep.subr.bf16.mxu0 0
    %1333 = vmatpush2.bf16.msra.mxu0 0
    %1334 = vmatprep.subr.bf16.mxu0 0
    %1335 = vmatpush2.bf16.msra.mxu0 0
    %1336 = vmatprep.subr.bf16.mxu0 0
    %1337 = vmatpush2.bf16.msra.mxu0 0
    %1338 = vmatprep.subr.bf16.mxu0 0
    %1339 = vmatpush2.bf16.msra.mxu0 0
    %1340 = vmatprep.subr.bf16.mxu0 0
    %1341 = vmatpush2.bf16.msra.mxu0 0
    %1342 = vmatprep.mubr.bf16.mxu0 0
    %1343 = vmatmul.mubr.bf16.gmra.mxu0 %v85
    %v1344 = vpop.f32.mrf.mxu0
    %v1345 = vadd.f32 %v1304, %v1344
    %v1346 = vpop.f32.mrf.mxu0
    %v1347 = vadd.f32 %v1306, %v1346
    %v1348 = vpop.f32.mrf.mxu0
    %v1349 = vpop.f32.mrf.mxu0
    %1350 = vdwg.mxu0
    %v1351 = vmax.f32 %v1267, %v1345
    %v1352 = vmax.f32 %v1268, %v1347
    %v1353 = vadd.f32 %v1351, %v1006
    %v1354 = vadd.f32 %v1352, %v1010
    %v1355 = vmax.f32 %v1353, 0.0
    %v1356 = vmax.f32 %v1354, 0.0
    %v1357 = vpack.c.bf16 %v1355, %v1355
    %v1358 = vpack.c.bf16 %v1356, %v1356
    %1359 = vmatprep.subr.bf16.mxu0 %v298
    %1360 = vmatpush1.bf16.msra.mxu0 %v297
    %1361 = vmatprep.subr.bf16.mxu0 %v296
    %1362 = vmatpush1.bf16.msra.mxu0 %v295
    %1363 = vmatprep.subr.bf16.mxu0 %v294
    %1364 = vmatpush1.bf16.msra.mxu0 %v293
    %1365 = vmatprep.subr.bf16.mxu0 %v292
    %1366 = vmatpush1.bf16.msra.mxu0 %v291
    %1367 = vmatprep.subr.bf16.mxu0 %v290
    %1368 = vmatpush1.bf16.msra.mxu0 %v289
    %1369 = vmatprep.subr.bf16.mxu0 %v288
    %1370 = vmatpush1.bf16.msra.mxu0 %v287
    %1371 = vmatprep.subr.bf16.mxu0 %v286
    %1372 = vmatpush1.bf16.msra.mxu0 %v285
    %1373 = vmatprep.subr.bf16.mxu0 %v284
    %1374 = vmatpush1.bf16.msra.mxu0 %v283
    %1375 = vmatprep.subr.bf16.mxu0 %v314
    %1376 = vmatpush2.bf16.msra.mxu0 %v313
    %1377 = vmatprep.subr.bf16.mxu0 %v312
    %1378 = vmatpush2.bf16.msra.mxu0 %v311
    %1379 = vmatprep.subr.bf16.mxu0 %v310
    %1380 = vmatpush2.bf16.msra.mxu0 %v309
    %1381 = vmatprep.subr.bf16.mxu0 %v308
    %1382 = vmatpush2.bf16.msra.mxu0 %v307
    %1383 = vmatprep.subr.bf16.mxu0 %v306
    %1384 = vmatpush2.bf16.msra.mxu0 %v305
    %1385 = vmatprep.subr.bf16.mxu0 %v304
    %1386 = vmatpush2.bf16.msra.mxu0 %v303
    %1387 = vmatprep.subr.bf16.mxu0 %v302
    %1388 = vmatpush2.bf16.msra.mxu0 %v301
    %1389 = vmatprep.subr.bf16.mxu0 %v300
    %1390 = vmatpush2.bf16.msra.mxu0 %v299
    %1391 = vmatprep.mubr.bf16.mxu0 %v85
    %1392 = vmatmul.mubr.bf16.gmra.mxu0 %v84
    %v1393 = vpop.f32.mrf.mxu0
    %v1394 = vadd.f32 0.0, %v1393
    %v1395 = vpop.f32.mrf.mxu0
    %v1396 = vadd.f32 0.0, %v1395
    %v1397 = vpop.f32.mrf.mxu0
    %v1398 = vpop.f32.mrf.mxu0
    %1399 = vdwg.mxu0
    %1400 = vmatprep.subr.bf16.mxu0 %v330
    %1401 = vmatpush1.bf16.msra.mxu0 %v329
    %1402 = vmatprep.subr.bf16.mxu0 %v328
    %1403 = vmatpush1.bf16.msra.mxu0 %v327
    %1404 = vmatprep.subr.bf16.mxu0 %v326
    %1405 = vmatpush1.bf16.msra.mxu0 %v325
    %1406 = vmatprep.subr.bf16.mxu0 %v324
    %1407 = vmatpush1.bf16.msra.mxu0 %v323
    %1408 = vmatprep.subr.bf16.mxu0 %v322
    %1409 = vmatpush1.bf16.msra.mxu0 %v321
    %1410 = vmatprep.subr.bf16.mxu0 %v320
    %1411 = vmatpush1.bf16.msra.mxu0 %v319
    %1412 = vmatprep.subr.bf16.mxu0 %v318
    %1413 = vmatpush1.bf16.msra.mxu0 %v317
    %1414 = vmatprep.subr.bf16.mxu0 %v316
    %1415 = vmatpush1.bf16.msra.mxu0 %v315
    %1416 = vmatprep.subr.bf16.mxu0 0
    %1417 = vmatpush2.bf16.msra.mxu0 0
    %1418 = vmatprep.subr.bf16.mxu0 0
    %1419 = vmatpush2.bf16.msra.mxu0 0
    %1420 = vmatprep.subr.bf16.mxu0 0
    %1421 = vmatpush2.bf16.msra.mxu0 0
    %1422 = vmatprep.subr.bf16.mxu0 0
    %1423 = vmatpush2.bf16.msra.mxu0 0
    %1424 = vmatprep.subr.bf16.mxu0 0
    %1425 = vmatpush2.bf16.msra.mxu0 0
    %1426 = vmatprep.subr.bf16.mxu0 0
    %1427 = vmatpush2.bf16.msra.mxu0 0
    %1428 = vmatprep.subr.bf16.mxu0 0
    %1429 = vmatpush2.bf16.msra.mxu0 0
    %1430 = vmatprep.subr.bf16.mxu0 0
    %1431 = vmatpush2.bf16.msra.mxu0 0
    %1432 = vmatprep.mubr.bf16.mxu0 0
    %1433 = vmatmul.mubr.bf16.gmra.mxu0 %v86
    %v1434 = vpop.f32.mrf.mxu0
    %v1435 = vadd.f32 %v1394, %v1434
    %v1436 = vpop.f32.mrf.mxu0
    %v1437 = vadd.f32 %v1396, %v1436
    %v1438 = vpop.f32.mrf.mxu0
    %v1439 = vpop.f32.mrf.mxu0
    %1440 = vdwg.mxu0
    %1441 = vmatprep.subr.bf16.mxu0 %v669
    %1442 = vmatpush1.bf16.msra.mxu0 %v668
    %1443 = vmatprep.subr.bf16.mxu0 %v667
    %1444 = vmatpush1.bf16.msra.mxu0 %v666
    %1445 = vmatprep.subr.bf16.mxu0 %v665
    %1446 = vmatpush1.bf16.msra.mxu0 %v664
    %1447 = vmatprep.subr.bf16.mxu0 %v663
    %1448 = vmatpush1.bf16.msra.mxu0 %v662
    %1449 = vmatprep.subr.bf16.mxu0 %v661
    %1450 = vmatpush1.bf16.msra.mxu0 %v660
    %1451 = vmatprep.subr.bf16.mxu0 %v659
    %1452 = vmatpush1.bf16.msra.mxu0 %v658
    %1453 = vmatprep.subr.bf16.mxu0 %v657
    %1454 = vmatpush1.bf16.msra.mxu0 %v656
    %1455 = vmatprep.subr.bf16.mxu0 %v655
    %1456 = vmatpush1.bf16.msra.mxu0 %v654
    %1457 = vmatprep.subr.bf16.mxu0 %v685
    %1458 = vmatpush2.bf16.msra.mxu0 %v684
    %1459 = vmatprep.subr.bf16.mxu0 %v683
    %1460 = vmatpush2.bf16.msra.mxu0 %v682
    %1461 = vmatprep.subr.bf16.mxu0 %v681
    %1462 = vmatpush2.bf16.msra.mxu0 %v680
    %1463 = vmatprep.subr.bf16.mxu0 %v679
    %1464 = vmatpush2.bf16.msra.mxu0 %v678
    %1465 = vmatprep.subr.bf16.mxu0 %v677
    %1466 = vmatpush2.bf16.msra.mxu0 %v676
    %1467 = vmatprep.subr.bf16.mxu0 %v675
    %1468 = vmatpush2.bf16.msra.mxu0 %v674
    %1469 = vmatprep.subr.bf16.mxu0 %v673
    %1470 = vmatpush2.bf16.msra.mxu0 %v672
    %1471 = vmatprep.subr.bf16.mxu0 %v671
    %1472 = vmatpush2.bf16.msra.mxu0 %v670
    %1473 = vmatprep.mubr.bf16.mxu0 %v85
    %1474 = vmatmul.mubr.bf16.gmra.mxu0 %v84
    %v1475 = vpop.f32.mrf.mxu0
    %v1476 = vadd.f32 0.0, %v1475
    %v1477 = vpop.f32.mrf.mxu0
    %v1478 = vadd.f32 0.0, %v1477
    %v1479 = vpop.f32.mrf.mxu0
    %v1480 = vpop.f32.mrf.mxu0
    %1481 = vdwg.mxu0
    %1482 = vmatprep.subr.bf16.mxu0 %v701
    %1483 = vmatpush1.bf16.msra.mxu0 %v700
    %1484 = vmatprep.subr.bf16.mxu0 %v699
    %1485 = vmatpush1.bf16.msra.mxu0 %v698
    %1486 = vmatprep.subr.bf16.mxu0 %v697
    %1487 = vmatpush1.bf16.msra.mxu0 %v696
    %1488 = vmatprep.subr.bf16.mxu0 %v695
    %1489 = vmatpush1.bf16.msra.mxu0 %v694
    %1490 = vmatprep.subr.bf16.mxu0 %v693
    %1491 = vmatpush1.bf16.msra.mxu0 %v692
    %1492 = vmatprep.subr.bf16.mxu0 %v691
    %1493 = vmatpush1.bf16.msra.mxu0 %v690
    %1494 = vmatprep.subr.bf16.mxu0 %v689
    %1495 = vmatpush1.bf16.msra.mxu0 %v688
    %1496 = vmatprep.subr.bf16.mxu0 %v687
    %1497 = vmatpush1.bf16.msra.mxu0 %v686
    %1498 = vmatprep.subr.bf16.mxu0 0
    %1499 = vmatpush2.bf16.msra.mxu0 0
    %1500 = vmatprep.subr.bf16.mxu0 0
    %1501 = vmatpush2.bf16.msra.mxu0 0
    %1502 = vmatprep.subr.bf16.mxu0 0
    %1503 = vmatpush2.bf16.msra.mxu0 0
    %1504 = vmatprep.subr.bf16.mxu0 0
    %1505 = vmatpush2.bf16.msra.mxu0 0
    %1506 = vmatprep.subr.bf16.mxu0 0
    %1507 = vmatpush2.bf16.msra.mxu0 0
    %1508 = vmatprep.subr.bf16.mxu0 0
    %1509 = vmatpush2.bf16.msra.mxu0 0
    %1510 = vmatprep.subr.bf16.mxu0 0
    %1511 = vmatpush2.bf16.msra.mxu0 0
    %1512 = vmatprep.subr.bf16.mxu0 0
    %1513 = vmatpush2.bf16.msra.mxu0 0
    %1514 = vmatprep.mubr.bf16.mxu0 0
    %1515 = vmatmul.mubr.bf16.gmra.mxu0 %v86
    %v1516 = vpop.f32.mrf.mxu0
    %v1517 = vadd.f32 %v1476, %v1516
    %v1518 = vpop.f32.mrf.mxu0
    %v1519 = vadd.f32 %v1478, %v1518
    %v1520 = vpop.f32.mrf.mxu0
    %v1521 = vpop.f32.mrf.mxu0
    %1522 = vdwg.mxu0
    %v1523 = vmax.f32 %v1435, %v1517
    %v1524 = vmax.f32 %v1437, %v1519
    %1525 = vmatprep.subr.bf16.mxu0 %v298
    %1526 = vmatpush1.bf16.msra.mxu0 %v297
    %1527 = vmatprep.subr.bf16.mxu0 %v296
    %1528 = vmatpush1.bf16.msra.mxu0 %v295
    %1529 = vmatprep.subr.bf16.mxu0 %v294
    %1530 = vmatpush1.bf16.msra.mxu0 %v293
    %1531 = vmatprep.subr.bf16.mxu0 %v292
    %1532 = vmatpush1.bf16.msra.mxu0 %v291
    %1533 = vmatprep.subr.bf16.mxu0 %v290
    %1534 = vmatpush1.bf16.msra.mxu0 %v289
    %1535 = vmatprep.subr.bf16.mxu0 %v288
    %1536 = vmatpush1.bf16.msra.mxu0 %v287
    %1537 = vmatprep.subr.bf16.mxu0 %v286
    %1538 = vmatpush1.bf16.msra.mxu0 %v285
    %1539 = vmatprep.subr.bf16.mxu0 %v284
    %1540 = vmatpush1.bf16.msra.mxu0 %v283
    %1541 = vmatprep.subr.bf16.mxu0 %v314
    %1542 = vmatpush2.bf16.msra.mxu0 %v313
    %1543 = vmatprep.subr.bf16.mxu0 %v312
    %1544 = vmatpush2.bf16.msra.mxu0 %v311
    %1545 = vmatprep.subr.bf16.mxu0 %v310
    %1546 = vmatpush2.bf16.msra.mxu0 %v309
    %1547 = vmatprep.subr.bf16.mxu0 %v308
    %1548 = vmatpush2.bf16.msra.mxu0 %v307
    %1549 = vmatprep.subr.bf16.mxu0 %v306
    %1550 = vmatpush2.bf16.msra.mxu0 %v305
    %1551 = vmatprep.subr.bf16.mxu0 %v304
    %1552 = vmatpush2.bf16.msra.mxu0 %v303
    %1553 = vmatprep.subr.bf16.mxu0 %v302
    %1554 = vmatpush2.bf16.msra.mxu0 %v301
    %1555 = vmatprep.subr.bf16.mxu0 %v300
    %1556 = vmatpush2.bf16.msra.mxu0 %v299
    %1557 = vmatprep.mubr.bf16.mxu0 %v86
    %1558 = vmatmul.mubr.bf16.gmra.mxu0 %v85
    %v1559 = vpop.f32.mrf.mxu0
    %v1560 = vadd.f32 0.0, %v1559
    %v1561 = vpop.f32.mrf.mxu0
    %v1562 = vadd.f32 0.0, %v1561
    %v1563 = vpop.f32.mrf.mxu0
    %v1564 = vpop.f32.mrf.mxu0
    %1565 = vdwg.mxu0
    %1566 = vmatprep.subr.bf16.mxu0 %v330
    %1567 = vmatpush1.bf16.msra.mxu0 %v329
    %1568 = vmatprep.subr.bf16.mxu0 %v328
    %1569 = vmatpush1.bf16.msra.mxu0 %v327
    %1570 = vmatprep.subr.bf16.mxu0 %v326
    %1571 = vmatpush1.bf16.msra.mxu0 %v325
    %1572 = vmatprep.subr.bf16.mxu0 %v324
    %1573 = vmatpush1.bf16.msra.mxu0 %v323
    %1574 = vmatprep.subr.bf16.mxu0 %v322
    %1575 = vmatpush1.bf16.msra.mxu0 %v321
    %1576 = vmatprep.subr.bf16.mxu0 %v320
    %1577 = vmatpush1.bf16.msra.mxu0 %v319
    %1578 = vmatprep.subr.bf16.mxu0 %v318
    %1579 = vmatpush1.bf16.msra.mxu0 %v317
    %1580 = vmatprep.subr.bf16.mxu0 %v316
    %1581 = vmatpush1.bf16.msra.mxu0 %v315
    %1582 = vmatprep.subr.bf16.mxu0 0
    %1583 = vmatpush2.bf16.msra.mxu0 0
    %1584 = vmatprep.subr.bf16.mxu0 0
    %1585 = vmatpush2.bf16.msra.mxu0 0
    %1586 = vmatprep.subr.bf16.mxu0 0
    %1587 = vmatpush2.bf16.msra.mxu0 0
    %1588 = vmatprep.subr.bf16.mxu0 0
    %1589 = vmatpush2.bf16.msra.mxu0 0
    %1590 = vmatprep.subr.bf16.mxu0 0
    %1591 = vmatpush2.bf16.msra.mxu0 0
    %1592 = vmatprep.subr.bf16.mxu0 0
    %1593 = vmatpush2.bf16.msra.mxu0 0
    %1594 = vmatprep.subr.bf16.mxu0 0
    %1595 = vmatpush2.bf16.msra.mxu0 0
    %1596 = vmatprep.subr.bf16.mxu0 0
    %1597 = vmatpush2.bf16.msra.mxu0 0
    %1598 = vmatprep.mubr.bf16.mxu0 0
    %1599 = vmatmul.mubr.bf16.gmra.mxu0 %v87
    %v1600 = vpop.f32.mrf.mxu0
    %v1601 = vadd.f32 %v1560, %v1600
    %v1602 = vpop.f32.mrf.mxu0
    %v1603 = vadd.f32 %v1562, %v1602
    %v1604 = vpop.f32.mrf.mxu0
    %v1605 = vpop.f32.mrf.mxu0
    %1606 = vdwg.mxu0
    %v1607 = vmax.f32 %v1523, %v1601
    %v1608 = vmax.f32 %v1524, %v1603
    %1609 = vmatprep.subr.bf16.mxu0 %v669
    %1610 = vmatpush1.bf16.msra.mxu0 %v668
    %1611 = vmatprep.subr.bf16.mxu0 %v667
    %1612 = vmatpush1.bf16.msra.mxu0 %v666
    %1613 = vmatprep.subr.bf16.mxu0 %v665
    %1614 = vmatpush1.bf16.msra.mxu0 %v664
    %1615 = vmatprep.subr.bf16.mxu0 %v663
    %1616 = vmatpush1.bf16.msra.mxu0 %v662
    %1617 = vmatprep.subr.bf16.mxu0 %v661
    %1618 = vmatpush1.bf16.msra.mxu0 %v660
    %1619 = vmatprep.subr.bf16.mxu0 %v659
    %1620 = vmatpush1.bf16.msra.mxu0 %v658
    %1621 = vmatprep.subr.bf16.mxu0 %v657
    %1622 = vmatpush1.bf16.msra.mxu0 %v656
    %1623 = vmatprep.subr.bf16.mxu0 %v655
    %1624 = vmatpush1.bf16.msra.mxu0 %v654
    %1625 = vmatprep.subr.bf16.mxu0 %v685
    %1626 = vmatpush2.bf16.msra.mxu0 %v684
    %1627 = vmatprep.subr.bf16.mxu0 %v683
    %1628 = vmatpush2.bf16.msra.mxu0 %v682
    %1629 = vmatprep.subr.bf16.mxu0 %v681
    %1630 = vmatpush2.bf16.msra.mxu0 %v680
    %1631 = vmatprep.subr.bf16.mxu0 %v679
    %1632 = vmatpush2.bf16.msra.mxu0 %v678
    %1633 = vmatprep.subr.bf16.mxu0 %v677
    %1634 = vmatpush2.bf16.msra.mxu0 %v676
    %1635 = vmatprep.subr.bf16.mxu0 %v675
    %1636 = vmatpush2.bf16.msra.mxu0 %v674
    %1637 = vmatprep.subr.bf16.mxu0 %v673
    %1638 = vmatpush2.bf16.msra.mxu0 %v672
    %1639 = vmatprep.subr.bf16.mxu0 %v671
    %1640 = vmatpush2.bf16.msra.mxu0 %v670
    %1641 = vmatprep.mubr.bf16.mxu0 %v86
    %1642 = vmatmul.mubr.bf16.gmra.mxu0 %v85
    %v1643 = vpop.f32.mrf.mxu0
    %v1644 = vadd.f32 0.0, %v1643
    %v1645 = vpop.f32.mrf.mxu0
    %v1646 = vadd.f32 0.0, %v1645
    %v1647 = vpop.f32.mrf.mxu0
    %v1648 = vpop.f32.mrf.mxu0
    %1649 = vdwg.mxu0
    %1650 = vmatprep.subr.bf16.mxu0 %v701
    %1651 = vmatpush1.bf16.msra.mxu0 %v700
    %1652 = vmatprep.subr.bf16.mxu0 %v699
    %1653 = vmatpush1.bf16.msra.mxu0 %v698
    %1654 = vmatprep.subr.bf16.mxu0 %v697
    %1655 = vmatpush1.bf16.msra.mxu0 %v696
    %1656 = vmatprep.subr.bf16.mxu0 %v695
    %1657 = vmatpush1.bf16.msra.mxu0 %v694
    %1658 = vmatprep.subr.bf16.mxu0 %v693
    %1659 = vmatpush1.bf16.msra.mxu0 %v692
    %1660 = vmatprep.subr.bf16.mxu0 %v691
    %1661 = vmatpush1.bf16.msra.mxu0 %v690
    %1662 = vmatprep.subr.bf16.mxu0 %v689
    %1663 = vmatpush1.bf16.msra.mxu0 %v688
    %1664 = vmatprep.subr.bf16.mxu0 %v687
    %1665 = vmatpush1.bf16.msra.mxu0 %v686
    %1666 = vmatprep.subr.bf16.mxu0 0
    %1667 = vmatpush2.bf16.msra.mxu0 0
    %1668 = vmatprep.subr.bf16.mxu0 0
    %1669 = vmatpush2.bf16.msra.mxu0 0
    %1670 = vmatprep.subr.bf16.mxu0 0
    %1671 = vmatpush2.bf16.msra.mxu0 0
    %1672 = vmatprep.subr.bf16.mxu0 0
    %1673 = vmatpush2.bf16.msra.mxu0 0
    %1674 = vmatprep.subr.bf16.mxu0 0
    %1675 = vmatpush2.bf16.msra.mxu0 0
    %1676 = vmatprep.subr.bf16.mxu0 0
    %1677 = vmatpush2.bf16.msra.mxu0 0
    %1678 = vmatprep.subr.bf16.mxu0 0
    %1679 = vmatpush2.bf16.msra.mxu0 0
    %1680 = vmatprep.subr.bf16.mxu0 0
    %1681 = vmatpush2.bf16.msra.mxu0 0
    %1682 = vmatprep.mubr.bf16.mxu0 0
    %1683 = vmatmul.mubr.bf16.gmra.mxu0 %v87
    %v1684 = vpop.f32.mrf.mxu0
    %v1685 = vadd.f32 %v1644, %v1684
    %v1686 = vpop.f32.mrf.mxu0
    %v1687 = vadd.f32 %v1646, %v1686
    %v1688 = vpop.f32.mrf.mxu0
    %v1689 = vpop.f32.mrf.mxu0
    %1690 = vdwg.mxu0
    %v1691 = vmax.f32 %v1607, %v1685
    %v1692 = vmax.f32 %v1608, %v1687
    %v1693 = vadd.f32 %v1691, %v1006
    %v1694 = vadd.f32 %v1692, %v1010
    %v1695 = vmax.f32 %v1693, 0.0
    %v1696 = vmax.f32 %v1694, 0.0
    %v1697 = vpack.c.bf16 %v1695, %v1695
    %v1698 = vpack.c.bf16 %v1696, %v1696
    %1699 = vmatprep.subr.bf16.mxu0 %v298
    %1700 = vmatpush1.bf16.msra.mxu0 %v297
    %1701 = vmatprep.subr.bf16.mxu0 %v296
    %1702 = vmatpush1.bf16.msra.mxu0 %v295
    %1703 = vmatprep.subr.bf16.mxu0 %v294
    %1704 = vmatpush1.bf16.msra.mxu0 %v293
    %1705 = vmatprep.subr.bf16.mxu0 %v292
    %1706 = vmatpush1.bf16.msra.mxu0 %v291
    %1707 = vmatprep.subr.bf16.mxu0 %v290
    %1708 = vmatpush1.bf16.msra.mxu0 %v289
    %1709 = vmatprep.subr.bf16.mxu0 %v288
    %1710 = vmatpush1.bf16.msra.mxu0 %v287
    %1711 = vmatprep.subr.bf16.mxu0 %v286
    %1712 = vmatpush1.bf16.msra.mxu0 %v285
    %1713 = vmatprep.subr.bf16.mxu0 %v284
    %1714 = vmatpush1.bf16.msra.mxu0 %v283
    %1715 = vmatprep.subr.bf16.mxu0 %v314
    %1716 = vmatpush2.bf16.msra.mxu0 %v313
    %1717 = vmatprep.subr.bf16.mxu0 %v312
    %1718 = vmatpush2.bf16.msra.mxu0 %v311
    %1719 = vmatprep.subr.bf16.mxu0 %v310
    %1720 = vmatpush2.bf16.msra.mxu0 %v309
    %1721 = vmatprep.subr.bf16.mxu0 %v308
    %1722 = vmatpush2.bf16.msra.mxu0 %v307
    %1723 = vmatprep.subr.bf16.mxu0 %v306
    %1724 = vmatpush2.bf16.msra.mxu0 %v305
    %1725 = vmatprep.subr.bf16.mxu0 %v304
    %1726 = vmatpush2.bf16.msra.mxu0 %v303
    %1727 = vmatprep.subr.bf16.mxu0 %v302
    %1728 = vmatpush2.bf16.msra.mxu0 %v301
    %1729 = vmatprep.subr.bf16.mxu0 %v300
    %1730 = vmatpush2.bf16.msra.mxu0 %v299
    %1731 = vmatprep.mubr.bf16.mxu0 %v87
    %1732 = vmatmul.mubr.bf16.gmra.mxu0 %v86
    %v1733 = vpop.f32.mrf.mxu0
    %v1734 = vadd.f32 0.0, %v1733
    %v1735 = vpop.f32.mrf.mxu0
    %v1736 = vadd.f32 0.0, %v1735
    %v1737 = vpop.f32.mrf.mxu0
    %v1738 = vpop.f32.mrf.mxu0
    %1739 = vdwg.mxu0
    %1740 = vmatprep.subr.bf16.mxu0 %v330
    %1741 = vmatpush1.bf16.msra.mxu0 %v329
    %1742 = vmatprep.subr.bf16.mxu0 %v328
    %1743 = vmatpush1.bf16.msra.mxu0 %v327
    %1744 = vmatprep.subr.bf16.mxu0 %v326
    %1745 = vmatpush1.bf16.msra.mxu0 %v325
    %1746 = vmatprep.subr.bf16.mxu0 %v324
    %1747 = vmatpush1.bf16.msra.mxu0 %v323
    %1748 = vmatprep.subr.bf16.mxu0 %v322
    %1749 = vmatpush1.bf16.msra.mxu0 %v321
    %1750 = vmatprep.subr.bf16.mxu0 %v320
    %1751 = vmatpush1.bf16.msra.mxu0 %v319
    %1752 = vmatprep.subr.bf16.mxu0 %v318
    %1753 = vmatpush1.bf16.msra.mxu0 %v317
    %1754 = vmatprep.subr.bf16.mxu0 %v316
    %1755 = vmatpush1.bf16.msra.mxu0 %v315
    %1756 = vmatprep.subr.bf16.mxu0 0
    %1757 = vmatpush2.bf16.msra.mxu0 0
    %1758 = vmatprep.subr.bf16.mxu0 0
    %1759 = vmatpush2.bf16.msra.mxu0 0
    %1760 = vmatprep.subr.bf16.mxu0 0
    %1761 = vmatpush2.bf16.msra.mxu0 0
    %1762 = vmatprep.subr.bf16.mxu0 0
    %1763 = vmatpush2.bf16.msra.mxu0 0
    %1764 = vmatprep.subr.bf16.mxu0 0
    %1765 = vmatpush2.bf16.msra.mxu0 0
    %1766 = vmatprep.subr.bf16.mxu0 0
    %1767 = vmatpush2.bf16.msra.mxu0 0
    %1768 = vmatprep.subr.bf16.mxu0 0
    %1769 = vmatpush2.bf16.msra.mxu0 0
    %1770 = vmatprep.subr.bf16.mxu0 0
    %1771 = vmatpush2.bf16.msra.mxu0 0
    %1772 = vmatprep.mubr.bf16.mxu0 0
    %1773 = vmatmul.mubr.bf16.gmra.mxu0 %v88
    %v1774 = vpop.f32.mrf.mxu0
    %v1775 = vadd.f32 %v1734, %v1774
    %v1776 = vpop.f32.mrf.mxu0
    %v1777 = vadd.f32 %v1736, %v1776
    %v1778 = vpop.f32.mrf.mxu0
    %v1779 = vpop.f32.mrf.mxu0
    %1780 = vdwg.mxu0
    %1781 = vmatprep.subr.bf16.mxu0 %v669
    %1782 = vmatpush1.bf16.msra.mxu0 %v668
    %1783 = vmatprep.subr.bf16.mxu0 %v667
    %1784 = vmatpush1.bf16.msra.mxu0 %v666
    %1785 = vmatprep.subr.bf16.mxu0 %v665
    %1786 = vmatpush1.bf16.msra.mxu0 %v664
    %1787 = vmatprep.subr.bf16.mxu0 %v663
    %1788 = vmatpush1.bf16.msra.mxu0 %v662
    %1789 = vmatprep.subr.bf16.mxu0 %v661
    %1790 = vmatpush1.bf16.msra.mxu0 %v660
    %1791 = vmatprep.subr.bf16.mxu0 %v659
    %1792 = vmatpush1.bf16.msra.mxu0 %v658
    %1793 = vmatprep.subr.bf16.mxu0 %v657
    %1794 = vmatpush1.bf16.msra.mxu0 %v656
    %1795 = vmatprep.subr.bf16.mxu0 %v655
    %1796 = vmatpush1.bf16.msra.mxu0 %v654
    %1797 = vmatprep.subr.bf16.mxu0 %v685
    %1798 = vmatpush2.bf16.msra.mxu0 %v684
    %1799 = vmatprep.subr.bf16.mxu0 %v683
    %1800 = vmatpush2.bf16.msra.mxu0 %v682
    %1801 = vmatprep.subr.bf16.mxu0 %v681
    %1802 = vmatpush2.bf16.msra.mxu0 %v680
    %1803 = vmatprep.subr.bf16.mxu0 %v679
    %1804 = vmatpush2.bf16.msra.mxu0 %v678
    %1805 = vmatprep.subr.bf16.mxu0 %v677
    %1806 = vmatpush2.bf16.msra.mxu0 %v676
    %1807 = vmatprep.subr.bf16.mxu0 %v675
    %1808 = vmatpush2.bf16.msra.mxu0 %v674
    %1809 = vmatprep.subr.bf16.mxu0 %v673
    %1810 = vmatpush2.bf16.msra.mxu0 %v672
    %1811 = vmatprep.subr.bf16.mxu0 %v671
    %1812 = vmatpush2.bf16.msra.mxu0 %v670
    %1813 = vmatprep.mubr.bf16.mxu0 %v87
    %1814 = vmatmul.mubr.bf16.gmra.mxu0 %v86
    %v1815 = vpop.f32.mrf.mxu0
    %v1816 = vadd.f32 0.0, %v1815
    %v1817 = vpop.f32.mrf.mxu0
    %v1818 = vadd.f32 0.0, %v1817
    %v1819 = vpop.f32.mrf.mxu0
    %v1820 = vpop.f32.mrf.mxu0
    %1821 = vdwg.mxu0
    %1822 = vmatprep.subr.bf16.mxu0 %v701
    %1823 = vmatpush1.bf16.msra.mxu0 %v700
    %1824 = vmatprep.subr.bf16.mxu0 %v699
    %1825 = vmatpush1.bf16.msra.mxu0 %v698
    %1826 = vmatprep.subr.bf16.mxu0 %v697
    %1827 = vmatpush1.bf16.msra.mxu0 %v696
    %1828 = vmatprep.subr.bf16.mxu0 %v695
    %1829 = vmatpush1.bf16.msra.mxu0 %v694
    %1830 = vmatprep.subr.bf16.mxu0 %v693
    %1831 = vmatpush1.bf16.msra.mxu0 %v692
    %1832 = vmatprep.subr.bf16.mxu0 %v691
    %1833 = vmatpush1.bf16.msra.mxu0 %v690
    %1834 = vmatprep.subr.bf16.mxu0 %v689
    %1835 = vmatpush1.bf16.msra.mxu0 %v688
    %1836 = vmatprep.subr.bf16.mxu0 %v687
    %1837 = vmatpush1.bf16.msra.mxu0 %v686
    %1838 = vmatprep.subr.bf16.mxu0 0
    %1839 = vmatpush2.bf16.msra.mxu0 0
    %1840 = vmatprep.subr.bf16.mxu0 0
    %1841 = vmatpush2.bf16.msra.mxu0 0
    %1842 = vmatprep.subr.bf16.mxu0 0
    %1843 = vmatpush2.bf16.msra.mxu0 0
    %1844 = vmatprep.subr.bf16.mxu0 0
    %1845 = vmatpush2.bf16.msra.mxu0 0
    %1846 = vmatprep.subr.bf16.mxu0 0
    %1847 = vmatpush2.bf16.msra.mxu0 0
    %1848 = vmatprep.subr.bf16.mxu0 0
    %1849 = vmatpush2.bf16.msra.mxu0 0
    %1850 = vmatprep.subr.bf16.mxu0 0
    %1851 = vmatpush2.bf16.msra.mxu0 0
    %1852 = vmatprep.subr.bf16.mxu0 0
    %1853 = vmatpush2.bf16.msra.mxu0 0
    %1854 = vmatprep.mubr.bf16.mxu0 0
    %1855 = vmatmul.mubr.bf16.gmra.mxu0 %v88
    %v1856 = vpop.f32.mrf.mxu0
    %v1857 = vadd.f32 %v1816, %v1856
    %v1858 = vpop.f32.mrf.mxu0
    %v1859 = vadd.f32 %v1818, %v1858
    %v1860 = vpop.f32.mrf.mxu0
    %v1861 = vpop.f32.mrf.mxu0
    %1862 = vdwg.mxu0
    %v1863 = vmax.f32 %v1775, %v1857
    %v1864 = vmax.f32 %v1777, %v1859
    %1865 = vmatprep.subr.bf16.mxu0 %v298
    %1866 = vmatpush1.bf16.msra.mxu0 %v297
    %1867 = vmatprep.subr.bf16.mxu0 %v296
    %1868 = vmatpush1.bf16.msra.mxu0 %v295
    %1869 = vmatprep.subr.bf16.mxu0 %v294
    %1870 = vmatpush1.bf16.msra.mxu0 %v293
    %1871 = vmatprep.subr.bf16.mxu0 %v292
    %1872 = vmatpush1.bf16.msra.mxu0 %v291
    %1873 = vmatprep.subr.bf16.mxu0 %v290
    %1874 = vmatpush1.bf16.msra.mxu0 %v289
    %1875 = vmatprep.subr.bf16.mxu0 %v288
    %1876 = vmatpush1.bf16.msra.mxu0 %v287
    %1877 = vmatprep.subr.bf16.mxu0 %v286
    %1878 = vmatpush1.bf16.msra.mxu0 %v285
    %1879 = vmatprep.subr.bf16.mxu0 %v284
    %1880 = vmatpush1.bf16.msra.mxu0 %v283
    %1881 = vmatprep.subr.bf16.mxu0 %v314
    %1882 = vmatpush2.bf16.msra.mxu0 %v313
    %1883 = vmatprep.subr.bf16.mxu0 %v312
    %1884 = vmatpush2.bf16.msra.mxu0 %v311
    %1885 = vmatprep.subr.bf16.mxu0 %v310
    %1886 = vmatpush2.bf16.msra.mxu0 %v309
    %1887 = vmatprep.subr.bf16.mxu0 %v308
    %1888 = vmatpush2.bf16.msra.mxu0 %v307
    %1889 = vmatprep.subr.bf16.mxu0 %v306
    %1890 = vmatpush2.bf16.msra.mxu0 %v305
    %1891 = vmatprep.subr.bf16.mxu0 %v304
    %1892 = vmatpush2.bf16.msra.mxu0 %v303
    %1893 = vmatprep.subr.bf16.mxu0 %v302
    %1894 = vmatpush2.bf16.msra.mxu0 %v301
    %1895 = vmatprep.subr.bf16.mxu0 %v300
    %1896 = vmatpush2.bf16.msra.mxu0 %v299
    %1897 = vmatprep.mubr.bf16.mxu0 %v88
    %1898 = vmatmul.mubr.bf16.gmra.mxu0 %v87
    %v1899 = vpop.f32.mrf.mxu0
    %v1900 = vadd.f32 0.0, %v1899
    %v1901 = vpop.f32.mrf.mxu0
    %v1902 = vadd.f32 0.0, %v1901
    %v1903 = vpop.f32.mrf.mxu0
    %v1904 = vpop.f32.mrf.mxu0
    %1905 = vdwg.mxu0
    %1906 = vmatprep.subr.bf16.mxu0 %v330
    %1907 = vmatpush1.bf16.msra.mxu0 %v329
    %1908 = vmatprep.subr.bf16.mxu0 %v328
    %1909 = vmatpush1.bf16.msra.mxu0 %v327
    %1910 = vmatprep.subr.bf16.mxu0 %v326
    %1911 = vmatpush1.bf16.msra.mxu0 %v325
    %1912 = vmatprep.subr.bf16.mxu0 %v324
    %1913 = vmatpush1.bf16.msra.mxu0 %v323
    %1914 = vmatprep.subr.bf16.mxu0 %v322
    %1915 = vmatpush1.bf16.msra.mxu0 %v321
    %1916 = vmatprep.subr.bf16.mxu0 %v320
    %1917 = vmatpush1.bf16.msra.mxu0 %v319
    %1918 = vmatprep.subr.bf16.mxu0 %v318
    %1919 = vmatpush1.bf16.msra.mxu0 %v317
    %1920 = vmatprep.subr.bf16.mxu0 %v316
    %1921 = vmatpush1.bf16.msra.mxu0 %v315
    %1922 = vmatprep.subr.bf16.mxu0 0
    %1923 = vmatpush2.bf16.msra.mxu0 0
    %1924 = vmatprep.subr.bf16.mxu0 0
    %1925 = vmatpush2.bf16.msra.mxu0 0
    %1926 = vmatprep.subr.bf16.mxu0 0
    %1927 = vmatpush2.bf16.msra.mxu0 0
    %1928 = vmatprep.subr.bf16.mxu0 0
    %1929 = vmatpush2.bf16.msra.mxu0 0
    %1930 = vmatprep.subr.bf16.mxu0 0
    %1931 = vmatpush2.bf16.msra.mxu0 0
    %1932 = vmatprep.subr.bf16.mxu0 0
    %1933 = vmatpush2.bf16.msra.mxu0 0
    %1934 = vmatprep.subr.bf16.mxu0 0
    %1935 = vmatpush2.bf16.msra.mxu0 0
    %1936 = vmatprep.subr.bf16.mxu0 0
    %1937 = vmatpush2.bf16.msra.mxu0 0
    %1938 = vmatprep.mubr.bf16.mxu0 0
    %1939 = vmatmul.mubr.bf16.gmra.mxu0 %v89
    %v1940 = vpop.f32.mrf.mxu0
    %v1941 = vadd.f32 %v1900, %v1940
    %v1942 = vpop.f32.mrf.mxu0
    %v1943 = vadd.f32 %v1902, %v1942
    %v1944 = vpop.f32.mrf.mxu0
    %v1945 = vpop.f32.mrf.mxu0
    %1946 = vdwg.mxu0
    %v1947 = vmax.f32 %v1863, %v1941
    %v1948 = vmax.f32 %v1864, %v1943
    %1949 = vmatprep.subr.bf16.mxu0 %v669
    %1950 = vmatpush1.bf16.msra.mxu0 %v668
    %1951 = vmatprep.subr.bf16.mxu0 %v667
    %1952 = vmatpush1.bf16.msra.mxu0 %v666
    %1953 = vmatprep.subr.bf16.mxu0 %v665
    %1954 = vmatpush1.bf16.msra.mxu0 %v664
    %1955 = vmatprep.subr.bf16.mxu0 %v663
    %1956 = vmatpush1.bf16.msra.mxu0 %v662
    %1957 = vmatprep.subr.bf16.mxu0 %v661
    %1958 = vmatpush1.bf16.msra.mxu0 %v660
    %1959 = vmatprep.subr.bf16.mxu0 %v659
    %1960 = vmatpush1.bf16.msra.mxu0 %v658
    %1961 = vmatprep.subr.bf16.mxu0 %v657
    %1962 = vmatpush1.bf16.msra.mxu0 %v656
    %1963 = vmatprep.subr.bf16.mxu0 %v655
    %1964 = vmatpush1.bf16.msra.mxu0 %v654
    %1965 = vmatprep.subr.bf16.mxu0 %v685
    %1966 = vmatpush2.bf16.msra.mxu0 %v684
    %1967 = vmatprep.subr.bf16.mxu0 %v683
    %1968 = vmatpush2.bf16.msra.mxu0 %v682
    %1969 = vmatprep.subr.bf16.mxu0 %v681
    %1970 = vmatpush2.bf16.msra.mxu0 %v680
    %1971 = vmatprep.subr.bf16.mxu0 %v679
    %1972 = vmatpush2.bf16.msra.mxu0 %v678
    %1973 = vmatprep.subr.bf16.mxu0 %v677
    %1974 = vmatpush2.bf16.msra.mxu0 %v676
    %1975 = vmatprep.subr.bf16.mxu0 %v675
    %1976 = vmatpush2.bf16.msra.mxu0 %v674
    %1977 = vmatprep.subr.bf16.mxu0 %v673
    %1978 = vmatpush2.bf16.msra.mxu0 %v672
    %1979 = vmatprep.subr.bf16.mxu0 %v671
    %1980 = vmatpush2.bf16.msra.mxu0 %v670
    %1981 = vmatprep.mubr.bf16.mxu0 %v88
    %1982 = vmatmul.mubr.bf16.gmra.mxu0 %v87
    %v1983 = vpop.f32.mrf.mxu0
    %v1984 = vadd.f32 0.0, %v1983
    %v1985 = vpop.f32.mrf.mxu0
    %v1986 = vadd.f32 0.0, %v1985
    %v1987 = vpop.f32.mrf.mxu0
    %v1988 = vpop.f32.mrf.mxu0
    %1989 = vdwg.mxu0
    %1990 = vmatprep.subr.bf16.mxu0 %v701
    %1991 = vmatpush1.bf16.msra.mxu0 %v700
    %1992 = vmatprep.subr.bf16.mxu0 %v699
    %1993 = vmatpush1.bf16.msra.mxu0 %v698
    %1994 = vmatprep.subr.bf16.mxu0 %v697
    %1995 = vmatpush1.bf16.msra.mxu0 %v696
    %1996 = vmatprep.subr.bf16.mxu0 %v695
    %1997 = vmatpush1.bf16.msra.mxu0 %v694
    %1998 = vmatprep.subr.bf16.mxu0 %v693
    %1999 = vmatpush1.bf16.msra.mxu0 %v692
    %2000 = vmatprep.subr.bf16.mxu0 %v691
    %2001 = vmatpush1.bf16.msra.mxu0 %v690
    %2002 = vmatprep.subr.bf16.mxu0 %v689
    %2003 = vmatpush1.bf16.msra.mxu0 %v688
    %2004 = vmatprep.subr.bf16.mxu0 %v687
    %2005 = vmatpush1.bf16.msra.mxu0 %v686
    %2006 = vmatprep.subr.bf16.mxu0 0
    %2007 = vmatpush2.bf16.msra.mxu0 0
    %2008 = vmatprep.subr.bf16.mxu0 0
    %2009 = vmatpush2.bf16.msra.mxu0 0
    %2010 = vmatprep.subr.bf16.mxu0 0
    %2011 = vmatpush2.bf16.msra.mxu0 0
    %2012 = vmatprep.subr.bf16.mxu0 0
    %2013 = vmatpush2.bf16.msra.mxu0 0
    %2014 = vmatprep.subr.bf16.mxu0 0
    %2015 = vmatpush2.bf16.msra.mxu0 0
    %2016 = vmatprep.subr.bf16.mxu0 0
    %2017 = vmatpush2.bf16.msra.mxu0 0
    %2018 = vmatprep.subr.bf16.mxu0 0
    %2019 = vmatpush2.bf16.msra.mxu0 0
    %2020 = vmatprep.subr.bf16.mxu0 0
    %2021 = vmatpush2.bf16.msra.mxu0 0
    %2022 = vmatprep.mubr.bf16.mxu0 0
    %2023 = vmatmul.mubr.bf16.gmra.mxu0 %v89
    %v2024 = vpop.f32.mrf.mxu0
    %v2025 = vadd.f32 %v1984, %v2024
    %v2026 = vpop.f32.mrf.mxu0
    %v2027 = vadd.f32 %v1986, %v2026
    %v2028 = vpop.f32.mrf.mxu0
    %v2029 = vpop.f32.mrf.mxu0
    %2030 = vdwg.mxu0
    %v2031 = vmax.f32 %v1947, %v2025
    %v2032 = vmax.f32 %v1948, %v2027
    %v2033 = vadd.f32 %v2031, %v1006
    %v2034 = vadd.f32 %v2032, %v1010
    %v2035 = vmax.f32 %v2033, 0.0
    %v2036 = vmax.f32 %v2034, 0.0
    %v2037 = vpack.c.bf16 %v2035, %v2035
    %v2038 = vpack.c.bf16 %v2036, %v2036
    %v2040 = vshrl.u32 %v2037, 16
    %v2042 = vrot.slane %v2040, 7
    %v2043 = vshll.u32 %v2037, 16
    %v2045 = vor.u32 %v2042, %v2043
    %v2047 = vshrl.u32 %v2038, 16
    %v2049 = vrot.slane %v2047, 7
    %v2050 = vshll.u32 %v2038, 16
    %v2052 = vor.u32 %v2049, %v2050
    %vm2055 = vcmask 1040384
    %vm2056 = vsmask.f32 256
    %vm2057 = vmand %vm2055, %vm2056
    %v2058 = vsel %vm2057, 0, %v2045
    %v2059 = vsel %vm2057, 0, %v2052
    %v2060 = vlaneseq
    %v2061 = vshrl.u32 %v2060, 7
    %vm2062 = vcmp.lt.s32.totalorder %v2061, 0
    %v2063 = vsub.s32 0, %v2061
    %v2064 = vsel %vm2062, %v2063, %v2061
    %v2065 = vshrl.u32 %v2064, 2
    %v2066 = vand.u32 %v2064, 3
    %v2067 = vsub.s32 0, %v2066
    %v2068 = vsel %vm2062, %v2067, %v2066
    %vm2069 = vcmp.ne.s32.totalorder %v2068, 0
    %vm2070 = vcmp.lt.s32.totalorder %v2068, 0
    %vm2071 = vmand %vm2070, %vm2069
    %v2072 = vadd.s32 %v2068, 4
    %v2073 = vsel %vm2071, %v2072, %v2068
    %vm2074 = vcmp.eq.s32.totalorder %v2073, 0
    %vm2075 = vmpackc.low %vm2074, %vm2074
    %v2076 = vsel %vm2075, 65537, 0
    %v2077 = vunpack.c.l.b16 %v2076
    %v2078 = vpack.c.b16 %v2077, %v2077
    %vm2079 = vcmp.ne.s16.totalorder %v2078, 0
    %v2080 = vsel %vm2079, 0, %v2058
    %v2081 = vsel %vm2079, 0, %v2059
    %v2083 = vshrl.u32 %v1017, 16
    %v2085 = vshll.u32 %v1017, 16
    %v2087 = vrot.slane %v2085, 1
    %v2088 = vor.u32 %v2083, %v2087
    %v2090 = vshrl.u32 %v1018, 16
    %v2092 = vshll.u32 %v1018, 16
    %v2094 = vrot.slane %v2092, 1
    %v2095 = vor.u32 %v2090, %v2094
    %vm2098 = vcmask 1043456
    %vm2099 = vsmask.f32 3328
    %vm2100 = vmand %vm2098, %vm2099
    %v2101 = vsel %vm2100, %v2088, 0
    %v2102 = vsel %vm2100, %v2095, 0
    %vm2103 = vcmp.eq.s32.totalorder %v2073, 3
    %vm2104 = vmpackc.low %vm2103, %vm2103
    %v2105 = vsel %vm2104, 65537, 0
    %v2106 = vunpack.c.l.b16 %v2105
    %v2107 = vpack.c.b16 %v2106, %v2106
    %vm2108 = vcmp.ne.s16.totalorder %v2107, 0
    %v2109 = vsel %vm2108, 0, %v2101
    %v2110 = vsel %vm2108, 0, %v2102
    %v2111 = vld [vmem:[#allocation6] sm:$0x3]
    %v2112 = vld [vmem:[#allocation4] sm:$0xff]
    %v2113 = vld [vmem:[#allocation4 + $0x8] sm:$0xff]
    %v2114 = vld [vmem:[#allocation4 + $0x10] sm:$0xff]
    %v2115 = vld [vmem:[#allocation4 + $0x18] sm:$0xff]
    %v2116 = vld [vmem:[#allocation4 + $0x20] sm:$0xff]
    %v2117 = vld [vmem:[#allocation4 + $0x28] sm:$0xff]
    %v2118 = vld [vmem:[#allocation4 + $0x30] sm:$0xff]
    %v2119 = vld [vmem:[#allocation4 + $0x38] sm:$0xff]
    %v2120 = vld [vmem:[#allocation4 + $0x40] sm:$0xff]
    %v2121 = vld [vmem:[#allocation4 + $0x48] sm:$0xff]
    %v2122 = vld [vmem:[#allocation4 + $0x50] sm:$0xff]
    %v2123 = vld [vmem:[#allocation4 + $0x58] sm:$0xff]
    %v2124 = vld [vmem:[#allocation4 + $0x60] sm:$0xff]
    %v2125 = vld [vmem:[#allocation4 + $0x68] sm:$0xff]
    %v2126 = vld [vmem:[#allocation4 + $0x70] sm:$0xff]
    %v2127 = vld [vmem:[#allocation4 + $0x78] sm:$0xff]
    %v2128 = vld [vmem:[#allocation4 + $0x80] sm:$0xff]
    %v2129 = vld [vmem:[#allocation4 + $0x88] sm:$0xff]
    %v2130 = vld [vmem:[#allocation4 + $0x90] sm:$0xff]
    %v2131 = vld [vmem:[#allocation4 + $0x98] sm:$0xff]
    %v2132 = vld [vmem:[#allocation4 + $0xa0] sm:$0xff]
    %v2133 = vld [vmem:[#allocation4 + $0xa8] sm:$0xff]
    %v2134 = vld [vmem:[#allocation4 + $0xb0] sm:$0xff]
    %v2135 = vld [vmem:[#allocation4 + $0xb8] sm:$0xff]
    %v2136 = vld [vmem:[#allocation4 + $0xc0] sm:$0xff]
    %v2137 = vld [vmem:[#allocation4 + $0xc8] sm:$0xff]
    %v2138 = vld [vmem:[#allocation4 + $0xd0] sm:$0xff]
    %v2139 = vld [vmem:[#allocation4 + $0xd8] sm:$0xff]
    %v2140 = vld [vmem:[#allocation4 + $0xe0] sm:$0xff]
    %v2141 = vld [vmem:[#allocation4 + $0xe8] sm:$0xff]
    %v2142 = vld [vmem:[#allocation4 + $0xf0] sm:$0xff]
    %v2143 = vld [vmem:[#allocation4 + $0xf8] sm:$0xff]
    %v2144 = vld [vmem:[#allocation4 + $0x100] sm:$0xff]
    %v2145 = vld [vmem:[#allocation4 + $0x108] sm:$0xff]
    %v2146 = vld [vmem:[#allocation4 + $0x110] sm:$0xff]
    %v2147 = vld [vmem:[#allocation4 + $0x118] sm:$0xff]
    %v2148 = vld [vmem:[#allocation4 + $0x120] sm:$0xff]
    %v2149 = vld [vmem:[#allocation4 + $0x128] sm:$0xff]
    %v2150 = vld [vmem:[#allocation4 + $0x130] sm:$0xff]
    %v2151 = vld [vmem:[#allocation4 + $0x138] sm:$0xff]
    %v2152 = vld [vmem:[#allocation4 + $0x140] sm:$0xff]
    %v2153 = vld [vmem:[#allocation4 + $0x148] sm:$0xff]
    %v2154 = vld [vmem:[#allocation4 + $0x150] sm:$0xff]
    %v2155 = vld [vmem:[#allocation4 + $0x158] sm:$0xff]
    %v2156 = vld [vmem:[#allocation4 + $0x160] sm:$0xff]
    %v2157 = vld [vmem:[#allocation4 + $0x168] sm:$0xff]
    %v2158 = vld [vmem:[#allocation4 + $0x170] sm:$0xff]
    %v2159 = vld [vmem:[#allocation4 + $0x178] sm:$0xff]
    %v2160 = vld [vmem:[#allocation4 + $0x180] sm:$0xff]
    %v2161 = vld [vmem:[#allocation4 + $0x188] sm:$0xff]
    %v2162 = vld [vmem:[#allocation4 + $0x190] sm:$0xff]
    %v2163 = vld [vmem:[#allocation4 + $0x198] sm:$0xff]
    %v2164 = vld [vmem:[#allocation4 + $0x1a0] sm:$0xff]
    %v2165 = vld [vmem:[#allocation4 + $0x1a8] sm:$0xff]
    %v2166 = vld [vmem:[#allocation4 + $0x1b0] sm:$0xff]
    %v2167 = vld [vmem:[#allocation4 + $0x1b8] sm:$0xff]
    %v2168 = vld [vmem:[#allocation4 + $0x1c0] sm:$0xff]
    %v2169 = vld [vmem:[#allocation4 + $0x1c8] sm:$0xff]
    %v2170 = vld [vmem:[#allocation4 + $0x1d0] sm:$0xff]
    %v2171 = vld [vmem:[#allocation4 + $0x1d8] sm:$0xff]
    %v2172 = vld [vmem:[#allocation4 + $0x1e0] sm:$0xff]
    %v2173 = vld [vmem:[#allocation4 + $0x1e8] sm:$0xff]
    %v2174 = vld [vmem:[#allocation4 + $0x1f0] sm:$0xff]
    %v2175 = vld [vmem:[#allocation4 + $0x1f8] sm:$0xff]
    %v2176 = vld [vmem:[#allocation4 + $0x200] sm:$0xff]
    %v2177 = vld [vmem:[#allocation4 + $0x208] sm:$0xff]
    %v2178 = vld [vmem:[#allocation4 + $0x210] sm:$0xff]
    %v2179 = vld [vmem:[#allocation4 + $0x218] sm:$0xff]
    %v2180 = vld [vmem:[#allocation4 + $0x220] sm:$0xff]
    %v2181 = vld [vmem:[#allocation4 + $0x228] sm:$0xff]
    %v2182 = vld [vmem:[#allocation4 + $0x230] sm:$0xff]
    %v2183 = vld [vmem:[#allocation4 + $0x238] sm:$0xff]
    %v2184 = vld [vmem:[#allocation4 + $0x240] sm:$0xff]
    %v2185 = vld [vmem:[#allocation4 + $0x248] sm:$0xff]
    %v2186 = vld [vmem:[#allocation4 + $0x250] sm:$0xff]
    %v2187 = vld [vmem:[#allocation4 + $0x258] sm:$0xff]
    %v2188 = vld [vmem:[#allocation4 + $0x260] sm:$0xff]
    %v2189 = vld [vmem:[#allocation4 + $0x268] sm:$0xff]
    %v2190 = vld [vmem:[#allocation4 + $0x270] sm:$0xff]
    %v2191 = vld [vmem:[#allocation4 + $0x278] sm:$0xff]
    %v2192 = vld [vmem:[#allocation4 + $0x280] sm:$0xff]
    %v2193 = vld [vmem:[#allocation4 + $0x288] sm:$0xff]
    %v2194 = vld [vmem:[#allocation4 + $0x290] sm:$0xff]
    %v2195 = vld [vmem:[#allocation4 + $0x298] sm:$0xff]
    %v2196 = vld [vmem:[#allocation4 + $0x2a0] sm:$0xff]
    %v2197 = vld [vmem:[#allocation4 + $0x2a8] sm:$0xff]
    %v2198 = vld [vmem:[#allocation4 + $0x2b0] sm:$0xff]
    %v2199 = vld [vmem:[#allocation4 + $0x2b8] sm:$0xff]
    %v2200 = vld [vmem:[#allocation4 + $0x2c0] sm:$0xff]
    %v2201 = vld [vmem:[#allocation4 + $0x2c8] sm:$0xff]
    %v2202 = vld [vmem:[#allocation4 + $0x2d0] sm:$0xff]
    %v2203 = vld [vmem:[#allocation4 + $0x2d8] sm:$0xff]
    %v2204 = vld [vmem:[#allocation4 + $0x2e0] sm:$0xff]
    %v2205 = vld [vmem:[#allocation4 + $0x2e8] sm:$0xff]
    %v2206 = vld [vmem:[#allocation4 + $0x2f0] sm:$0xff]
    %v2207 = vld [vmem:[#allocation4 + $0x2f8] sm:$0xff]
    %v2304 = vunpack.c.l.b16 %v2112
    %v2305 = vunpack.c.h.b16 %v2112
    %v2306 = vunpack.c.l.b16 %v2113
    %v2307 = vunpack.c.h.b16 %v2113
    %v2308 = vunpack.c.l.b16 %v2114
    %v2309 = vunpack.c.h.b16 %v2114
    %v2310 = vunpack.c.l.b16 %v2115
    %v2311 = vunpack.c.h.b16 %v2115
    %v2312 = vunpack.c.l.b16 %v2116
    %v2313 = vunpack.c.h.b16 %v2116
    %v2314 = vunpack.c.l.b16 %v2117
    %v2315 = vunpack.c.h.b16 %v2117
    %v2316 = vunpack.c.l.b16 %v2118
    %v2317 = vunpack.c.h.b16 %v2118
    %v2318 = vunpack.c.l.b16 %v2119
    %v2319 = vunpack.c.h.b16 %v2119
    %v2320 = vunpack.c.l.b16 %v2120
    %v2321 = vunpack.c.h.b16 %v2120
    %v2322 = vunpack.c.l.b16 %v2121
    %v2323 = vunpack.c.h.b16 %v2121
    %v2324 = vunpack.c.l.b16 %v2122
    %v2325 = vunpack.c.h.b16 %v2122
    %v2326 = vunpack.c.l.b16 %v2123
    %v2327 = vunpack.c.h.b16 %v2123
    %v2328 = vunpack.c.l.b16 %v2124
    %v2329 = vunpack.c.h.b16 %v2124
    %v2330 = vunpack.c.l.b16 %v2125
    %v2331 = vunpack.c.h.b16 %v2125
    %v2332 = vunpack.c.l.b16 %v2126
    %v2333 = vunpack.c.h.b16 %v2126
    %v2334 = vunpack.c.l.b16 %v2127
    %v2335 = vunpack.c.h.b16 %v2127
    %v2336 = vunpack.c.l.b16 %v2128
    %v2337 = vunpack.c.h.b16 %v2128
    %v2338 = vunpack.c.l.b16 %v2129
    %v2339 = vunpack.c.h.b16 %v2129
    %v2340 = vunpack.c.l.b16 %v2130
    %v2341 = vunpack.c.h.b16 %v2130
    %v2342 = vunpack.c.l.b16 %v2131
    %v2343 = vunpack.c.h.b16 %v2131
    %v2344 = vunpack.c.l.b16 %v2132
    %v2345 = vunpack.c.h.b16 %v2132
    %v2346 = vunpack.c.l.b16 %v2133
    %v2347 = vunpack.c.h.b16 %v2133
    %v2348 = vunpack.c.l.b16 %v2134
    %v2349 = vunpack.c.h.b16 %v2134
    %v2350 = vunpack.c.l.b16 %v2135
    %v2351 = vunpack.c.h.b16 %v2135
    %v2352 = vunpack.c.l.b16 %v2136
    %v2353 = vunpack.c.h.b16 %v2136
    %v2354 = vunpack.c.l.b16 %v2137
    %v2355 = vunpack.c.h.b16 %v2137
    %v2356 = vunpack.c.l.b16 %v2138
    %v2357 = vunpack.c.h.b16 %v2138
    %v2358 = vunpack.c.l.b16 %v2139
    %v2359 = vunpack.c.h.b16 %v2139
    %v2360 = vunpack.c.l.b16 %v2140
    %v2361 = vunpack.c.h.b16 %v2140
    %v2362 = vunpack.c.l.b16 %v2141
    %v2363 = vunpack.c.h.b16 %v2141
    %v2364 = vunpack.c.l.b16 %v2142
    %v2365 = vunpack.c.h.b16 %v2142
    %v2366 = vunpack.c.l.b16 %v2143
    %v2367 = vunpack.c.h.b16 %v2143
    %v2368 = vunpack.c.l.b16 %v2144
    %v2369 = vunpack.c.h.b16 %v2144
    %v2370 = vunpack.c.l.b16 %v2145
    %v2371 = vunpack.c.h.b16 %v2145
    %v2372 = vunpack.c.l.b16 %v2146
    %v2373 = vunpack.c.h.b16 %v2146
    %v2374 = vunpack.c.l.b16 %v2147
    %v2375 = vunpack.c.h.b16 %v2147
    %v2376 = vunpack.c.l.b16 %v2148
    %v2377 = vunpack.c.h.b16 %v2148
    %v2378 = vunpack.c.l.b16 %v2149
    %v2379 = vunpack.c.h.b16 %v2149
    %v2380 = vunpack.c.l.b16 %v2150
    %v2381 = vunpack.c.h.b16 %v2150
    %v2382 = vunpack.c.l.b16 %v2151
    %v2383 = vunpack.c.h.b16 %v2151
    %v2384 = vunpack.c.l.b16 %v2152
    %v2385 = vunpack.c.h.b16 %v2152
    %v2386 = vunpack.c.l.b16 %v2153
    %v2387 = vunpack.c.h.b16 %v2153
    %v2388 = vunpack.c.l.b16 %v2154
    %v2389 = vunpack.c.h.b16 %v2154
    %v2390 = vunpack.c.l.b16 %v2155
    %v2391 = vunpack.c.h.b16 %v2155
    %v2392 = vunpack.c.l.b16 %v2156
    %v2393 = vunpack.c.h.b16 %v2156
    %v2394 = vunpack.c.l.b16 %v2157
    %v2395 = vunpack.c.h.b16 %v2157
    %v2396 = vunpack.c.l.b16 %v2158
    %v2397 = vunpack.c.h.b16 %v2158
    %v2398 = vunpack.c.l.b16 %v2159
    %v2399 = vunpack.c.h.b16 %v2159
    %v2400 = vunpack.c.l.b16 %v2160
    %v2401 = vunpack.c.h.b16 %v2160
    %v2402 = vunpack.c.l.b16 %v2161
    %v2403 = vunpack.c.h.b16 %v2161
    %v2404 = vunpack.c.l.b16 %v2162
    %v2405 = vunpack.c.h.b16 %v2162
    %v2406 = vunpack.c.l.b16 %v2163
    %v2407 = vunpack.c.h.b16 %v2163
    %v2408 = vunpack.c.l.b16 %v2164
    %v2409 = vunpack.c.h.b16 %v2164
    %v2410 = vunpack.c.l.b16 %v2165
    %v2411 = vunpack.c.h.b16 %v2165
    %v2412 = vunpack.c.l.b16 %v2166
    %v2413 = vunpack.c.h.b16 %v2166
    %v2414 = vunpack.c.l.b16 %v2167
    %v2415 = vunpack.c.h.b16 %v2167
    %v2416 = vunpack.c.l.b16 %v2168
    %v2417 = vunpack.c.h.b16 %v2168
    %v2418 = vunpack.c.l.b16 %v2169
    %v2419 = vunpack.c.h.b16 %v2169
    %v2420 = vunpack.c.l.b16 %v2170
    %v2421 = vunpack.c.h.b16 %v2170
    %v2422 = vunpack.c.l.b16 %v2171
    %v2423 = vunpack.c.h.b16 %v2171
    %v2424 = vunpack.c.l.b16 %v2172
    %v2425 = vunpack.c.h.b16 %v2172
    %v2426 = vunpack.c.l.b16 %v2173
    %v2427 = vunpack.c.h.b16 %v2173
    %v2428 = vunpack.c.l.b16 %v2174
    %v2429 = vunpack.c.h.b16 %v2174
    %v2430 = vunpack.c.l.b16 %v2175
    %v2431 = vunpack.c.h.b16 %v2175
    %v2432 = vunpack.c.l.b16 %v2176
    %v2433 = vunpack.c.h.b16 %v2176
    %v2434 = vunpack.c.l.b16 %v2177
    %v2435 = vunpack.c.h.b16 %v2177
    %v2436 = vunpack.c.l.b16 %v2178
    %v2437 = vunpack.c.h.b16 %v2178
    %v2438 = vunpack.c.l.b16 %v2179
    %v2439 = vunpack.c.h.b16 %v2179
    %v2440 = vunpack.c.l.b16 %v2180
    %v2441 = vunpack.c.h.b16 %v2180
    %v2442 = vunpack.c.l.b16 %v2181
    %v2443 = vunpack.c.h.b16 %v2181
    %v2444 = vunpack.c.l.b16 %v2182
    %v2445 = vunpack.c.h.b16 %v2182
    %v2446 = vunpack.c.l.b16 %v2183
    %v2447 = vunpack.c.h.b16 %v2183
    %v2448 = vunpack.c.l.b16 %v2184
    %v2449 = vunpack.c.h.b16 %v2184
    %v2450 = vunpack.c.l.b16 %v2185
    %v2451 = vunpack.c.h.b16 %v2185
    %v2452 = vunpack.c.l.b16 %v2186
    %v2453 = vunpack.c.h.b16 %v2186
    %v2454 = vunpack.c.l.b16 %v2187
    %v2455 = vunpack.c.h.b16 %v2187
    %v2456 = vunpack.c.l.b16 %v2188
    %v2457 = vunpack.c.h.b16 %v2188
    %v2458 = vunpack.c.l.b16 %v2189
    %v2459 = vunpack.c.h.b16 %v2189
    %v2460 = vunpack.c.l.b16 %v2190
    %v2461 = vunpack.c.h.b16 %v2190
    %v2462 = vunpack.c.l.b16 %v2191
    %v2463 = vunpack.c.h.b16 %v2191
    %v2464 = vunpack.c.l.b16 %v2192
    %v2465 = vunpack.c.h.b16 %v2192
    %v2466 = vunpack.c.l.b16 %v2193
    %v2467 = vunpack.c.h.b16 %v2193
    %v2468 = vunpack.c.l.b16 %v2194
    %v2469 = vunpack.c.h.b16 %v2194
    %v2470 = vunpack.c.l.b16 %v2195
    %v2471 = vunpack.c.h.b16 %v2195
    %v2472 = vunpack.c.l.b16 %v2196
    %v2473 = vunpack.c.h.b16 %v2196
    %v2474 = vunpack.c.l.b16 %v2197
    %v2475 = vunpack.c.h.b16 %v2197
    %v2476 = vunpack.c.l.b16 %v2198
    %v2477 = vunpack.c.h.b16 %v2198
    %v2478 = vunpack.c.l.b16 %v2199
    %v2479 = vunpack.c.h.b16 %v2199
    %v2480 = vunpack.c.l.b16 %v2200
    %v2481 = vunpack.c.h.b16 %v2200
    %v2482 = vunpack.c.l.b16 %v2201
    %v2483 = vunpack.c.h.b16 %v2201
    %v2484 = vunpack.c.l.b16 %v2202
    %v2485 = vunpack.c.h.b16 %v2202
    %v2486 = vunpack.c.l.b16 %v2203
    %v2487 = vunpack.c.h.b16 %v2203
    %v2488 = vunpack.c.l.b16 %v2204
    %v2489 = vunpack.c.h.b16 %v2204
    %v2490 = vunpack.c.l.b16 %v2205
    %v2491 = vunpack.c.h.b16 %v2205
    %v2492 = vunpack.c.l.b16 %v2206
    %v2493 = vunpack.c.h.b16 %v2206
    %v2494 = vunpack.c.l.b16 %v2207
    %v2495 = vunpack.c.h.b16 %v2207
    %v2496 = vpack.c.b16 %v2306, %v2304
    %v2497 = vpack.c.b16 %v2307, %v2305
    %v2498 = vpack.c.b16 %v2310, %v2308
    %v2499 = vpack.c.b16 %v2311, %v2309
    %v2500 = vpack.c.b16 %v2314, %v2312
    %v2501 = vpack.c.b16 %v2315, %v2313
    %v2502 = vpack.c.b16 %v2318, %v2316
    %v2503 = vpack.c.b16 %v2319, %v2317
    %v2504 = vpack.c.b16 %v2322, %v2320
    %v2505 = vpack.c.b16 %v2323, %v2321
    %v2506 = vpack.c.b16 %v2326, %v2324
    %v2507 = vpack.c.b16 %v2327, %v2325
    %v2508 = vpack.c.b16 %v2330, %v2328
    %v2509 = vpack.c.b16 %v2331, %v2329
    %v2510 = vpack.c.b16 %v2334, %v2332
    %v2511 = vpack.c.b16 %v2335, %v2333
    %v2512 = vpack.c.b16 %v2338, %v2336
    %v2513 = vpack.c.b16 %v2339, %v2337
    %v2514 = vpack.c.b16 %v2342, %v2340
    %v2515 = vpack.c.b16 %v2343, %v2341
    %v2516 = vpack.c.b16 %v2346, %v2344
    %v2517 = vpack.c.b16 %v2347, %v2345
    %v2518 = vpack.c.b16 %v2350, %v2348
    %v2519 = vpack.c.b16 %v2351, %v2349
    %v2520 = vpack.c.b16 %v2354, %v2352
    %v2521 = vpack.c.b16 %v2355, %v2353
    %v2522 = vpack.c.b16 %v2358, %v2356
    %v2523 = vpack.c.b16 %v2359, %v2357
    %v2524 = vpack.c.b16 %v2362, %v2360
    %v2525 = vpack.c.b16 %v2363, %v2361
    %v2526 = vpack.c.b16 %v2366, %v2364
    %v2527 = vpack.c.b16 %v2367, %v2365
    %v2528 = vpack.c.b16 %v2370, %v2368
    %v2529 = vpack.c.b16 %v2371, %v2369
    %v2530 = vpack.c.b16 %v2374, %v2372
    %v2531 = vpack.c.b16 %v2375, %v2373
    %v2532 = vpack.c.b16 %v2378, %v2376
    %v2533 = vpack.c.b16 %v2379, %v2377
    %v2534 = vpack.c.b16 %v2382, %v2380
    %v2535 = vpack.c.b16 %v2383, %v2381
    %v2536 = vpack.c.b16 %v2386, %v2384
    %v2537 = vpack.c.b16 %v2387, %v2385
    %v2538 = vpack.c.b16 %v2390, %v2388
    %v2539 = vpack.c.b16 %v2391, %v2389
    %v2540 = vpack.c.b16 %v2394, %v2392
    %v2541 = vpack.c.b16 %v2395, %v2393
    %v2542 = vpack.c.b16 %v2398, %v2396
    %v2543 = vpack.c.b16 %v2399, %v2397
    %v2544 = vpack.c.b16 %v2402, %v2400
    %v2545 = vpack.c.b16 %v2403, %v2401
    %v2546 = vpack.c.b16 %v2406, %v2404
    %v2547 = vpack.c.b16 %v2407, %v2405
    %v2548 = vpack.c.b16 %v2410, %v2408
    %v2549 = vpack.c.b16 %v2411, %v2409
    %v2550 = vpack.c.b16 %v2414, %v2412
    %v2551 = vpack.c.b16 %v2415, %v2413
    %v2552 = vpack.c.b16 %v2418, %v2416
    %v2553 = vpack.c.b16 %v2419, %v2417
    %v2554 = vpack.c.b16 %v2422, %v2420
    %v2555 = vpack.c.b16 %v2423, %v2421
    %v2556 = vpack.c.b16 %v2426, %v2424
    %v2557 = vpack.c.b16 %v2427, %v2425
    %v2558 = vpack.c.b16 %v2430, %v2428
    %v2559 = vpack.c.b16 %v2431, %v2429
    %v2560 = vpack.c.b16 %v2434, %v2432
    %v2561 = vpack.c.b16 %v2435, %v2433
    %v2562 = vpack.c.b16 %v2438, %v2436
    %v2563 = vpack.c.b16 %v2439, %v2437
    %v2564 = vpack.c.b16 %v2442, %v2440
    %v2565 = vpack.c.b16 %v2443, %v2441
    %v2566 = vpack.c.b16 %v2446, %v2444
    %v2567 = vpack.c.b16 %v2447, %v2445
    %v2568 = vpack.c.b16 %v2450, %v2448
    %v2569 = vpack.c.b16 %v2451, %v2449
    %v2570 = vpack.c.b16 %v2454, %v2452
    %v2571 = vpack.c.b16 %v2455, %v2453
    %v2572 = vpack.c.b16 %v2458, %v2456
    %v2573 = vpack.c.b16 %v2459, %v2457
    %v2574 = vpack.c.b16 %v2462, %v2460
    %v2575 = vpack.c.b16 %v2463, %v2461
    %v2576 = vpack.c.b16 %v2466, %v2464
    %v2577 = vpack.c.b16 %v2467, %v2465
    %v2578 = vpack.c.b16 %v2470, %v2468
    %v2579 = vpack.c.b16 %v2471, %v2469
    %v2580 = vpack.c.b16 %v2474, %v2472
    %v2581 = vpack.c.b16 %v2475, %v2473
    %v2582 = vpack.c.b16 %v2478, %v2476
    %v2583 = vpack.c.b16 %v2479, %v2477
    %v2584 = vpack.c.b16 %v2482, %v2480
    %v2585 = vpack.c.b16 %v2483, %v2481
    %v2586 = vpack.c.b16 %v2486, %v2484
    %v2587 = vpack.c.b16 %v2487, %v2485
    %v2588 = vpack.c.b16 %v2490, %v2488
    %v2589 = vpack.c.b16 %v2491, %v2489
    %v2590 = vpack.c.b16 %v2494, %v2492
    %v2591 = vpack.c.b16 %v2495, %v2493
    %2688 = vmatprep.subr.bf16.mxu0 %v2511
    %2689 = vmatpush1.bf16.msra.mxu0 %v2510
    %2690 = vmatprep.subr.bf16.mxu0 %v2509
    %2691 = vmatpush1.bf16.msra.mxu0 %v2508
    %2692 = vmatprep.subr.bf16.mxu0 %v2507
    %2693 = vmatpush1.bf16.msra.mxu0 %v2506
    %2694 = vmatprep.subr.bf16.mxu0 %v2505
    %2695 = vmatpush1.bf16.msra.mxu0 %v2504
    %2696 = vmatprep.subr.bf16.mxu0 %v2503
    %2697 = vmatpush1.bf16.msra.mxu0 %v2502
    %2698 = vmatprep.subr.bf16.mxu0 %v2501
    %2699 = vmatpush1.bf16.msra.mxu0 %v2500
    %2700 = vmatprep.subr.bf16.mxu0 %v2499
    %2701 = vmatpush1.bf16.msra.mxu0 %v2498
    %2702 = vmatprep.subr.bf16.mxu0 %v2497
    %2703 = vmatpush1.bf16.msra.mxu0 %v2496
    %2704 = vmatprep.subr.bf16.mxu0 %v2527
    %2705 = vmatpush2.bf16.msra.mxu0 %v2526
    %2706 = vmatprep.subr.bf16.mxu0 %v2525
    %2707 = vmatpush2.bf16.msra.mxu0 %v2524
    %2708 = vmatprep.subr.bf16.mxu0 %v2523
    %2709 = vmatpush2.bf16.msra.mxu0 %v2522
    %2710 = vmatprep.subr.bf16.mxu0 %v2521
    %2711 = vmatpush2.bf16.msra.mxu0 %v2520
    %2712 = vmatprep.subr.bf16.mxu0 %v2519
    %2713 = vmatpush2.bf16.msra.mxu0 %v2518
    %2714 = vmatprep.subr.bf16.mxu0 %v2517
    %2715 = vmatpush2.bf16.msra.mxu0 %v2516
    %2716 = vmatprep.subr.bf16.mxu0 %v2515
    %2717 = vmatpush2.bf16.msra.mxu0 %v2514
    %2718 = vmatprep.subr.bf16.mxu0 %v2513
    %2719 = vmatpush2.bf16.msra.mxu0 %v2512
    %2720 = vmatprep.mubr.bf16.mxu0 %v2081
    %2721 = vmatmul.mubr.bf16.gmra.mxu0 %v2080
    %v2722 = vpop.f32.mrf.mxu0
    %v2723 = vadd.f32 0.0, %v2722
    %v2724 = vpop.f32.mrf.mxu0
    %v2725 = vadd.f32 0.0, %v2724
    %v2726 = vpop.f32.mrf.mxu0
    %v2727 = vpop.f32.mrf.mxu0
    %2728 = vdwg.mxu0
    %2729 = vmatprep.subr.bf16.mxu0 %v2543
    %2730 = vmatpush1.bf16.msra.mxu0 %v2542
    %2731 = vmatprep.subr.bf16.mxu0 %v2541
    %2732 = vmatpush1.bf16.msra.mxu0 %v2540
    %2733 = vmatprep.subr.bf16.mxu0 %v2539
    %2734 = vmatpush1.bf16.msra.mxu0 %v2538
    %2735 = vmatprep.subr.bf16.mxu0 %v2537
    %2736 = vmatpush1.bf16.msra.mxu0 %v2536
    %2737 = vmatprep.subr.bf16.mxu0 %v2535
    %2738 = vmatpush1.bf16.msra.mxu0 %v2534
    %2739 = vmatprep.subr.bf16.mxu0 %v2533
    %2740 = vmatpush1.bf16.msra.mxu0 %v2532
    %2741 = vmatprep.subr.bf16.mxu0 %v2531
    %2742 = vmatpush1.bf16.msra.mxu0 %v2530
    %2743 = vmatprep.subr.bf16.mxu0 %v2529
    %2744 = vmatpush1.bf16.msra.mxu0 %v2528
    %2745 = vmatprep.subr.bf16.mxu0 %v2559
    %2746 = vmatpush2.bf16.msra.mxu0 %v2558
    %2747 = vmatprep.subr.bf16.mxu0 %v2557
    %2748 = vmatpush2.bf16.msra.mxu0 %v2556
    %2749 = vmatprep.subr.bf16.mxu0 %v2555
    %2750 = vmatpush2.bf16.msra.mxu0 %v2554
    %2751 = vmatprep.subr.bf16.mxu0 %v2553
    %2752 = vmatpush2.bf16.msra.mxu0 %v2552
    %2753 = vmatprep.subr.bf16.mxu0 %v2551
    %2754 = vmatpush2.bf16.msra.mxu0 %v2550
    %2755 = vmatprep.subr.bf16.mxu0 %v2549
    %2756 = vmatpush2.bf16.msra.mxu0 %v2548
    %2757 = vmatprep.subr.bf16.mxu0 %v2547
    %2758 = vmatpush2.bf16.msra.mxu0 %v2546
    %2759 = vmatprep.subr.bf16.mxu0 %v2545
    %2760 = vmatpush2.bf16.msra.mxu0 %v2544
    %2761 = vmatprep.mubr.bf16.mxu0 %v1018
    %2762 = vmatmul.mubr.bf16.gmra.mxu0 %v1017
    %v2763 = vpop.f32.mrf.mxu0
    %v2764 = vadd.f32 %v2723, %v2763
    %v2765 = vpop.f32.mrf.mxu0
    %v2766 = vadd.f32 %v2725, %v2765
    %v2767 = vpop.f32.mrf.mxu0
    %v2768 = vpop.f32.mrf.mxu0
    %2769 = vdwg.mxu0
    %2770 = vmatprep.subr.bf16.mxu0 %v2575
    %2771 = vmatpush1.bf16.msra.mxu0 %v2574
    %2772 = vmatprep.subr.bf16.mxu0 %v2573
    %2773 = vmatpush1.bf16.msra.mxu0 %v2572
    %2774 = vmatprep.subr.bf16.mxu0 %v2571
    %2775 = vmatpush1.bf16.msra.mxu0 %v2570
    %2776 = vmatprep.subr.bf16.mxu0 %v2569
    %2777 = vmatpush1.bf16.msra.mxu0 %v2568
    %2778 = vmatprep.subr.bf16.mxu0 %v2567
    %2779 = vmatpush1.bf16.msra.mxu0 %v2566
    %2780 = vmatprep.subr.bf16.mxu0 %v2565
    %2781 = vmatpush1.bf16.msra.mxu0 %v2564
    %2782 = vmatprep.subr.bf16.mxu0 %v2563
    %2783 = vmatpush1.bf16.msra.mxu0 %v2562
    %2784 = vmatprep.subr.bf16.mxu0 %v2561
    %2785 = vmatpush1.bf16.msra.mxu0 %v2560
    %2786 = vmatprep.subr.bf16.mxu0 %v2591
    %2787 = vmatpush2.bf16.msra.mxu0 %v2590
    %2788 = vmatprep.subr.bf16.mxu0 %v2589
    %2789 = vmatpush2.bf16.msra.mxu0 %v2588
    %2790 = vmatprep.subr.bf16.mxu0 %v2587
    %2791 = vmatpush2.bf16.msra.mxu0 %v2586
    %2792 = vmatprep.subr.bf16.mxu0 %v2585
    %2793 = vmatpush2.bf16.msra.mxu0 %v2584
    %2794 = vmatprep.subr.bf16.mxu0 %v2583
    %2795 = vmatpush2.bf16.msra.mxu0 %v2582
    %2796 = vmatprep.subr.bf16.mxu0 %v2581
    %2797 = vmatpush2.bf16.msra.mxu0 %v2580
    %2798 = vmatprep.subr.bf16.mxu0 %v2579
    %2799 = vmatpush2.bf16.msra.mxu0 %v2578
    %2800 = vmatprep.subr.bf16.mxu0 %v2577
    %2801 = vmatpush2.bf16.msra.mxu0 %v2576
    %2802 = vmatprep.mubr.bf16.mxu0 %v1358
    %2803 = vmatmul.mubr.bf16.gmra.mxu0 %v1357
    %v2804 = vpop.f32.mrf.mxu0
    %v2805 = vadd.f32 %v2764, %v2804
    %v2806 = vpop.f32.mrf.mxu0
    %v2807 = vadd.f32 %v2766, %v2806
    %v2808 = vpop.f32.mrf.mxu0
    %v2809 = vpop.f32.mrf.mxu0
    %2810 = vdwg.mxu0
    %s2811 = scalar_lea.vmem [#allocation4], 768
    %v2812 = vld [vmem:[%s2811] sm:$0xff]
    %v2813 = vld [vmem:[%s2811 + $0x8] sm:$0xff]
    %v2814 = vld [vmem:[%s2811 + $0x10] sm:$0xff]
    %v2815 = vld [vmem:[%s2811 + $0x18] sm:$0xff]
    %v2816 = vld [vmem:[%s2811 + $0x20] sm:$0xff]
    %v2817 = vld [vmem:[%s2811 + $0x28] sm:$0xff]
    %v2818 = vld [vmem:[%s2811 + $0x30] sm:$0xff]
    %v2819 = vld [vmem:[%s2811 + $0x38] sm:$0xff]
    %v2820 = vld [vmem:[%s2811 + $0x40] sm:$0xff]
    %v2821 = vld [vmem:[%s2811 + $0x48] sm:$0xff]
    %v2822 = vld [vmem:[%s2811 + $0x50] sm:$0xff]
    %v2823 = vld [vmem:[%s2811 + $0x58] sm:$0xff]
    %v2824 = vld [vmem:[%s2811 + $0x60] sm:$0xff]
    %v2825 = vld [vmem:[%s2811 + $0x68] sm:$0xff]
    %v2826 = vld [vmem:[%s2811 + $0x70] sm:$0xff]
    %v2827 = vld [vmem:[%s2811 + $0x78] sm:$0xff]
    %v2828 = vld [vmem:[%s2811 + $0x80] sm:$0xff]
    %v2829 = vld [vmem:[%s2811 + $0x88] sm:$0xff]
    %v2830 = vld [vmem:[%s2811 + $0x90] sm:$0xff]
    %v2831 = vld [vmem:[%s2811 + $0x98] sm:$0xff]
    %v2832 = vld [vmem:[%s2811 + $0xa0] sm:$0xff]
    %v2833 = vld [vmem:[%s2811 + $0xa8] sm:$0xff]
    %v2834 = vld [vmem:[%s2811 + $0xb0] sm:$0xff]
    %v2835 = vld [vmem:[%s2811 + $0xb8] sm:$0xff]
    %v2836 = vld [vmem:[%s2811 + $0xc0] sm:$0xff]
    %v2837 = vld [vmem:[%s2811 + $0xc8] sm:$0xff]
    %v2838 = vld [vmem:[%s2811 + $0xd0] sm:$0xff]
    %v2839 = vld [vmem:[%s2811 + $0xd8] sm:$0xff]
    %v2840 = vld [vmem:[%s2811 + $0xe0] sm:$0xff]
    %v2841 = vld [vmem:[%s2811 + $0xe8] sm:$0xff]
    %v2842 = vld [vmem:[%s2811 + $0xf0] sm:$0xff]
    %v2843 = vld [vmem:[%s2811 + $0xf8] sm:$0xff]
    %v2844 = vld [vmem:[%s2811 + $0x100] sm:$0xff]
    %v2845 = vld [vmem:[%s2811 + $0x108] sm:$0xff]
    %v2846 = vld [vmem:[%s2811 + $0x110] sm:$0xff]
    %v2847 = vld [vmem:[%s2811 + $0x118] sm:$0xff]
    %v2848 = vld [vmem:[%s2811 + $0x120] sm:$0xff]
    %v2849 = vld [vmem:[%s2811 + $0x128] sm:$0xff]
    %v2850 = vld [vmem:[%s2811 + $0x130] sm:$0xff]
    %v2851 = vld [vmem:[%s2811 + $0x138] sm:$0xff]
    %v2852 = vld [vmem:[%s2811 + $0x140] sm:$0xff]
    %v2853 = vld [vmem:[%s2811 + $0x148] sm:$0xff]
    %v2854 = vld [vmem:[%s2811 + $0x150] sm:$0xff]
    %v2855 = vld [vmem:[%s2811 + $0x158] sm:$0xff]
    %v2856 = vld [vmem:[%s2811 + $0x160] sm:$0xff]
    %v2857 = vld [vmem:[%s2811 + $0x168] sm:$0xff]
    %v2858 = vld [vmem:[%s2811 + $0x170] sm:$0xff]
    %v2859 = vld [vmem:[%s2811 + $0x178] sm:$0xff]
    %v2860 = vld [vmem:[%s2811 + $0x180] sm:$0xff]
    %v2861 = vld [vmem:[%s2811 + $0x188] sm:$0xff]
    %v2862 = vld [vmem:[%s2811 + $0x190] sm:$0xff]
    %v2863 = vld [vmem:[%s2811 + $0x198] sm:$0xff]
    %v2864 = vld [vmem:[%s2811 + $0x1a0] sm:$0xff]
    %v2865 = vld [vmem:[%s2811 + $0x1a8] sm:$0xff]
    %v2866 = vld [vmem:[%s2811 + $0x1b0] sm:$0xff]
    %v2867 = vld [vmem:[%s2811 + $0x1b8] sm:$0xff]
    %v2868 = vld [vmem:[%s2811 + $0x1c0] sm:$0xff]
    %v2869 = vld [vmem:[%s2811 + $0x1c8] sm:$0xff]
    %v2870 = vld [vmem:[%s2811 + $0x1d0] sm:$0xff]
    %v2871 = vld [vmem:[%s2811 + $0x1d8] sm:$0xff]
    %v2872 = vld [vmem:[%s2811 + $0x1e0] sm:$0xff]
    %v2873 = vld [vmem:[%s2811 + $0x1e8] sm:$0xff]
    %v2874 = vld [vmem:[%s2811 + $0x1f0] sm:$0xff]
    %v2875 = vld [vmem:[%s2811 + $0x1f8] sm:$0xff]
    %v2876 = vld [vmem:[%s2811 + $0x200] sm:$0xff]
    %v2877 = vld [vmem:[%s2811 + $0x208] sm:$0xff]
    %v2878 = vld [vmem:[%s2811 + $0x210] sm:$0xff]
    %v2879 = vld [vmem:[%s2811 + $0x218] sm:$0xff]
    %v2880 = vld [vmem:[%s2811 + $0x220] sm:$0xff]
    %v2881 = vld [vmem:[%s2811 + $0x228] sm:$0xff]
    %v2882 = vld [vmem:[%s2811 + $0x230] sm:$0xff]
    %v2883 = vld [vmem:[%s2811 + $0x238] sm:$0xff]
    %v2884 = vld [vmem:[%s2811 + $0x240] sm:$0xff]
    %v2885 = vld [vmem:[%s2811 + $0x248] sm:$0xff]
    %v2886 = vld [vmem:[%s2811 + $0x250] sm:$0xff]
    %v2887 = vld [vmem:[%s2811 + $0x258] sm:$0xff]
    %v2888 = vld [vmem:[%s2811 + $0x260] sm:$0xff]
    %v2889 = vld [vmem:[%s2811 + $0x268] sm:$0xff]
    %v2890 = vld [vmem:[%s2811 + $0x270] sm:$0xff]
    %v2891 = vld [vmem:[%s2811 + $0x278] sm:$0xff]
    %v2892 = vld [vmem:[%s2811 + $0x280] sm:$0xff]
    %v2893 = vld [vmem:[%s2811 + $0x288] sm:$0xff]
    %v2894 = vld [vmem:[%s2811 + $0x290] sm:$0xff]
    %v2895 = vld [vmem:[%s2811 + $0x298] sm:$0xff]
    %v2896 = vld [vmem:[%s2811 + $0x2a0] sm:$0xff]
    %v2897 = vld [vmem:[%s2811 + $0x2a8] sm:$0xff]
    %v2898 = vld [vmem:[%s2811 + $0x2b0] sm:$0xff]
    %v2899 = vld [vmem:[%s2811 + $0x2b8] sm:$0xff]
    %v2900 = vld [vmem:[%s2811 + $0x2c0] sm:$0xff]
    %v2901 = vld [vmem:[%s2811 + $0x2c8] sm:$0xff]
    %v2902 = vld [vmem:[%s2811 + $0x2d0] sm:$0xff]
    %v2903 = vld [vmem:[%s2811 + $0x2d8] sm:$0xff]
    %v2904 = vld [vmem:[%s2811 + $0x2e0] sm:$0xff]
    %v2905 = vld [vmem:[%s2811 + $0x2e8] sm:$0xff]
    %v2906 = vld [vmem:[%s2811 + $0x2f0] sm:$0xff]
    %v2907 = vld [vmem:[%s2811 + $0x2f8] sm:$0xff]
    %v3004 = vunpack.c.l.b16 %v2812
    %v3005 = vunpack.c.h.b16 %v2812
    %v3006 = vunpack.c.l.b16 %v2813
    %v3007 = vunpack.c.h.b16 %v2813
    %v3008 = vunpack.c.l.b16 %v2814
    %v3009 = vunpack.c.h.b16 %v2814
    %v3010 = vunpack.c.l.b16 %v2815
    %v3011 = vunpack.c.h.b16 %v2815
    %v3012 = vunpack.c.l.b16 %v2816
    %v3013 = vunpack.c.h.b16 %v2816
    %v3014 = vunpack.c.l.b16 %v2817
    %v3015 = vunpack.c.h.b16 %v2817
    %v3016 = vunpack.c.l.b16 %v2818
    %v3017 = vunpack.c.h.b16 %v2818
    %v3018 = vunpack.c.l.b16 %v2819
    %v3019 = vunpack.c.h.b16 %v2819
    %v3020 = vunpack.c.l.b16 %v2820
    %v3021 = vunpack.c.h.b16 %v2820
    %v3022 = vunpack.c.l.b16 %v2821
    %v3023 = vunpack.c.h.b16 %v2821
    %v3024 = vunpack.c.l.b16 %v2822
    %v3025 = vunpack.c.h.b16 %v2822
    %v3026 = vunpack.c.l.b16 %v2823
    %v3027 = vunpack.c.h.b16 %v2823
    %v3028 = vunpack.c.l.b16 %v2824
    %v3029 = vunpack.c.h.b16 %v2824
    %v3030 = vunpack.c.l.b16 %v2825
    %v3031 = vunpack.c.h.b16 %v2825
    %v3032 = vunpack.c.l.b16 %v2826
    %v3033 = vunpack.c.h.b16 %v2826
    %v3034 = vunpack.c.l.b16 %v2827
    %v3035 = vunpack.c.h.b16 %v2827
    %v3036 = vunpack.c.l.b16 %v2828
    %v3037 = vunpack.c.h.b16 %v2828
    %v3038 = vunpack.c.l.b16 %v2829
    %v3039 = vunpack.c.h.b16 %v2829
    %v3040 = vunpack.c.l.b16 %v2830
    %v3041 = vunpack.c.h.b16 %v2830
    %v3042 = vunpack.c.l.b16 %v2831
    %v3043 = vunpack.c.h.b16 %v2831
    %v3044 = vunpack.c.l.b16 %v2832
    %v3045 = vunpack.c.h.b16 %v2832
    %v3046 = vunpack.c.l.b16 %v2833
    %v3047 = vunpack.c.h.b16 %v2833
    %v3048 = vunpack.c.l.b16 %v2834
    %v3049 = vunpack.c.h.b16 %v2834
    %v3050 = vunpack.c.l.b16 %v2835
    %v3051 = vunpack.c.h.b16 %v2835
    %v3052 = vunpack.c.l.b16 %v2836
    %v3053 = vunpack.c.h.b16 %v2836
    %v3054 = vunpack.c.l.b16 %v2837
    %v3055 = vunpack.c.h.b16 %v2837
    %v3056 = vunpack.c.l.b16 %v2838
    %v3057 = vunpack.c.h.b16 %v2838
    %v3058 = vunpack.c.l.b16 %v2839
    %v3059 = vunpack.c.h.b16 %v2839
    %v3060 = vunpack.c.l.b16 %v2840
    %v3061 = vunpack.c.h.b16 %v2840
    %v3062 = vunpack.c.l.b16 %v2841
    %v3063 = vunpack.c.h.b16 %v2841
    %v3064 = vunpack.c.l.b16 %v2842
    %v3065 = vunpack.c.h.b16 %v2842
    %v3066 = vunpack.c.l.b16 %v2843
    %v3067 = vunpack.c.h.b16 %v2843
    %v3068 = vunpack.c.l.b16 %v2844
    %v3069 = vunpack.c.h.b16 %v2844
    %v3070 = vunpack.c.l.b16 %v2845
    %v3071 = vunpack.c.h.b16 %v2845
    %v3072 = vunpack.c.l.b16 %v2846
    %v3073 = vunpack.c.h.b16 %v2846
    %v3074 = vunpack.c.l.b16 %v2847
    %v3075 = vunpack.c.h.b16 %v2847
    %v3076 = vunpack.c.l.b16 %v2848
    %v3077 = vunpack.c.h.b16 %v2848
    %v3078 = vunpack.c.l.b16 %v2849
    %v3079 = vunpack.c.h.b16 %v2849
    %v3080 = vunpack.c.l.b16 %v2850
    %v3081 = vunpack.c.h.b16 %v2850
    %v3082 = vunpack.c.l.b16 %v2851
    %v3083 = vunpack.c.h.b16 %v2851
    %v3084 = vunpack.c.l.b16 %v2852
    %v3085 = vunpack.c.h.b16 %v2852
    %v3086 = vunpack.c.l.b16 %v2853
    %v3087 = vunpack.c.h.b16 %v2853
    %v3088 = vunpack.c.l.b16 %v2854
    %v3089 = vunpack.c.h.b16 %v2854
    %v3090 = vunpack.c.l.b16 %v2855
    %v3091 = vunpack.c.h.b16 %v2855
    %v3092 = vunpack.c.l.b16 %v2856
    %v3093 = vunpack.c.h.b16 %v2856
    %v3094 = vunpack.c.l.b16 %v2857
    %v3095 = vunpack.c.h.b16 %v2857
    %v3096 = vunpack.c.l.b16 %v2858
    %v3097 = vunpack.c.h.b16 %v2858
    %v3098 = vunpack.c.l.b16 %v2859
    %v3099 = vunpack.c.h.b16 %v2859
    %v3100 = vunpack.c.l.b16 %v2860
    %v3101 = vunpack.c.h.b16 %v2860
    %v3102 = vunpack.c.l.b16 %v2861
    %v3103 = vunpack.c.h.b16 %v2861
    %v3104 = vunpack.c.l.b16 %v2862
    %v3105 = vunpack.c.h.b16 %v2862
    %v3106 = vunpack.c.l.b16 %v2863
    %v3107 = vunpack.c.h.b16 %v2863
    %v3108 = vunpack.c.l.b16 %v2864
    %v3109 = vunpack.c.h.b16 %v2864
    %v3110 = vunpack.c.l.b16 %v2865
    %v3111 = vunpack.c.h.b16 %v2865
    %v3112 = vunpack.c.l.b16 %v2866
    %v3113 = vunpack.c.h.b16 %v2866
    %v3114 = vunpack.c.l.b16 %v2867
    %v3115 = vunpack.c.h.b16 %v2867
    %v3116 = vunpack.c.l.b16 %v2868
    %v3117 = vunpack.c.h.b16 %v2868
    %v3118 = vunpack.c.l.b16 %v2869
    %v3119 = vunpack.c.h.b16 %v2869
    %v3120 = vunpack.c.l.b16 %v2870
    %v3121 = vunpack.c.h.b16 %v2870
    %v3122 = vunpack.c.l.b16 %v2871
    %v3123 = vunpack.c.h.b16 %v2871
    %v3124 = vunpack.c.l.b16 %v2872
    %v3125 = vunpack.c.h.b16 %v2872
    %v3126 = vunpack.c.l.b16 %v2873
    %v3127 = vunpack.c.h.b16 %v2873
    %v3128 = vunpack.c.l.b16 %v2874
    %v3129 = vunpack.c.h.b16 %v2874
    %v3130 = vunpack.c.l.b16 %v2875
    %v3131 = vunpack.c.h.b16 %v2875
    %v3132 = vunpack.c.l.b16 %v2876
    %v3133 = vunpack.c.h.b16 %v2876
    %v3134 = vunpack.c.l.b16 %v2877
    %v3135 = vunpack.c.h.b16 %v2877
    %v3136 = vunpack.c.l.b16 %v2878
    %v3137 = vunpack.c.h.b16 %v2878
    %v3138 = vunpack.c.l.b16 %v2879
    %v3139 = vunpack.c.h.b16 %v2879
    %v3140 = vunpack.c.l.b16 %v2880
    %v3141 = vunpack.c.h.b16 %v2880
    %v3142 = vunpack.c.l.b16 %v2881
    %v3143 = vunpack.c.h.b16 %v2881
    %v3144 = vunpack.c.l.b16 %v2882
    %v3145 = vunpack.c.h.b16 %v2882
    %v3146 = vunpack.c.l.b16 %v2883
    %v3147 = vunpack.c.h.b16 %v2883
    %v3148 = vunpack.c.l.b16 %v2884
    %v3149 = vunpack.c.h.b16 %v2884
    %v3150 = vunpack.c.l.b16 %v2885
    %v3151 = vunpack.c.h.b16 %v2885
    %v3152 = vunpack.c.l.b16 %v2886
    %v3153 = vunpack.c.h.b16 %v2886
    %v3154 = vunpack.c.l.b16 %v2887
    %v3155 = vunpack.c.h.b16 %v2887
    %v3156 = vunpack.c.l.b16 %v2888
    %v3157 = vunpack.c.h.b16 %v2888
    %v3158 = vunpack.c.l.b16 %v2889
    %v3159 = vunpack.c.h.b16 %v2889
    %v3160 = vunpack.c.l.b16 %v2890
    %v3161 = vunpack.c.h.b16 %v2890
    %v3162 = vunpack.c.l.b16 %v2891
    %v3163 = vunpack.c.h.b16 %v2891
    %v3164 = vunpack.c.l.b16 %v2892
    %v3165 = vunpack.c.h.b16 %v2892
    %v3166 = vunpack.c.l.b16 %v2893
    %v3167 = vunpack.c.h.b16 %v2893
    %v3168 = vunpack.c.l.b16 %v2894
    %v3169 = vunpack.c.h.b16 %v2894
    %v3170 = vunpack.c.l.b16 %v2895
    %v3171 = vunpack.c.h.b16 %v2895
    %v3172 = vunpack.c.l.b16 %v2896
    %v3173 = vunpack.c.h.b16 %v2896
    %v3174 = vunpack.c.l.b16 %v2897
    %v3175 = vunpack.c.h.b16 %v2897
    %v3176 = vunpack.c.l.b16 %v2898
    %v3177 = vunpack.c.h.b16 %v2898
    %v3178 = vunpack.c.l.b16 %v2899
    %v3179 = vunpack.c.h.b16 %v2899
    %v3180 = vunpack.c.l.b16 %v2900
    %v3181 = vunpack.c.h.b16 %v2900
    %v3182 = vunpack.c.l.b16 %v2901
    %v3183 = vunpack.c.h.b16 %v2901
    %v3184 = vunpack.c.l.b16 %v2902
    %v3185 = vunpack.c.h.b16 %v2902
    %v3186 = vunpack.c.l.b16 %v2903
    %v3187 = vunpack.c.h.b16 %v2903
    %v3188 = vunpack.c.l.b16 %v2904
    %v3189 = vunpack.c.h.b16 %v2904
    %v3190 = vunpack.c.l.b16 %v2905
    %v3191 = vunpack.c.h.b16 %v2905
    %v3192 = vunpack.c.l.b16 %v2906
    %v3193 = vunpack.c.h.b16 %v2906
    %v3194 = vunpack.c.l.b16 %v2907
    %v3195 = vunpack.c.h.b16 %v2907
    %v3196 = vpack.c.b16 %v3006, %v3004
    %v3197 = vpack.c.b16 %v3007, %v3005
    %v3198 = vpack.c.b16 %v3010, %v3008
    %v3199 = vpack.c.b16 %v3011, %v3009
    %v3200 = vpack.c.b16 %v3014, %v3012
    %v3201 = vpack.c.b16 %v3015, %v3013
    %v3202 = vpack.c.b16 %v3018, %v3016
    %v3203 = vpack.c.b16 %v3019, %v3017
    %v3204 = vpack.c.b16 %v3022, %v3020
    %v3205 = vpack.c.b16 %v3023, %v3021
    %v3206 = vpack.c.b16 %v3026, %v3024
    %v3207 = vpack.c.b16 %v3027, %v3025
    %v3208 = vpack.c.b16 %v3030, %v3028
    %v3209 = vpack.c.b16 %v3031, %v3029
    %v3210 = vpack.c.b16 %v3034, %v3032
    %v3211 = vpack.c.b16 %v3035, %v3033
    %v3212 = vpack.c.b16 %v3038, %v3036
    %v3213 = vpack.c.b16 %v3039, %v3037
    %v3214 = vpack.c.b16 %v3042, %v3040
    %v3215 = vpack.c.b16 %v3043, %v3041
    %v3216 = vpack.c.b16 %v3046, %v3044
    %v3217 = vpack.c.b16 %v3047, %v3045
    %v3218 = vpack.c.b16 %v3050, %v3048
    %v3219 = vpack.c.b16 %v3051, %v3049
    %v3220 = vpack.c.b16 %v3054, %v3052
    %v3221 = vpack.c.b16 %v3055, %v3053
    %v3222 = vpack.c.b16 %v3058, %v3056
    %v3223 = vpack.c.b16 %v3059, %v3057
    %v3224 = vpack.c.b16 %v3062, %v3060
    %v3225 = vpack.c.b16 %v3063, %v3061
    %v3226 = vpack.c.b16 %v3066, %v3064
    %v3227 = vpack.c.b16 %v3067, %v3065
    %v3228 = vpack.c.b16 %v3070, %v3068
    %v3229 = vpack.c.b16 %v3071, %v3069
    %v3230 = vpack.c.b16 %v3074, %v3072
    %v3231 = vpack.c.b16 %v3075, %v3073
    %v3232 = vpack.c.b16 %v3078, %v3076
    %v3233 = vpack.c.b16 %v3079, %v3077
    %v3234 = vpack.c.b16 %v3082, %v3080
    %v3235 = vpack.c.b16 %v3083, %v3081
    %v3236 = vpack.c.b16 %v3086, %v3084
    %v3237 = vpack.c.b16 %v3087, %v3085
    %v3238 = vpack.c.b16 %v3090, %v3088
    %v3239 = vpack.c.b16 %v3091, %v3089
    %v3240 = vpack.c.b16 %v3094, %v3092
    %v3241 = vpack.c.b16 %v3095, %v3093
    %v3242 = vpack.c.b16 %v3098, %v3096
    %v3243 = vpack.c.b16 %v3099, %v3097
    %v3244 = vpack.c.b16 %v3102, %v3100
    %v3245 = vpack.c.b16 %v3103, %v3101
    %v3246 = vpack.c.b16 %v3106, %v3104
    %v3247 = vpack.c.b16 %v3107, %v3105
    %v3248 = vpack.c.b16 %v3110, %v3108
    %v3249 = vpack.c.b16 %v3111, %v3109
    %v3250 = vpack.c.b16 %v3114, %v3112
    %v3251 = vpack.c.b16 %v3115, %v3113
    %v3252 = vpack.c.b16 %v3118, %v3116
    %v3253 = vpack.c.b16 %v3119, %v3117
    %v3254 = vpack.c.b16 %v3122, %v3120
    %v3255 = vpack.c.b16 %v3123, %v3121
    %v3256 = vpack.c.b16 %v3126, %v3124
    %v3257 = vpack.c.b16 %v3127, %v3125
    %v3258 = vpack.c.b16 %v3130, %v3128
    %v3259 = vpack.c.b16 %v3131, %v3129
    %v3260 = vpack.c.b16 %v3134, %v3132
    %v3261 = vpack.c.b16 %v3135, %v3133
    %v3262 = vpack.c.b16 %v3138, %v3136
    %v3263 = vpack.c.b16 %v3139, %v3137
    %v3264 = vpack.c.b16 %v3142, %v3140
    %v3265 = vpack.c.b16 %v3143, %v3141
    %v3266 = vpack.c.b16 %v3146, %v3144
    %v3267 = vpack.c.b16 %v3147, %v3145
    %v3268 = vpack.c.b16 %v3150, %v3148
    %v3269 = vpack.c.b16 %v3151, %v3149
    %v3270 = vpack.c.b16 %v3154, %v3152
    %v3271 = vpack.c.b16 %v3155, %v3153
    %v3272 = vpack.c.b16 %v3158, %v3156
    %v3273 = vpack.c.b16 %v3159, %v3157
    %v3274 = vpack.c.b16 %v3162, %v3160
    %v3275 = vpack.c.b16 %v3163, %v3161
    %v3276 = vpack.c.b16 %v3166, %v3164
    %v3277 = vpack.c.b16 %v3167, %v3165
    %v3278 = vpack.c.b16 %v3170, %v3168
    %v3279 = vpack.c.b16 %v3171, %v3169
    %v3280 = vpack.c.b16 %v3174, %v3172
    %v3281 = vpack.c.b16 %v3175, %v3173
    %v3282 = vpack.c.b16 %v3178, %v3176
    %v3283 = vpack.c.b16 %v3179, %v3177
    %v3284 = vpack.c.b16 %v3182, %v3180
    %v3285 = vpack.c.b16 %v3183, %v3181
    %v3286 = vpack.c.b16 %v3186, %v3184
    %v3287 = vpack.c.b16 %v3187, %v3185
    %v3288 = vpack.c.b16 %v3190, %v3188
    %v3289 = vpack.c.b16 %v3191, %v3189
    %v3290 = vpack.c.b16 %v3194, %v3192
    %v3291 = vpack.c.b16 %v3195, %v3193
    %3388 = vmatprep.subr.bf16.mxu0 %v3211
    %3389 = vmatpush1.bf16.msra.mxu0 %v3210
    %3390 = vmatprep.subr.bf16.mxu0 %v3209
    %3391 = vmatpush1.bf16.msra.mxu0 %v3208
    %3392 = vmatprep.subr.bf16.mxu0 %v3207
    %3393 = vmatpush1.bf16.msra.mxu0 %v3206
    %3394 = vmatprep.subr.bf16.mxu0 %v3205
    %3395 = vmatpush1.bf16.msra.mxu0 %v3204
    %3396 = vmatprep.subr.bf16.mxu0 %v3203
    %3397 = vmatpush1.bf16.msra.mxu0 %v3202
    %3398 = vmatprep.subr.bf16.mxu0 %v3201
    %3399 = vmatpush1.bf16.msra.mxu0 %v3200
    %3400 = vmatprep.subr.bf16.mxu0 %v3199
    %3401 = vmatpush1.bf16.msra.mxu0 %v3198
    %3402 = vmatprep.subr.bf16.mxu0 %v3197
    %3403 = vmatpush1.bf16.msra.mxu0 %v3196
    %3404 = vmatprep.subr.bf16.mxu0 %v3227
    %3405 = vmatpush2.bf16.msra.mxu0 %v3226
    %3406 = vmatprep.subr.bf16.mxu0 %v3225
    %3407 = vmatpush2.bf16.msra.mxu0 %v3224
    %3408 = vmatprep.subr.bf16.mxu0 %v3223
    %3409 = vmatpush2.bf16.msra.mxu0 %v3222
    %3410 = vmatprep.subr.bf16.mxu0 %v3221
    %3411 = vmatpush2.bf16.msra.mxu0 %v3220
    %3412 = vmatprep.subr.bf16.mxu0 %v3219
    %3413 = vmatpush2.bf16.msra.mxu0 %v3218
    %3414 = vmatprep.subr.bf16.mxu0 %v3217
    %3415 = vmatpush2.bf16.msra.mxu0 %v3216
    %3416 = vmatprep.subr.bf16.mxu0 %v3215
    %3417 = vmatpush2.bf16.msra.mxu0 %v3214
    %3418 = vmatprep.subr.bf16.mxu0 %v3213
    %3419 = vmatpush2.bf16.msra.mxu0 %v3212
    %3420 = vmatprep.mubr.bf16.mxu0 %v2081
    %3421 = vmatmul.mubr.bf16.gmra.mxu0 %v2080
    %v3422 = vpop.f32.mrf.mxu0
    %v3423 = vadd.f32 0.0, %v3422
    %v3424 = vpop.f32.mrf.mxu0
    %v3425 = vadd.f32 0.0, %v3424
    %v3426 = vpop.f32.mrf.mxu0
    %v3427 = vpop.f32.mrf.mxu0
    %3428 = vdwg.mxu0
    %3429 = vmatprep.subr.bf16.mxu0 %v3243
    %3430 = vmatpush1.bf16.msra.mxu0 %v3242
    %3431 = vmatprep.subr.bf16.mxu0 %v3241
    %3432 = vmatpush1.bf16.msra.mxu0 %v3240
    %3433 = vmatprep.subr.bf16.mxu0 %v3239
    %3434 = vmatpush1.bf16.msra.mxu0 %v3238
    %3435 = vmatprep.subr.bf16.mxu0 %v3237
    %3436 = vmatpush1.bf16.msra.mxu0 %v3236
    %3437 = vmatprep.subr.bf16.mxu0 %v3235
    %3438 = vmatpush1.bf16.msra.mxu0 %v3234
    %3439 = vmatprep.subr.bf16.mxu0 %v3233
    %3440 = vmatpush1.bf16.msra.mxu0 %v3232
    %3441 = vmatprep.subr.bf16.mxu0 %v3231
    %3442 = vmatpush1.bf16.msra.mxu0 %v3230
    %3443 = vmatprep.subr.bf16.mxu0 %v3229
    %3444 = vmatpush1.bf16.msra.mxu0 %v3228
    %3445 = vmatprep.subr.bf16.mxu0 %v3259
    %3446 = vmatpush2.bf16.msra.mxu0 %v3258
    %3447 = vmatprep.subr.bf16.mxu0 %v3257
    %3448 = vmatpush2.bf16.msra.mxu0 %v3256
    %3449 = vmatprep.subr.bf16.mxu0 %v3255
    %3450 = vmatpush2.bf16.msra.mxu0 %v3254
    %3451 = vmatprep.subr.bf16.mxu0 %v3253
    %3452 = vmatpush2.bf16.msra.mxu0 %v3252
    %3453 = vmatprep.subr.bf16.mxu0 %v3251
    %3454 = vmatpush2.bf16.msra.mxu0 %v3250
    %3455 = vmatprep.subr.bf16.mxu0 %v3249
    %3456 = vmatpush2.bf16.msra.mxu0 %v3248
    %3457 = vmatprep.subr.bf16.mxu0 %v3247
    %3458 = vmatpush2.bf16.msra.mxu0 %v3246
    %3459 = vmatprep.subr.bf16.mxu0 %v3245
    %3460 = vmatpush2.bf16.msra.mxu0 %v3244
    %3461 = vmatprep.mubr.bf16.mxu0 %v1018
    %3462 = vmatmul.mubr.bf16.gmra.mxu0 %v1017
    %v3463 = vpop.f32.mrf.mxu0
    %v3464 = vadd.f32 %v3423, %v3463
    %v3465 = vpop.f32.mrf.mxu0
    %v3466 = vadd.f32 %v3425, %v3465
    %v3467 = vpop.f32.mrf.mxu0
    %v3468 = vpop.f32.mrf.mxu0
    %3469 = vdwg.mxu0
    %3470 = vmatprep.subr.bf16.mxu0 %v3275
    %3471 = vmatpush1.bf16.msra.mxu0 %v3274
    %3472 = vmatprep.subr.bf16.mxu0 %v3273
    %3473 = vmatpush1.bf16.msra.mxu0 %v3272
    %3474 = vmatprep.subr.bf16.mxu0 %v3271
    %3475 = vmatpush1.bf16.msra.mxu0 %v3270
    %3476 = vmatprep.subr.bf16.mxu0 %v3269
    %3477 = vmatpush1.bf16.msra.mxu0 %v3268
    %3478 = vmatprep.subr.bf16.mxu0 %v3267
    %3479 = vmatpush1.bf16.msra.mxu0 %v3266
    %3480 = vmatprep.subr.bf16.mxu0 %v3265
    %3481 = vmatpush1.bf16.msra.mxu0 %v3264
    %3482 = vmatprep.subr.bf16.mxu0 %v3263
    %3483 = vmatpush1.bf16.msra.mxu0 %v3262
    %3484 = vmatprep.subr.bf16.mxu0 %v3261
    %3485 = vmatpush1.bf16.msra.mxu0 %v3260
    %3486 = vmatprep.subr.bf16.mxu0 %v3291
    %3487 = vmatpush2.bf16.msra.mxu0 %v3290
    %3488 = vmatprep.subr.bf16.mxu0 %v3289
    %3489 = vmatpush2.bf16.msra.mxu0 %v3288
    %3490 = vmatprep.subr.bf16.mxu0 %v3287
    %3491 = vmatpush2.bf16.msra.mxu0 %v3286
    %3492 = vmatprep.subr.bf16.mxu0 %v3285
    %3493 = vmatpush2.bf16.msra.mxu0 %v3284
    %3494 = vmatprep.subr.bf16.mxu0 %v3283
    %3495 = vmatpush2.bf16.msra.mxu0 %v3282
    %3496 = vmatprep.subr.bf16.mxu0 %v3281
    %3497 = vmatpush2.bf16.msra.mxu0 %v3280
    %3498 = vmatprep.subr.bf16.mxu0 %v3279
    %3499 = vmatpush2.bf16.msra.mxu0 %v3278
    %3500 = vmatprep.subr.bf16.mxu0 %v3277
    %3501 = vmatpush2.bf16.msra.mxu0 %v3276
    %3502 = vmatprep.mubr.bf16.mxu0 %v1358
    %3503 = vmatmul.mubr.bf16.gmra.mxu0 %v1357
    %v3504 = vpop.f32.mrf.mxu0
    %v3505 = vadd.f32 %v3464, %v3504
    %v3506 = vpop.f32.mrf.mxu0
    %v3507 = vadd.f32 %v3466, %v3506
    %v3508 = vpop.f32.mrf.mxu0
    %v3509 = vpop.f32.mrf.mxu0
    %3510 = vdwg.mxu0
    %v3511 = vmax.f32 %v2805, %v3505
    %v3512 = vmax.f32 %v2807, %v3507
    %3513 = vmatprep.subr.bf16.mxu0 %v2511
    %3514 = vmatpush1.bf16.msra.mxu0 %v2510
    %3515 = vmatprep.subr.bf16.mxu0 %v2509
    %3516 = vmatpush1.bf16.msra.mxu0 %v2508
    %3517 = vmatprep.subr.bf16.mxu0 %v2507
    %3518 = vmatpush1.bf16.msra.mxu0 %v2506
    %3519 = vmatprep.subr.bf16.mxu0 %v2505
    %3520 = vmatpush1.bf16.msra.mxu0 %v2504
    %3521 = vmatprep.subr.bf16.mxu0 %v2503
    %3522 = vmatpush1.bf16.msra.mxu0 %v2502
    %3523 = vmatprep.subr.bf16.mxu0 %v2501
    %3524 = vmatpush1.bf16.msra.mxu0 %v2500
    %3525 = vmatprep.subr.bf16.mxu0 %v2499
    %3526 = vmatpush1.bf16.msra.mxu0 %v2498
    %3527 = vmatprep.subr.bf16.mxu0 %v2497
    %3528 = vmatpush1.bf16.msra.mxu0 %v2496
    %3529 = vmatprep.subr.bf16.mxu0 %v2527
    %3530 = vmatpush2.bf16.msra.mxu0 %v2526
    %3531 = vmatprep.subr.bf16.mxu0 %v2525
    %3532 = vmatpush2.bf16.msra.mxu0 %v2524
    %3533 = vmatprep.subr.bf16.mxu0 %v2523
    %3534 = vmatpush2.bf16.msra.mxu0 %v2522
    %3535 = vmatprep.subr.bf16.mxu0 %v2521
    %3536 = vmatpush2.bf16.msra.mxu0 %v2520
    %3537 = vmatprep.subr.bf16.mxu0 %v2519
    %3538 = vmatpush2.bf16.msra.mxu0 %v2518
    %3539 = vmatprep.subr.bf16.mxu0 %v2517
    %3540 = vmatpush2.bf16.msra.mxu0 %v2516
    %3541 = vmatprep.subr.bf16.mxu0 %v2515
    %3542 = vmatpush2.bf16.msra.mxu0 %v2514
    %3543 = vmatprep.subr.bf16.mxu0 %v2513
    %3544 = vmatpush2.bf16.msra.mxu0 %v2512
    %3545 = vmatprep.mubr.bf16.mxu0 %v1018
    %3546 = vmatmul.mubr.bf16.gmra.mxu0 %v1017
    %v3547 = vpop.f32.mrf.mxu0
    %v3548 = vadd.f32 0.0, %v3547
    %v3549 = vpop.f32.mrf.mxu0
    %v3550 = vadd.f32 0.0, %v3549
    %v3551 = vpop.f32.mrf.mxu0
    %v3552 = vpop.f32.mrf.mxu0
    %3553 = vdwg.mxu0
    %3554 = vmatprep.subr.bf16.mxu0 %v2543
    %3555 = vmatpush1.bf16.msra.mxu0 %v2542
    %3556 = vmatprep.subr.bf16.mxu0 %v2541
    %3557 = vmatpush1.bf16.msra.mxu0 %v2540
    %3558 = vmatprep.subr.bf16.mxu0 %v2539
    %3559 = vmatpush1.bf16.msra.mxu0 %v2538
    %3560 = vmatprep.subr.bf16.mxu0 %v2537
    %3561 = vmatpush1.bf16.msra.mxu0 %v2536
    %3562 = vmatprep.subr.bf16.mxu0 %v2535
    %3563 = vmatpush1.bf16.msra.mxu0 %v2534
    %3564 = vmatprep.subr.bf16.mxu0 %v2533
    %3565 = vmatpush1.bf16.msra.mxu0 %v2532
    %3566 = vmatprep.subr.bf16.mxu0 %v2531
    %3567 = vmatpush1.bf16.msra.mxu0 %v2530
    %3568 = vmatprep.subr.bf16.mxu0 %v2529
    %3569 = vmatpush1.bf16.msra.mxu0 %v2528
    %3570 = vmatprep.subr.bf16.mxu0 %v2559
    %3571 = vmatpush2.bf16.msra.mxu0 %v2558
    %3572 = vmatprep.subr.bf16.mxu0 %v2557
    %3573 = vmatpush2.bf16.msra.mxu0 %v2556
    %3574 = vmatprep.subr.bf16.mxu0 %v2555
    %3575 = vmatpush2.bf16.msra.mxu0 %v2554
    %3576 = vmatprep.subr.bf16.mxu0 %v2553
    %3577 = vmatpush2.bf16.msra.mxu0 %v2552
    %3578 = vmatprep.subr.bf16.mxu0 %v2551
    %3579 = vmatpush2.bf16.msra.mxu0 %v2550
    %3580 = vmatprep.subr.bf16.mxu0 %v2549
    %3581 = vmatpush2.bf16.msra.mxu0 %v2548
    %3582 = vmatprep.subr.bf16.mxu0 %v2547
    %3583 = vmatpush2.bf16.msra.mxu0 %v2546
    %3584 = vmatprep.subr.bf16.mxu0 %v2545
    %3585 = vmatpush2.bf16.msra.mxu0 %v2544
    %3586 = vmatprep.mubr.bf16.mxu0 %v1358
    %3587 = vmatmul.mubr.bf16.gmra.mxu0 %v1357
    %v3588 = vpop.f32.mrf.mxu0
    %v3589 = vadd.f32 %v3548, %v3588
    %v3590 = vpop.f32.mrf.mxu0
    %v3591 = vadd.f32 %v3550, %v3590
    %v3592 = vpop.f32.mrf.mxu0
    %v3593 = vpop.f32.mrf.mxu0
    %3594 = vdwg.mxu0
    %3595 = vmatprep.subr.bf16.mxu0 %v2575
    %3596 = vmatpush1.bf16.msra.mxu0 %v2574
    %3597 = vmatprep.subr.bf16.mxu0 %v2573
    %3598 = vmatpush1.bf16.msra.mxu0 %v2572
    %3599 = vmatprep.subr.bf16.mxu0 %v2571
    %3600 = vmatpush1.bf16.msra.mxu0 %v2570
    %3601 = vmatprep.subr.bf16.mxu0 %v2569
    %3602 = vmatpush1.bf16.msra.mxu0 %v2568
    %3603 = vmatprep.subr.bf16.mxu0 %v2567
    %3604 = vmatpush1.bf16.msra.mxu0 %v2566
    %3605 = vmatprep.subr.bf16.mxu0 %v2565
    %3606 = vmatpush1.bf16.msra.mxu0 %v2564
    %3607 = vmatprep.subr.bf16.mxu0 %v2563
    %3608 = vmatpush1.bf16.msra.mxu0 %v2562
    %3609 = vmatprep.subr.bf16.mxu0 %v2561
    %3610 = vmatpush1.bf16.msra.mxu0 %v2560
    %3611 = vmatprep.subr.bf16.mxu0 %v2591
    %3612 = vmatpush2.bf16.msra.mxu0 %v2590
    %3613 = vmatprep.subr.bf16.mxu0 %v2589
    %3614 = vmatpush2.bf16.msra.mxu0 %v2588
    %3615 = vmatprep.subr.bf16.mxu0 %v2587
    %3616 = vmatpush2.bf16.msra.mxu0 %v2586
    %3617 = vmatprep.subr.bf16.mxu0 %v2585
    %3618 = vmatpush2.bf16.msra.mxu0 %v2584
    %3619 = vmatprep.subr.bf16.mxu0 %v2583
    %3620 = vmatpush2.bf16.msra.mxu0 %v2582
    %3621 = vmatprep.subr.bf16.mxu0 %v2581
    %3622 = vmatpush2.bf16.msra.mxu0 %v2580
    %3623 = vmatprep.subr.bf16.mxu0 %v2579
    %3624 = vmatpush2.bf16.msra.mxu0 %v2578
    %3625 = vmatprep.subr.bf16.mxu0 %v2577
    %3626 = vmatpush2.bf16.msra.mxu0 %v2576
    %3627 = vmatprep.mubr.bf16.mxu0 %v1698
    %3628 = vmatmul.mubr.bf16.gmra.mxu0 %v1697
    %v3629 = vpop.f32.mrf.mxu0
    %v3630 = vadd.f32 %v3589, %v3629
    %v3631 = vpop.f32.mrf.mxu0
    %v3632 = vadd.f32 %v3591, %v3631
    %v3633 = vpop.f32.mrf.mxu0
    %v3634 = vpop.f32.mrf.mxu0
    %3635 = vdwg.mxu0
    %v3636 = vmax.f32 %v3511, %v3630
    %v3637 = vmax.f32 %v3512, %v3632
    %3638 = vmatprep.subr.bf16.mxu0 %v3211
    %3639 = vmatpush1.bf16.msra.mxu0 %v3210
    %3640 = vmatprep.subr.bf16.mxu0 %v3209
    %3641 = vmatpush1.bf16.msra.mxu0 %v3208
    %3642 = vmatprep.subr.bf16.mxu0 %v3207
    %3643 = vmatpush1.bf16.msra.mxu0 %v3206
    %3644 = vmatprep.subr.bf16.mxu0 %v3205
    %3645 = vmatpush1.bf16.msra.mxu0 %v3204
    %3646 = vmatprep.subr.bf16.mxu0 %v3203
    %3647 = vmatpush1.bf16.msra.mxu0 %v3202
    %3648 = vmatprep.subr.bf16.mxu0 %v3201
    %3649 = vmatpush1.bf16.msra.mxu0 %v3200
    %3650 = vmatprep.subr.bf16.mxu0 %v3199
    %3651 = vmatpush1.bf16.msra.mxu0 %v3198
    %3652 = vmatprep.subr.bf16.mxu0 %v3197
    %3653 = vmatpush1.bf16.msra.mxu0 %v3196
    %3654 = vmatprep.subr.bf16.mxu0 %v3227
    %3655 = vmatpush2.bf16.msra.mxu0 %v3226
    %3656 = vmatprep.subr.bf16.mxu0 %v3225
    %3657 = vmatpush2.bf16.msra.mxu0 %v3224
    %3658 = vmatprep.subr.bf16.mxu0 %v3223
    %3659 = vmatpush2.bf16.msra.mxu0 %v3222
    %3660 = vmatprep.subr.bf16.mxu0 %v3221
    %3661 = vmatpush2.bf16.msra.mxu0 %v3220
    %3662 = vmatprep.subr.bf16.mxu0 %v3219
    %3663 = vmatpush2.bf16.msra.mxu0 %v3218
    %3664 = vmatprep.subr.bf16.mxu0 %v3217
    %3665 = vmatpush2.bf16.msra.mxu0 %v3216
    %3666 = vmatprep.subr.bf16.mxu0 %v3215
    %3667 = vmatpush2.bf16.msra.mxu0 %v3214
    %3668 = vmatprep.subr.bf16.mxu0 %v3213
    %3669 = vmatpush2.bf16.msra.mxu0 %v3212
    %3670 = vmatprep.mubr.bf16.mxu0 %v1018
    %3671 = vmatmul.mubr.bf16.gmra.mxu0 %v1017
    %v3672 = vpop.f32.mrf.mxu0
    %v3673 = vadd.f32 0.0, %v3672
    %v3674 = vpop.f32.mrf.mxu0
    %v3675 = vadd.f32 0.0, %v3674
    %v3676 = vpop.f32.mrf.mxu0
    %v3677 = vpop.f32.mrf.mxu0
    %3678 = vdwg.mxu0
    %3679 = vmatprep.subr.bf16.mxu0 %v3243
    %3680 = vmatpush1.bf16.msra.mxu0 %v3242
    %3681 = vmatprep.subr.bf16.mxu0 %v3241
    %3682 = vmatpush1.bf16.msra.mxu0 %v3240
    %3683 = vmatprep.subr.bf16.mxu0 %v3239
    %3684 = vmatpush1.bf16.msra.mxu0 %v3238
    %3685 = vmatprep.subr.bf16.mxu0 %v3237
    %3686 = vmatpush1.bf16.msra.mxu0 %v3236
    %3687 = vmatprep.subr.bf16.mxu0 %v3235
    %3688 = vmatpush1.bf16.msra.mxu0 %v3234
    %3689 = vmatprep.subr.bf16.mxu0 %v3233
    %3690 = vmatpush1.bf16.msra.mxu0 %v3232
    %3691 = vmatprep.subr.bf16.mxu0 %v3231
    %3692 = vmatpush1.bf16.msra.mxu0 %v3230
    %3693 = vmatprep.subr.bf16.mxu0 %v3229
    %3694 = vmatpush1.bf16.msra.mxu0 %v3228
    %3695 = vmatprep.subr.bf16.mxu0 %v3259
    %3696 = vmatpush2.bf16.msra.mxu0 %v3258
    %3697 = vmatprep.subr.bf16.mxu0 %v3257
    %3698 = vmatpush2.bf16.msra.mxu0 %v3256
    %3699 = vmatprep.subr.bf16.mxu0 %v3255
    %3700 = vmatpush2.bf16.msra.mxu0 %v3254
    %3701 = vmatprep.subr.bf16.mxu0 %v3253
    %3702 = vmatpush2.bf16.msra.mxu0 %v3252
    %3703 = vmatprep.subr.bf16.mxu0 %v3251
    %3704 = vmatpush2.bf16.msra.mxu0 %v3250
    %3705 = vmatprep.subr.bf16.mxu0 %v3249
    %3706 = vmatpush2.bf16.msra.mxu0 %v3248
    %3707 = vmatprep.subr.bf16.mxu0 %v3247
    %3708 = vmatpush2.bf16.msra.mxu0 %v3246
    %3709 = vmatprep.subr.bf16.mxu0 %v3245
    %3710 = vmatpush2.bf16.msra.mxu0 %v3244
    %3711 = vmatprep.mubr.bf16.mxu0 %v1358
    %3712 = vmatmul.mubr.bf16.gmra.mxu0 %v1357
    %v3713 = vpop.f32.mrf.mxu0
    %v3714 = vadd.f32 %v3673, %v3713
    %v3715 = vpop.f32.mrf.mxu0
    %v3716 = vadd.f32 %v3675, %v3715
    %v3717 = vpop.f32.mrf.mxu0
    %v3718 = vpop.f32.mrf.mxu0
    %3719 = vdwg.mxu0
    %3720 = vmatprep.subr.bf16.mxu0 %v3275
    %3721 = vmatpush1.bf16.msra.mxu0 %v3274
    %3722 = vmatprep.subr.bf16.mxu0 %v3273
    %3723 = vmatpush1.bf16.msra.mxu0 %v3272
    %3724 = vmatprep.subr.bf16.mxu0 %v3271
    %3725 = vmatpush1.bf16.msra.mxu0 %v3270
    %3726 = vmatprep.subr.bf16.mxu0 %v3269
    %3727 = vmatpush1.bf16.msra.mxu0 %v3268
    %3728 = vmatprep.subr.bf16.mxu0 %v3267
    %3729 = vmatpush1.bf16.msra.mxu0 %v3266
    %3730 = vmatprep.subr.bf16.mxu0 %v3265
    %3731 = vmatpush1.bf16.msra.mxu0 %v3264
    %3732 = vmatprep.subr.bf16.mxu0 %v3263
    %3733 = vmatpush1.bf16.msra.mxu0 %v3262
    %3734 = vmatprep.subr.bf16.mxu0 %v3261
    %3735 = vmatpush1.bf16.msra.mxu0 %v3260
    %3736 = vmatprep.subr.bf16.mxu0 %v3291
    %3737 = vmatpush2.bf16.msra.mxu0 %v3290
    %3738 = vmatprep.subr.bf16.mxu0 %v3289
    %3739 = vmatpush2.bf16.msra.mxu0 %v3288
    %3740 = vmatprep.subr.bf16.mxu0 %v3287
    %3741 = vmatpush2.bf16.msra.mxu0 %v3286
    %3742 = vmatprep.subr.bf16.mxu0 %v3285
    %3743 = vmatpush2.bf16.msra.mxu0 %v3284
    %3744 = vmatprep.subr.bf16.mxu0 %v3283
    %3745 = vmatpush2.bf16.msra.mxu0 %v3282
    %3746 = vmatprep.subr.bf16.mxu0 %v3281
    %3747 = vmatpush2.bf16.msra.mxu0 %v3280
    %3748 = vmatprep.subr.bf16.mxu0 %v3279
    %3749 = vmatpush2.bf16.msra.mxu0 %v3278
    %3750 = vmatprep.subr.bf16.mxu0 %v3277
    %3751 = vmatpush2.bf16.msra.mxu0 %v3276
    %3752 = vmatprep.mubr.bf16.mxu0 %v1698
    %3753 = vmatmul.mubr.bf16.gmra.mxu0 %v1697
    %v3754 = vpop.f32.mrf.mxu0
    %v3755 = vadd.f32 %v3714, %v3754
    %v3756 = vpop.f32.mrf.mxu0
    %v3757 = vadd.f32 %v3716, %v3756
    %v3758 = vpop.f32.mrf.mxu0
    %v3759 = vpop.f32.mrf.mxu0
    %3760 = vdwg.mxu0
    %v3761 = vmax.f32 %v3636, %v3755
    %v3762 = vmax.f32 %v3637, %v3757
    %v3764 = vlaneseq
    %v3765 = vshrl.u32 %v3764, 7
    %v3766 = vsub.s32 0, %v3765
    %v3767 = vrot.slane %v2111, %v3766
    %v3768 = vlaneseq
    %v3769 = vshrl.u32 %v3768, 7
    %v3770 = vsub.s32 1, %v3769
    %v3771 = vrot.slane %v2111, %v3770
    %v3774 = vadd.f32 %v3761, %v3767
    %v3775 = vadd.f32 %v3762, %v3771
    %v3776 = vmax.f32 %v3774, 0.0
    %v3777 = vmax.f32 %v3775, 0.0
    %v3778 = vpack.c.bf16 %v3776, %v3776
    %v3779 = vpack.c.bf16 %v3777, %v3777
    %3780 = vmatprep.subr.bf16.mxu0 %v2511
    %3781 = vmatpush1.bf16.msra.mxu0 %v2510
    %3782 = vmatprep.subr.bf16.mxu0 %v2509
    %3783 = vmatpush1.bf16.msra.mxu0 %v2508
    %3784 = vmatprep.subr.bf16.mxu0 %v2507
    %3785 = vmatpush1.bf16.msra.mxu0 %v2506
    %3786 = vmatprep.subr.bf16.mxu0 %v2505
    %3787 = vmatpush1.bf16.msra.mxu0 %v2504
    %3788 = vmatprep.subr.bf16.mxu0 %v2503
    %3789 = vmatpush1.bf16.msra.mxu0 %v2502
    %3790 = vmatprep.subr.bf16.mxu0 %v2501
    %3791 = vmatpush1.bf16.msra.mxu0 %v2500
    %3792 = vmatprep.subr.bf16.mxu0 %v2499
    %3793 = vmatpush1.bf16.msra.mxu0 %v2498
    %3794 = vmatprep.subr.bf16.mxu0 %v2497
    %3795 = vmatpush1.bf16.msra.mxu0 %v2496
    %3796 = vmatprep.subr.bf16.mxu0 %v2527
    %3797 = vmatpush2.bf16.msra.mxu0 %v2526
    %3798 = vmatprep.subr.bf16.mxu0 %v2525
    %3799 = vmatpush2.bf16.msra.mxu0 %v2524
    %3800 = vmatprep.subr.bf16.mxu0 %v2523
    %3801 = vmatpush2.bf16.msra.mxu0 %v2522
    %3802 = vmatprep.subr.bf16.mxu0 %v2521
    %3803 = vmatpush2.bf16.msra.mxu0 %v2520
    %3804 = vmatprep.subr.bf16.mxu0 %v2519
    %3805 = vmatpush2.bf16.msra.mxu0 %v2518
    %3806 = vmatprep.subr.bf16.mxu0 %v2517
    %3807 = vmatpush2.bf16.msra.mxu0 %v2516
    %3808 = vmatprep.subr.bf16.mxu0 %v2515
    %3809 = vmatpush2.bf16.msra.mxu0 %v2514
    %3810 = vmatprep.subr.bf16.mxu0 %v2513
    %3811 = vmatpush2.bf16.msra.mxu0 %v2512
    %3812 = vmatprep.mubr.bf16.mxu0 %v1358
    %3813 = vmatmul.mubr.bf16.gmra.mxu0 %v1357
    %v3814 = vpop.f32.mrf.mxu0
    %v3815 = vadd.f32 0.0, %v3814
    %v3816 = vpop.f32.mrf.mxu0
    %v3817 = vadd.f32 0.0, %v3816
    %v3818 = vpop.f32.mrf.mxu0
    %v3819 = vpop.f32.mrf.mxu0
    %3820 = vdwg.mxu0
    %3821 = vmatprep.subr.bf16.mxu0 %v2543
    %3822 = vmatpush1.bf16.msra.mxu0 %v2542
    %3823 = vmatprep.subr.bf16.mxu0 %v2541
    %3824 = vmatpush1.bf16.msra.mxu0 %v2540
    %3825 = vmatprep.subr.bf16.mxu0 %v2539
    %3826 = vmatpush1.bf16.msra.mxu0 %v2538
    %3827 = vmatprep.subr.bf16.mxu0 %v2537
    %3828 = vmatpush1.bf16.msra.mxu0 %v2536
    %3829 = vmatprep.subr.bf16.mxu0 %v2535
    %3830 = vmatpush1.bf16.msra.mxu0 %v2534
    %3831 = vmatprep.subr.bf16.mxu0 %v2533
    %3832 = vmatpush1.bf16.msra.mxu0 %v2532
    %3833 = vmatprep.subr.bf16.mxu0 %v2531
    %3834 = vmatpush1.bf16.msra.mxu0 %v2530
    %3835 = vmatprep.subr.bf16.mxu0 %v2529
    %3836 = vmatpush1.bf16.msra.mxu0 %v2528
    %3837 = vmatprep.subr.bf16.mxu0 %v2559
    %3838 = vmatpush2.bf16.msra.mxu0 %v2558
    %3839 = vmatprep.subr.bf16.mxu0 %v2557
    %3840 = vmatpush2.bf16.msra.mxu0 %v2556
    %3841 = vmatprep.subr.bf16.mxu0 %v2555
    %3842 = vmatpush2.bf16.msra.mxu0 %v2554
    %3843 = vmatprep.subr.bf16.mxu0 %v2553
    %3844 = vmatpush2.bf16.msra.mxu0 %v2552
    %3845 = vmatprep.subr.bf16.mxu0 %v2551
    %3846 = vmatpush2.bf16.msra.mxu0 %v2550
    %3847 = vmatprep.subr.bf16.mxu0 %v2549
    %3848 = vmatpush2.bf16.msra.mxu0 %v2548
    %3849 = vmatprep.subr.bf16.mxu0 %v2547
    %3850 = vmatpush2.bf16.msra.mxu0 %v2546
    %3851 = vmatprep.subr.bf16.mxu0 %v2545
    %3852 = vmatpush2.bf16.msra.mxu0 %v2544
    %3853 = vmatprep.mubr.bf16.mxu0 %v1698
    %3854 = vmatmul.mubr.bf16.gmra.mxu0 %v1697
    %v3855 = vpop.f32.mrf.mxu0
    %v3856 = vadd.f32 %v3815, %v3855
    %v3857 = vpop.f32.mrf.mxu0
    %v3858 = vadd.f32 %v3817, %v3857
    %v3859 = vpop.f32.mrf.mxu0
    %v3860 = vpop.f32.mrf.mxu0
    %3861 = vdwg.mxu0
    %3862 = vmatprep.subr.bf16.mxu0 %v2575
    %3863 = vmatpush1.bf16.msra.mxu0 %v2574
    %3864 = vmatprep.subr.bf16.mxu0 %v2573
    %3865 = vmatpush1.bf16.msra.mxu0 %v2572
    %3866 = vmatprep.subr.bf16.mxu0 %v2571
    %3867 = vmatpush1.bf16.msra.mxu0 %v2570
    %3868 = vmatprep.subr.bf16.mxu0 %v2569
    %3869 = vmatpush1.bf16.msra.mxu0 %v2568
    %3870 = vmatprep.subr.bf16.mxu0 %v2567
    %3871 = vmatpush1.bf16.msra.mxu0 %v2566
    %3872 = vmatprep.subr.bf16.mxu0 %v2565
    %3873 = vmatpush1.bf16.msra.mxu0 %v2564
    %3874 = vmatprep.subr.bf16.mxu0 %v2563
    %3875 = vmatpush1.bf16.msra.mxu0 %v2562
    %3876 = vmatprep.subr.bf16.mxu0 %v2561
    %3877 = vmatpush1.bf16.msra.mxu0 %v2560
    %3878 = vmatprep.subr.bf16.mxu0 %v2591
    %3879 = vmatpush2.bf16.msra.mxu0 %v2590
    %3880 = vmatprep.subr.bf16.mxu0 %v2589
    %3881 = vmatpush2.bf16.msra.mxu0 %v2588
    %3882 = vmatprep.subr.bf16.mxu0 %v2587
    %3883 = vmatpush2.bf16.msra.mxu0 %v2586
    %3884 = vmatprep.subr.bf16.mxu0 %v2585
    %3885 = vmatpush2.bf16.msra.mxu0 %v2584
    %3886 = vmatprep.subr.bf16.mxu0 %v2583
    %3887 = vmatpush2.bf16.msra.mxu0 %v2582
    %3888 = vmatprep.subr.bf16.mxu0 %v2581
    %3889 = vmatpush2.bf16.msra.mxu0 %v2580
    %3890 = vmatprep.subr.bf16.mxu0 %v2579
    %3891 = vmatpush2.bf16.msra.mxu0 %v2578
    %3892 = vmatprep.subr.bf16.mxu0 %v2577
    %3893 = vmatpush2.bf16.msra.mxu0 %v2576
    %3894 = vmatprep.mubr.bf16.mxu0 %v2038
    %3895 = vmatmul.mubr.bf16.gmra.mxu0 %v2037
    %v3896 = vpop.f32.mrf.mxu0
    %v3897 = vadd.f32 %v3856, %v3896
    %v3898 = vpop.f32.mrf.mxu0
    %v3899 = vadd.f32 %v3858, %v3898
    %v3900 = vpop.f32.mrf.mxu0
    %v3901 = vpop.f32.mrf.mxu0
    %3902 = vdwg.mxu0
    %3903 = vmatprep.subr.bf16.mxu0 %v3211
    %3904 = vmatpush1.bf16.msra.mxu0 %v3210
    %3905 = vmatprep.subr.bf16.mxu0 %v3209
    %3906 = vmatpush1.bf16.msra.mxu0 %v3208
    %3907 = vmatprep.subr.bf16.mxu0 %v3207
    %3908 = vmatpush1.bf16.msra.mxu0 %v3206
    %3909 = vmatprep.subr.bf16.mxu0 %v3205
    %3910 = vmatpush1.bf16.msra.mxu0 %v3204
    %3911 = vmatprep.subr.bf16.mxu0 %v3203
    %3912 = vmatpush1.bf16.msra.mxu0 %v3202
    %3913 = vmatprep.subr.bf16.mxu0 %v3201
    %3914 = vmatpush1.bf16.msra.mxu0 %v3200
    %3915 = vmatprep.subr.bf16.mxu0 %v3199
    %3916 = vmatpush1.bf16.msra.mxu0 %v3198
    %3917 = vmatprep.subr.bf16.mxu0 %v3197
    %3918 = vmatpush1.bf16.msra.mxu0 %v3196
    %3919 = vmatprep.subr.bf16.mxu0 %v3227
    %3920 = vmatpush2.bf16.msra.mxu0 %v3226
    %3921 = vmatprep.subr.bf16.mxu0 %v3225
    %3922 = vmatpush2.bf16.msra.mxu0 %v3224
    %3923 = vmatprep.subr.bf16.mxu0 %v3223
    %3924 = vmatpush2.bf16.msra.mxu0 %v3222
    %3925 = vmatprep.subr.bf16.mxu0 %v3221
    %3926 = vmatpush2.bf16.msra.mxu0 %v3220
    %3927 = vmatprep.subr.bf16.mxu0 %v3219
    %3928 = vmatpush2.bf16.msra.mxu0 %v3218
    %3929 = vmatprep.subr.bf16.mxu0 %v3217
    %3930 = vmatpush2.bf16.msra.mxu0 %v3216
    %3931 = vmatprep.subr.bf16.mxu0 %v3215
    %3932 = vmatpush2.bf16.msra.mxu0 %v3214
    %3933 = vmatprep.subr.bf16.mxu0 %v3213
    %3934 = vmatpush2.bf16.msra.mxu0 %v3212
    %3935 = vmatprep.mubr.bf16.mxu0 %v1358
    %3936 = vmatmul.mubr.bf16.gmra.mxu0 %v1357
    %v3937 = vpop.f32.mrf.mxu0
    %v3938 = vadd.f32 0.0, %v3937
    %v3939 = vpop.f32.mrf.mxu0
    %v3940 = vadd.f32 0.0, %v3939
    %v3941 = vpop.f32.mrf.mxu0
    %v3942 = vpop.f32.mrf.mxu0
    %3943 = vdwg.mxu0
    %3944 = vmatprep.subr.bf16.mxu0 %v3243
    %3945 = vmatpush1.bf16.msra.mxu0 %v3242
    %3946 = vmatprep.subr.bf16.mxu0 %v3241
    %3947 = vmatpush1.bf16.msra.mxu0 %v3240
    %3948 = vmatprep.subr.bf16.mxu0 %v3239
    %3949 = vmatpush1.bf16.msra.mxu0 %v3238
    %3950 = vmatprep.subr.bf16.mxu0 %v3237
    %3951 = vmatpush1.bf16.msra.mxu0 %v3236
    %3952 = vmatprep.subr.bf16.mxu0 %v3235
    %3953 = vmatpush1.bf16.msra.mxu0 %v3234
    %3954 = vmatprep.subr.bf16.mxu0 %v3233
    %3955 = vmatpush1.bf16.msra.mxu0 %v3232
    %3956 = vmatprep.subr.bf16.mxu0 %v3231
    %3957 = vmatpush1.bf16.msra.mxu0 %v3230
    %3958 = vmatprep.subr.bf16.mxu0 %v3229
    %3959 = vmatpush1.bf16.msra.mxu0 %v3228
    %3960 = vmatprep.subr.bf16.mxu0 %v3259
    %3961 = vmatpush2.bf16.msra.mxu0 %v3258
    %3962 = vmatprep.subr.bf16.mxu0 %v3257
    %3963 = vmatpush2.bf16.msra.mxu0 %v3256
    %3964 = vmatprep.subr.bf16.mxu0 %v3255
    %3965 = vmatpush2.bf16.msra.mxu0 %v3254
    %3966 = vmatprep.subr.bf16.mxu0 %v3253
    %3967 = vmatpush2.bf16.msra.mxu0 %v3252
    %3968 = vmatprep.subr.bf16.mxu0 %v3251
    %3969 = vmatpush2.bf16.msra.mxu0 %v3250
    %3970 = vmatprep.subr.bf16.mxu0 %v3249
    %3971 = vmatpush2.bf16.msra.mxu0 %v3248
    %3972 = vmatprep.subr.bf16.mxu0 %v3247
    %3973 = vmatpush2.bf16.msra.mxu0 %v3246
    %3974 = vmatprep.subr.bf16.mxu0 %v3245
    %3975 = vmatpush2.bf16.msra.mxu0 %v3244
    %3976 = vmatprep.mubr.bf16.mxu0 %v1698
    %3977 = vmatmul.mubr.bf16.gmra.mxu0 %v1697
    %v3978 = vpop.f32.mrf.mxu0
    %v3979 = vadd.f32 %v3938, %v3978
    %v3980 = vpop.f32.mrf.mxu0
    %v3981 = vadd.f32 %v3940, %v3980
    %v3982 = vpop.f32.mrf.mxu0
    %v3983 = vpop.f32.mrf.mxu0
    %3984 = vdwg.mxu0
    %3985 = vmatprep.subr.bf16.mxu0 %v3275
    %3986 = vmatpush1.bf16.msra.mxu0 %v3274
    %3987 = vmatprep.subr.bf16.mxu0 %v3273
    %3988 = vmatpush1.bf16.msra.mxu0 %v3272
    %3989 = vmatprep.subr.bf16.mxu0 %v3271
    %3990 = vmatpush1.bf16.msra.mxu0 %v3270
    %3991 = vmatprep.subr.bf16.mxu0 %v3269
    %3992 = vmatpush1.bf16.msra.mxu0 %v3268
    %3993 = vmatprep.subr.bf16.mxu0 %v3267
    %3994 = vmatpush1.bf16.msra.mxu0 %v3266
    %3995 = vmatprep.subr.bf16.mxu0 %v3265
    %3996 = vmatpush1.bf16.msra.mxu0 %v3264
    %3997 = vmatprep.subr.bf16.mxu0 %v3263
    %3998 = vmatpush1.bf16.msra.mxu0 %v3262
    %3999 = vmatprep.subr.bf16.mxu0 %v3261
    %4000 = vmatpush1.bf16.msra.mxu0 %v3260
    %4001 = vmatprep.subr.bf16.mxu0 %v3291
    %4002 = vmatpush2.bf16.msra.mxu0 %v3290
    %4003 = vmatprep.subr.bf16.mxu0 %v3289
    %4004 = vmatpush2.bf16.msra.mxu0 %v3288
    %4005 = vmatprep.subr.bf16.mxu0 %v3287
    %4006 = vmatpush2.bf16.msra.mxu0 %v3286
    %4007 = vmatprep.subr.bf16.mxu0 %v3285
    %4008 = vmatpush2.bf16.msra.mxu0 %v3284
    %4009 = vmatprep.subr.bf16.mxu0 %v3283
    %4010 = vmatpush2.bf16.msra.mxu0 %v3282
    %4011 = vmatprep.subr.bf16.mxu0 %v3281
    %4012 = vmatpush2.bf16.msra.mxu0 %v3280
    %4013 = vmatprep.subr.bf16.mxu0 %v3279
    %4014 = vmatpush2.bf16.msra.mxu0 %v3278
    %4015 = vmatprep.subr.bf16.mxu0 %v3277
    %4016 = vmatpush2.bf16.msra.mxu0 %v3276
    %4017 = vmatprep.mubr.bf16.mxu0 %v2038
    %4018 = vmatmul.mubr.bf16.gmra.mxu0 %v2037
    %v4019 = vpop.f32.mrf.mxu0
    %v4020 = vadd.f32 %v3979, %v4019
    %v4021 = vpop.f32.mrf.mxu0
    %v4022 = vadd.f32 %v3981, %v4021
    %v4023 = vpop.f32.mrf.mxu0
    %v4024 = vpop.f32.mrf.mxu0
    %4025 = vdwg.mxu0
    %v4026 = vmax.f32 %v3897, %v4020
    %v4027 = vmax.f32 %v3899, %v4022
    %4028 = vmatprep.subr.bf16.mxu0 %v2511
    %4029 = vmatpush1.bf16.msra.mxu0 %v2510
    %4030 = vmatprep.subr.bf16.mxu0 %v2509
    %4031 = vmatpush1.bf16.msra.mxu0 %v2508
    %4032 = vmatprep.subr.bf16.mxu0 %v2507
    %4033 = vmatpush1.bf16.msra.mxu0 %v2506
    %4034 = vmatprep.subr.bf16.mxu0 %v2505
    %4035 = vmatpush1.bf16.msra.mxu0 %v2504
    %4036 = vmatprep.subr.bf16.mxu0 %v2503
    %4037 = vmatpush1.bf16.msra.mxu0 %v2502
    %4038 = vmatprep.subr.bf16.mxu0 %v2501
    %4039 = vmatpush1.bf16.msra.mxu0 %v2500
    %4040 = vmatprep.subr.bf16.mxu0 %v2499
    %4041 = vmatpush1.bf16.msra.mxu0 %v2498
    %4042 = vmatprep.subr.bf16.mxu0 %v2497
    %4043 = vmatpush1.bf16.msra.mxu0 %v2496
    %4044 = vmatprep.subr.bf16.mxu0 %v2527
    %4045 = vmatpush2.bf16.msra.mxu0 %v2526
    %4046 = vmatprep.subr.bf16.mxu0 %v2525
    %4047 = vmatpush2.bf16.msra.mxu0 %v2524
    %4048 = vmatprep.subr.bf16.mxu0 %v2523
    %4049 = vmatpush2.bf16.msra.mxu0 %v2522
    %4050 = vmatprep.subr.bf16.mxu0 %v2521
    %4051 = vmatpush2.bf16.msra.mxu0 %v2520
    %4052 = vmatprep.subr.bf16.mxu0 %v2519
    %4053 = vmatpush2.bf16.msra.mxu0 %v2518
    %4054 = vmatprep.subr.bf16.mxu0 %v2517
    %4055 = vmatpush2.bf16.msra.mxu0 %v2516
    %4056 = vmatprep.subr.bf16.mxu0 %v2515
    %4057 = vmatpush2.bf16.msra.mxu0 %v2514
    %4058 = vmatprep.subr.bf16.mxu0 %v2513
    %4059 = vmatpush2.bf16.msra.mxu0 %v2512
    %4060 = vmatprep.mubr.bf16.mxu0 %v1698
    %4061 = vmatmul.mubr.bf16.gmra.mxu0 %v1697
    %v4062 = vpop.f32.mrf.mxu0
    %v4063 = vadd.f32 0.0, %v4062
    %v4064 = vpop.f32.mrf.mxu0
    %v4065 = vadd.f32 0.0, %v4064
    %v4066 = vpop.f32.mrf.mxu0
    %v4067 = vpop.f32.mrf.mxu0
    %4068 = vdwg.mxu0
    %4069 = vmatprep.subr.bf16.mxu0 %v2543
    %4070 = vmatpush1.bf16.msra.mxu0 %v2542
    %4071 = vmatprep.subr.bf16.mxu0 %v2541
    %4072 = vmatpush1.bf16.msra.mxu0 %v2540
    %4073 = vmatprep.subr.bf16.mxu0 %v2539
    %4074 = vmatpush1.bf16.msra.mxu0 %v2538
    %4075 = vmatprep.subr.bf16.mxu0 %v2537
    %4076 = vmatpush1.bf16.msra.mxu0 %v2536
    %4077 = vmatprep.subr.bf16.mxu0 %v2535
    %4078 = vmatpush1.bf16.msra.mxu0 %v2534
    %4079 = vmatprep.subr.bf16.mxu0 %v2533
    %4080 = vmatpush1.bf16.msra.mxu0 %v2532
    %4081 = vmatprep.subr.bf16.mxu0 %v2531
    %4082 = vmatpush1.bf16.msra.mxu0 %v2530
    %4083 = vmatprep.subr.bf16.mxu0 %v2529
    %4084 = vmatpush1.bf16.msra.mxu0 %v2528
    %4085 = vmatprep.subr.bf16.mxu0 %v2559
    %4086 = vmatpush2.bf16.msra.mxu0 %v2558
    %4087 = vmatprep.subr.bf16.mxu0 %v2557
    %4088 = vmatpush2.bf16.msra.mxu0 %v2556
    %4089 = vmatprep.subr.bf16.mxu0 %v2555
    %4090 = vmatpush2.bf16.msra.mxu0 %v2554
    %4091 = vmatprep.subr.bf16.mxu0 %v2553
    %4092 = vmatpush2.bf16.msra.mxu0 %v2552
    %4093 = vmatprep.subr.bf16.mxu0 %v2551
    %4094 = vmatpush2.bf16.msra.mxu0 %v2550
    %4095 = vmatprep.subr.bf16.mxu0 %v2549
    %4096 = vmatpush2.bf16.msra.mxu0 %v2548
    %4097 = vmatprep.subr.bf16.mxu0 %v2547
    %4098 = vmatpush2.bf16.msra.mxu0 %v2546
    %4099 = vmatprep.subr.bf16.mxu0 %v2545
    %4100 = vmatpush2.bf16.msra.mxu0 %v2544
    %4101 = vmatprep.mubr.bf16.mxu0 %v2038
    %4102 = vmatmul.mubr.bf16.gmra.mxu0 %v2037
    %v4103 = vpop.f32.mrf.mxu0
    %v4104 = vadd.f32 %v4063, %v4103
    %v4105 = vpop.f32.mrf.mxu0
    %v4106 = vadd.f32 %v4065, %v4105
    %v4107 = vpop.f32.mrf.mxu0
    %v4108 = vpop.f32.mrf.mxu0
    %4109 = vdwg.mxu0
    %4110 = vmatprep.subr.bf16.mxu0 %v2575
    %4111 = vmatpush1.bf16.msra.mxu0 %v2574
    %4112 = vmatprep.subr.bf16.mxu0 %v2573
    %4113 = vmatpush1.bf16.msra.mxu0 %v2572
    %4114 = vmatprep.subr.bf16.mxu0 %v2571
    %4115 = vmatpush1.bf16.msra.mxu0 %v2570
    %4116 = vmatprep.subr.bf16.mxu0 %v2569
    %4117 = vmatpush1.bf16.msra.mxu0 %v2568
    %4118 = vmatprep.subr.bf16.mxu0 %v2567
    %4119 = vmatpush1.bf16.msra.mxu0 %v2566
    %4120 = vmatprep.subr.bf16.mxu0 %v2565
    %4121 = vmatpush1.bf16.msra.mxu0 %v2564
    %4122 = vmatprep.subr.bf16.mxu0 %v2563
    %4123 = vmatpush1.bf16.msra.mxu0 %v2562
    %4124 = vmatprep.subr.bf16.mxu0 %v2561
    %4125 = vmatpush1.bf16.msra.mxu0 %v2560
    %4126 = vmatprep.subr.bf16.mxu0 %v2591
    %4127 = vmatpush2.bf16.msra.mxu0 %v2590
    %4128 = vmatprep.subr.bf16.mxu0 %v2589
    %4129 = vmatpush2.bf16.msra.mxu0 %v2588
    %4130 = vmatprep.subr.bf16.mxu0 %v2587
    %4131 = vmatpush2.bf16.msra.mxu0 %v2586
    %4132 = vmatprep.subr.bf16.mxu0 %v2585
    %4133 = vmatpush2.bf16.msra.mxu0 %v2584
    %4134 = vmatprep.subr.bf16.mxu0 %v2583
    %4135 = vmatpush2.bf16.msra.mxu0 %v2582
    %4136 = vmatprep.subr.bf16.mxu0 %v2581
    %4137 = vmatpush2.bf16.msra.mxu0 %v2580
    %4138 = vmatprep.subr.bf16.mxu0 %v2579
    %4139 = vmatpush2.bf16.msra.mxu0 %v2578
    %4140 = vmatprep.subr.bf16.mxu0 %v2577
    %4141 = vmatpush2.bf16.msra.mxu0 %v2576
    %4142 = vmatprep.mubr.bf16.mxu0 %v2110
    %4143 = vmatmul.mubr.bf16.gmra.mxu0 %v2109
    %v4144 = vpop.f32.mrf.mxu0
    %v4145 = vadd.f32 %v4104, %v4144
    %v4146 = vpop.f32.mrf.mxu0
    %v4147 = vadd.f32 %v4106, %v4146
    %v4148 = vpop.f32.mrf.mxu0
    %v4149 = vpop.f32.mrf.mxu0
    %4150 = vdwg.mxu0
    %v4151 = vmax.f32 %v4026, %v4145
    %v4152 = vmax.f32 %v4027, %v4147
    %4153 = vmatprep.subr.bf16.mxu0 %v3211
    %4154 = vmatpush1.bf16.msra.mxu0 %v3210
    %4155 = vmatprep.subr.bf16.mxu0 %v3209
    %4156 = vmatpush1.bf16.msra.mxu0 %v3208
    %4157 = vmatprep.subr.bf16.mxu0 %v3207
    %4158 = vmatpush1.bf16.msra.mxu0 %v3206
    %4159 = vmatprep.subr.bf16.mxu0 %v3205
    %4160 = vmatpush1.bf16.msra.mxu0 %v3204
    %4161 = vmatprep.subr.bf16.mxu0 %v3203
    %4162 = vmatpush1.bf16.msra.mxu0 %v3202
    %4163 = vmatprep.subr.bf16.mxu0 %v3201
    %4164 = vmatpush1.bf16.msra.mxu0 %v3200
    %4165 = vmatprep.subr.bf16.mxu0 %v3199
    %4166 = vmatpush1.bf16.msra.mxu0 %v3198
    %4167 = vmatprep.subr.bf16.mxu0 %v3197
    %4168 = vmatpush1.bf16.msra.mxu0 %v3196
    %4169 = vmatprep.subr.bf16.mxu0 %v3227
    %4170 = vmatpush2.bf16.msra.mxu0 %v3226
    %4171 = vmatprep.subr.bf16.mxu0 %v3225
    %4172 = vmatpush2.bf16.msra.mxu0 %v3224
    %4173 = vmatprep.subr.bf16.mxu0 %v3223
    %4174 = vmatpush2.bf16.msra.mxu0 %v3222
    %4175 = vmatprep.subr.bf16.mxu0 %v3221
    %4176 = vmatpush2.bf16.msra.mxu0 %v3220
    %4177 = vmatprep.subr.bf16.mxu0 %v3219
    %4178 = vmatpush2.bf16.msra.mxu0 %v3218
    %4179 = vmatprep.subr.bf16.mxu0 %v3217
    %4180 = vmatpush2.bf16.msra.mxu0 %v3216
    %4181 = vmatprep.subr.bf16.mxu0 %v3215
    %4182 = vmatpush2.bf16.msra.mxu0 %v3214
    %4183 = vmatprep.subr.bf16.mxu0 %v3213
    %4184 = vmatpush2.bf16.msra.mxu0 %v3212
    %4185 = vmatprep.mubr.bf16.mxu0 %v1698
    %4186 = vmatmul.mubr.bf16.gmra.mxu0 %v1697
    %v4187 = vpop.f32.mrf.mxu0
    %v4188 = vadd.f32 0.0, %v4187
    %v4189 = vpop.f32.mrf.mxu0
    %v4190 = vadd.f32 0.0, %v4189
    %v4191 = vpop.f32.mrf.mxu0
    %v4192 = vpop.f32.mrf.mxu0
    %4193 = vdwg.mxu0
    %4194 = vmatprep.subr.bf16.mxu0 %v3243
    %4195 = vmatpush1.bf16.msra.mxu0 %v3242
    %4196 = vmatprep.subr.bf16.mxu0 %v3241
    %4197 = vmatpush1.bf16.msra.mxu0 %v3240
    %4198 = vmatprep.subr.bf16.mxu0 %v3239
    %4199 = vmatpush1.bf16.msra.mxu0 %v3238
    %4200 = vmatprep.subr.bf16.mxu0 %v3237
    %4201 = vmatpush1.bf16.msra.mxu0 %v3236
    %4202 = vmatprep.subr.bf16.mxu0 %v3235
    %4203 = vmatpush1.bf16.msra.mxu0 %v3234
    %4204 = vmatprep.subr.bf16.mxu0 %v3233
    %4205 = vmatpush1.bf16.msra.mxu0 %v3232
    %4206 = vmatprep.subr.bf16.mxu0 %v3231
    %4207 = vmatpush1.bf16.msra.mxu0 %v3230
    %4208 = vmatprep.subr.bf16.mxu0 %v3229
    %4209 = vmatpush1.bf16.msra.mxu0 %v3228
    %4210 = vmatprep.subr.bf16.mxu0 %v3259
    %4211 = vmatpush2.bf16.msra.mxu0 %v3258
    %4212 = vmatprep.subr.bf16.mxu0 %v3257
    %4213 = vmatpush2.bf16.msra.mxu0 %v3256
    %4214 = vmatprep.subr.bf16.mxu0 %v3255
    %4215 = vmatpush2.bf16.msra.mxu0 %v3254
    %4216 = vmatprep.subr.bf16.mxu0 %v3253
    %4217 = vmatpush2.bf16.msra.mxu0 %v3252
    %4218 = vmatprep.subr.bf16.mxu0 %v3251
    %4219 = vmatpush2.bf16.msra.mxu0 %v3250
    %4220 = vmatprep.subr.bf16.mxu0 %v3249
    %4221 = vmatpush2.bf16.msra.mxu0 %v3248
    %4222 = vmatprep.subr.bf16.mxu0 %v3247
    %4223 = vmatpush2.bf16.msra.mxu0 %v3246
    %4224 = vmatprep.subr.bf16.mxu0 %v3245
    %4225 = vmatpush2.bf16.msra.mxu0 %v3244
    %4226 = vmatprep.mubr.bf16.mxu0 %v2038
    %4227 = vmatmul.mubr.bf16.gmra.mxu0 %v2037
    %v4228 = vpop.f32.mrf.mxu0
    %v4229 = vadd.f32 %v4188, %v4228
    %v4230 = vpop.f32.mrf.mxu0
    %v4231 = vadd.f32 %v4190, %v4230
    %v4232 = vpop.f32.mrf.mxu0
    %v4233 = vpop.f32.mrf.mxu0
    %4234 = vdwg.mxu0
    %4235 = vmatprep.subr.bf16.mxu0 %v3275
    %4236 = vmatpush1.bf16.msra.mxu0 %v3274
    %4237 = vmatprep.subr.bf16.mxu0 %v3273
    %4238 = vmatpush1.bf16.msra.mxu0 %v3272
    %4239 = vmatprep.subr.bf16.mxu0 %v3271
    %4240 = vmatpush1.bf16.msra.mxu0 %v3270
    %4241 = vmatprep.subr.bf16.mxu0 %v3269
    %4242 = vmatpush1.bf16.msra.mxu0 %v3268
    %4243 = vmatprep.subr.bf16.mxu0 %v3267
    %4244 = vmatpush1.bf16.msra.mxu0 %v3266
    %4245 = vmatprep.subr.bf16.mxu0 %v3265
    %4246 = vmatpush1.bf16.msra.mxu0 %v3264
    %4247 = vmatprep.subr.bf16.mxu0 %v3263
    %4248 = vmatpush1.bf16.msra.mxu0 %v3262
    %4249 = vmatprep.subr.bf16.mxu0 %v3261
    %4250 = vmatpush1.bf16.msra.mxu0 %v3260
    %4251 = vmatprep.subr.bf16.mxu0 %v3291
    %4252 = vmatpush2.bf16.msra.mxu0 %v3290
    %4253 = vmatprep.subr.bf16.mxu0 %v3289
    %4254 = vmatpush2.bf16.msra.mxu0 %v3288
    %4255 = vmatprep.subr.bf16.mxu0 %v3287
    %4256 = vmatpush2.bf16.msra.mxu0 %v3286
    %4257 = vmatprep.subr.bf16.mxu0 %v3285
    %4258 = vmatpush2.bf16.msra.mxu0 %v3284
    %4259 = vmatprep.subr.bf16.mxu0 %v3283
    %4260 = vmatpush2.bf16.msra.mxu0 %v3282
    %4261 = vmatprep.subr.bf16.mxu0 %v3281
    %4262 = vmatpush2.bf16.msra.mxu0 %v3280
    %4263 = vmatprep.subr.bf16.mxu0 %v3279
    %4264 = vmatpush2.bf16.msra.mxu0 %v3278
    %4265 = vmatprep.subr.bf16.mxu0 %v3277
    %4266 = vmatpush2.bf16.msra.mxu0 %v3276
    %4267 = vmatprep.mubr.bf16.mxu0 %v2110
    %4268 = vmatmul.mubr.bf16.gmra.mxu0 %v2109
    %v4269 = vpop.f32.mrf.mxu0
    %v4270 = vadd.f32 %v4229, %v4269
    %v4271 = vpop.f32.mrf.mxu0
    %v4272 = vadd.f32 %v4231, %v4271
    %v4273 = vpop.f32.mrf.mxu0
    %v4274 = vpop.f32.mrf.mxu0
    %4275 = vdwg.mxu0
    %v4276 = vmax.f32 %v4151, %v4270
    %v4277 = vmax.f32 %v4152, %v4272
    %v4278 = vadd.f32 %v4276, %v3767
    %v4279 = vadd.f32 %v4277, %v3771
    %v4280 = vmax.f32 %v4278, 0.0
    %v4281 = vmax.f32 %v4279, 0.0
    %v4282 = vpack.c.bf16 %v4280, %v4280
    %v4283 = vpack.c.bf16 %v4281, %v4281
    %v4285 = vshrl.u32 %v4282, 16
    %v4287 = vrot.slane %v4285, 7
    %v4288 = vshll.u32 %v4282, 16
    %v4290 = vor.u32 %v4287, %v4288
    %v4292 = vshrl.u32 %v4283, 16
    %v4294 = vrot.slane %v4292, 7
    %v4295 = vshll.u32 %v4283, 16
    %v4297 = vor.u32 %v4294, %v4295
    %v4300 = vsel %vm2057, 0, %v4290
    %v4301 = vsel %vm2057, 0, %v4297
    %v4302 = vsel %vm2079, 0, %v4300
    %v4303 = vsel %vm2079, 0, %v4301
    %v4305 = vshrl.u32 %v3778, 16
    %v4307 = vshll.u32 %v3778, 16
    %v4309 = vrot.slane %v4307, 1
    %v4310 = vor.u32 %v4305, %v4309
    %v4312 = vshrl.u32 %v3779, 16
    %v4314 = vshll.u32 %v3779, 16
    %v4316 = vrot.slane %v4314, 1
    %v4317 = vor.u32 %v4312, %v4316
    %v4320 = vsel %vm2100, %v4310, 0
    %v4321 = vsel %vm2100, %v4317, 0
    %v4322 = vsel %vm2108, 0, %v4320
    %v4323 = vsel %vm2108, 0, %v4321
    %v4324 = vld [vmem:[#allocation7] sm:$0x3]
    %v4325 = vld [vmem:[%s5] sm:$0xff]
    %v4326 = vld [vmem:[%s5 + $0x8] sm:$0xff]
    %v4327 = vld [vmem:[%s5 + $0x10] sm:$0xff]
    %v4328 = vld [vmem:[%s5 + $0x18] sm:$0xff]
    %v4329 = vld [vmem:[%s5 + $0x20] sm:$0xff]
    %v4330 = vld [vmem:[%s5 + $0x28] sm:$0xff]
    %v4331 = vld [vmem:[%s5 + $0x30] sm:$0xff]
    %v4332 = vld [vmem:[%s5 + $0x38] sm:$0xff]
    %v4333 = vld [vmem:[%s5 + $0x40] sm:$0xff]
    %v4334 = vld [vmem:[%s5 + $0x48] sm:$0xff]
    %v4335 = vld [vmem:[%s5 + $0x50] sm:$0xff]
    %v4336 = vld [vmem:[%s5 + $0x58] sm:$0xff]
    %v4337 = vld [vmem:[%s5 + $0x60] sm:$0xff]
    %v4338 = vld [vmem:[%s5 + $0x68] sm:$0xff]
    %v4339 = vld [vmem:[%s5 + $0x70] sm:$0xff]
    %v4340 = vld [vmem:[%s5 + $0x78] sm:$0xff]
    %v4341 = vld [vmem:[%s5 + $0x80] sm:$0xff]
    %v4342 = vld [vmem:[%s5 + $0x88] sm:$0xff]
    %v4343 = vld [vmem:[%s5 + $0x90] sm:$0xff]
    %v4344 = vld [vmem:[%s5 + $0x98] sm:$0xff]
    %v4345 = vld [vmem:[%s5 + $0xa0] sm:$0xff]
    %v4346 = vld [vmem:[%s5 + $0xa8] sm:$0xff]
    %v4347 = vld [vmem:[%s5 + $0xb0] sm:$0xff]
    %v4348 = vld [vmem:[%s5 + $0xb8] sm:$0xff]
    %v4349 = vld [vmem:[%s5 + $0xc0] sm:$0xff]
    %v4350 = vld [vmem:[%s5 + $0xc8] sm:$0xff]
    %v4351 = vld [vmem:[%s5 + $0xd0] sm:$0xff]
    %v4352 = vld [vmem:[%s5 + $0xd8] sm:$0xff]
    %v4353 = vld [vmem:[%s5 + $0xe0] sm:$0xff]
    %v4354 = vld [vmem:[%s5 + $0xe8] sm:$0xff]
    %v4355 = vld [vmem:[%s5 + $0xf0] sm:$0xff]
    %v4356 = vld [vmem:[%s5 + $0xf8] sm:$0xff]
    %v4357 = vld [vmem:[%s5 + $0x100] sm:$0xff]
    %v4358 = vld [vmem:[%s5 + $0x108] sm:$0xff]
    %v4359 = vld [vmem:[%s5 + $0x110] sm:$0xff]
    %v4360 = vld [vmem:[%s5 + $0x118] sm:$0xff]
    %v4361 = vld [vmem:[%s5 + $0x120] sm:$0xff]
    %v4362 = vld [vmem:[%s5 + $0x128] sm:$0xff]
    %v4363 = vld [vmem:[%s5 + $0x130] sm:$0xff]
    %v4364 = vld [vmem:[%s5 + $0x138] sm:$0xff]
    %v4365 = vld [vmem:[%s5 + $0x140] sm:$0xff]
    %v4366 = vld [vmem:[%s5 + $0x148] sm:$0xff]
    %v4367 = vld [vmem:[%s5 + $0x150] sm:$0xff]
    %v4368 = vld [vmem:[%s5 + $0x158] sm:$0xff]
    %v4369 = vld [vmem:[%s5 + $0x160] sm:$0xff]
    %v4370 = vld [vmem:[%s5 + $0x168] sm:$0xff]
    %v4371 = vld [vmem:[%s5 + $0x170] sm:$0xff]
    %v4372 = vld [vmem:[%s5 + $0x178] sm:$0xff]
    %v4373 = vld [vmem:[%s5 + $0x180] sm:$0xff]
    %v4374 = vld [vmem:[%s5 + $0x188] sm:$0xff]
    %v4375 = vld [vmem:[%s5 + $0x190] sm:$0xff]
    %v4376 = vld [vmem:[%s5 + $0x198] sm:$0xff]
    %v4377 = vld [vmem:[%s5 + $0x1a0] sm:$0xff]
    %v4378 = vld [vmem:[%s5 + $0x1a8] sm:$0xff]
    %v4379 = vld [vmem:[%s5 + $0x1b0] sm:$0xff]
    %v4380 = vld [vmem:[%s5 + $0x1b8] sm:$0xff]
    %v4381 = vld [vmem:[%s5 + $0x1c0] sm:$0xff]
    %v4382 = vld [vmem:[%s5 + $0x1c8] sm:$0xff]
    %v4383 = vld [vmem:[%s5 + $0x1d0] sm:$0xff]
    %v4384 = vld [vmem:[%s5 + $0x1d8] sm:$0xff]
    %v4385 = vld [vmem:[%s5 + $0x1e0] sm:$0xff]
    %v4386 = vld [vmem:[%s5 + $0x1e8] sm:$0xff]
    %v4387 = vld [vmem:[%s5 + $0x1f0] sm:$0xff]
    %v4388 = vld [vmem:[%s5 + $0x1f8] sm:$0xff]
    %v4389 = vld [vmem:[%s5 + $0x200] sm:$0xff]
    %v4390 = vld [vmem:[%s5 + $0x208] sm:$0xff]
    %v4391 = vld [vmem:[%s5 + $0x210] sm:$0xff]
    %v4392 = vld [vmem:[%s5 + $0x218] sm:$0xff]
    %v4393 = vld [vmem:[%s5 + $0x220] sm:$0xff]
    %v4394 = vld [vmem:[%s5 + $0x228] sm:$0xff]
    %v4395 = vld [vmem:[%s5 + $0x230] sm:$0xff]
    %v4396 = vld [vmem:[%s5 + $0x238] sm:$0xff]
    %v4397 = vld [vmem:[%s5 + $0x240] sm:$0xff]
    %v4398 = vld [vmem:[%s5 + $0x248] sm:$0xff]
    %v4399 = vld [vmem:[%s5 + $0x250] sm:$0xff]
    %v4400 = vld [vmem:[%s5 + $0x258] sm:$0xff]
    %v4401 = vld [vmem:[%s5 + $0x260] sm:$0xff]
    %v4402 = vld [vmem:[%s5 + $0x268] sm:$0xff]
    %v4403 = vld [vmem:[%s5 + $0x270] sm:$0xff]
    %v4404 = vld [vmem:[%s5 + $0x278] sm:$0xff]
    %v4405 = vld [vmem:[%s5 + $0x280] sm:$0xff]
    %v4406 = vld [vmem:[%s5 + $0x288] sm:$0xff]
    %v4407 = vld [vmem:[%s5 + $0x290] sm:$0xff]
    %v4408 = vld [vmem:[%s5 + $0x298] sm:$0xff]
    %v4409 = vld [vmem:[%s5 + $0x2a0] sm:$0xff]
    %v4410 = vld [vmem:[%s5 + $0x2a8] sm:$0xff]
    %v4411 = vld [vmem:[%s5 + $0x2b0] sm:$0xff]
    %v4412 = vld [vmem:[%s5 + $0x2b8] sm:$0xff]
    %v4413 = vld [vmem:[%s5 + $0x2c0] sm:$0xff]
    %v4414 = vld [vmem:[%s5 + $0x2c8] sm:$0xff]
    %v4415 = vld [vmem:[%s5 + $0x2d0] sm:$0xff]
    %v4416 = vld [vmem:[%s5 + $0x2d8] sm:$0xff]
    %v4417 = vld [vmem:[%s5 + $0x2e0] sm:$0xff]
    %v4418 = vld [vmem:[%s5 + $0x2e8] sm:$0xff]
    %v4419 = vld [vmem:[%s5 + $0x2f0] sm:$0xff]
    %v4420 = vld [vmem:[%s5 + $0x2f8] sm:$0xff]
    %v4517 = vunpack.c.l.b16 %v4325
    %v4518 = vunpack.c.h.b16 %v4325
    %v4519 = vunpack.c.l.b16 %v4326
    %v4520 = vunpack.c.h.b16 %v4326
    %v4521 = vunpack.c.l.b16 %v4327
    %v4522 = vunpack.c.h.b16 %v4327
    %v4523 = vunpack.c.l.b16 %v4328
    %v4524 = vunpack.c.h.b16 %v4328
    %v4525 = vunpack.c.l.b16 %v4329
    %v4526 = vunpack.c.h.b16 %v4329
    %v4527 = vunpack.c.l.b16 %v4330
    %v4528 = vunpack.c.h.b16 %v4330
    %v4529 = vunpack.c.l.b16 %v4331
    %v4530 = vunpack.c.h.b16 %v4331
    %v4531 = vunpack.c.l.b16 %v4332
    %v4532 = vunpack.c.h.b16 %v4332
    %v4533 = vunpack.c.l.b16 %v4333
    %v4534 = vunpack.c.h.b16 %v4333
    %v4535 = vunpack.c.l.b16 %v4334
    %v4536 = vunpack.c.h.b16 %v4334
    %v4537 = vunpack.c.l.b16 %v4335
    %v4538 = vunpack.c.h.b16 %v4335
    %v4539 = vunpack.c.l.b16 %v4336
    %v4540 = vunpack.c.h.b16 %v4336
    %v4541 = vunpack.c.l.b16 %v4337
    %v4542 = vunpack.c.h.b16 %v4337
    %v4543 = vunpack.c.l.b16 %v4338
    %v4544 = vunpack.c.h.b16 %v4338
    %v4545 = vunpack.c.l.b16 %v4339
    %v4546 = vunpack.c.h.b16 %v4339
    %v4547 = vunpack.c.l.b16 %v4340
    %v4548 = vunpack.c.h.b16 %v4340
    %v4549 = vunpack.c.l.b16 %v4341
    %v4550 = vunpack.c.h.b16 %v4341
    %v4551 = vunpack.c.l.b16 %v4342
    %v4552 = vunpack.c.h.b16 %v4342
    %v4553 = vunpack.c.l.b16 %v4343
    %v4554 = vunpack.c.h.b16 %v4343
    %v4555 = vunpack.c.l.b16 %v4344
    %v4556 = vunpack.c.h.b16 %v4344
    %v4557 = vunpack.c.l.b16 %v4345
    %v4558 = vunpack.c.h.b16 %v4345
    %v4559 = vunpack.c.l.b16 %v4346
    %v4560 = vunpack.c.h.b16 %v4346
    %v4561 = vunpack.c.l.b16 %v4347
    %v4562 = vunpack.c.h.b16 %v4347
    %v4563 = vunpack.c.l.b16 %v4348
    %v4564 = vunpack.c.h.b16 %v4348
    %v4565 = vunpack.c.l.b16 %v4349
    %v4566 = vunpack.c.h.b16 %v4349
    %v4567 = vunpack.c.l.b16 %v4350
    %v4568 = vunpack.c.h.b16 %v4350
    %v4569 = vunpack.c.l.b16 %v4351
    %v4570 = vunpack.c.h.b16 %v4351
    %v4571 = vunpack.c.l.b16 %v4352
    %v4572 = vunpack.c.h.b16 %v4352
    %v4573 = vunpack.c.l.b16 %v4353
    %v4574 = vunpack.c.h.b16 %v4353
    %v4575 = vunpack.c.l.b16 %v4354
    %v4576 = vunpack.c.h.b16 %v4354
    %v4577 = vunpack.c.l.b16 %v4355
    %v4578 = vunpack.c.h.b16 %v4355
    %v4579 = vunpack.c.l.b16 %v4356
    %v4580 = vunpack.c.h.b16 %v4356
    %v4581 = vunpack.c.l.b16 %v4357
    %v4582 = vunpack.c.h.b16 %v4357
    %v4583 = vunpack.c.l.b16 %v4358
    %v4584 = vunpack.c.h.b16 %v4358
    %v4585 = vunpack.c.l.b16 %v4359
    %v4586 = vunpack.c.h.b16 %v4359
    %v4587 = vunpack.c.l.b16 %v4360
    %v4588 = vunpack.c.h.b16 %v4360
    %v4589 = vunpack.c.l.b16 %v4361
    %v4590 = vunpack.c.h.b16 %v4361
    %v4591 = vunpack.c.l.b16 %v4362
    %v4592 = vunpack.c.h.b16 %v4362
    %v4593 = vunpack.c.l.b16 %v4363
    %v4594 = vunpack.c.h.b16 %v4363
    %v4595 = vunpack.c.l.b16 %v4364
    %v4596 = vunpack.c.h.b16 %v4364
    %v4597 = vunpack.c.l.b16 %v4365
    %v4598 = vunpack.c.h.b16 %v4365
    %v4599 = vunpack.c.l.b16 %v4366
    %v4600 = vunpack.c.h.b16 %v4366
    %v4601 = vunpack.c.l.b16 %v4367
    %v4602 = vunpack.c.h.b16 %v4367
    %v4603 = vunpack.c.l.b16 %v4368
    %v4604 = vunpack.c.h.b16 %v4368
    %v4605 = vunpack.c.l.b16 %v4369
    %v4606 = vunpack.c.h.b16 %v4369
    %v4607 = vunpack.c.l.b16 %v4370
    %v4608 = vunpack.c.h.b16 %v4370
    %v4609 = vunpack.c.l.b16 %v4371
    %v4610 = vunpack.c.h.b16 %v4371
    %v4611 = vunpack.c.l.b16 %v4372
    %v4612 = vunpack.c.h.b16 %v4372
    %v4613 = vunpack.c.l.b16 %v4373
    %v4614 = vunpack.c.h.b16 %v4373
    %v4615 = vunpack.c.l.b16 %v4374
    %v4616 = vunpack.c.h.b16 %v4374
    %v4617 = vunpack.c.l.b16 %v4375
    %v4618 = vunpack.c.h.b16 %v4375
    %v4619 = vunpack.c.l.b16 %v4376
    %v4620 = vunpack.c.h.b16 %v4376
    %v4621 = vunpack.c.l.b16 %v4377
    %v4622 = vunpack.c.h.b16 %v4377
    %v4623 = vunpack.c.l.b16 %v4378
    %v4624 = vunpack.c.h.b16 %v4378
    %v4625 = vunpack.c.l.b16 %v4379
    %v4626 = vunpack.c.h.b16 %v4379
    %v4627 = vunpack.c.l.b16 %v4380
    %v4628 = vunpack.c.h.b16 %v4380
    %v4629 = vunpack.c.l.b16 %v4381
    %v4630 = vunpack.c.h.b16 %v4381
    %v4631 = vunpack.c.l.b16 %v4382
    %v4632 = vunpack.c.h.b16 %v4382
    %v4633 = vunpack.c.l.b16 %v4383
    %v4634 = vunpack.c.h.b16 %v4383
    %v4635 = vunpack.c.l.b16 %v4384
    %v4636 = vunpack.c.h.b16 %v4384
    %v4637 = vunpack.c.l.b16 %v4385
    %v4638 = vunpack.c.h.b16 %v4385
    %v4639 = vunpack.c.l.b16 %v4386
    %v4640 = vunpack.c.h.b16 %v4386
    %v4641 = vunpack.c.l.b16 %v4387
    %v4642 = vunpack.c.h.b16 %v4387
    %v4643 = vunpack.c.l.b16 %v4388
    %v4644 = vunpack.c.h.b16 %v4388
    %v4645 = vunpack.c.l.b16 %v4389
    %v4646 = vunpack.c.h.b16 %v4389
    %v4647 = vunpack.c.l.b16 %v4390
    %v4648 = vunpack.c.h.b16 %v4390
    %v4649 = vunpack.c.l.b16 %v4391
    %v4650 = vunpack.c.h.b16 %v4391
    %v4651 = vunpack.c.l.b16 %v4392
    %v4652 = vunpack.c.h.b16 %v4392
    %v4653 = vunpack.c.l.b16 %v4393
    %v4654 = vunpack.c.h.b16 %v4393
    %v4655 = vunpack.c.l.b16 %v4394
    %v4656 = vunpack.c.h.b16 %v4394
    %v4657 = vunpack.c.l.b16 %v4395
    %v4658 = vunpack.c.h.b16 %v4395
    %v4659 = vunpack.c.l.b16 %v4396
    %v4660 = vunpack.c.h.b16 %v4396
    %v4661 = vunpack.c.l.b16 %v4397
    %v4662 = vunpack.c.h.b16 %v4397
    %v4663 = vunpack.c.l.b16 %v4398
    %v4664 = vunpack.c.h.b16 %v4398
    %v4665 = vunpack.c.l.b16 %v4399
    %v4666 = vunpack.c.h.b16 %v4399
    %v4667 = vunpack.c.l.b16 %v4400
    %v4668 = vunpack.c.h.b16 %v4400
    %v4669 = vunpack.c.l.b16 %v4401
    %v4670 = vunpack.c.h.b16 %v4401
    %v4671 = vunpack.c.l.b16 %v4402
    %v4672 = vunpack.c.h.b16 %v4402
    %v4673 = vunpack.c.l.b16 %v4403
    %v4674 = vunpack.c.h.b16 %v4403
    %v4675 = vunpack.c.l.b16 %v4404
    %v4676 = vunpack.c.h.b16 %v4404
    %v4677 = vunpack.c.l.b16 %v4405
    %v4678 = vunpack.c.h.b16 %v4405
    %v4679 = vunpack.c.l.b16 %v4406
    %v4680 = vunpack.c.h.b16 %v4406
    %v4681 = vunpack.c.l.b16 %v4407
    %v4682 = vunpack.c.h.b16 %v4407
    %v4683 = vunpack.c.l.b16 %v4408
    %v4684 = vunpack.c.h.b16 %v4408
    %v4685 = vunpack.c.l.b16 %v4409
    %v4686 = vunpack.c.h.b16 %v4409
    %v4687 = vunpack.c.l.b16 %v4410
    %v4688 = vunpack.c.h.b16 %v4410
    %v4689 = vunpack.c.l.b16 %v4411
    %v4690 = vunpack.c.h.b16 %v4411
    %v4691 = vunpack.c.l.b16 %v4412
    %v4692 = vunpack.c.h.b16 %v4412
    %v4693 = vunpack.c.l.b16 %v4413
    %v4694 = vunpack.c.h.b16 %v4413
    %v4695 = vunpack.c.l.b16 %v4414
    %v4696 = vunpack.c.h.b16 %v4414
    %v4697 = vunpack.c.l.b16 %v4415
    %v4698 = vunpack.c.h.b16 %v4415
    %v4699 = vunpack.c.l.b16 %v4416
    %v4700 = vunpack.c.h.b16 %v4416
    %v4701 = vunpack.c.l.b16 %v4417
    %v4702 = vunpack.c.h.b16 %v4417
    %v4703 = vunpack.c.l.b16 %v4418
    %v4704 = vunpack.c.h.b16 %v4418
    %v4705 = vunpack.c.l.b16 %v4419
    %v4706 = vunpack.c.h.b16 %v4419
    %v4707 = vunpack.c.l.b16 %v4420
    %v4708 = vunpack.c.h.b16 %v4420
    %v4709 = vpack.c.b16 %v4519, %v4517
    %v4710 = vpack.c.b16 %v4520, %v4518
    %v4711 = vpack.c.b16 %v4523, %v4521
    %v4712 = vpack.c.b16 %v4524, %v4522
    %v4713 = vpack.c.b16 %v4527, %v4525
    %v4714 = vpack.c.b16 %v4528, %v4526
    %v4715 = vpack.c.b16 %v4531, %v4529
    %v4716 = vpack.c.b16 %v4532, %v4530
    %v4717 = vpack.c.b16 %v4535, %v4533
    %v4718 = vpack.c.b16 %v4536, %v4534
    %v4719 = vpack.c.b16 %v4539, %v4537
    %v4720 = vpack.c.b16 %v4540, %v4538
    %v4721 = vpack.c.b16 %v4543, %v4541
    %v4722 = vpack.c.b16 %v4544, %v4542
    %v4723 = vpack.c.b16 %v4547, %v4545
    %v4724 = vpack.c.b16 %v4548, %v4546
    %v4725 = vpack.c.b16 %v4551, %v4549
    %v4726 = vpack.c.b16 %v4552, %v4550
    %v4727 = vpack.c.b16 %v4555, %v4553
    %v4728 = vpack.c.b16 %v4556, %v4554
    %v4729 = vpack.c.b16 %v4559, %v4557
    %v4730 = vpack.c.b16 %v4560, %v4558
    %v4731 = vpack.c.b16 %v4563, %v4561
    %v4732 = vpack.c.b16 %v4564, %v4562
    %v4733 = vpack.c.b16 %v4567, %v4565
    %v4734 = vpack.c.b16 %v4568, %v4566
    %v4735 = vpack.c.b16 %v4571, %v4569
    %v4736 = vpack.c.b16 %v4572, %v4570
    %v4737 = vpack.c.b16 %v4575, %v4573
    %v4738 = vpack.c.b16 %v4576, %v4574
    %v4739 = vpack.c.b16 %v4579, %v4577
    %v4740 = vpack.c.b16 %v4580, %v4578
    %v4741 = vpack.c.b16 %v4583, %v4581
    %v4742 = vpack.c.b16 %v4584, %v4582
    %v4743 = vpack.c.b16 %v4587, %v4585
    %v4744 = vpack.c.b16 %v4588, %v4586
    %v4745 = vpack.c.b16 %v4591, %v4589
    %v4746 = vpack.c.b16 %v4592, %v4590
    %v4747 = vpack.c.b16 %v4595, %v4593
    %v4748 = vpack.c.b16 %v4596, %v4594
    %v4749 = vpack.c.b16 %v4599, %v4597
    %v4750 = vpack.c.b16 %v4600, %v4598
    %v4751 = vpack.c.b16 %v4603, %v4601
    %v4752 = vpack.c.b16 %v4604, %v4602
    %v4753 = vpack.c.b16 %v4607, %v4605
    %v4754 = vpack.c.b16 %v4608, %v4606
    %v4755 = vpack.c.b16 %v4611, %v4609
    %v4756 = vpack.c.b16 %v4612, %v4610
    %v4757 = vpack.c.b16 %v4615, %v4613
    %v4758 = vpack.c.b16 %v4616, %v4614
    %v4759 = vpack.c.b16 %v4619, %v4617
    %v4760 = vpack.c.b16 %v4620, %v4618
    %v4761 = vpack.c.b16 %v4623, %v4621
    %v4762 = vpack.c.b16 %v4624, %v4622
    %v4763 = vpack.c.b16 %v4627, %v4625
    %v4764 = vpack.c.b16 %v4628, %v4626
    %v4765 = vpack.c.b16 %v4631, %v4629
    %v4766 = vpack.c.b16 %v4632, %v4630
    %v4767 = vpack.c.b16 %v4635, %v4633
    %v4768 = vpack.c.b16 %v4636, %v4634
    %v4769 = vpack.c.b16 %v4639, %v4637
    %v4770 = vpack.c.b16 %v4640, %v4638
    %v4771 = vpack.c.b16 %v4643, %v4641
    %v4772 = vpack.c.b16 %v4644, %v4642
    %v4773 = vpack.c.b16 %v4647, %v4645
    %v4774 = vpack.c.b16 %v4648, %v4646
    %v4775 = vpack.c.b16 %v4651, %v4649
    %v4776 = vpack.c.b16 %v4652, %v4650
    %v4777 = vpack.c.b16 %v4655, %v4653
    %v4778 = vpack.c.b16 %v4656, %v4654
    %v4779 = vpack.c.b16 %v4659, %v4657
    %v4780 = vpack.c.b16 %v4660, %v4658
    %v4781 = vpack.c.b16 %v4663, %v4661
    %v4782 = vpack.c.b16 %v4664, %v4662
    %v4783 = vpack.c.b16 %v4667, %v4665
    %v4784 = vpack.c.b16 %v4668, %v4666
    %v4785 = vpack.c.b16 %v4671, %v4669
    %v4786 = vpack.c.b16 %v4672, %v4670
    %v4787 = vpack.c.b16 %v4675, %v4673
    %v4788 = vpack.c.b16 %v4676, %v4674
    %v4789 = vpack.c.b16 %v4679, %v4677
    %v4790 = vpack.c.b16 %v4680, %v4678
    %v4791 = vpack.c.b16 %v4683, %v4681
    %v4792 = vpack.c.b16 %v4684, %v4682
    %v4793 = vpack.c.b16 %v4687, %v4685
    %v4794 = vpack.c.b16 %v4688, %v4686
    %v4795 = vpack.c.b16 %v4691, %v4689
    %v4796 = vpack.c.b16 %v4692, %v4690
    %v4797 = vpack.c.b16 %v4695, %v4693
    %v4798 = vpack.c.b16 %v4696, %v4694
    %v4799 = vpack.c.b16 %v4699, %v4697
    %v4800 = vpack.c.b16 %v4700, %v4698
    %v4801 = vpack.c.b16 %v4703, %v4701
    %v4802 = vpack.c.b16 %v4704, %v4702
    %v4803 = vpack.c.b16 %v4707, %v4705
    %v4804 = vpack.c.b16 %v4708, %v4706
    %4901 = vmatprep.subr.bf16.mxu0 %v4724
    %4902 = vmatpush1.bf16.msra.mxu0 %v4723
    %4903 = vmatprep.subr.bf16.mxu0 %v4722
    %4904 = vmatpush1.bf16.msra.mxu0 %v4721
    %4905 = vmatprep.subr.bf16.mxu0 %v4720
    %4906 = vmatpush1.bf16.msra.mxu0 %v4719
    %4907 = vmatprep.subr.bf16.mxu0 %v4718
    %4908 = vmatpush1.bf16.msra.mxu0 %v4717
    %4909 = vmatprep.subr.bf16.mxu0 %v4716
    %4910 = vmatpush1.bf16.msra.mxu0 %v4715
    %4911 = vmatprep.subr.bf16.mxu0 %v4714
    %4912 = vmatpush1.bf16.msra.mxu0 %v4713
    %4913 = vmatprep.subr.bf16.mxu0 %v4712
    %4914 = vmatpush1.bf16.msra.mxu0 %v4711
    %4915 = vmatprep.subr.bf16.mxu0 %v4710
    %4916 = vmatpush1.bf16.msra.mxu0 %v4709
    %4917 = vmatprep.subr.bf16.mxu0 %v4740
    %4918 = vmatpush2.bf16.msra.mxu0 %v4739
    %4919 = vmatprep.subr.bf16.mxu0 %v4738
    %4920 = vmatpush2.bf16.msra.mxu0 %v4737
    %4921 = vmatprep.subr.bf16.mxu0 %v4736
    %4922 = vmatpush2.bf16.msra.mxu0 %v4735
    %4923 = vmatprep.subr.bf16.mxu0 %v4734
    %4924 = vmatpush2.bf16.msra.mxu0 %v4733
    %4925 = vmatprep.subr.bf16.mxu0 %v4732
    %4926 = vmatpush2.bf16.msra.mxu0 %v4731
    %4927 = vmatprep.subr.bf16.mxu0 %v4730
    %4928 = vmatpush2.bf16.msra.mxu0 %v4729
    %4929 = vmatprep.subr.bf16.mxu0 %v4728
    %4930 = vmatpush2.bf16.msra.mxu0 %v4727
    %4931 = vmatprep.subr.bf16.mxu0 %v4726
    %4932 = vmatpush2.bf16.msra.mxu0 %v4725
    %4933 = vmatprep.mubr.bf16.mxu0 %v4303
    %4934 = vmatmul.mubr.bf16.gmra.mxu0 %v4302
    %v4935 = vpop.f32.mrf.mxu0
    %v4936 = vadd.f32 0.0, %v4935
    %v4937 = vpop.f32.mrf.mxu0
    %v4938 = vadd.f32 0.0, %v4937
    %v4939 = vpop.f32.mrf.mxu0
    %v4940 = vpop.f32.mrf.mxu0
    %4941 = vdwg.mxu0
    %4942 = vmatprep.subr.bf16.mxu0 %v4756
    %4943 = vmatpush1.bf16.msra.mxu0 %v4755
    %4944 = vmatprep.subr.bf16.mxu0 %v4754
    %4945 = vmatpush1.bf16.msra.mxu0 %v4753
    %4946 = vmatprep.subr.bf16.mxu0 %v4752
    %4947 = vmatpush1.bf16.msra.mxu0 %v4751
    %4948 = vmatprep.subr.bf16.mxu0 %v4750
    %4949 = vmatpush1.bf16.msra.mxu0 %v4749
    %4950 = vmatprep.subr.bf16.mxu0 %v4748
    %4951 = vmatpush1.bf16.msra.mxu0 %v4747
    %4952 = vmatprep.subr.bf16.mxu0 %v4746
    %4953 = vmatpush1.bf16.msra.mxu0 %v4745
    %4954 = vmatprep.subr.bf16.mxu0 %v4744
    %4955 = vmatpush1.bf16.msra.mxu0 %v4743
    %4956 = vmatprep.subr.bf16.mxu0 %v4742
    %4957 = vmatpush1.bf16.msra.mxu0 %v4741
    %4958 = vmatprep.subr.bf16.mxu0 %v4772
    %4959 = vmatpush2.bf16.msra.mxu0 %v4771
    %4960 = vmatprep.subr.bf16.mxu0 %v4770
    %4961 = vmatpush2.bf16.msra.mxu0 %v4769
    %4962 = vmatprep.subr.bf16.mxu0 %v4768
    %4963 = vmatpush2.bf16.msra.mxu0 %v4767
    %4964 = vmatprep.subr.bf16.mxu0 %v4766
    %4965 = vmatpush2.bf16.msra.mxu0 %v4765
    %4966 = vmatprep.subr.bf16.mxu0 %v4764
    %4967 = vmatpush2.bf16.msra.mxu0 %v4763
    %4968 = vmatprep.subr.bf16.mxu0 %v4762
    %4969 = vmatpush2.bf16.msra.mxu0 %v4761
    %4970 = vmatprep.subr.bf16.mxu0 %v4760
    %4971 = vmatpush2.bf16.msra.mxu0 %v4759
    %4972 = vmatprep.subr.bf16.mxu0 %v4758
    %4973 = vmatpush2.bf16.msra.mxu0 %v4757
    %4974 = vmatprep.mubr.bf16.mxu0 %v3779
    %4975 = vmatmul.mubr.bf16.gmra.mxu0 %v3778
    %v4976 = vpop.f32.mrf.mxu0
    %v4977 = vadd.f32 %v4936, %v4976
    %v4978 = vpop.f32.mrf.mxu0
    %v4979 = vadd.f32 %v4938, %v4978
    %v4980 = vpop.f32.mrf.mxu0
    %v4981 = vpop.f32.mrf.mxu0
    %4982 = vdwg.mxu0
    %4983 = vmatprep.subr.bf16.mxu0 %v4788
    %4984 = vmatpush1.bf16.msra.mxu0 %v4787
    %4985 = vmatprep.subr.bf16.mxu0 %v4786
    %4986 = vmatpush1.bf16.msra.mxu0 %v4785
    %4987 = vmatprep.subr.bf16.mxu0 %v4784
    %4988 = vmatpush1.bf16.msra.mxu0 %v4783
    %4989 = vmatprep.subr.bf16.mxu0 %v4782
    %4990 = vmatpush1.bf16.msra.mxu0 %v4781
    %4991 = vmatprep.subr.bf16.mxu0 %v4780
    %4992 = vmatpush1.bf16.msra.mxu0 %v4779
    %4993 = vmatprep.subr.bf16.mxu0 %v4778
    %4994 = vmatpush1.bf16.msra.mxu0 %v4777
    %4995 = vmatprep.subr.bf16.mxu0 %v4776
    %4996 = vmatpush1.bf16.msra.mxu0 %v4775
    %4997 = vmatprep.subr.bf16.mxu0 %v4774
    %4998 = vmatpush1.bf16.msra.mxu0 %v4773
    %4999 = vmatprep.subr.bf16.mxu0 %v4804
    %5000 = vmatpush2.bf16.msra.mxu0 %v4803
    %5001 = vmatprep.subr.bf16.mxu0 %v4802
    %5002 = vmatpush2.bf16.msra.mxu0 %v4801
    %5003 = vmatprep.subr.bf16.mxu0 %v4800
    %5004 = vmatpush2.bf16.msra.mxu0 %v4799
    %5005 = vmatprep.subr.bf16.mxu0 %v4798
    %5006 = vmatpush2.bf16.msra.mxu0 %v4797
    %5007 = vmatprep.subr.bf16.mxu0 %v4796
    %5008 = vmatpush2.bf16.msra.mxu0 %v4795
    %5009 = vmatprep.subr.bf16.mxu0 %v4794
    %5010 = vmatpush2.bf16.msra.mxu0 %v4793
    %5011 = vmatprep.subr.bf16.mxu0 %v4792
    %5012 = vmatpush2.bf16.msra.mxu0 %v4791
    %5013 = vmatprep.subr.bf16.mxu0 %v4790
    %5014 = vmatpush2.bf16.msra.mxu0 %v4789
    %5015 = vmatprep.mubr.bf16.mxu0 %v4283
    %5016 = vmatmul.mubr.bf16.gmra.mxu0 %v4282
    %v5017 = vpop.f32.mrf.mxu0
    %v5018 = vadd.f32 %v4977, %v5017
    %v5019 = vpop.f32.mrf.mxu0
    %v5020 = vadd.f32 %v4979, %v5019
    %v5021 = vpop.f32.mrf.mxu0
    %v5022 = vpop.f32.mrf.mxu0
    %5023 = vdwg.mxu0
    %s5024 = scalar_lea.vmem %s5, 768
    %v5025 = vld [vmem:[%s5024] sm:$0xff]
    %v5026 = vld [vmem:[%s5024 + $0x8] sm:$0xff]
    %v5027 = vld [vmem:[%s5024 + $0x10] sm:$0xff]
    %v5028 = vld [vmem:[%s5024 + $0x18] sm:$0xff]
    %v5029 = vld [vmem:[%s5024 + $0x20] sm:$0xff]
    %v5030 = vld [vmem:[%s5024 + $0x28] sm:$0xff]
    %v5031 = vld [vmem:[%s5024 + $0x30] sm:$0xff]
    %v5032 = vld [vmem:[%s5024 + $0x38] sm:$0xff]
    %v5033 = vld [vmem:[%s5024 + $0x40] sm:$0xff]
    %v5034 = vld [vmem:[%s5024 + $0x48] sm:$0xff]
    %v5035 = vld [vmem:[%s5024 + $0x50] sm:$0xff]
    %v5036 = vld [vmem:[%s5024 + $0x58] sm:$0xff]
    %v5037 = vld [vmem:[%s5024 + $0x60] sm:$0xff]
    %v5038 = vld [vmem:[%s5024 + $0x68] sm:$0xff]
    %v5039 = vld [vmem:[%s5024 + $0x70] sm:$0xff]
    %v5040 = vld [vmem:[%s5024 + $0x78] sm:$0xff]
    %v5041 = vld [vmem:[%s5024 + $0x80] sm:$0xff]
    %v5042 = vld [vmem:[%s5024 + $0x88] sm:$0xff]
    %v5043 = vld [vmem:[%s5024 + $0x90] sm:$0xff]
    %v5044 = vld [vmem:[%s5024 + $0x98] sm:$0xff]
    %v5045 = vld [vmem:[%s5024 + $0xa0] sm:$0xff]
    %v5046 = vld [vmem:[%s5024 + $0xa8] sm:$0xff]
    %v5047 = vld [vmem:[%s5024 + $0xb0] sm:$0xff]
    %v5048 = vld [vmem:[%s5024 + $0xb8] sm:$0xff]
    %v5049 = vld [vmem:[%s5024 + $0xc0] sm:$0xff]
    %v5050 = vld [vmem:[%s5024 + $0xc8] sm:$0xff]
    %v5051 = vld [vmem:[%s5024 + $0xd0] sm:$0xff]
    %v5052 = vld [vmem:[%s5024 + $0xd8] sm:$0xff]
    %v5053 = vld [vmem:[%s5024 + $0xe0] sm:$0xff]
    %v5054 = vld [vmem:[%s5024 + $0xe8] sm:$0xff]
    %v5055 = vld [vmem:[%s5024 + $0xf0] sm:$0xff]
    %v5056 = vld [vmem:[%s5024 + $0xf8] sm:$0xff]
    %v5057 = vld [vmem:[%s5024 + $0x100] sm:$0xff]
    %v5058 = vld [vmem:[%s5024 + $0x108] sm:$0xff]
    %v5059 = vld [vmem:[%s5024 + $0x110] sm:$0xff]
    %v5060 = vld [vmem:[%s5024 + $0x118] sm:$0xff]
    %v5061 = vld [vmem:[%s5024 + $0x120] sm:$0xff]
    %v5062 = vld [vmem:[%s5024 + $0x128] sm:$0xff]
    %v5063 = vld [vmem:[%s5024 + $0x130] sm:$0xff]
    %v5064 = vld [vmem:[%s5024 + $0x138] sm:$0xff]
    %v5065 = vld [vmem:[%s5024 + $0x140] sm:$0xff]
    %v5066 = vld [vmem:[%s5024 + $0x148] sm:$0xff]
    %v5067 = vld [vmem:[%s5024 + $0x150] sm:$0xff]
    %v5068 = vld [vmem:[%s5024 + $0x158] sm:$0xff]
    %v5069 = vld [vmem:[%s5024 + $0x160] sm:$0xff]
    %v5070 = vld [vmem:[%s5024 + $0x168] sm:$0xff]
    %v5071 = vld [vmem:[%s5024 + $0x170] sm:$0xff]
    %v5072 = vld [vmem:[%s5024 + $0x178] sm:$0xff]
    %v5073 = vld [vmem:[%s5024 + $0x180] sm:$0xff]
    %v5074 = vld [vmem:[%s5024 + $0x188] sm:$0xff]
    %v5075 = vld [vmem:[%s5024 + $0x190] sm:$0xff]
    %v5076 = vld [vmem:[%s5024 + $0x198] sm:$0xff]
    %v5077 = vld [vmem:[%s5024 + $0x1a0] sm:$0xff]
    %v5078 = vld [vmem:[%s5024 + $0x1a8] sm:$0xff]
    %v5079 = vld [vmem:[%s5024 + $0x1b0] sm:$0xff]
    %v5080 = vld [vmem:[%s5024 + $0x1b8] sm:$0xff]
    %v5081 = vld [vmem:[%s5024 + $0x1c0] sm:$0xff]
    %v5082 = vld [vmem:[%s5024 + $0x1c8] sm:$0xff]
    %v5083 = vld [vmem:[%s5024 + $0x1d0] sm:$0xff]
    %v5084 = vld [vmem:[%s5024 + $0x1d8] sm:$0xff]
    %v5085 = vld [vmem:[%s5024 + $0x1e0] sm:$0xff]
    %v5086 = vld [vmem:[%s5024 + $0x1e8] sm:$0xff]
    %v5087 = vld [vmem:[%s5024 + $0x1f0] sm:$0xff]
    %v5088 = vld [vmem:[%s5024 + $0x1f8] sm:$0xff]
    %v5089 = vld [vmem:[%s5024 + $0x200] sm:$0xff]
    %v5090 = vld [vmem:[%s5024 + $0x208] sm:$0xff]
    %v5091 = vld [vmem:[%s5024 + $0x210] sm:$0xff]
    %v5092 = vld [vmem:[%s5024 + $0x218] sm:$0xff]
    %v5093 = vld [vmem:[%s5024 + $0x220] sm:$0xff]
    %v5094 = vld [vmem:[%s5024 + $0x228] sm:$0xff]
    %v5095 = vld [vmem:[%s5024 + $0x230] sm:$0xff]
    %v5096 = vld [vmem:[%s5024 + $0x238] sm:$0xff]
    %v5097 = vld [vmem:[%s5024 + $0x240] sm:$0xff]
    %v5098 = vld [vmem:[%s5024 + $0x248] sm:$0xff]
    %v5099 = vld [vmem:[%s5024 + $0x250] sm:$0xff]
    %v5100 = vld [vmem:[%s5024 + $0x258] sm:$0xff]
    %v5101 = vld [vmem:[%s5024 + $0x260] sm:$0xff]
    %v5102 = vld [vmem:[%s5024 + $0x268] sm:$0xff]
    %v5103 = vld [vmem:[%s5024 + $0x270] sm:$0xff]
    %v5104 = vld [vmem:[%s5024 + $0x278] sm:$0xff]
    %v5105 = vld [vmem:[%s5024 + $0x280] sm:$0xff]
    %v5106 = vld [vmem:[%s5024 + $0x288] sm:$0xff]
    %v5107 = vld [vmem:[%s5024 + $0x290] sm:$0xff]
    %v5108 = vld [vmem:[%s5024 + $0x298] sm:$0xff]
    %v5109 = vld [vmem:[%s5024 + $0x2a0] sm:$0xff]
    %v5110 = vld [vmem:[%s5024 + $0x2a8] sm:$0xff]
    %v5111 = vld [vmem:[%s5024 + $0x2b0] sm:$0xff]
    %v5112 = vld [vmem:[%s5024 + $0x2b8] sm:$0xff]
    %v5113 = vld [vmem:[%s5024 + $0x2c0] sm:$0xff]
    %v5114 = vld [vmem:[%s5024 + $0x2c8] sm:$0xff]
    %v5115 = vld [vmem:[%s5024 + $0x2d0] sm:$0xff]
    %v5116 = vld [vmem:[%s5024 + $0x2d8] sm:$0xff]
    %v5117 = vld [vmem:[%s5024 + $0x2e0] sm:$0xff]
    %v5118 = vld [vmem:[%s5024 + $0x2e8] sm:$0xff]
    %v5119 = vld [vmem:[%s5024 + $0x2f0] sm:$0xff]
    %v5120 = vld [vmem:[%s5024 + $0x2f8] sm:$0xff]
    %v5217 = vunpack.c.l.b16 %v5025
    %v5218 = vunpack.c.h.b16 %v5025
    %v5219 = vunpack.c.l.b16 %v5026
    %v5220 = vunpack.c.h.b16 %v5026
    %v5221 = vunpack.c.l.b16 %v5027
    %v5222 = vunpack.c.h.b16 %v5027
    %v5223 = vunpack.c.l.b16 %v5028
    %v5224 = vunpack.c.h.b16 %v5028
    %v5225 = vunpack.c.l.b16 %v5029
    %v5226 = vunpack.c.h.b16 %v5029
    %v5227 = vunpack.c.l.b16 %v5030
    %v5228 = vunpack.c.h.b16 %v5030
    %v5229 = vunpack.c.l.b16 %v5031
    %v5230 = vunpack.c.h.b16 %v5031
    %v5231 = vunpack.c.l.b16 %v5032
    %v5232 = vunpack.c.h.b16 %v5032
    %v5233 = vunpack.c.l.b16 %v5033
    %v5234 = vunpack.c.h.b16 %v5033
    %v5235 = vunpack.c.l.b16 %v5034
    %v5236 = vunpack.c.h.b16 %v5034
    %v5237 = vunpack.c.l.b16 %v5035
    %v5238 = vunpack.c.h.b16 %v5035
    %v5239 = vunpack.c.l.b16 %v5036
    %v5240 = vunpack.c.h.b16 %v5036
    %v5241 = vunpack.c.l.b16 %v5037
    %v5242 = vunpack.c.h.b16 %v5037
    %v5243 = vunpack.c.l.b16 %v5038
    %v5244 = vunpack.c.h.b16 %v5038
    %v5245 = vunpack.c.l.b16 %v5039
    %v5246 = vunpack.c.h.b16 %v5039
    %v5247 = vunpack.c.l.b16 %v5040
    %v5248 = vunpack.c.h.b16 %v5040
    %v5249 = vunpack.c.l.b16 %v5041
    %v5250 = vunpack.c.h.b16 %v5041
    %v5251 = vunpack.c.l.b16 %v5042
    %v5252 = vunpack.c.h.b16 %v5042
    %v5253 = vunpack.c.l.b16 %v5043
    %v5254 = vunpack.c.h.b16 %v5043
    %v5255 = vunpack.c.l.b16 %v5044
    %v5256 = vunpack.c.h.b16 %v5044
    %v5257 = vunpack.c.l.b16 %v5045
    %v5258 = vunpack.c.h.b16 %v5045
    %v5259 = vunpack.c.l.b16 %v5046
    %v5260 = vunpack.c.h.b16 %v5046
    %v5261 = vunpack.c.l.b16 %v5047
    %v5262 = vunpack.c.h.b16 %v5047
    %v5263 = vunpack.c.l.b16 %v5048
    %v5264 = vunpack.c.h.b16 %v5048
    %v5265 = vunpack.c.l.b16 %v5049
    %v5266 = vunpack.c.h.b16 %v5049
    %v5267 = vunpack.c.l.b16 %v5050
    %v5268 = vunpack.c.h.b16 %v5050
    %v5269 = vunpack.c.l.b16 %v5051
    %v5270 = vunpack.c.h.b16 %v5051
    %v5271 = vunpack.c.l.b16 %v5052
    %v5272 = vunpack.c.h.b16 %v5052
    %v5273 = vunpack.c.l.b16 %v5053
    %v5274 = vunpack.c.h.b16 %v5053
    %v5275 = vunpack.c.l.b16 %v5054
    %v5276 = vunpack.c.h.b16 %v5054
    %v5277 = vunpack.c.l.b16 %v5055
    %v5278 = vunpack.c.h.b16 %v5055
    %v5279 = vunpack.c.l.b16 %v5056
    %v5280 = vunpack.c.h.b16 %v5056
    %v5281 = vunpack.c.l.b16 %v5057
    %v5282 = vunpack.c.h.b16 %v5057
    %v5283 = vunpack.c.l.b16 %v5058
    %v5284 = vunpack.c.h.b16 %v5058
    %v5285 = vunpack.c.l.b16 %v5059
    %v5286 = vunpack.c.h.b16 %v5059
    %v5287 = vunpack.c.l.b16 %v5060
    %v5288 = vunpack.c.h.b16 %v5060
    %v5289 = vunpack.c.l.b16 %v5061
    %v5290 = vunpack.c.h.b16 %v5061
    %v5291 = vunpack.c.l.b16 %v5062
    %v5292 = vunpack.c.h.b16 %v5062
    %v5293 = vunpack.c.l.b16 %v5063
    %v5294 = vunpack.c.h.b16 %v5063
    %v5295 = vunpack.c.l.b16 %v5064
    %v5296 = vunpack.c.h.b16 %v5064
    %v5297 = vunpack.c.l.b16 %v5065
    %v5298 = vunpack.c.h.b16 %v5065
    %v5299 = vunpack.c.l.b16 %v5066
    %v5300 = vunpack.c.h.b16 %v5066
    %v5301 = vunpack.c.l.b16 %v5067
    %v5302 = vunpack.c.h.b16 %v5067
    %v5303 = vunpack.c.l.b16 %v5068
    %v5304 = vunpack.c.h.b16 %v5068
    %v5305 = vunpack.c.l.b16 %v5069
    %v5306 = vunpack.c.h.b16 %v5069
    %v5307 = vunpack.c.l.b16 %v5070
    %v5308 = vunpack.c.h.b16 %v5070
    %v5309 = vunpack.c.l.b16 %v5071
    %v5310 = vunpack.c.h.b16 %v5071
    %v5311 = vunpack.c.l.b16 %v5072
    %v5312 = vunpack.c.h.b16 %v5072
    %v5313 = vunpack.c.l.b16 %v5073
    %v5314 = vunpack.c.h.b16 %v5073
    %v5315 = vunpack.c.l.b16 %v5074
    %v5316 = vunpack.c.h.b16 %v5074
    %v5317 = vunpack.c.l.b16 %v5075
    %v5318 = vunpack.c.h.b16 %v5075
    %v5319 = vunpack.c.l.b16 %v5076
    %v5320 = vunpack.c.h.b16 %v5076
    %v5321 = vunpack.c.l.b16 %v5077
    %v5322 = vunpack.c.h.b16 %v5077
    %v5323 = vunpack.c.l.b16 %v5078
    %v5324 = vunpack.c.h.b16 %v5078
    %v5325 = vunpack.c.l.b16 %v5079
    %v5326 = vunpack.c.h.b16 %v5079
    %v5327 = vunpack.c.l.b16 %v5080
    %v5328 = vunpack.c.h.b16 %v5080
    %v5329 = vunpack.c.l.b16 %v5081
    %v5330 = vunpack.c.h.b16 %v5081
    %v5331 = vunpack.c.l.b16 %v5082
    %v5332 = vunpack.c.h.b16 %v5082
    %v5333 = vunpack.c.l.b16 %v5083
    %v5334 = vunpack.c.h.b16 %v5083
    %v5335 = vunpack.c.l.b16 %v5084
    %v5336 = vunpack.c.h.b16 %v5084
    %v5337 = vunpack.c.l.b16 %v5085
    %v5338 = vunpack.c.h.b16 %v5085
    %v5339 = vunpack.c.l.b16 %v5086
    %v5340 = vunpack.c.h.b16 %v5086
    %v5341 = vunpack.c.l.b16 %v5087
    %v5342 = vunpack.c.h.b16 %v5087
    %v5343 = vunpack.c.l.b16 %v5088
    %v5344 = vunpack.c.h.b16 %v5088
    %v5345 = vunpack.c.l.b16 %v5089
    %v5346 = vunpack.c.h.b16 %v5089
    %v5347 = vunpack.c.l.b16 %v5090
    %v5348 = vunpack.c.h.b16 %v5090
    %v5349 = vunpack.c.l.b16 %v5091
    %v5350 = vunpack.c.h.b16 %v5091
    %v5351 = vunpack.c.l.b16 %v5092
    %v5352 = vunpack.c.h.b16 %v5092
    %v5353 = vunpack.c.l.b16 %v5093
    %v5354 = vunpack.c.h.b16 %v5093
    %v5355 = vunpack.c.l.b16 %v5094
    %v5356 = vunpack.c.h.b16 %v5094
    %v5357 = vunpack.c.l.b16 %v5095
    %v5358 = vunpack.c.h.b16 %v5095
    %v5359 = vunpack.c.l.b16 %v5096
    %v5360 = vunpack.c.h.b16 %v5096
    %v5361 = vunpack.c.l.b16 %v5097
    %v5362 = vunpack.c.h.b16 %v5097
    %v5363 = vunpack.c.l.b16 %v5098
    %v5364 = vunpack.c.h.b16 %v5098
    %v5365 = vunpack.c.l.b16 %v5099
    %v5366 = vunpack.c.h.b16 %v5099
    %v5367 = vunpack.c.l.b16 %v5100
    %v5368 = vunpack.c.h.b16 %v5100
    %v5369 = vunpack.c.l.b16 %v5101
    %v5370 = vunpack.c.h.b16 %v5101
    %v5371 = vunpack.c.l.b16 %v5102
    %v5372 = vunpack.c.h.b16 %v5102
    %v5373 = vunpack.c.l.b16 %v5103
    %v5374 = vunpack.c.h.b16 %v5103
    %v5375 = vunpack.c.l.b16 %v5104
    %v5376 = vunpack.c.h.b16 %v5104
    %v5377 = vunpack.c.l.b16 %v5105
    %v5378 = vunpack.c.h.b16 %v5105
    %v5379 = vunpack.c.l.b16 %v5106
    %v5380 = vunpack.c.h.b16 %v5106
    %v5381 = vunpack.c.l.b16 %v5107
    %v5382 = vunpack.c.h.b16 %v5107
    %v5383 = vunpack.c.l.b16 %v5108
    %v5384 = vunpack.c.h.b16 %v5108
    %v5385 = vunpack.c.l.b16 %v5109
    %v5386 = vunpack.c.h.b16 %v5109
    %v5387 = vunpack.c.l.b16 %v5110
    %v5388 = vunpack.c.h.b16 %v5110
    %v5389 = vunpack.c.l.b16 %v5111
    %v5390 = vunpack.c.h.b16 %v5111
    %v5391 = vunpack.c.l.b16 %v5112
    %v5392 = vunpack.c.h.b16 %v5112
    %v5393 = vunpack.c.l.b16 %v5113
    %v5394 = vunpack.c.h.b16 %v5113
    %v5395 = vunpack.c.l.b16 %v5114
    %v5396 = vunpack.c.h.b16 %v5114
    %v5397 = vunpack.c.l.b16 %v5115
    %v5398 = vunpack.c.h.b16 %v5115
    %v5399 = vunpack.c.l.b16 %v5116
    %v5400 = vunpack.c.h.b16 %v5116
    %v5401 = vunpack.c.l.b16 %v5117
    %v5402 = vunpack.c.h.b16 %v5117
    %v5403 = vunpack.c.l.b16 %v5118
    %v5404 = vunpack.c.h.b16 %v5118
    %v5405 = vunpack.c.l.b16 %v5119
    %v5406 = vunpack.c.h.b16 %v5119
    %v5407 = vunpack.c.l.b16 %v5120
    %v5408 = vunpack.c.h.b16 %v5120
    %v5409 = vpack.c.b16 %v5219, %v5217
    %v5410 = vpack.c.b16 %v5220, %v5218
    %v5411 = vpack.c.b16 %v5223, %v5221
    %v5412 = vpack.c.b16 %v5224, %v5222
    %v5413 = vpack.c.b16 %v5227, %v5225
    %v5414 = vpack.c.b16 %v5228, %v5226
    %v5415 = vpack.c.b16 %v5231, %v5229
    %v5416 = vpack.c.b16 %v5232, %v5230
    %v5417 = vpack.c.b16 %v5235, %v5233
    %v5418 = vpack.c.b16 %v5236, %v5234
    %v5419 = vpack.c.b16 %v5239, %v5237
    %v5420 = vpack.c.b16 %v5240, %v5238
    %v5421 = vpack.c.b16 %v5243, %v5241
    %v5422 = vpack.c.b16 %v5244, %v5242
    %v5423 = vpack.c.b16 %v5247, %v5245
    %v5424 = vpack.c.b16 %v5248, %v5246
    %v5425 = vpack.c.b16 %v5251, %v5249
    %v5426 = vpack.c.b16 %v5252, %v5250
    %v5427 = vpack.c.b16 %v5255, %v5253
    %v5428 = vpack.c.b16 %v5256, %v5254
    %v5429 = vpack.c.b16 %v5259, %v5257
    %v5430 = vpack.c.b16 %v5260, %v5258
    %v5431 = vpack.c.b16 %v5263, %v5261
    %v5432 = vpack.c.b16 %v5264, %v5262
    %v5433 = vpack.c.b16 %v5267, %v5265
    %v5434 = vpack.c.b16 %v5268, %v5266
    %v5435 = vpack.c.b16 %v5271, %v5269
    %v5436 = vpack.c.b16 %v5272, %v5270
    %v5437 = vpack.c.b16 %v5275, %v5273
    %v5438 = vpack.c.b16 %v5276, %v5274
    %v5439 = vpack.c.b16 %v5279, %v5277
    %v5440 = vpack.c.b16 %v5280, %v5278
    %v5441 = vpack.c.b16 %v5283, %v5281
    %v5442 = vpack.c.b16 %v5284, %v5282
    %v5443 = vpack.c.b16 %v5287, %v5285
    %v5444 = vpack.c.b16 %v5288, %v5286
    %v5445 = vpack.c.b16 %v5291, %v5289
    %v5446 = vpack.c.b16 %v5292, %v5290
    %v5447 = vpack.c.b16 %v5295, %v5293
    %v5448 = vpack.c.b16 %v5296, %v5294
    %v5449 = vpack.c.b16 %v5299, %v5297
    %v5450 = vpack.c.b16 %v5300, %v5298
    %v5451 = vpack.c.b16 %v5303, %v5301
    %v5452 = vpack.c.b16 %v5304, %v5302
    %v5453 = vpack.c.b16 %v5307, %v5305
    %v5454 = vpack.c.b16 %v5308, %v5306
    %v5455 = vpack.c.b16 %v5311, %v5309
    %v5456 = vpack.c.b16 %v5312, %v5310
    %v5457 = vpack.c.b16 %v5315, %v5313
    %v5458 = vpack.c.b16 %v5316, %v5314
    %v5459 = vpack.c.b16 %v5319, %v5317
    %v5460 = vpack.c.b16 %v5320, %v5318
    %v5461 = vpack.c.b16 %v5323, %v5321
    %v5462 = vpack.c.b16 %v5324, %v5322
    %v5463 = vpack.c.b16 %v5327, %v5325
    %v5464 = vpack.c.b16 %v5328, %v5326
    %v5465 = vpack.c.b16 %v5331, %v5329
    %v5466 = vpack.c.b16 %v5332, %v5330
    %v5467 = vpack.c.b16 %v5335, %v5333
    %v5468 = vpack.c.b16 %v5336, %v5334
    %v5469 = vpack.c.b16 %v5339, %v5337
    %v5470 = vpack.c.b16 %v5340, %v5338
    %v5471 = vpack.c.b16 %v5343, %v5341
    %v5472 = vpack.c.b16 %v5344, %v5342
    %v5473 = vpack.c.b16 %v5347, %v5345
    %v5474 = vpack.c.b16 %v5348, %v5346
    %v5475 = vpack.c.b16 %v5351, %v5349
    %v5476 = vpack.c.b16 %v5352, %v5350
    %v5477 = vpack.c.b16 %v5355, %v5353
    %v5478 = vpack.c.b16 %v5356, %v5354
    %v5479 = vpack.c.b16 %v5359, %v5357
    %v5480 = vpack.c.b16 %v5360, %v5358
    %v5481 = vpack.c.b16 %v5363, %v5361
    %v5482 = vpack.c.b16 %v5364, %v5362
    %v5483 = vpack.c.b16 %v5367, %v5365
    %v5484 = vpack.c.b16 %v5368, %v5366
    %v5485 = vpack.c.b16 %v5371, %v5369
    %v5486 = vpack.c.b16 %v5372, %v5370
    %v5487 = vpack.c.b16 %v5375, %v5373
    %v5488 = vpack.c.b16 %v5376, %v5374
    %v5489 = vpack.c.b16 %v5379, %v5377
    %v5490 = vpack.c.b16 %v5380, %v5378
    %v5491 = vpack.c.b16 %v5383, %v5381
    %v5492 = vpack.c.b16 %v5384, %v5382
    %v5493 = vpack.c.b16 %v5387, %v5385
    %v5494 = vpack.c.b16 %v5388, %v5386
    %v5495 = vpack.c.b16 %v5391, %v5389
    %v5496 = vpack.c.b16 %v5392, %v5390
    %v5497 = vpack.c.b16 %v5395, %v5393
    %v5498 = vpack.c.b16 %v5396, %v5394
    %v5499 = vpack.c.b16 %v5399, %v5397
    %v5500 = vpack.c.b16 %v5400, %v5398
    %v5501 = vpack.c.b16 %v5403, %v5401
    %v5502 = vpack.c.b16 %v5404, %v5402
    %v5503 = vpack.c.b16 %v5407, %v5405
    %v5504 = vpack.c.b16 %v5408, %v5406
    %5601 = vmatprep.subr.bf16.mxu0 %v5424
    %5602 = vmatpush1.bf16.msra.mxu0 %v5423
    %5603 = vmatprep.subr.bf16.mxu0 %v5422
    %5604 = vmatpush1.bf16.msra.mxu0 %v5421
    %5605 = vmatprep.subr.bf16.mxu0 %v5420
    %5606 = vmatpush1.bf16.msra.mxu0 %v5419
    %5607 = vmatprep.subr.bf16.mxu0 %v5418
    %5608 = vmatpush1.bf16.msra.mxu0 %v5417
    %5609 = vmatprep.subr.bf16.mxu0 %v5416
    %5610 = vmatpush1.bf16.msra.mxu0 %v5415
    %5611 = vmatprep.subr.bf16.mxu0 %v5414
    %5612 = vmatpush1.bf16.msra.mxu0 %v5413
    %5613 = vmatprep.subr.bf16.mxu0 %v5412
    %5614 = vmatpush1.bf16.msra.mxu0 %v5411
    %5615 = vmatprep.subr.bf16.mxu0 %v5410
    %5616 = vmatpush1.bf16.msra.mxu0 %v5409
    %5617 = vmatprep.subr.bf16.mxu0 %v5440
    %5618 = vmatpush2.bf16.msra.mxu0 %v5439
    %5619 = vmatprep.subr.bf16.mxu0 %v5438
    %5620 = vmatpush2.bf16.msra.mxu0 %v5437
    %5621 = vmatprep.subr.bf16.mxu0 %v5436
    %5622 = vmatpush2.bf16.msra.mxu0 %v5435
    %5623 = vmatprep.subr.bf16.mxu0 %v5434
    %5624 = vmatpush2.bf16.msra.mxu0 %v5433
    %5625 = vmatprep.subr.bf16.mxu0 %v5432
    %5626 = vmatpush2.bf16.msra.mxu0 %v5431
    %5627 = vmatprep.subr.bf16.mxu0 %v5430
    %5628 = vmatpush2.bf16.msra.mxu0 %v5429
    %5629 = vmatprep.subr.bf16.mxu0 %v5428
    %5630 = vmatpush2.bf16.msra.mxu0 %v5427
    %5631 = vmatprep.subr.bf16.mxu0 %v5426
    %5632 = vmatpush2.bf16.msra.mxu0 %v5425
    %5633 = vmatprep.mubr.bf16.mxu0 %v4303
    %5634 = vmatmul.mubr.bf16.gmra.mxu0 %v4302
    %v5635 = vpop.f32.mrf.mxu0
    %v5636 = vadd.f32 0.0, %v5635
    %v5637 = vpop.f32.mrf.mxu0
    %v5638 = vadd.f32 0.0, %v5637
    %v5639 = vpop.f32.mrf.mxu0
    %v5640 = vpop.f32.mrf.mxu0
    %5641 = vdwg.mxu0
    %5642 = vmatprep.subr.bf16.mxu0 %v5456
    %5643 = vmatpush1.bf16.msra.mxu0 %v5455
    %5644 = vmatprep.subr.bf16.mxu0 %v5454
    %5645 = vmatpush1.bf16.msra.mxu0 %v5453
    %5646 = vmatprep.subr.bf16.mxu0 %v5452
    %5647 = vmatpush1.bf16.msra.mxu0 %v5451
    %5648 = vmatprep.subr.bf16.mxu0 %v5450
    %5649 = vmatpush1.bf16.msra.mxu0 %v5449
    %5650 = vmatprep.subr.bf16.mxu0 %v5448
    %5651 = vmatpush1.bf16.msra.mxu0 %v5447
    %5652 = vmatprep.subr.bf16.mxu0 %v5446
    %5653 = vmatpush1.bf16.msra.mxu0 %v5445
    %5654 = vmatprep.subr.bf16.mxu0 %v5444
    %5655 = vmatpush1.bf16.msra.mxu0 %v5443
    %5656 = vmatprep.subr.bf16.mxu0 %v5442
    %5657 = vmatpush1.bf16.msra.mxu0 %v5441
    %5658 = vmatprep.subr.bf16.mxu0 %v5472
    %5659 = vmatpush2.bf16.msra.mxu0 %v5471
    %5660 = vmatprep.subr.bf16.mxu0 %v5470
    %5661 = vmatpush2.bf16.msra.mxu0 %v5469
    %5662 = vmatprep.subr.bf16.mxu0 %v5468
    %5663 = vmatpush2.bf16.msra.mxu0 %v5467
    %5664 = vmatprep.subr.bf16.mxu0 %v5466
    %5665 = vmatpush2.bf16.msra.mxu0 %v5465
    %5666 = vmatprep.subr.bf16.mxu0 %v5464
    %5667 = vmatpush2.bf16.msra.mxu0 %v5463
    %5668 = vmatprep.subr.bf16.mxu0 %v5462
    %5669 = vmatpush2.bf16.msra.mxu0 %v5461
    %5670 = vmatprep.subr.bf16.mxu0 %v5460
    %5671 = vmatpush2.bf16.msra.mxu0 %v5459
    %5672 = vmatprep.subr.bf16.mxu0 %v5458
    %5673 = vmatpush2.bf16.msra.mxu0 %v5457
    %5674 = vmatprep.mubr.bf16.mxu0 %v3779
    %5675 = vmatmul.mubr.bf16.gmra.mxu0 %v3778
    %v5676 = vpop.f32.mrf.mxu0
    %v5677 = vadd.f32 %v5636, %v5676
    %v5678 = vpop.f32.mrf.mxu0
    %v5679 = vadd.f32 %v5638, %v5678
    %v5680 = vpop.f32.mrf.mxu0
    %v5681 = vpop.f32.mrf.mxu0
    %5682 = vdwg.mxu0
    %5683 = vmatprep.subr.bf16.mxu0 %v5488
    %5684 = vmatpush1.bf16.msra.mxu0 %v5487
    %5685 = vmatprep.subr.bf16.mxu0 %v5486
    %5686 = vmatpush1.bf16.msra.mxu0 %v5485
    %5687 = vmatprep.subr.bf16.mxu0 %v5484
    %5688 = vmatpush1.bf16.msra.mxu0 %v5483
    %5689 = vmatprep.subr.bf16.mxu0 %v5482
    %5690 = vmatpush1.bf16.msra.mxu0 %v5481
    %5691 = vmatprep.subr.bf16.mxu0 %v5480
    %5692 = vmatpush1.bf16.msra.mxu0 %v5479
    %5693 = vmatprep.subr.bf16.mxu0 %v5478
    %5694 = vmatpush1.bf16.msra.mxu0 %v5477
    %5695 = vmatprep.subr.bf16.mxu0 %v5476
    %5696 = vmatpush1.bf16.msra.mxu0 %v5475
    %5697 = vmatprep.subr.bf16.mxu0 %v5474
    %5698 = vmatpush1.bf16.msra.mxu0 %v5473
    %5699 = vmatprep.subr.bf16.mxu0 %v5504
    %5700 = vmatpush2.bf16.msra.mxu0 %v5503
    %5701 = vmatprep.subr.bf16.mxu0 %v5502
    %5702 = vmatpush2.bf16.msra.mxu0 %v5501
    %5703 = vmatprep.subr.bf16.mxu0 %v5500
    %5704 = vmatpush2.bf16.msra.mxu0 %v5499
    %5705 = vmatprep.subr.bf16.mxu0 %v5498
    %5706 = vmatpush2.bf16.msra.mxu0 %v5497
    %5707 = vmatprep.subr.bf16.mxu0 %v5496
    %5708 = vmatpush2.bf16.msra.mxu0 %v5495
    %5709 = vmatprep.subr.bf16.mxu0 %v5494
    %5710 = vmatpush2.bf16.msra.mxu0 %v5493
    %5711 = vmatprep.subr.bf16.mxu0 %v5492
    %5712 = vmatpush2.bf16.msra.mxu0 %v5491
    %5713 = vmatprep.subr.bf16.mxu0 %v5490
    %5714 = vmatpush2.bf16.msra.mxu0 %v5489
    %5715 = vmatprep.mubr.bf16.mxu0 %v4283
    %5716 = vmatmul.mubr.bf16.gmra.mxu0 %v4282
    %v5717 = vpop.f32.mrf.mxu0
    %v5718 = vadd.f32 %v5677, %v5717
    %v5719 = vpop.f32.mrf.mxu0
    %v5720 = vadd.f32 %v5679, %v5719
    %v5721 = vpop.f32.mrf.mxu0
    %v5722 = vpop.f32.mrf.mxu0
    %5723 = vdwg.mxu0
    %v5724 = vmax.f32 %v5018, %v5718
    %v5725 = vmax.f32 %v5020, %v5720
    %5726 = vmatprep.subr.bf16.mxu0 %v4724
    %5727 = vmatpush1.bf16.msra.mxu0 %v4723
    %5728 = vmatprep.subr.bf16.mxu0 %v4722
    %5729 = vmatpush1.bf16.msra.mxu0 %v4721
    %5730 = vmatprep.subr.bf16.mxu0 %v4720
    %5731 = vmatpush1.bf16.msra.mxu0 %v4719
    %5732 = vmatprep.subr.bf16.mxu0 %v4718
    %5733 = vmatpush1.bf16.msra.mxu0 %v4717
    %5734 = vmatprep.subr.bf16.mxu0 %v4716
    %5735 = vmatpush1.bf16.msra.mxu0 %v4715
    %5736 = vmatprep.subr.bf16.mxu0 %v4714
    %5737 = vmatpush1.bf16.msra.mxu0 %v4713
    %5738 = vmatprep.subr.bf16.mxu0 %v4712
    %5739 = vmatpush1.bf16.msra.mxu0 %v4711
    %5740 = vmatprep.subr.bf16.mxu0 %v4710
    %5741 = vmatpush1.bf16.msra.mxu0 %v4709
    %5742 = vmatprep.subr.bf16.mxu0 %v4740
    %5743 = vmatpush2.bf16.msra.mxu0 %v4739
    %5744 = vmatprep.subr.bf16.mxu0 %v4738
    %5745 = vmatpush2.bf16.msra.mxu0 %v4737
    %5746 = vmatprep.subr.bf16.mxu0 %v4736
    %5747 = vmatpush2.bf16.msra.mxu0 %v4735
    %5748 = vmatprep.subr.bf16.mxu0 %v4734
    %5749 = vmatpush2.bf16.msra.mxu0 %v4733
    %5750 = vmatprep.subr.bf16.mxu0 %v4732
    %5751 = vmatpush2.bf16.msra.mxu0 %v4731
    %5752 = vmatprep.subr.bf16.mxu0 %v4730
    %5753 = vmatpush2.bf16.msra.mxu0 %v4729
    %5754 = vmatprep.subr.bf16.mxu0 %v4728
    %5755 = vmatpush2.bf16.msra.mxu0 %v4727
    %5756 = vmatprep.subr.bf16.mxu0 %v4726
    %5757 = vmatpush2.bf16.msra.mxu0 %v4725
    %5758 = vmatprep.mubr.bf16.mxu0 %v3779
    %5759 = vmatmul.mubr.bf16.gmra.mxu0 %v3778
    %v5760 = vpop.f32.mrf.mxu0
    %v5761 = vadd.f32 0.0, %v5760
    %v5762 = vpop.f32.mrf.mxu0
    %v5763 = vadd.f32 0.0, %v5762
    %v5764 = vpop.f32.mrf.mxu0
    %v5765 = vpop.f32.mrf.mxu0
    %5766 = vdwg.mxu0
    %5767 = vmatprep.subr.bf16.mxu0 %v4756
    %5768 = vmatpush1.bf16.msra.mxu0 %v4755
    %5769 = vmatprep.subr.bf16.mxu0 %v4754
    %5770 = vmatpush1.bf16.msra.mxu0 %v4753
    %5771 = vmatprep.subr.bf16.mxu0 %v4752
    %5772 = vmatpush1.bf16.msra.mxu0 %v4751
    %5773 = vmatprep.subr.bf16.mxu0 %v4750
    %5774 = vmatpush1.bf16.msra.mxu0 %v4749
    %5775 = vmatprep.subr.bf16.mxu0 %v4748
    %5776 = vmatpush1.bf16.msra.mxu0 %v4747
    %5777 = vmatprep.subr.bf16.mxu0 %v4746
    %5778 = vmatpush1.bf16.msra.mxu0 %v4745
    %5779 = vmatprep.subr.bf16.mxu0 %v4744
    %5780 = vmatpush1.bf16.msra.mxu0 %v4743
    %5781 = vmatprep.subr.bf16.mxu0 %v4742
    %5782 = vmatpush1.bf16.msra.mxu0 %v4741
    %5783 = vmatprep.subr.bf16.mxu0 %v4772
    %5784 = vmatpush2.bf16.msra.mxu0 %v4771
    %5785 = vmatprep.subr.bf16.mxu0 %v4770
    %5786 = vmatpush2.bf16.msra.mxu0 %v4769
    %5787 = vmatprep.subr.bf16.mxu0 %v4768
    %5788 = vmatpush2.bf16.msra.mxu0 %v4767
    %5789 = vmatprep.subr.bf16.mxu0 %v4766
    %5790 = vmatpush2.bf16.msra.mxu0 %v4765
    %5791 = vmatprep.subr.bf16.mxu0 %v4764
    %5792 = vmatpush2.bf16.msra.mxu0 %v4763
    %5793 = vmatprep.subr.bf16.mxu0 %v4762
    %5794 = vmatpush2.bf16.msra.mxu0 %v4761
    %5795 = vmatprep.subr.bf16.mxu0 %v4760
    %5796 = vmatpush2.bf16.msra.mxu0 %v4759
    %5797 = vmatprep.subr.bf16.mxu0 %v4758
    %5798 = vmatpush2.bf16.msra.mxu0 %v4757
    %5799 = vmatprep.mubr.bf16.mxu0 %v4283
    %5800 = vmatmul.mubr.bf16.gmra.mxu0 %v4282
    %v5801 = vpop.f32.mrf.mxu0
    %v5802 = vadd.f32 %v5761, %v5801
    %v5803 = vpop.f32.mrf.mxu0
    %v5804 = vadd.f32 %v5763, %v5803
    %v5805 = vpop.f32.mrf.mxu0
    %v5806 = vpop.f32.mrf.mxu0
    %5807 = vdwg.mxu0
    %5808 = vmatprep.subr.bf16.mxu0 %v4788
    %5809 = vmatpush1.bf16.msra.mxu0 %v4787
    %5810 = vmatprep.subr.bf16.mxu0 %v4786
    %5811 = vmatpush1.bf16.msra.mxu0 %v4785
    %5812 = vmatprep.subr.bf16.mxu0 %v4784
    %5813 = vmatpush1.bf16.msra.mxu0 %v4783
    %5814 = vmatprep.subr.bf16.mxu0 %v4782
    %5815 = vmatpush1.bf16.msra.mxu0 %v4781
    %5816 = vmatprep.subr.bf16.mxu0 %v4780
    %5817 = vmatpush1.bf16.msra.mxu0 %v4779
    %5818 = vmatprep.subr.bf16.mxu0 %v4778
    %5819 = vmatpush1.bf16.msra.mxu0 %v4777
    %5820 = vmatprep.subr.bf16.mxu0 %v4776
    %5821 = vmatpush1.bf16.msra.mxu0 %v4775
    %5822 = vmatprep.subr.bf16.mxu0 %v4774
    %5823 = vmatpush1.bf16.msra.mxu0 %v4773
    %5824 = vmatprep.subr.bf16.mxu0 %v4804
    %5825 = vmatpush2.bf16.msra.mxu0 %v4803
    %5826 = vmatprep.subr.bf16.mxu0 %v4802
    %5827 = vmatpush2.bf16.msra.mxu0 %v4801
    %5828 = vmatprep.subr.bf16.mxu0 %v4800
    %5829 = vmatpush2.bf16.msra.mxu0 %v4799
    %5830 = vmatprep.subr.bf16.mxu0 %v4798
    %5831 = vmatpush2.bf16.msra.mxu0 %v4797
    %5832 = vmatprep.subr.bf16.mxu0 %v4796
    %5833 = vmatpush2.bf16.msra.mxu0 %v4795
    %5834 = vmatprep.subr.bf16.mxu0 %v4794
    %5835 = vmatpush2.bf16.msra.mxu0 %v4793
    %5836 = vmatprep.subr.bf16.mxu0 %v4792
    %5837 = vmatpush2.bf16.msra.mxu0 %v4791
    %5838 = vmatprep.subr.bf16.mxu0 %v4790
    %5839 = vmatpush2.bf16.msra.mxu0 %v4789
    %5840 = vmatprep.mubr.bf16.mxu0 %v4323
    %5841 = vmatmul.mubr.bf16.gmra.mxu0 %v4322
    %v5842 = vpop.f32.mrf.mxu0
    %v5843 = vadd.f32 %v5802, %v5842
    %v5844 = vpop.f32.mrf.mxu0
    %v5845 = vadd.f32 %v5804, %v5844
    %v5846 = vpop.f32.mrf.mxu0
    %v5847 = vpop.f32.mrf.mxu0
    %5848 = vdwg.mxu0
    %v5849 = vmax.f32 %v5724, %v5843
    %v5850 = vmax.f32 %v5725, %v5845
    %5851 = vmatprep.subr.bf16.mxu0 %v5424
    %5852 = vmatpush1.bf16.msra.mxu0 %v5423
    %5853 = vmatprep.subr.bf16.mxu0 %v5422
    %5854 = vmatpush1.bf16.msra.mxu0 %v5421
    %5855 = vmatprep.subr.bf16.mxu0 %v5420
    %5856 = vmatpush1.bf16.msra.mxu0 %v5419
    %5857 = vmatprep.subr.bf16.mxu0 %v5418
    %5858 = vmatpush1.bf16.msra.mxu0 %v5417
    %5859 = vmatprep.subr.bf16.mxu0 %v5416
    %5860 = vmatpush1.bf16.msra.mxu0 %v5415
    %5861 = vmatprep.subr.bf16.mxu0 %v5414
    %5862 = vmatpush1.bf16.msra.mxu0 %v5413
    %5863 = vmatprep.subr.bf16.mxu0 %v5412
    %5864 = vmatpush1.bf16.msra.mxu0 %v5411
    %5865 = vmatprep.subr.bf16.mxu0 %v5410
    %5866 = vmatpush1.bf16.msra.mxu0 %v5409
    %5867 = vmatprep.subr.bf16.mxu0 %v5440
    %5868 = vmatpush2.bf16.msra.mxu0 %v5439
    %5869 = vmatprep.subr.bf16.mxu0 %v5438
    %5870 = vmatpush2.bf16.msra.mxu0 %v5437
    %5871 = vmatprep.subr.bf16.mxu0 %v5436
    %5872 = vmatpush2.bf16.msra.mxu0 %v5435
    %5873 = vmatprep.subr.bf16.mxu0 %v5434
    %5874 = vmatpush2.bf16.msra.mxu0 %v5433
    %5875 = vmatprep.subr.bf16.mxu0 %v5432
    %5876 = vmatpush2.bf16.msra.mxu0 %v5431
    %5877 = vmatprep.subr.bf16.mxu0 %v5430
    %5878 = vmatpush2.bf16.msra.mxu0 %v5429
    %5879 = vmatprep.subr.bf16.mxu0 %v5428
    %5880 = vmatpush2.bf16.msra.mxu0 %v5427
    %5881 = vmatprep.subr.bf16.mxu0 %v5426
    %5882 = vmatpush2.bf16.msra.mxu0 %v5425
    %5883 = vmatprep.mubr.bf16.mxu0 %v3779
    %5884 = vmatmul.mubr.bf16.gmra.mxu0 %v3778
    %v5885 = vpop.f32.mrf.mxu0
    %v5886 = vadd.f32 0.0, %v5885
    %v5887 = vpop.f32.mrf.mxu0
    %v5888 = vadd.f32 0.0, %v5887
    %v5889 = vpop.f32.mrf.mxu0
    %v5890 = vpop.f32.mrf.mxu0
    %5891 = vdwg.mxu0
    %5892 = vmatprep.subr.bf16.mxu0 %v5456
    %5893 = vmatpush1.bf16.msra.mxu0 %v5455
    %5894 = vmatprep.subr.bf16.mxu0 %v5454
    %5895 = vmatpush1.bf16.msra.mxu0 %v5453
    %5896 = vmatprep.subr.bf16.mxu0 %v5452
    %5897 = vmatpush1.bf16.msra.mxu0 %v5451
    %5898 = vmatprep.subr.bf16.mxu0 %v5450
    %5899 = vmatpush1.bf16.msra.mxu0 %v5449
    %5900 = vmatprep.subr.bf16.mxu0 %v5448
    %5901 = vmatpush1.bf16.msra.mxu0 %v5447
    %5902 = vmatprep.subr.bf16.mxu0 %v5446
    %5903 = vmatpush1.bf16.msra.mxu0 %v5445
    %5904 = vmatprep.subr.bf16.mxu0 %v5444
    %5905 = vmatpush1.bf16.msra.mxu0 %v5443
    %5906 = vmatprep.subr.bf16.mxu0 %v5442
    %5907 = vmatpush1.bf16.msra.mxu0 %v5441
    %5908 = vmatprep.subr.bf16.mxu0 %v5472
    %5909 = vmatpush2.bf16.msra.mxu0 %v5471
    %5910 = vmatprep.subr.bf16.mxu0 %v5470
    %5911 = vmatpush2.bf16.msra.mxu0 %v5469
    %5912 = vmatprep.subr.bf16.mxu0 %v5468
    %5913 = vmatpush2.bf16.msra.mxu0 %v5467
    %5914 = vmatprep.subr.bf16.mxu0 %v5466
    %5915 = vmatpush2.bf16.msra.mxu0 %v5465
    %5916 = vmatprep.subr.bf16.mxu0 %v5464
    %5917 = vmatpush2.bf16.msra.mxu0 %v5463
    %5918 = vmatprep.subr.bf16.mxu0 %v5462
    %5919 = vmatpush2.bf16.msra.mxu0 %v5461
    %5920 = vmatprep.subr.bf16.mxu0 %v5460
    %5921 = vmatpush2.bf16.msra.mxu0 %v5459
    %5922 = vmatprep.subr.bf16.mxu0 %v5458
    %5923 = vmatpush2.bf16.msra.mxu0 %v5457
    %5924 = vmatprep.mubr.bf16.mxu0 %v4283
    %5925 = vmatmul.mubr.bf16.gmra.mxu0 %v4282
    %v5926 = vpop.f32.mrf.mxu0
    %v5927 = vadd.f32 %v5886, %v5926
    %v5928 = vpop.f32.mrf.mxu0
    %v5929 = vadd.f32 %v5888, %v5928
    %v5930 = vpop.f32.mrf.mxu0
    %v5931 = vpop.f32.mrf.mxu0
    %5932 = vdwg.mxu0
    %5933 = vmatprep.subr.bf16.mxu0 %v5488
    %5934 = vmatpush1.bf16.msra.mxu0 %v5487
    %5935 = vmatprep.subr.bf16.mxu0 %v5486
    %5936 = vmatpush1.bf16.msra.mxu0 %v5485
    %5937 = vmatprep.subr.bf16.mxu0 %v5484
    %5938 = vmatpush1.bf16.msra.mxu0 %v5483
    %5939 = vmatprep.subr.bf16.mxu0 %v5482
    %5940 = vmatpush1.bf16.msra.mxu0 %v5481
    %5941 = vmatprep.subr.bf16.mxu0 %v5480
    %5942 = vmatpush1.bf16.msra.mxu0 %v5479
    %5943 = vmatprep.subr.bf16.mxu0 %v5478
    %5944 = vmatpush1.bf16.msra.mxu0 %v5477
    %5945 = vmatprep.subr.bf16.mxu0 %v5476
    %5946 = vmatpush1.bf16.msra.mxu0 %v5475
    %5947 = vmatprep.subr.bf16.mxu0 %v5474
    %5948 = vmatpush1.bf16.msra.mxu0 %v5473
    %5949 = vmatprep.subr.bf16.mxu0 %v5504
    %5950 = vmatpush2.bf16.msra.mxu0 %v5503
    %5951 = vmatprep.subr.bf16.mxu0 %v5502
    %5952 = vmatpush2.bf16.msra.mxu0 %v5501
    %5953 = vmatprep.subr.bf16.mxu0 %v5500
    %5954 = vmatpush2.bf16.msra.mxu0 %v5499
    %5955 = vmatprep.subr.bf16.mxu0 %v5498
    %5956 = vmatpush2.bf16.msra.mxu0 %v5497
    %5957 = vmatprep.subr.bf16.mxu0 %v5496
    %5958 = vmatpush2.bf16.msra.mxu0 %v5495
    %5959 = vmatprep.subr.bf16.mxu0 %v5494
    %5960 = vmatpush2.bf16.msra.mxu0 %v5493
    %5961 = vmatprep.subr.bf16.mxu0 %v5492
    %5962 = vmatpush2.bf16.msra.mxu0 %v5491
    %5963 = vmatprep.subr.bf16.mxu0 %v5490
    %5964 = vmatpush2.bf16.msra.mxu0 %v5489
    %5965 = vmatprep.mubr.bf16.mxu0 %v4323
    %5966 = vmatmul.mubr.bf16.gmra.mxu0 %v4322
    %v5967 = vpop.f32.mrf.mxu0
    %v5968 = vadd.f32 %v5927, %v5967
    %v5969 = vpop.f32.mrf.mxu0
    %v5970 = vadd.f32 %v5929, %v5969
    %v5971 = vpop.f32.mrf.mxu0
    %v5972 = vpop.f32.mrf.mxu0
    %5973 = vdwg.mxu0
    %v5974 = vmax.f32 %v5849, %v5968
    %v5975 = vmax.f32 %v5850, %v5970
    %v5977 = vlaneseq
    %v5978 = vshrl.u32 %v5977, 7
    %v5979 = vsub.s32 0, %v5978
    %v5980 = vrot.slane %v4324, %v5979
    %v5981 = vlaneseq
    %v5982 = vshrl.u32 %v5981, 7
    %v5983 = vsub.s32 1, %v5982
    %v5984 = vrot.slane %v4324, %v5983
    %v5987 = vadd.f32 %v5974, %v5980
    %v5988 = vadd.f32 %v5975, %v5984
    %v5989 = vmax.f32 %v5987, 0.0
    %v5990 = vmax.f32 %v5988, 0.0
    %v5991 = vpack.c.bf16 %v5989, %v5989
    %v5992 = vpack.c.bf16 %v5990, %v5990
    %v5995 = vunpack.c.l.b16 %v5991
    %v5996 = vunpack.c.l.b16 %v5992
    %v5997 = vpack.c.b16 %v5996, %v5995
    %5999 = vst [vmem:[%s7] sm:$0xff] %v5997
    // Predicated region
    $region46: #{forward.2} parent=1 // pred_check
      _
    $region47: #{forward.2} parent=1 // pred_check_branch
      %6001 = sbr.rel (0) target = $region49
    $region48: #{forward.2} parent=1 // pred_region
      _
    $region49: #{forward.2} parent=1 // pred_fallthru
      _
    // Predicated region
    $region50: #{forward.2} parent=1 // pred_check
      _
    $region51: #{forward.2} parent=1 // pred_check_branch
      %6003 = sbr.rel (0) target = $region53
    $region52: #{forward.2} parent=1 // pred_region
      _
    $region53: #{forward.2} parent=1 // pred_fallthru
      _
    %6004 = vsyncpa [#allocation3], 1
    %6005 = vsyncpa [#allocation5], 1
    %6006 = vsyncpa [#allocation8], 1

</llo_original>
